<compile_context>
chip_gen: v7x
topology: tpu7x:2x2x1
jax: 0.10.0
libtpu: 0.0.40
codegen_flags: <defaults>
</compile_context>

<pallas_src>
import numpy as np
import jax
import jax.numpy as jnp
from jax.experimental import pallas as pl
from jax.experimental.pallas import tpu as pltpu

LANE = 128


def _round_up(x, m):
    return (x + m - 1) // m * m


def _tpu_info():
    """Best-effort (vmem_bytes, device_kind) query with safe fallbacks."""
    kind = ""
    try:
        kind = jax.devices()[0].device_kind.lower()
    except Exception:
        pass
    vmem = None
    try:
        info = pltpu.get_tpu_info()
        for name in ("vmem_capacity_bytes", "vmem_bytes", "vmem_size_bytes"):
            v = getattr(info, name, None)
            if isinstance(v, int) and v > 0:
                vmem = v
                break
    except Exception:
        pass
    if vmem is None:
        vmem = (64 << 20) if "v7" in kind else (128 << 20)
    return vmem, kind


def _make_kernel(H, W, groups, eps, cin, cout, has_shortcut, fuse_taps):
    Wp = W + 2                       # padded row width
    N_out = H * Wp                   # output slab rows (cols 1..W valid)
    BASE = ((-Wp) % 8) or 8          # leading zero rows; BASE + Wp is 8-aligned
    TOP = BASE + Wp                  # first interior row (multiple of 8)
    n_pad = _round_up(BASE + (H + 2) * Wp + 1, 8)
    BOT = TOP + N_out                # first bottom-halo row
    cnt1 = float(H * W * (cin // groups))
    cnt2 = float(H * W * (cout // groups))

    def silu(v):
        # exp + approximate reciprocal both use the EUP slot (VALU stays free)
        return v * pl.reciprocal(1.0 + jnp.exp(-v), approx=True)

    def gn_scale_bias(v, gather_ref, scatter_ref, gamma_ref, beta_ref, count):
        # v: (N_out, Cp) fp32, zero in invalid columns -> unbiased sums.
        s = jnp.sum(v, axis=0, keepdims=True)                    # (1, Cp)
        sq = jnp.sum(v * v, axis=0, keepdims=True)               # (1, Cp)
        gs = jnp.dot(s, gather_ref[...], preferred_element_type=jnp.float32)   # (1, Gp)
        gsq = jnp.dot(sq, gather_ref[...], preferred_element_type=jnp.float32)
        mean_g = gs * (1.0 / count)
        var_g = jnp.maximum(gsq * (1.0 / count) - mean_g * mean_g, 0.0)
        inv_g = jax.lax.rsqrt(var_g + eps)
        inv_c = jnp.dot(inv_g, scatter_ref[...], preferred_element_type=jnp.float32)
        mean_c = jnp.dot(mean_g, scatter_ref[...], preferred_element_type=jnp.float32)
        # fold affine into one scale/bias (2 full-slab ops instead of 4)
        scale = inv_c * gamma_ref[...]
        bias = beta_ref[...] - mean_c * scale
        return scale, bias

    def conv3x3(src_ref, w_ref, stage_ref):
        # src_ref: (n_pad, Ci_p) bf16 halo slab, zero outside the image.
        ci = src_ref.shape[-1]
        acc = None
        for kh in range(3):
            start = BASE - 1 + kh * Wp
            if fuse_taps:
                # v5e/v6e: fuse the 3 column taps (K = 3*Ci_p) via one reused
                # bf16 staging buffer (bounds live ranges, lane-dense feed).
                for kw in range(3):
                    stage_ref[:, pl.ds(kw * ci, ci)] = src_ref[pl.ds(start + kw, N_out), :]
                lhs = stage_ref[:, pl.ds(0, 3 * ci)]
                d = jnp.dot(lhs, w_ref[kh], preferred_element_type=jnp.float32)
                acc = d if acc is None else acc + d
            else:
                # v7x: 9 unfused K=Ci_p matmuls reading the shifted windows
                # directly (no staging copies; MRB accumulates results).
                for kw in range(3):
                    d = jnp.dot(src_ref[pl.ds(start + kw, N_out), :],
                                w_ref[kh * 3 + kw],
                                preferred_element_type=jnp.float32)
                    acc = d if acc is None else acc + d
        return acc

    def kernel(x_ref, tproj_ref, outm_ref,
               ga1_ref, sc1_ref, g1_ref, bt1_ref, w1_ref,
               ga2_ref, sc2_ref, g2_ref, bt2_ref, w2_ref, cb2_ref,
               *rest):
        pos = 0
        if has_shortcut:
            ws_ref, bs_ref = rest[0], rest[1]
            pos = 2
        o_ref = rest[pos]
        abuf = rest[pos + 1]
        hbuf = rest[pos + 2]
        stage = rest[pos + 3] if fuse_taps else None

        ci_p = abuf.shape[-1]
        co_p = hbuf.shape[-1]
        outm = outm_ref[...]                                     # (N_out, 1) fp32

        # zero only the halo strips (tiny, bf16); interior is overwritten below
        abuf[pl.ds(0, TOP), :] = jnp.zeros((TOP, ci_p), jnp.bfloat16)
        abuf[pl.ds(BOT, n_pad - BOT), :] = jnp.zeros((n_pad - BOT, ci_p), jnp.bfloat16)
        hbuf[pl.ds(0, TOP), :] = jnp.zeros((TOP, co_p), jnp.bfloat16)
        hbuf[pl.ds(BOT, n_pad - BOT), :] = jnp.zeros((n_pad - BOT, co_p), jnp.bfloat16)

        # ---- GroupNorm1 -> SiLU -> Conv1 -----------------------------------
        xi = x_ref[pl.ds(TOP, N_out), :].astype(jnp.float32)     # interior rows only
        s1, b1 = gn_scale_bias(xi, ga1_ref, sc1_ref, g1_ref, bt1_ref, cnt1)
        a1 = silu(xi * s1 + b1) * outm                           # zero junk halo cols
        abuf[pl.ds(TOP, N_out), :] = a1.astype(jnp.bfloat16)
        h = conv3x3(abuf, w1_ref, stage)                         # (N_out, Cout_p) fp32

        # time-embedding projection (+ conv1 bias) precomputed in XLA;
        # mask junk halo columns once so GN2 stats need no extra mask multiply.
        h = (h + tproj_ref[...]) * outm

        # ---- GroupNorm2 -> SiLU -> Conv2 -----------------------------------
        s2, b2 = gn_scale_bias(h, ga2_ref, sc2_ref, g2_ref, bt2_ref, cnt2)
        a2 = silu(h * s2 + b2) * outm
        hbuf[pl.ds(TOP, N_out), :] = a2.astype(jnp.bfloat16)
        h = conv3x3(hbuf, w2_ref, stage) + cb2_ref[...]

        # ---- shortcut + residual add (fp32 accumulate) ----------------------
        if has_shortcut:
            xs = x_ref[pl.ds(TOP, N_out), :]                     # bf16, straight to MXU
            sc = jnp.dot(xs, ws_ref[...], preferred_element_type=jnp.float32) + bs_ref[...]
        else:
            sc = x_ref[pl.ds(TOP, N_out), :].astype(jnp.float32)
        o_ref[...] = (sc + h).astype(o_ref.dtype)

    return kernel, Wp, BASE, TOP, N_out, n_pad


def resnet_block_2d(x_nchw, temb, params, *, groups=4, eps=1e-6):
    B, Cin, H, W = x_nchw.shape
    Cout = params["conv1_w"].shape[2]
    has_shortcut = params.get("shortcut_w") is not None
    Cin_p = _round_up(Cin, LANE)
    Cout_p = _round_up(Cout, LANE)
    Gp = _round_up(groups, LANE)

    vmem_bytes, kind = _tpu_info()
    # v7x (64 MiB VMEM, MRB accumulation): unfused taps. v5e/v6e: fused taps.
    fuse_taps = not ("v7" in kind or vmem_bytes <= (64 << 20))
    vmem_limit = int(max(32 << 20, min(vmem_bytes - (8 << 20), 104 << 20)))

    kernel, Wp, BASE, TOP, N_out, n_pad = _make_kernel(
        H, W, groups, eps, Cin, Cout, has_shortcut, fuse_taps)

    # ---------------- host-side (XLA) preparation ---------------------------
    # halo-padded, channel-padded, flattened input slab (bf16 DMA)
    x_nhwc = jnp.transpose(x_nchw, (0, 2, 3, 1)).astype(jnp.float32)
    xp = jnp.pad(x_nhwc, ((0, 0), (1, 1), (1, 1), (0, Cin_p - Cin)))
    xp = xp.reshape(B, (H + 2) * Wp, Cin_p)
    xp = jnp.pad(xp, ((0, 0), (BASE, n_pad - BASE - (H + 2) * Wp), (0, 0)))
    xp = xp.astype(jnp.bfloat16)

    # time-embedding branch hoisted out of the kernel; conv1 bias folded in
    tproj = (jax.nn.silu(temb.astype(jnp.float32)) @ params["time_w"]
             + params["time_b"] + params["conv1_b"])
    tproj = jnp.pad(tproj, ((0, 0), (0, Cout_p - Cout))).reshape(B, 1, Cout_p)
    tproj = tproj.astype(jnp.float32)

    # (N_out, 1) validity mask for the junk halo columns of the output slab
    cq = np.arange(N_out) % Wp
    outmask = jnp.asarray(((cq >= 1) & (cq <= W)).astype(np.float32)[:, None])

    def pad_row(v, cdim):
        return jnp.pad(v.astype(jnp.float32), ((0, 0), (0, cdim - v.shape[1])))

    def conv_w(w9, cip, cop):
        w = jnp.pad(w9.astype(jnp.float32),
                    ((0, 0), (0, cip - w9.shape[1]), (0, cop - w9.shape[2])))
        if fuse_taps:
            # (9, cip, cop) -> (3, 3*cip, cop): row taps fused along K
            w = w.reshape(3, 3, cip, cop).reshape(3, 3 * cip, cop)
        return w.astype(jnp.bfloat16)

    def group_mats(C, Cp):
        gidx = np.arange(C) // (C // groups)
        gather = np.zeros((Cp, Gp), np.float32)
        gather[np.arange(C), gidx] = 1.0
        return jnp.asarray(gather), jnp.asarray(np.ascontiguousarray(gather.T))

    ga1, sc1 = group_mats(Cin, Cin_p)
    ga2, sc2 = group_mats(Cout, Cout_p)
    g1 = pad_row(params["gn1_g"], Cin_p)
    bt1 = pad_row(params["gn1_b"], Cin_p)
    g2 = pad_row(params["gn2_g"], Cout_p)
    bt2 = pad_row(params["gn2_b"], Cout_p)
    w1 = conv_w(params["conv1_w"], Cin_p, Cout_p)
    w2 = conv_w(params["conv2_w"], Cout_p, Cout_p)
    cb2 = pad_row(params["conv2_b"], Cout_p)

    def cspec(shape):
        # constant-index parameter block: request single buffering (saves VMEM)
        nd = len(shape)
        idx = lambda b, _n=nd: (0,) * _n
        try:
            return pl.BlockSpec(shape, idx, pipeline_mode=pl.Buffered(1))
        except TypeError:
            return pl.BlockSpec(shape, idx)

    w1_shape = (3, 3 * Cin_p, Cout_p) if fuse_taps else (9, Cin_p, Cout_p)
    w2_shape = (3, 3 * Cout_p, Cout_p) if fuse_taps else (9, Cout_p, Cout_p)

    in_specs = [
        pl.BlockSpec((None, n_pad, Cin_p), lambda b: (b, 0, 0)),   # x slab (bf16)
        pl.BlockSpec((None, 1, Cout_p), lambda b: (b, 0, 0)),      # temb proj (+cb1)
        cspec((N_out, 1)),                                         # halo-column mask
        cspec((Cin_p, Gp)), cspec((Gp, Cin_p)),                    # GN1 gather/scatter
        cspec((1, Cin_p)), cspec((1, Cin_p)),                      # GN1 gamma/beta
        cspec(w1_shape),                                           # conv1 weights
        cspec((Cout_p, Gp)), cspec((Gp, Cout_p)),                  # GN2 gather/scatter
        cspec((1, Cout_p)), cspec((1, Cout_p)),                    # GN2 gamma/beta
        cspec(w2_shape), cspec((1, Cout_p)),                       # conv2 w/b
    ]
    args = [xp, tproj, outmask, ga1, sc1, g1, bt1, w1, ga2, sc2, g2, bt2, w2, cb2]
    if has_shortcut:
        ws = jnp.pad(params["shortcut_w"].astype(jnp.float32),
                     ((0, Cin_p - Cin), (0, Cout_p - Cout))).astype(jnp.bfloat16)
        bs = pad_row(params["shortcut_b"], Cout_p)
        in_specs += [cspec((Cin_p, Cout_p)), cspec((1, Cout_p))]
        args += [ws, bs]

    scratch = [pltpu.VMEM((n_pad, Cin_p), jnp.bfloat16),           # GN1 activations
               pltpu.VMEM((n_pad, Cout_p), jnp.bfloat16)]          # GN2 activations
    if fuse_taps:
        scratch.append(pltpu.VMEM((N_out, 3 * max(Cin_p, Cout_p)), jnp.bfloat16))

    out = pl.pallas_call(
        kernel,
        out_shape=jax.ShapeDtypeStruct((B, N_out, Cout_p), jnp.float32),
        grid=(B,),
        in_specs=in_specs,
        out_specs=pl.BlockSpec((None, N_out, Cout_p), lambda b: (b, 0, 0)),
        scratch_shapes=scratch,
        compiler_params=pltpu.CompilerParams(
            dimension_semantics=("parallel",),
            vmem_limit_bytes=vmem_limit),
    )(*args)

    out = out.reshape(B, H, Wp, Cout_p)[:, :, 1:W + 1, :Cout]
    return out.transpose(0, 3, 1, 2)                               # back to NCHW


def reference(x_nchw, temb, params, *, groups=4, eps=1e-6):
    """Pure-JAX reference matching the PyTorch forward semantics."""
    def gn(x, gamma, beta):
        B, C, H, W = x.shape
        xg = x.reshape(B, groups, C // groups, H, W)
        mean = xg.mean(axis=(2, 3, 4), keepdims=True)
        var = xg.var(axis=(2, 3, 4), keepdims=True)
        xn = ((xg - mean) / jnp.sqrt(var + eps)).reshape(B, C, H, W)
        return xn * gamma.reshape(1, C, 1, 1) + beta.reshape(1, C, 1, 1)

    def conv3x3(x, w9, b):
        Ci, Co = w9.shape[1], w9.shape[2]
        w = w9.reshape(3, 3, Ci, Co).transpose(3, 2, 0, 1)          # OIHW
        y = jax.lax.conv_general_dilated(
            x, w, (1, 1), ((1, 1), (1, 1)),
            dimension_numbers=("NCHW", "OIHW", "NCHW"))
        return y + b.reshape(1, Co, 1, 1)

    silu = jax.nn.silu
    h = silu(gn(x_nchw, params["gn1_g"][0], params["gn1_b"][0]))
    h = conv3x3(h, params["conv1_w"], params["conv1_b"])
    t = silu(temb) @ params["time_w"] + params["time_b"]
    h = h + t[:, :, None, None]
    h = silu(gn(h, params["gn2_g"][0], params["gn2_b"][0]))
    h = conv3x3(h, params["conv2_w"], params["conv2_b"])
    if params.get("shortcut_w") is not None:
        Co = params["shortcut_w"].shape[1]
        x_sc = jnp.einsum("bchw,cd->bdhw", x_nchw, params["shortcut_w"]) \
            + params["shortcut_b"].reshape(1, Co, 1, 1)
    else:
        x_sc = x_nchw
    return x_sc + h


def make_params(key, Cin, Cout, Tc, with_shortcut):
    ks = jax.random.split(key, 12)
    return {
        "gn1_g":   1.0 + 0.1 * jax.random.normal(ks[0], (1, Cin), jnp.float32),
        "gn1_b":   0.1 * jax.random.normal(ks[1], (1, Cin), jnp.float32),
        "conv1_w": 0.1 * jax.random.normal(ks[2], (9, Cin, Cout), jnp.float32),
        "conv1_b": 0.1 * jax.random.normal(ks[3], (1, Cout), jnp.float32),
        "time_w":  0.1 * jax.random.normal(ks[4], (Tc, Cout), jnp.float32),
        "time_b":  0.1 * jax.random.normal(ks[5], (1, Cout), jnp.float32),
        "gn2_g":   1.0 + 0.1 * jax.random.normal(ks[6], (1, Cout), jnp.float32),
        "gn2_b":   0.1 * jax.random.normal(ks[7], (1, Cout), jnp.float32),
        "conv2_w": 0.1 * jax.random.normal(ks[8], (9, Cout, Cout), jnp.float32),
        "conv2_b": 0.1 * jax.random.normal(ks[9], (1, Cout), jnp.float32),
        "shortcut_w": (0.1 * jax.random.normal(ks[10], (Cin, Cout), jnp.float32)
                       if with_shortcut else None),
        "shortcut_b": (0.1 * jax.random.normal(ks[11], (1, Cout), jnp.float32)
                       if with_shortcut else None),
    }


if __name__ == "__main__":
    key = jax.random.PRNGKey(0)
    k0, k1, k2, k3 = jax.random.split(key, 4)

    # tolerance accounts for bf16 MXU operands accumulated over 9 taps x 2 convs
    RTOL, ATOL = 5e-2, 8e-2

    # ---- config 1: Cin != Cout -> 1x1 conv shortcut (use_in_shortcut=True) ----
    B, Cin, Cout, H, W, Tc, groups = 2, 8, 16, 16, 16, 32, 4
    x = jax.random.normal(k0, (B, Cin, H, W), jnp.float32)
    temb = jax.random.normal(k1, (B, Tc), jnp.float32)
    params = make_params(k2, Cin, Cout, Tc, with_shortcut=True)

    out = jax.block_until_ready(resnet_block_2d(x, temb, params, groups=groups))
    assert out.shape == (B, Cout, H, W)
    ref = reference(x, temb, params, groups=groups)
    np.testing.assert_allclose(np.asarray(out), np.asarray(ref), rtol=RTOL, atol=ATOL)

    # ---- config 2: Cin == Cout -> identity shortcut (use_in_shortcut=False) ---
    Cin2 = Cout2 = 16
    x2 = jax.random.normal(k3, (B, Cin2, H, W), jnp.float32)
    params2 = make_params(k2, Cin2, Cout2, Tc, with_shortcut=False)
    out2 = jax.block_until_ready(resnet_block_2d(x2, temb, params2, groups=groups))
    ref2 = reference(x2, temb, params2, groups=groups)
    np.testing.assert_allclose(np.asarray(out2), np.asarray(ref2), rtol=RTOL, atol=ATOL)

    print("KERNEL_OK")
</pallas_src>

<mosaic_0001>
module attributes {stable_mosaic.version = 11 : i64} {
  func.func @kernel(%arg0: i32, %arg1: memref<1x336x128xbf16, #tpu.memory_space<vmem>>, %arg2: memref<1x1x128xf32, #tpu.memory_space<vmem>>, %arg3: memref<288x1xf32, #tpu.memory_space<vmem>>, %arg4: memref<128x128xf32, #tpu.memory_space<vmem>>, %arg5: memref<128x128xf32, #tpu.memory_space<vmem>>, %arg6: memref<1x128xf32, #tpu.memory_space<vmem>>, %arg7: memref<1x128xf32, #tpu.memory_space<vmem>>, %arg8: memref<3x384x128xbf16, #tpu.memory_space<vmem>>, %arg9: memref<128x128xf32, #tpu.memory_space<vmem>>, %arg10: memref<128x128xf32, #tpu.memory_space<vmem>>, %arg11: memref<1x128xf32, #tpu.memory_space<vmem>>, %arg12: memref<1x128xf32, #tpu.memory_space<vmem>>, %arg13: memref<3x384x128xbf16, #tpu.memory_space<vmem>>, %arg14: memref<1x128xf32, #tpu.memory_space<vmem>>, %arg15: memref<128x128xbf16, #tpu.memory_space<vmem>>, %arg16: memref<1x128xf32, #tpu.memory_space<vmem>>, %arg17: memref<1x288x128xf32, #tpu.memory_space<vmem>>, %arg18: memref<336x128xbf16, #tpu.memory_space<vmem>>, %arg19: memref<336x128xbf16, #tpu.memory_space<vmem>>, %arg20: memref<288x384xbf16, #tpu.memory_space<vmem>>) attributes {dimension_semantics = [#tpu.dimension_semantics<parallel>], iteration_bounds = array<i64: 2>, scalar_prefetch = 0 : i64, scratch_operands = 3 : i64, tpu.core_type = #tpu.core_type<tc>, window_params = [{transform_indices = @transform_0, window_bounds = array<i64: 1, 336, 128>}, {transform_indices = @transform_1, window_bounds = array<i64: 1, 1, 128>}, {pipeline_mode = #tpu.pipeline_mode<synchronous>, transform_indices = @transform_2, window_bounds = array<i64: 288, 1>}, {pipeline_mode = #tpu.pipeline_mode<synchronous>, transform_indices = @transform_3, window_bounds = array<i64: 128, 128>}, {pipeline_mode = #tpu.pipeline_mode<synchronous>, transform_indices = @transform_4, window_bounds = array<i64: 128, 128>}, {pipeline_mode = #tpu.pipeline_mode<synchronous>, transform_indices = @transform_5, window_bounds = array<i64: 1, 128>}, {pipeline_mode = #tpu.pipeline_mode<synchronous>, transform_indices = @transform_6, window_bounds = array<i64: 1, 128>}, {pipeline_mode = #tpu.pipeline_mode<synchronous>, transform_indices = @transform_7, window_bounds = array<i64: 3, 384, 128>}, {pipeline_mode = #tpu.pipeline_mode<synchronous>, transform_indices = @transform_8, window_bounds = array<i64: 128, 128>}, {pipeline_mode = #tpu.pipeline_mode<synchronous>, transform_indices = @transform_9, window_bounds = array<i64: 128, 128>}, {pipeline_mode = #tpu.pipeline_mode<synchronous>, transform_indices = @transform_10, window_bounds = array<i64: 1, 128>}, {pipeline_mode = #tpu.pipeline_mode<synchronous>, transform_indices = @transform_11, window_bounds = array<i64: 1, 128>}, {pipeline_mode = #tpu.pipeline_mode<synchronous>, transform_indices = @transform_12, window_bounds = array<i64: 3, 384, 128>}, {pipeline_mode = #tpu.pipeline_mode<synchronous>, transform_indices = @transform_13, window_bounds = array<i64: 1, 128>}, {pipeline_mode = #tpu.pipeline_mode<synchronous>, transform_indices = @transform_14, window_bounds = array<i64: 128, 128>}, {pipeline_mode = #tpu.pipeline_mode<synchronous>, transform_indices = @transform_15, window_bounds = array<i64: 1, 128>}, {transform_indices = @transform_16, window_bounds = array<i64: 1, 288, 128>}]} {
    %c0 = arith.constant 0 : index
    %c0_0 = arith.constant 0 : index
    %0 = vector.load %arg3[%c0, %c0_0] : memref<288x1xf32, #tpu.memory_space<vmem>>, vector<288x1xf32>
    %cst = arith.constant 0.000000e+00 : bf16
    %1 = vector.broadcast %cst : bf16 to vector<24x128xbf16>
    %c0_1 = arith.constant 0 : index
    %c0_2 = arith.constant 0 : index
    %2 = vector.load %arg18[%c0_1, %c0_2] : memref<336x128xbf16, #tpu.memory_space<vmem>>, vector<24x128xbf16>
    tpu.vector_store %arg18[%c0_1, %c0_2], %1 {strides = array<i32>} : memref<336x128xbf16, #tpu.memory_space<vmem>>, vector<24x128xbf16>,
    %cst_3 = arith.constant 0.000000e+00 : bf16
    %3 = vector.broadcast %cst_3 : bf16 to vector<24x128xbf16>
    %c312 = arith.constant 312 : index
    %c0_4 = arith.constant 0 : index
    %4 = vector.load %arg18[%c312, %c0_4] : memref<336x128xbf16, #tpu.memory_space<vmem>>, vector<24x128xbf16>
    tpu.vector_store %arg18[%c312, %c0_4], %3 {strides = array<i32>} : memref<336x128xbf16, #tpu.memory_space<vmem>>, vector<24x128xbf16>,
    %cst_5 = arith.constant 0.000000e+00 : bf16
    %5 = vector.broadcast %cst_5 : bf16 to vector<24x128xbf16>
    %c0_6 = arith.constant 0 : index
    %c0_7 = arith.constant 0 : index
    %6 = vector.load %arg19[%c0_6, %c0_7] : memref<336x128xbf16, #tpu.memory_space<vmem>>, vector<24x128xbf16>
    tpu.vector_store %arg19[%c0_6, %c0_7], %5 {strides = array<i32>} : memref<336x128xbf16, #tpu.memory_space<vmem>>, vector<24x128xbf16>,
    %cst_8 = arith.constant 0.000000e+00 : bf16
    %7 = vector.broadcast %cst_8 : bf16 to vector<24x128xbf16>
    %c312_9 = arith.constant 312 : index
    %c0_10 = arith.constant 0 : index
    %8 = vector.load %arg19[%c312_9, %c0_10] : memref<336x128xbf16, #tpu.memory_space<vmem>>, vector<24x128xbf16>
    tpu.vector_store %arg19[%c312_9, %c0_10], %7 {strides = array<i32>} : memref<336x128xbf16, #tpu.memory_space<vmem>>, vector<24x128xbf16>,
    %c0_11 = arith.constant 0 : index
    %c24 = arith.constant 24 : index
    %c0_12 = arith.constant 0 : index
    %9 = vector.load %arg1[%c0_11, %c24, %c0_12] : memref<1x336x128xbf16, #tpu.memory_space<vmem>>, vector<1x288x128xbf16>
    %10 = vector.shape_cast %9 : vector<1x288x128xbf16> to vector<288x128xbf16>
    %11 = arith.extf %10 : vector<288x128xbf16> to vector<288x128xf32>
    %cst_13 = arith.constant dense<0.000000e+00> : vector<128xf32>
    %12 = vector.multi_reduction <add>, %11, %cst_13 [0] : vector<288x128xf32> to vector<128xf32>
    %13 = vector.shape_cast %12 : vector<128xf32> to vector<1x128xf32>
    %14 = arith.mulf %11, %11 : vector<288x128xf32>
    %cst_14 = arith.constant dense<0.000000e+00> : vector<128xf32>
    %15 = vector.multi_reduction <add>, %14, %cst_14 [0] : vector<288x128xf32> to vector<128xf32>
    %16 = vector.shape_cast %15 : vector<128xf32> to vector<1x128xf32>
    %c0_15 = arith.constant 0 : index
    %c0_16 = arith.constant 0 : index
    %17 = vector.load %arg4[%c0_15, %c0_16] : memref<128x128xf32, #tpu.memory_space<vmem>>, vector<128x128xf32>
    %cst_17 = arith.constant dense<0.000000e+00> : vector<1x128xf32>
    %18 = tpu.matmul %13, %17, %cst_17 {dimension_numbers = #tpu.dot_dimension_numbers<[1], [0], [0], [1], [0, 0, 1, 1], [], []>} : vector<1x128xf32>, vector<128x128xf32>, vector<1x128xf32> -> vector<1x128xf32>
    %c0_18 = arith.constant 0 : index
    %c0_19 = arith.constant 0 : index
    %19 = vector.load %arg4[%c0_18, %c0_19] : memref<128x128xf32, #tpu.memory_space<vmem>>, vector<128x128xf32>
    %cst_20 = arith.constant dense<0.000000e+00> : vector<1x128xf32>
    %20 = tpu.matmul %16, %19, %cst_20 {dimension_numbers = #tpu.dot_dimension_numbers<[1], [0], [0], [1], [0, 0, 1, 1], [], []>} : vector<1x128xf32>, vector<128x128xf32>, vector<1x128xf32> -> vector<1x128xf32>
    %cst_21 = arith.constant 0.001953125 : f32
    %21 = vector.broadcast %cst_21 : f32 to vector<1x128xf32>
    %22 = arith.mulf %18, %21 : vector<1x128xf32>
    %cst_22 = arith.constant 0.001953125 : f32
    %23 = vector.broadcast %cst_22 : f32 to vector<1x128xf32>
    %24 = arith.mulf %20, %23 : vector<1x128xf32>
    %25 = arith.mulf %22, %22 : vector<1x128xf32>
    %26 = arith.subf %24, %25 : vector<1x128xf32>
    %cst_23 = arith.constant 0.000000e+00 : f32
    %27 = vector.broadcast %cst_23 : f32 to vector<1x128xf32>
    %28 = arith.maximumf %26, %27 : vector<1x128xf32>
    %cst_24 = arith.constant 9.99999997E-7 : f32
    %29 = vector.broadcast %cst_24 : f32 to vector<1x128xf32>
    %30 = arith.addf %28, %29 : vector<1x128xf32>
    %31 = math.rsqrt %30 : vector<1x128xf32>
    %c0_25 = arith.constant 0 : index
    %c0_26 = arith.constant 0 : index
    %32 = vector.load %arg5[%c0_25, %c0_26] : memref<128x128xf32, #tpu.memory_space<vmem>>, vector<128x128xf32>
    %cst_27 = arith.constant dense<0.000000e+00> : vector<1x128xf32>
    %33 = tpu.matmul %31, %32, %cst_27 {dimension_numbers = #tpu.dot_dimension_numbers<[1], [0], [0], [1], [0, 0, 1, 1], [], []>} : vector<1x128xf32>, vector<128x128xf32>, vector<1x128xf32> -> vector<1x128xf32>
    %c0_28 = arith.constant 0 : index
    %c0_29 = arith.constant 0 : index
    %34 = vector.load %arg5[%c0_28, %c0_29] : memref<128x128xf32, #tpu.memory_space<vmem>>, vector<128x128xf32>
    %cst_30 = arith.constant dense<0.000000e+00> : vector<1x128xf32>
    %35 = tpu.matmul %22, %34, %cst_30 {dimension_numbers = #tpu.dot_dimension_numbers<[1], [0], [0], [1], [0, 0, 1, 1], [], []>} : vector<1x128xf32>, vector<128x128xf32>, vector<1x128xf32> -> vector<1x128xf32>
    %c0_31 = arith.constant 0 : index
    %c0_32 = arith.constant 0 : index
    %36 = vector.load %arg6[%c0_31, %c0_32] : memref<1x128xf32, #tpu.memory_space<vmem>>, vector<1x128xf32>
    %37 = arith.mulf %33, %36 : vector<1x128xf32>
    %c0_33 = arith.constant 0 : index
    %c0_34 = arith.constant 0 : index
    %38 = vector.load %arg7[%c0_33, %c0_34] : memref<1x128xf32, #tpu.memory_space<vmem>>, vector<1x128xf32>
    %39 = arith.mulf %35, %37 : vector<1x128xf32>
    %40 = arith.subf %38, %39 : vector<1x128xf32>
    %41 = vector.broadcast %37 : vector<1x128xf32> to vector<288x128xf32>
    %42 = arith.mulf %11, %41 : vector<288x128xf32>
    %43 = vector.broadcast %40 : vector<1x128xf32> to vector<288x128xf32>
    %44 = arith.addf %42, %43 : vector<288x128xf32>
    %cst_35 = arith.constant 0.000000e+00 : f32
    %45 = vector.broadcast %cst_35 : f32 to vector<288x128xf32>
    %46 = arith.subf %45, %44 : vector<288x128xf32>
    %47 = math.exp %46 : vector<288x128xf32>
    %cst_36 = arith.constant 1.000000e+00 : f32
    %48 = vector.broadcast %cst_36 : f32 to vector<288x128xf32>
    %49 = arith.addf %48, %47 : vector<288x128xf32>
    %50 = tpu.reciprocal %49 {approx = true} : vector<288x128xf32> -> vector<288x128xf32>
    %51 = arith.mulf %44, %50 : vector<288x128xf32>
    %52 = vector.broadcast %0 : vector<288x1xf32> to vector<288x128xf32>
    %53 = arith.mulf %51, %52 : vector<288x128xf32>
    %54 = arith.truncf %53 : vector<288x128xf32> to vector<288x128xbf16>
    %c24_37 = arith.constant 24 : index
    %c0_38 = arith.constant 0 : index
    %55 = vector.load %arg18[%c24_37, %c0_38] : memref<336x128xbf16, #tpu.memory_space<vmem>>, vector<288x128xbf16>
    tpu.vector_store %arg18[%c24_37, %c0_38], %54 {strides = array<i32>} : memref<336x128xbf16, #tpu.memory_space<vmem>>, vector<288x128xbf16>,
    %c5 = arith.constant 5 : index
    %c0_39 = arith.constant 0 : index
    %56 = vector.load %arg18[%c5, %c0_39] : memref<336x128xbf16, #tpu.memory_space<vmem>>, vector<288x128xbf16>
    %c0_40 = arith.constant 0 : index
    %c0_41 = arith.constant 0 : index
    %57 = vector.load %arg20[%c0_40, %c0_41] : memref<288x384xbf16, #tpu.memory_space<vmem>>, vector<288x128xbf16>
    tpu.vector_store %arg20[%c0_40, %c0_41], %56 {strides = array<i32>} : memref<288x384xbf16, #tpu.memory_space<vmem>>, vector<288x128xbf16>,
    %c6 = arith.constant 6 : index
    %c0_42 = arith.constant 0 : index
    %58 = vector.load %arg18[%c6, %c0_42] : memref<336x128xbf16, #tpu.memory_space<vmem>>, vector<288x128xbf16>
    %c0_43 = arith.constant 0 : index
    %c128 = arith.constant 128 : index
    %59 = vector.load %arg20[%c0_43, %c128] : memref<288x384xbf16, #tpu.memory_space<vmem>>, vector<288x128xbf16>
    tpu.vector_store %arg20[%c0_43, %c128], %58 {strides = array<i32>} : memref<288x384xbf16, #tpu.memory_space<vmem>>, vector<288x128xbf16>,
    %c7 = arith.constant 7 : index
    %c0_44 = arith.constant 0 : index
    %60 = vector.load %arg18[%c7, %c0_44] : memref<336x128xbf16, #tpu.memory_space<vmem>>, vector<288x128xbf16>
    %c0_45 = arith.constant 0 : index
    %c256 = arith.constant 256 : index
    %61 = vector.load %arg20[%c0_45, %c256] : memref<288x384xbf16, #tpu.memory_space<vmem>>, vector<288x128xbf16>
    tpu.vector_store %arg20[%c0_45, %c256], %60 {strides = array<i32>} : memref<288x384xbf16, #tpu.memory_space<vmem>>, vector<288x128xbf16>,
    %c0_46 = arith.constant 0 : index
    %c0_47 = arith.constant 0 : index
    %62 = vector.load %arg20[%c0_46, %c0_47] : memref<288x384xbf16, #tpu.memory_space<vmem>>, vector<288x384xbf16>
    %c0_48 = arith.constant 0 : index
    %c0_49 = arith.constant 0 : index
    %c0_50 = arith.constant 0 : index
    %63 = vector.load %arg8[%c0_48, %c0_49, %c0_50] : memref<3x384x128xbf16, #tpu.memory_space<vmem>>, vector<1x384x128xbf16>
    %64 = vector.shape_cast %63 : vector<1x384x128xbf16> to vector<384x128xbf16>
    %cst_51 = arith.constant dense<0.000000e+00> : vector<288x128xf32>
    %65 = tpu.matmul %62, %64, %cst_51 {dimension_numbers = #tpu.dot_dimension_numbers<[1], [0], [0], [1], [0, 0, 1, 1], [], []>} : vector<288x384xbf16>, vector<384x128xbf16>, vector<288x128xf32> -> vector<288x128xf32>
    %c23 = arith.constant 23 : index
    %c0_52 = arith.constant 0 : index
    %66 = vector.load %arg18[%c23, %c0_52] : memref<336x128xbf16, #tpu.memory_space<vmem>>, vector<288x128xbf16>
    %c0_53 = arith.constant 0 : index
    %c0_54 = arith.constant 0 : index
    %67 = vector.load %arg20[%c0_53, %c0_54] : memref<288x384xbf16, #tpu.memory_space<vmem>>, vector<288x128xbf16>
    tpu.vector_store %arg20[%c0_53, %c0_54], %66 {strides = array<i32>} : memref<288x384xbf16, #tpu.memory_space<vmem>>, vector<288x128xbf16>,
    %c24_55 = arith.constant 24 : index
    %c0_56 = arith.constant 0 : index
    %68 = vector.load %arg18[%c24_55, %c0_56] : memref<336x128xbf16, #tpu.memory_space<vmem>>, vector<288x128xbf16>
    %c0_57 = arith.constant 0 : index
    %c128_58 = arith.constant 128 : index
    %69 = vector.load %arg20[%c0_57, %c128_58] : memref<288x384xbf16, #tpu.memory_space<vmem>>, vector<288x128xbf16>
    tpu.vector_store %arg20[%c0_57, %c128_58], %68 {strides = array<i32>} : memref<288x384xbf16, #tpu.memory_space<vmem>>, vector<288x128xbf16>,
    %c25 = arith.constant 25 : index
    %c0_59 = arith.constant 0 : index
    %70 = vector.load %arg18[%c25, %c0_59] : memref<336x128xbf16, #tpu.memory_space<vmem>>, vector<288x128xbf16>
    %c0_60 = arith.constant 0 : index
    %c256_61 = arith.constant 256 : index
    %71 = vector.load %arg20[%c0_60, %c256_61] : memref<288x384xbf16, #tpu.memory_space<vmem>>, vector<288x128xbf16>
    tpu.vector_store %arg20[%c0_60, %c256_61], %70 {strides = array<i32>} : memref<288x384xbf16, #tpu.memory_space<vmem>>, vector<288x128xbf16>,
    %c0_62 = arith.constant 0 : index
    %c0_63 = arith.constant 0 : index
    %72 = vector.load %arg20[%c0_62, %c0_63] : memref<288x384xbf16, #tpu.memory_space<vmem>>, vector<288x384xbf16>
    %c1 = arith.constant 1 : index
    %c0_64 = arith.constant 0 : index
    %c0_65 = arith.constant 0 : index
    %73 = vector.load %arg8[%c1, %c0_64, %c0_65] : memref<3x384x128xbf16, #tpu.memory_space<vmem>>, vector<1x384x128xbf16>
    %74 = vector.shape_cast %73 : vector<1x384x128xbf16> to vector<384x128xbf16>
    %cst_66 = arith.constant dense<0.000000e+00> : vector<288x128xf32>
    %75 = tpu.matmul %72, %74, %cst_66 {dimension_numbers = #tpu.dot_dimension_numbers<[1], [0], [0], [1], [0, 0, 1, 1], [], []>} : vector<288x384xbf16>, vector<384x128xbf16>, vector<288x128xf32> -> vector<288x128xf32>
    %76 = arith.addf %65, %75 : vector<288x128xf32>
    %c41 = arith.constant 41 : index
    %c0_67 = arith.constant 0 : index
    %77 = vector.load %arg18[%c41, %c0_67] : memref<336x128xbf16, #tpu.memory_space<vmem>>, vector<288x128xbf16>
    %c0_68 = arith.constant 0 : index
    %c0_69 = arith.constant 0 : index
    %78 = vector.load %arg20[%c0_68, %c0_69] : memref<288x384xbf16, #tpu.memory_space<vmem>>, vector<288x128xbf16>
    tpu.vector_store %arg20[%c0_68, %c0_69], %77 {strides = array<i32>} : memref<288x384xbf16, #tpu.memory_space<vmem>>, vector<288x128xbf16>,
    %c42 = arith.constant 42 : index
    %c0_70 = arith.constant 0 : index
    %79 = vector.load %arg18[%c42, %c0_70] : memref<336x128xbf16, #tpu.memory_space<vmem>>, vector<288x128xbf16>
    %c0_71 = arith.constant 0 : index
    %c128_72 = arith.constant 128 : index
    %80 = vector.load %arg20[%c0_71, %c128_72] : memref<288x384xbf16, #tpu.memory_space<vmem>>, vector<288x128xbf16>
    tpu.vector_store %arg20[%c0_71, %c128_72], %79 {strides = array<i32>} : memref<288x384xbf16, #tpu.memory_space<vmem>>, vector<288x128xbf16>,
    %c43 = arith.constant 43 : index
    %c0_73 = arith.constant 0 : index
    %81 = vector.load %arg18[%c43, %c0_73] : memref<336x128xbf16, #tpu.memory_space<vmem>>, vector<288x128xbf16>
    %c0_74 = arith.constant 0 : index
    %c256_75 = arith.constant 256 : index
    %82 = vector.load %arg20[%c0_74, %c256_75] : memref<288x384xbf16, #tpu.memory_space<vmem>>, vector<288x128xbf16>
    tpu.vector_store %arg20[%c0_74, %c256_75], %81 {strides = array<i32>} : memref<288x384xbf16, #tpu.memory_space<vmem>>, vector<288x128xbf16>,
    %c0_76 = arith.constant 0 : index
    %c0_77 = arith.constant 0 : index
    %83 = vector.load %arg20[%c0_76, %c0_77] : memref<288x384xbf16, #tpu.memory_space<vmem>>, vector<288x384xbf16>
    %c2 = arith.constant 2 : index
    %c0_78 = arith.constant 0 : index
    %c0_79 = arith.constant 0 : index
    %84 = vector.load %arg8[%c2, %c0_78, %c0_79] : memref<3x384x128xbf16, #tpu.memory_space<vmem>>, vector<1x384x128xbf16>
    %85 = vector.shape_cast %84 : vector<1x384x128xbf16> to vector<384x128xbf16>
    %cst_80 = arith.constant dense<0.000000e+00> : vector<288x128xf32>
    %86 = tpu.matmul %83, %85, %cst_80 {dimension_numbers = #tpu.dot_dimension_numbers<[1], [0], [0], [1], [0, 0, 1, 1], [], []>} : vector<288x384xbf16>, vector<384x128xbf16>, vector<288x128xf32> -> vector<288x128xf32>
    %87 = arith.addf %76, %86 : vector<288x128xf32>
    %c0_81 = arith.constant 0 : index
    %c0_82 = arith.constant 0 : index
    %c0_83 = arith.constant 0 : index
    %88 = vector.load %arg2[%c0_81, %c0_82, %c0_83] : memref<1x1x128xf32, #tpu.memory_space<vmem>>, vector<1x1x128xf32>
    %89 = vector.shape_cast %88 : vector<1x1x128xf32> to vector<1x128xf32>
    %90 = vector.broadcast %89 : vector<1x128xf32> to vector<288x128xf32>
    %91 = arith.addf %87, %90 : vector<288x128xf32>
    %92 = vector.broadcast %0 : vector<288x1xf32> to vector<288x128xf32>
    %93 = arith.mulf %91, %92 : vector<288x128xf32>
    %cst_84 = arith.constant dense<0.000000e+00> : vector<128xf32>
    %94 = vector.multi_reduction <add>, %93, %cst_84 [0] : vector<288x128xf32> to vector<128xf32>
    %95 = vector.shape_cast %94 : vector<128xf32> to vector<1x128xf32>
    %96 = arith.mulf %93, %93 : vector<288x128xf32>
    %cst_85 = arith.constant dense<0.000000e+00> : vector<128xf32>
    %97 = vector.multi_reduction <add>, %96, %cst_85 [0] : vector<288x128xf32> to vector<128xf32>
    %98 = vector.shape_cast %97 : vector<128xf32> to vector<1x128xf32>
    %c0_86 = arith.constant 0 : index
    %c0_87 = arith.constant 0 : index
    %99 = vector.load %arg9[%c0_86, %c0_87] : memref<128x128xf32, #tpu.memory_space<vmem>>, vector<128x128xf32>
    %cst_88 = arith.constant dense<0.000000e+00> : vector<1x128xf32>
    %100 = tpu.matmul %95, %99, %cst_88 {dimension_numbers = #tpu.dot_dimension_numbers<[1], [0], [0], [1], [0, 0, 1, 1], [], []>} : vector<1x128xf32>, vector<128x128xf32>, vector<1x128xf32> -> vector<1x128xf32>
    %c0_89 = arith.constant 0 : index
    %c0_90 = arith.constant 0 : index
    %101 = vector.load %arg9[%c0_89, %c0_90] : memref<128x128xf32, #tpu.memory_space<vmem>>, vector<128x128xf32>
    %cst_91 = arith.constant dense<0.000000e+00> : vector<1x128xf32>
    %102 = tpu.matmul %98, %101, %cst_91 {dimension_numbers = #tpu.dot_dimension_numbers<[1], [0], [0], [1], [0, 0, 1, 1], [], []>} : vector<1x128xf32>, vector<128x128xf32>, vector<1x128xf32> -> vector<1x128xf32>
    %cst_92 = arith.constant 9.765625E-4 : f32
    %103 = vector.broadcast %cst_92 : f32 to vector<1x128xf32>
    %104 = arith.mulf %100, %103 : vector<1x128xf32>
    %cst_93 = arith.constant 9.765625E-4 : f32
    %105 = vector.broadcast %cst_93 : f32 to vector<1x128xf32>
    %106 = arith.mulf %102, %105 : vector<1x128xf32>
    %107 = arith.mulf %104, %104 : vector<1x128xf32>
    %108 = arith.subf %106, %107 : vector<1x128xf32>
    %cst_94 = arith.constant 0.000000e+00 : f32
    %109 = vector.broadcast %cst_94 : f32 to vector<1x128xf32>
    %110 = arith.maximumf %108, %109 : vector<1x128xf32>
    %cst_95 = arith.constant 9.99999997E-7 : f32
    %111 = vector.broadcast %cst_95 : f32 to vector<1x128xf32>
    %112 = arith.addf %110, %111 : vector<1x128xf32>
    %113 = math.rsqrt %112 : vector<1x128xf32>
    %c0_96 = arith.constant 0 : index
    %c0_97 = arith.constant 0 : index
    %114 = vector.load %arg10[%c0_96, %c0_97] : memref<128x128xf32, #tpu.memory_space<vmem>>, vector<128x128xf32>
    %cst_98 = arith.constant dense<0.000000e+00> : vector<1x128xf32>
    %115 = tpu.matmul %113, %114, %cst_98 {dimension_numbers = #tpu.dot_dimension_numbers<[1], [0], [0], [1], [0, 0, 1, 1], [], []>} : vector<1x128xf32>, vector<128x128xf32>, vector<1x128xf32> -> vector<1x128xf32>
    %c0_99 = arith.constant 0 : index
    %c0_100 = arith.constant 0 : index
    %116 = vector.load %arg10[%c0_99, %c0_100] : memref<128x128xf32, #tpu.memory_space<vmem>>, vector<128x128xf32>
    %cst_101 = arith.constant dense<0.000000e+00> : vector<1x128xf32>
    %117 = tpu.matmul %104, %116, %cst_101 {dimension_numbers = #tpu.dot_dimension_numbers<[1], [0], [0], [1], [0, 0, 1, 1], [], []>} : vector<1x128xf32>, vector<128x128xf32>, vector<1x128xf32> -> vector<1x128xf32>
    %c0_102 = arith.constant 0 : index
    %c0_103 = arith.constant 0 : index
    %118 = vector.load %arg11[%c0_102, %c0_103] : memref<1x128xf32, #tpu.memory_space<vmem>>, vector<1x128xf32>
    %119 = arith.mulf %115, %118 : vector<1x128xf32>
    %c0_104 = arith.constant 0 : index
    %c0_105 = arith.constant 0 : index
    %120 = vector.load %arg12[%c0_104, %c0_105] : memref<1x128xf32, #tpu.memory_space<vmem>>, vector<1x128xf32>
    %121 = arith.mulf %117, %119 : vector<1x128xf32>
    %122 = arith.subf %120, %121 : vector<1x128xf32>
    %123 = vector.broadcast %119 : vector<1x128xf32> to vector<288x128xf32>
    %124 = arith.mulf %93, %123 : vector<288x128xf32>
    %125 = vector.broadcast %122 : vector<1x128xf32> to vector<288x128xf32>
    %126 = arith.addf %124, %125 : vector<288x128xf32>
    %cst_106 = arith.constant 0.000000e+00 : f32
    %127 = vector.broadcast %cst_106 : f32 to vector<288x128xf32>
    %128 = arith.subf %127, %126 : vector<288x128xf32>
    %129 = math.exp %128 : vector<288x128xf32>
    %cst_107 = arith.constant 1.000000e+00 : f32
    %130 = vector.broadcast %cst_107 : f32 to vector<288x128xf32>
    %131 = arith.addf %130, %129 : vector<288x128xf32>
    %132 = tpu.reciprocal %131 {approx = true} : vector<288x128xf32> -> vector<288x128xf32>
    %133 = arith.mulf %126, %132 : vector<288x128xf32>
    %134 = vector.broadcast %0 : vector<288x1xf32> to vector<288x128xf32>
    %135 = arith.mulf %133, %134 : vector<288x128xf32>
    %136 = arith.truncf %135 : vector<288x128xf32> to vector<288x128xbf16>
    %c24_108 = arith.constant 24 : index
    %c0_109 = arith.constant 0 : index
    %137 = vector.load %arg19[%c24_108, %c0_109] : memref<336x128xbf16, #tpu.memory_space<vmem>>, vector<288x128xbf16>
    tpu.vector_store %arg19[%c24_108, %c0_109], %136 {strides = array<i32>} : memref<336x128xbf16, #tpu.memory_space<vmem>>, vector<288x128xbf16>,
    %c5_110 = arith.constant 5 : index
    %c0_111 = arith.constant 0 : index
    %138 = vector.load %arg19[%c5_110, %c0_111] : memref<336x128xbf16, #tpu.memory_space<vmem>>, vector<288x128xbf16>
    %c0_112 = arith.constant 0 : index
    %c0_113 = arith.constant 0 : index
    %139 = vector.load %arg20[%c0_112, %c0_113] : memref<288x384xbf16, #tpu.memory_space<vmem>>, vector<288x128xbf16>
    tpu.vector_store %arg20[%c0_112, %c0_113], %138 {strides = array<i32>} : memref<288x384xbf16, #tpu.memory_space<vmem>>, vector<288x128xbf16>,
    %c6_114 = arith.constant 6 : index
    %c0_115 = arith.constant 0 : index
    %140 = vector.load %arg19[%c6_114, %c0_115] : memref<336x128xbf16, #tpu.memory_space<vmem>>, vector<288x128xbf16>
    %c0_116 = arith.constant 0 : index
    %c128_117 = arith.constant 128 : index
    %141 = vector.load %arg20[%c0_116, %c128_117] : memref<288x384xbf16, #tpu.memory_space<vmem>>, vector<288x128xbf16>
    tpu.vector_store %arg20[%c0_116, %c128_117], %140 {strides = array<i32>} : memref<288x384xbf16, #tpu.memory_space<vmem>>, vector<288x128xbf16>,
    %c7_118 = arith.constant 7 : index
    %c0_119 = arith.constant 0 : index
    %142 = vector.load %arg19[%c7_118, %c0_119] : memref<336x128xbf16, #tpu.memory_space<vmem>>, vector<288x128xbf16>
    %c0_120 = arith.constant 0 : index
    %c256_121 = arith.constant 256 : index
    %143 = vector.load %arg20[%c0_120, %c256_121] : memref<288x384xbf16, #tpu.memory_space<vmem>>, vector<288x128xbf16>
    tpu.vector_store %arg20[%c0_120, %c256_121], %142 {strides = array<i32>} : memref<288x384xbf16, #tpu.memory_space<vmem>>, vector<288x128xbf16>,
    %c0_122 = arith.constant 0 : index
    %c0_123 = arith.constant 0 : index
    %144 = vector.load %arg20[%c0_122, %c0_123] : memref<288x384xbf16, #tpu.memory_space<vmem>>, vector<288x384xbf16>
    %c0_124 = arith.constant 0 : index
    %c0_125 = arith.constant 0 : index
    %c0_126 = arith.constant 0 : index
    %145 = vector.load %arg13[%c0_124, %c0_125, %c0_126] : memref<3x384x128xbf16, #tpu.memory_space<vmem>>, vector<1x384x128xbf16>
    %146 = vector.shape_cast %145 : vector<1x384x128xbf16> to vector<384x128xbf16>
    %cst_127 = arith.constant dense<0.000000e+00> : vector<288x128xf32>
    %147 = tpu.matmul %144, %146, %cst_127 {dimension_numbers = #tpu.dot_dimension_numbers<[1], [0], [0], [1], [0, 0, 1, 1], [], []>} : vector<288x384xbf16>, vector<384x128xbf16>, vector<288x128xf32> -> vector<288x128xf32>
    %c23_128 = arith.constant 23 : index
    %c0_129 = arith.constant 0 : index
    %148 = vector.load %arg19[%c23_128, %c0_129] : memref<336x128xbf16, #tpu.memory_space<vmem>>, vector<288x128xbf16>
    %c0_130 = arith.constant 0 : index
    %c0_131 = arith.constant 0 : index
    %149 = vector.load %arg20[%c0_130, %c0_131] : memref<288x384xbf16, #tpu.memory_space<vmem>>, vector<288x128xbf16>
    tpu.vector_store %arg20[%c0_130, %c0_131], %148 {strides = array<i32>} : memref<288x384xbf16, #tpu.memory_space<vmem>>, vector<288x128xbf16>,
    %c24_132 = arith.constant 24 : index
    %c0_133 = arith.constant 0 : index
    %150 = vector.load %arg19[%c24_132, %c0_133] : memref<336x128xbf16, #tpu.memory_space<vmem>>, vector<288x128xbf16>
    %c0_134 = arith.constant 0 : index
    %c128_135 = arith.constant 128 : index
    %151 = vector.load %arg20[%c0_134, %c128_135] : memref<288x384xbf16, #tpu.memory_space<vmem>>, vector<288x128xbf16>
    tpu.vector_store %arg20[%c0_134, %c128_135], %150 {strides = array<i32>} : memref<288x384xbf16, #tpu.memory_space<vmem>>, vector<288x128xbf16>,
    %c25_136 = arith.constant 25 : index
    %c0_137 = arith.constant 0 : index
    %152 = vector.load %arg19[%c25_136, %c0_137] : memref<336x128xbf16, #tpu.memory_space<vmem>>, vector<288x128xbf16>
    %c0_138 = arith.constant 0 : index
    %c256_139 = arith.constant 256 : index
    %153 = vector.load %arg20[%c0_138, %c256_139] : memref<288x384xbf16, #tpu.memory_space<vmem>>, vector<288x128xbf16>
    tpu.vector_store %arg20[%c0_138, %c256_139], %152 {strides = array<i32>} : memref<288x384xbf16, #tpu.memory_space<vmem>>, vector<288x128xbf16>,
    %c0_140 = arith.constant 0 : index
    %c0_141 = arith.constant 0 : index
    %154 = vector.load %arg20[%c0_140, %c0_141] : memref<288x384xbf16, #tpu.memory_space<vmem>>, vector<288x384xbf16>
    %c1_142 = arith.constant 1 : index
    %c0_143 = arith.constant 0 : index
    %c0_144 = arith.constant 0 : index
    %155 = vector.load %arg13[%c1_142, %c0_143, %c0_144] : memref<3x384x128xbf16, #tpu.memory_space<vmem>>, vector<1x384x128xbf16>
    %156 = vector.shape_cast %155 : vector<1x384x128xbf16> to vector<384x128xbf16>
    %cst_145 = arith.constant dense<0.000000e+00> : vector<288x128xf32>
    %157 = tpu.matmul %154, %156, %cst_145 {dimension_numbers = #tpu.dot_dimension_numbers<[1], [0], [0], [1], [0, 0, 1, 1], [], []>} : vector<288x384xbf16>, vector<384x128xbf16>, vector<288x128xf32> -> vector<288x128xf32>
    %158 = arith.addf %147, %157 : vector<288x128xf32>
    %c41_146 = arith.constant 41 : index
    %c0_147 = arith.constant 0 : index
    %159 = vector.load %arg19[%c41_146, %c0_147] : memref<336x128xbf16, #tpu.memory_space<vmem>>, vector<288x128xbf16>
    %c0_148 = arith.constant 0 : index
    %c0_149 = arith.constant 0 : index
    %160 = vector.load %arg20[%c0_148, %c0_149] : memref<288x384xbf16, #tpu.memory_space<vmem>>, vector<288x128xbf16>
    tpu.vector_store %arg20[%c0_148, %c0_149], %159 {strides = array<i32>} : memref<288x384xbf16, #tpu.memory_space<vmem>>, vector<288x128xbf16>,
    %c42_150 = arith.constant 42 : index
    %c0_151 = arith.constant 0 : index
    %161 = vector.load %arg19[%c42_150, %c0_151] : memref<336x128xbf16, #tpu.memory_space<vmem>>, vector<288x128xbf16>
    %c0_152 = arith.constant 0 : index
    %c128_153 = arith.constant 128 : index
    %162 = vector.load %arg20[%c0_152, %c128_153] : memref<288x384xbf16, #tpu.memory_space<vmem>>, vector<288x128xbf16>
    tpu.vector_store %arg20[%c0_152, %c128_153], %161 {strides = array<i32>} : memref<288x384xbf16, #tpu.memory_space<vmem>>, vector<288x128xbf16>,
    %c43_154 = arith.constant 43 : index
    %c0_155 = arith.constant 0 : index
    %163 = vector.load %arg19[%c43_154, %c0_155] : memref<336x128xbf16, #tpu.memory_space<vmem>>, vector<288x128xbf16>
    %c0_156 = arith.constant 0 : index
    %c256_157 = arith.constant 256 : index
    %164 = vector.load %arg20[%c0_156, %c256_157] : memref<288x384xbf16, #tpu.memory_space<vmem>>, vector<288x128xbf16>
    tpu.vector_store %arg20[%c0_156, %c256_157], %163 {strides = array<i32>} : memref<288x384xbf16, #tpu.memory_space<vmem>>, vector<288x128xbf16>,
    %c0_158 = arith.constant 0 : index
    %c0_159 = arith.constant 0 : index
    %165 = vector.load %arg20[%c0_158, %c0_159] : memref<288x384xbf16, #tpu.memory_space<vmem>>, vector<288x384xbf16>
    %c2_160 = arith.constant 2 : index
    %c0_161 = arith.constant 0 : index
    %c0_162 = arith.constant 0 : index
    %166 = vector.load %arg13[%c2_160, %c0_161, %c0_162] : memref<3x384x128xbf16, #tpu.memory_space<vmem>>, vector<1x384x128xbf16>
    %167 = vector.shape_cast %166 : vector<1x384x128xbf16> to vector<384x128xbf16>
    %cst_163 = arith.constant dense<0.000000e+00> : vector<288x128xf32>
    %168 = tpu.matmul %165, %167, %cst_163 {dimension_numbers = #tpu.dot_dimension_numbers<[1], [0], [0], [1], [0, 0, 1, 1], [], []>} : vector<288x384xbf16>, vector<384x128xbf16>, vector<288x128xf32> -> vector<288x128xf32>
    %169 = arith.addf %158, %168 : vector<288x128xf32>
    %c0_164 = arith.constant 0 : index
    %c0_165 = arith.constant 0 : index
    %170 = vector.load %arg14[%c0_164, %c0_165] : memref<1x128xf32, #tpu.memory_space<vmem>>, vector<1x128xf32>
    %171 = vector.broadcast %170 : vector<1x128xf32> to vector<288x128xf32>
    %172 = arith.addf %169, %171 : vector<288x128xf32>
    %c0_166 = arith.constant 0 : index
    %c24_167 = arith.constant 24 : index
    %c0_168 = arith.constant 0 : index
    %173 = vector.load %arg1[%c0_166, %c24_167, %c0_168] : memref<1x336x128xbf16, #tpu.memory_space<vmem>>, vector<1x288x128xbf16>
    %174 = vector.shape_cast %173 : vector<1x288x128xbf16> to vector<288x128xbf16>
    %c0_169 = arith.constant 0 : index
    %c0_170 = arith.constant 0 : index
    %175 = vector.load %arg15[%c0_169, %c0_170] : memref<128x128xbf16, #tpu.memory_space<vmem>>, vector<128x128xbf16>
    %cst_171 = arith.constant dense<0.000000e+00> : vector<288x128xf32>
    %176 = tpu.matmul %174, %175, %cst_171 {dimension_numbers = #tpu.dot_dimension_numbers<[1], [0], [0], [1], [0, 0, 1, 1], [], []>} : vector<288x128xbf16>, vector<128x128xbf16>, vector<288x128xf32> -> vector<288x128xf32>
    %c0_172 = arith.constant 0 : index
    %c0_173 = arith.constant 0 : index
    %177 = vector.load %arg16[%c0_172, %c0_173] : memref<1x128xf32, #tpu.memory_space<vmem>>, vector<1x128xf32>
    %178 = vector.broadcast %177 : vector<1x128xf32> to vector<288x128xf32>
    %179 = arith.addf %176, %178 : vector<288x128xf32>
    %180 = arith.addf %179, %172 : vector<288x128xf32>
    %c0_174 = arith.constant 0 : index
    %c0_175 = arith.constant 0 : index
    %c0_176 = arith.constant 0 : index
    %181 = vector.load %arg17[%c0_174, %c0_175, %c0_176] : memref<1x288x128xf32, #tpu.memory_space<vmem>>, vector<1x288x128xf32>
    %182 = vector.shape_cast %181 : vector<1x288x128xf32> to vector<288x128xf32>
    %183 = vector.shape_cast %180 : vector<288x128xf32> to vector<1x288x128xf32>
    tpu.vector_store %arg17[%c0_174, %c0_175, %c0_176], %183 {strides = array<i32>} : memref<1x288x128xf32, #tpu.memory_space<vmem>>, vector<1x288x128xf32>,
    return
  }
  func.func @transform_0(%arg0: i32) -> (i32, i32, i32) {
    %c0_i32 = arith.constant 0 : i32
    %c0_i32_0 = arith.constant 0 : i32
    %c0_i32_1 = arith.constant 0 : i32
    return %arg0, %c0_i32, %c0_i32_0 : i32, i32, i32
  }
  func.func @transform_1(%arg0: i32) -> (i32, i32, i32) {
    %c0_i32 = arith.constant 0 : i32
    %c0_i32_0 = arith.constant 0 : i32
    %c0_i32_1 = arith.constant 0 : i32
    return %arg0, %c0_i32, %c0_i32_0 : i32, i32, i32
  }
  func.func @transform_2(%arg0: i32) -> (i32, i32) {
    %c0_i32 = arith.constant 0 : i32
    %c0_i32_0 = arith.constant 0 : i32
    %c0_i32_1 = arith.constant 0 : i32
    return %c0_i32, %c0_i32_0 : i32, i32
  }
  func.func @transform_3(%arg0: i32) -> (i32, i32) {
    %c0_i32 = arith.constant 0 : i32
    %c0_i32_0 = arith.constant 0 : i32
    %c0_i32_1 = arith.constant 0 : i32
    return %c0_i32, %c0_i32_0 : i32, i32
  }
  func.func @transform_4(%arg0: i32) -> (i32, i32) {
    %c0_i32 = arith.constant 0 : i32
    %c0_i32_0 = arith.constant 0 : i32
    %c0_i32_1 = arith.constant 0 : i32
    return %c0_i32, %c0_i32_0 : i32, i32
  }
  func.func @transform_5(%arg0: i32) -> (i32, i32) {
    %c0_i32 = arith.constant 0 : i32
    %c0_i32_0 = arith.constant 0 : i32
    %c0_i32_1 = arith.constant 0 : i32
    return %c0_i32, %c0_i32_0 : i32, i32
  }
  func.func @transform_6(%arg0: i32) -> (i32, i32) {
    %c0_i32 = arith.constant 0 : i32
    %c0_i32_0 = arith.constant 0 : i32
    %c0_i32_1 = arith.constant 0 : i32
    return %c0_i32, %c0_i32_0 : i32, i32
  }
  func.func @transform_7(%arg0: i32) -> (i32, i32, i32) {
    %c0_i32 = arith.constant 0 : i32
    %c0_i32_0 = arith.constant 0 : i32
    %c0_i32_1 = arith.constant 0 : i32
    %c0_i32_2 = arith.constant 0 : i32
    return %c0_i32, %c0_i32_0, %c0_i32_1 : i32, i32, i32
  }
  func.func @transform_8(%arg0: i32) -> (i32, i32) {
    %c0_i32 = arith.constant 0 : i32
    %c0_i32_0 = arith.constant 0 : i32
    %c0_i32_1 = arith.constant 0 : i32
    return %c0_i32, %c0_i32_0 : i32, i32
  }
  func.func @transform_9(%arg0: i32) -> (i32, i32) {
    %c0_i32 = arith.constant 0 : i32
    %c0_i32_0 = arith.constant 0 : i32
    %c0_i32_1 = arith.constant 0 : i32
    return %c0_i32, %c0_i32_0 : i32, i32
  }
  func.func @transform_10(%arg0: i32) -> (i32, i32) {
    %c0_i32 = arith.constant 0 : i32
    %c0_i32_0 = arith.constant 0 : i32
    %c0_i32_1 = arith.constant 0 : i32
    return %c0_i32, %c0_i32_0 : i32, i32
  }
  func.func @transform_11(%arg0: i32) -> (i32, i32) {
    %c0_i32 = arith.constant 0 : i32
    %c0_i32_0 = arith.constant 0 : i32
    %c0_i32_1 = arith.constant 0 : i32
    return %c0_i32, %c0_i32_0 : i32, i32
  }
  func.func @transform_12(%arg0: i32) -> (i32, i32, i32) {
    %c0_i32 = arith.constant 0 : i32
    %c0_i32_0 = arith.constant 0 : i32
    %c0_i32_1 = arith.constant 0 : i32
    %c0_i32_2 = arith.constant 0 : i32
    return %c0_i32, %c0_i32_0, %c0_i32_1 : i32, i32, i32
  }
  func.func @transform_13(%arg0: i32) -> (i32, i32) {
    %c0_i32 = arith.constant 0 : i32
    %c0_i32_0 = arith.constant 0 : i32
    %c0_i32_1 = arith.constant 0 : i32
    return %c0_i32, %c0_i32_0 : i32, i32
  }
  func.func @transform_14(%arg0: i32) -> (i32, i32) {
    %c0_i32 = arith.constant 0 : i32
    %c0_i32_0 = arith.constant 0 : i32
    %c0_i32_1 = arith.constant 0 : i32
    return %c0_i32, %c0_i32_0 : i32, i32
  }
  func.func @transform_15(%arg0: i32) -> (i32, i32) {
    %c0_i32 = arith.constant 0 : i32
    %c0_i32_0 = arith.constant 0 : i32
    %c0_i32_1 = arith.constant 0 : i32
    return %c0_i32, %c0_i32_0 : i32, i32
  }
  func.func @transform_16(%arg0: i32) -> (i32, i32, i32) {
    %c0_i32 = arith.constant 0 : i32
    %c0_i32_0 = arith.constant 0 : i32
    %c0_i32_1 = arith.constant 0 : i32
    return %arg0, %c0_i32, %c0_i32_0 : i32, i32, i32
  }
}

</mosaic_0001>

<llo_original>
// kernel: tpu_custom_call.1
$region0: #{tpu_custom_call.1}
  #allocation0 [shape = 'u32[]', space=smem, size = 0x4, offset = 0x4, fixed_abs, tag = 'smem constant byte address 0x4 - core index']
  #allocation1 [shape = 'u32[144,128]{1,0:T(1,128)}', space=vmem, size = 0x12000, scoped, tag = 'internal scratch']
  #allocation2 [shape = 'bf16[336,128]{1,0:T(16,128)(2,1)}', space=vmem, size = 0x15000, scoped, tag = 'scratch operand']
  #allocation3 [shape = 'bf16[336,128]{1,0:T(16,128)(2,1)}', space=vmem, size = 0x15000, scoped, tag = 'scratch operand']
  #allocation4 [shape = 'bf16[288,384]{1,0:T(16,128)(2,1)}', space=vmem, size = 0x36000, scoped, tag = 'scratch operand']
  %s0 = inlined_call_operand.hbm [shape: bf16[2,336,128], index: 0, kind: input, shape index: {}]
  %s1 = inlined_call_operand.hbm [shape: f32[2,1,128], index: 1, kind: input, shape index: {}]
  %s2 = inlined_call_operand.hbm [shape: f32[288,1], index: 2, kind: input, shape index: {}]
  %s3 = inlined_call_operand.hbm [shape: f32[128,128], index: 3, kind: input, shape index: {}]
  %s4 = inlined_call_operand.hbm [shape: f32[128,128], index: 4, kind: input, shape index: {}]
  %s5 = inlined_call_operand.hbm [shape: f32[1,128], index: 5, kind: input, shape index: {}]
  %s6 = inlined_call_operand.hbm [shape: f32[1,128], index: 6, kind: input, shape index: {}]
  %s7 = inlined_call_operand.hbm [shape: bf16[3,384,128], index: 7, kind: input, shape index: {}]
  %s8 = inlined_call_operand.hbm [shape: f32[128,128], index: 8, kind: input, shape index: {}]
  %s9 = inlined_call_operand.hbm [shape: f32[128,128], index: 9, kind: input, shape index: {}]
  %s10 = inlined_call_operand.hbm [shape: f32[1,128], index: 10, kind: input, shape index: {}]
  %s11 = inlined_call_operand.hbm [shape: f32[1,128], index: 11, kind: input, shape index: {}]
  %s12 = inlined_call_operand.hbm [shape: bf16[3,384,128], index: 12, kind: input, shape index: {}]
  %s13 = inlined_call_operand.hbm [shape: f32[1,128], index: 13, kind: input, shape index: {}]
  %s14 = inlined_call_operand.hbm [shape: bf16[128,128], index: 14, kind: input, shape index: {}]
  %s15 = inlined_call_operand.hbm [shape: f32[1,128], index: 15, kind: input, shape index: {}]
  %s16 = inlined_call_operand.hbm [shape: f32[2,288,128], index: 16, kind: output, shape index: {}]
  %s17 = sld [smem:[#allocation0]]
  $region161: #{tpu_custom_call.1} parent=0
    _
  %s19 = ssub.s32 1, %s17
  %s20 = scalar_select 0, %s19, %s17
  $region1: #{tpu_custom_call.1} parent=0
    #allocation5 [shape = 'u8[172032]{0}', space=vmem, size = 0x2a000, scoped, tag = 'input window, operand 0']
    #allocation6 [shape = 's32[2]{0}', space=sflag, size = 0x8, scoped, tag = 'scoped memory for tpu_custom_call.1']
    #allocation7 [shape = 's32[2]{0}', space=sflag, size = 0x8, scoped, tag = 'scoped memory for tpu_custom_call.1']
    #allocation8 [shape = 'u8[1024]{0}', space=vmem, size = 0x400, scoped, tag = 'input window, operand 1']
    #allocation9 [shape = 's32[2]{0}', space=sflag, size = 0x8, scoped, tag = 'scoped memory for tpu_custom_call.1']
    #allocation10 [shape = 'u8[147456]{0}', space=vmem, size = 0x24000, scoped, tag = 'input window, operand 2, single buffered']
    #allocation11 [shape = 'u8[65536]{0}', space=vmem, size = 0x10000, scoped, tag = 'input window, operand 3, single buffered']
    #allocation12 [shape = 's32[1]{0}', space=sflag, size = 0x4, scoped, tag = 'scoped memory for tpu_custom_call.1']
    #allocation13 [shape = 'u8[65536]{0}', space=vmem, size = 0x10000, scoped, tag = 'input window, operand 4, single buffered']
    #allocation14 [shape = 'u8[512]{0}', space=vmem, size = 0x400, scoped, tag = 'input window, operand 5, single buffered']
    #allocation15 [shape = 's32[1]{0}', space=sflag, size = 0x4, scoped, tag = 'scoped memory for tpu_custom_call.1']
    #allocation16 [shape = 'u8[512]{0}', space=vmem, size = 0x400, scoped, tag = 'input window, operand 6, single buffered']
    #allocation17 [shape = 'u8[294912]{0}', space=vmem, size = 0x48000, scoped, tag = 'input window, operand 7, single buffered']
    #allocation18 [shape = 's32[1]{0}', space=sflag, size = 0x4, scoped, tag = 'scoped memory for tpu_custom_call.1']
    #allocation19 [shape = 'u8[65536]{0}', space=vmem, size = 0x10000, scoped, tag = 'input window, operand 8, single buffered']
    #allocation20 [shape = 'u8[65536]{0}', space=vmem, size = 0x10000, scoped, tag = 'input window, operand 9, single buffered']
    #allocation21 [shape = 's32[1]{0}', space=sflag, size = 0x4, scoped, tag = 'scoped memory for tpu_custom_call.1']
    #allocation22 [shape = 'u8[512]{0}', space=vmem, size = 0x400, scoped, tag = 'input window, operand 10, single buffered']
    #allocation23 [shape = 'u8[512]{0}', space=vmem, size = 0x400, scoped, tag = 'input window, operand 11, single buffered']
    #allocation24 [shape = 's32[1]{0}', space=sflag, size = 0x4, scoped, tag = 'scoped memory for tpu_custom_call.1']
    #allocation25 [shape = 'u8[294912]{0}', space=vmem, size = 0x48000, scoped, tag = 'input window, operand 12, single buffered']
    #allocation26 [shape = 'u8[512]{0}', space=vmem, size = 0x400, scoped, tag = 'input window, operand 13, single buffered']
    #allocation27 [shape = 's32[1]{0}', space=sflag, size = 0x4, scoped, tag = 'scoped memory for tpu_custom_call.1']
    #allocation28 [shape = 'u8[32768]{0}', space=vmem, size = 0x8000, scoped, tag = 'input window, operand 14, single buffered']
    #allocation29 [shape = 'u8[512]{0}', space=vmem, size = 0x400, scoped, tag = 'input window, operand 15, single buffered']
    #allocation30 [shape = 's32[1]{0}', space=sflag, size = 0x4, scoped, tag = 'scoped memory for tpu_custom_call.1']
    #allocation31 [shape = 'u8[294912]{0}', space=vmem, size = 0x48000, scoped, tag = 'output window, operand 0']
    %21 = vsyncpa [#allocation6], 0
    %s22 = scalar_lea.sflag [#allocation6], 1
    %23 = vsyncpa %s22, 0
    %24 = vsyncpa [#allocation9], 0
    %s25 = scalar_lea.sflag [#allocation9], 1
    %26 = vsyncpa %s25, 0
    %27 = vsyncpa [#allocation12], 0
    %28 = vsyncpa [#allocation15], 0
    %29 = vsyncpa [#allocation18], 0
    %30 = vsyncpa [#allocation21], 0
    %31 = vsyncpa [#allocation24], 0
    %32 = vsyncpa [#allocation27], 0
    %33 = vsyncpa [#allocation30], 0
    %34 = vsyncpa [#allocation7], 0
    %s35 = scalar_lea.sflag [#allocation7], 1
    %36 = vsyncpa %s35, 0
    loop: start=0, step=1, limit=4
    $region2: #{tpu_custom_call.1} parent=1 // loop_pre_header
      _
    $region3: #{tpu_custom_call.1} parent=1 // loop_header
      %s38 = sphi 0, %s42
      %p39 = scmp.ge.s32.totalorder %s38, 4
      %s48 = sphi 0, %s50
      %s51 = sphi 0, %s48
      %s52 = sphi 0, %s51
      %s68 = sphi 0, %s52
      %s74 = sphi 0, %s76
      %s77 = sphi 0, %s74
      %s78 = sphi 0, %s77
      %s94 = sphi 0, %s78
      %s98 = sphi 0, %s98
      %s100 = sphi 0, %s98
      %s101 = sphi 0, %s100
      %s115 = sphi 0, %s101
      %s119 = sphi 0, %s119
      %s121 = sphi 0, %s119
      %s122 = sphi 0, %s121
      %s136 = sphi 0, %s122
      %s140 = sphi 0, %s140
      %s142 = sphi 0, %s140
      %s143 = sphi 0, %s142
      %s157 = sphi 0, %s143
      %s161 = sphi 0, %s161
      %s163 = sphi 0, %s161
      %s164 = sphi 0, %s163
      %s178 = sphi 0, %s164
      %s182 = sphi 0, %s182
      %s184 = sphi 0, %s182
      %s185 = sphi 0, %s184
      %s199 = sphi 0, %s185
      %s203 = sphi 0, %s203
      %s205 = sphi 0, %s203
      %s206 = sphi 0, %s205
      %s220 = sphi 0, %s206
      %s224 = sphi 0, %s224
      %s226 = sphi 0, %s224
      %s227 = sphi 0, %s226
      %s241 = sphi 0, %s227
      %s245 = sphi 0, %s245
      %s247 = sphi 0, %s245
      %s248 = sphi 0, %s247
      %s262 = sphi 0, %s248
      %s266 = sphi 0, %s266
      %s268 = sphi 0, %s266
      %s269 = sphi 0, %s268
      %s283 = sphi 0, %s269
      %s287 = sphi 0, %s287
      %s289 = sphi 0, %s287
      %s290 = sphi 0, %s289
      %s304 = sphi 0, %s290
      %s308 = sphi 0, %s308
      %s310 = sphi 0, %s308
      %s311 = sphi 0, %s310
      %s325 = sphi 0, %s311
      %s329 = sphi 0, %s329
      %s331 = sphi 0, %s329
      %s332 = sphi 0, %s331
      %s346 = sphi 0, %s332
      %s350 = sphi 0, %s350
      %s352 = sphi 0, %s350
      %s353 = sphi 0, %s352
      %s367 = sphi 0, %s353
      %s371 = sphi 0, %s371
      %s373 = sphi 0, %s371
      %s374 = sphi 0, %s373
      %s388 = sphi 0, %s374
      %s394 = sphi 0, %s396
      %s397 = sphi 0, %s394
      %s398 = sphi 0, %s397
      %s414 = sphi 0, %s398
    $region4: #{tpu_custom_call.1} parent=1 // loop_header_branch
      %41 = sbr.rel (%p39) target = $region8
    $region5: #{tpu_custom_call.1} parent=1 // loop_body
      %s43 = ssub.s32 %s38, 1
      %s44 = ssub.s32 %s38, 2
      %s45 = sadd.s32 %s38, 1
      %s46 = ssub.s32 %s38, %s45
      %p47 = scmp.eq.s32.totalorder %s46, 0
      %s49 = sadd.s32 %s48, 1
      %s50 = scalar_select %p47, %s48, %s49
      %p53 = pneg %p47
      %p54 = scmp.eq.s32.totalorder %s38, 1
      %p55 = por %p53, %p54
      %p56 = scmp.ne.s32.totalorder %s48, %s51
      %p57 = scmp.eq.s32.totalorder %s38, 0
      %p58 = por %p56, %p57
      %p59 = scmp.ne.s32.totalorder %s48, %s51
      %p60 = scmp.eq.s32.totalorder %s43, 1
      %p61 = por %p59, %p60
      %p62 = scmp.ne.s32.totalorder %s51, %s52
      %p63 = scmp.eq.s32.totalorder %s43, 0
      %p64 = por %p62, %p63
      %p65 = scmp.ne.s32.totalorder %s51, %s52
      %p66 = scmp.eq.s32.totalorder %s44, 1
      %p67 = por %p65, %p66
      %p69 = scmp.ne.s32.totalorder %s52, %s68
      %p70 = scmp.eq.s32.totalorder %s44, 0
      %p71 = por %p69, %p70
      %s72 = ssub.s32 %s38, %s45
      %p73 = scmp.eq.s32.totalorder %s72, 0
      %s75 = sadd.s32 %s74, 1
      %s76 = scalar_select %p73, %s74, %s75
      %p79 = pneg %p73
      %p80 = scmp.eq.s32.totalorder %s38, 1
      %p81 = por %p79, %p80
      %p82 = scmp.ne.s32.totalorder %s74, %s77
      %p83 = scmp.eq.s32.totalorder %s38, 0
      %p84 = por %p82, %p83
      %p85 = scmp.ne.s32.totalorder %s74, %s77
      %p86 = scmp.eq.s32.totalorder %s43, 1
      %p87 = por %p85, %p86
      %p88 = scmp.ne.s32.totalorder %s77, %s78
      %p89 = scmp.eq.s32.totalorder %s43, 0
      %p90 = por %p88, %p89
      %p91 = scmp.ne.s32.totalorder %s77, %s78
      %p92 = scmp.eq.s32.totalorder %s44, 1
      %p93 = por %p91, %p92
      %p95 = scmp.ne.s32.totalorder %s78, %s94
      %p96 = scmp.eq.s32.totalorder %s44, 0
      %p97 = por %p95, %p96
      %s99 = sadd.s32 %s98, 1
      %p102 = scmp.eq.s32.totalorder %s38, 1
      %p103 = scmp.ne.s32.totalorder %s98, %s100
      %p104 = scmp.eq.s32.totalorder %s38, 0
      %p105 = por %p103, %p104
      %p106 = scmp.ne.s32.totalorder %s98, %s100
      %p107 = scmp.eq.s32.totalorder %s43, 1
      %p108 = por %p106, %p107
      %p109 = scmp.ne.s32.totalorder %s100, %s101
      %p110 = scmp.eq.s32.totalorder %s43, 0
      %p111 = por %p109, %p110
      %p112 = scmp.ne.s32.totalorder %s100, %s101
      %p113 = scmp.eq.s32.totalorder %s44, 1
      %p114 = por %p112, %p113
      %p116 = scmp.ne.s32.totalorder %s101, %s115
      %p117 = scmp.eq.s32.totalorder %s44, 0
      %p118 = por %p116, %p117
      %s120 = sadd.s32 %s119, 1
      %p123 = scmp.eq.s32.totalorder %s38, 1
      %p124 = scmp.ne.s32.totalorder %s119, %s121
      %p125 = scmp.eq.s32.totalorder %s38, 0
      %p126 = por %p124, %p125
      %p127 = scmp.ne.s32.totalorder %s119, %s121
      %p128 = scmp.eq.s32.totalorder %s43, 1
      %p129 = por %p127, %p128
      %p130 = scmp.ne.s32.totalorder %s121, %s122
      %p131 = scmp.eq.s32.totalorder %s43, 0
      %p132 = por %p130, %p131
      %p133 = scmp.ne.s32.totalorder %s121, %s122
      %p134 = scmp.eq.s32.totalorder %s44, 1
      %p135 = por %p133, %p134
      %p137 = scmp.ne.s32.totalorder %s122, %s136
      %p138 = scmp.eq.s32.totalorder %s44, 0
      %p139 = por %p137, %p138
      %s141 = sadd.s32 %s140, 1
      %p144 = scmp.eq.s32.totalorder %s38, 1
      %p145 = scmp.ne.s32.totalorder %s140, %s142
      %p146 = scmp.eq.s32.totalorder %s38, 0
      %p147 = por %p145, %p146
      %p148 = scmp.ne.s32.totalorder %s140, %s142
      %p149 = scmp.eq.s32.totalorder %s43, 1
      %p150 = por %p148, %p149
      %p151 = scmp.ne.s32.totalorder %s142, %s143
      %p152 = scmp.eq.s32.totalorder %s43, 0
      %p153 = por %p151, %p152
      %p154 = scmp.ne.s32.totalorder %s142, %s143
      %p155 = scmp.eq.s32.totalorder %s44, 1
      %p156 = por %p154, %p155
      %p158 = scmp.ne.s32.totalorder %s143, %s157
      %p159 = scmp.eq.s32.totalorder %s44, 0
      %p160 = por %p158, %p159
      %s162 = sadd.s32 %s161, 1
      %p165 = scmp.eq.s32.totalorder %s38, 1
      %p166 = scmp.ne.s32.totalorder %s161, %s163
      %p167 = scmp.eq.s32.totalorder %s38, 0
      %p168 = por %p166, %p167
      %p169 = scmp.ne.s32.totalorder %s161, %s163
      %p170 = scmp.eq.s32.totalorder %s43, 1
      %p171 = por %p169, %p170
      %p172 = scmp.ne.s32.totalorder %s163, %s164
      %p173 = scmp.eq.s32.totalorder %s43, 0
      %p174 = por %p172, %p173
      %p175 = scmp.ne.s32.totalorder %s163, %s164
      %p176 = scmp.eq.s32.totalorder %s44, 1
      %p177 = por %p175, %p176
      %p179 = scmp.ne.s32.totalorder %s164, %s178
      %p180 = scmp.eq.s32.totalorder %s44, 0
      %p181 = por %p179, %p180
      %s183 = sadd.s32 %s182, 1
      %p186 = scmp.eq.s32.totalorder %s38, 1
      %p187 = scmp.ne.s32.totalorder %s182, %s184
      %p188 = scmp.eq.s32.totalorder %s38, 0
      %p189 = por %p187, %p188
      %p190 = scmp.ne.s32.totalorder %s182, %s184
      %p191 = scmp.eq.s32.totalorder %s43, 1
      %p192 = por %p190, %p191
      %p193 = scmp.ne.s32.totalorder %s184, %s185
      %p194 = scmp.eq.s32.totalorder %s43, 0
      %p195 = por %p193, %p194
      %p196 = scmp.ne.s32.totalorder %s184, %s185
      %p197 = scmp.eq.s32.totalorder %s44, 1
      %p198 = por %p196, %p197
      %p200 = scmp.ne.s32.totalorder %s185, %s199
      %p201 = scmp.eq.s32.totalorder %s44, 0
      %p202 = por %p200, %p201
      %s204 = sadd.s32 %s203, 1
      %p207 = scmp.eq.s32.totalorder %s38, 1
      %p208 = scmp.ne.s32.totalorder %s203, %s205
      %p209 = scmp.eq.s32.totalorder %s38, 0
      %p210 = por %p208, %p209
      %p211 = scmp.ne.s32.totalorder %s203, %s205
      %p212 = scmp.eq.s32.totalorder %s43, 1
      %p213 = por %p211, %p212
      %p214 = scmp.ne.s32.totalorder %s205, %s206
      %p215 = scmp.eq.s32.totalorder %s43, 0
      %p216 = por %p214, %p215
      %p217 = scmp.ne.s32.totalorder %s205, %s206
      %p218 = scmp.eq.s32.totalorder %s44, 1
      %p219 = por %p217, %p218
      %p221 = scmp.ne.s32.totalorder %s206, %s220
      %p222 = scmp.eq.s32.totalorder %s44, 0
      %p223 = por %p221, %p222
      %s225 = sadd.s32 %s224, 1
      %p228 = scmp.eq.s32.totalorder %s38, 1
      %p229 = scmp.ne.s32.totalorder %s224, %s226
      %p230 = scmp.eq.s32.totalorder %s38, 0
      %p231 = por %p229, %p230
      %p232 = scmp.ne.s32.totalorder %s224, %s226
      %p233 = scmp.eq.s32.totalorder %s43, 1
      %p234 = por %p232, %p233
      %p235 = scmp.ne.s32.totalorder %s226, %s227
      %p236 = scmp.eq.s32.totalorder %s43, 0
      %p237 = por %p235, %p236
      %p238 = scmp.ne.s32.totalorder %s226, %s227
      %p239 = scmp.eq.s32.totalorder %s44, 1
      %p240 = por %p238, %p239
      %p242 = scmp.ne.s32.totalorder %s227, %s241
      %p243 = scmp.eq.s32.totalorder %s44, 0
      %p244 = por %p242, %p243
      %s246 = sadd.s32 %s245, 1
      %p249 = scmp.eq.s32.totalorder %s38, 1
      %p250 = scmp.ne.s32.totalorder %s245, %s247
      %p251 = scmp.eq.s32.totalorder %s38, 0
      %p252 = por %p250, %p251
      %p253 = scmp.ne.s32.totalorder %s245, %s247
      %p254 = scmp.eq.s32.totalorder %s43, 1
      %p255 = por %p253, %p254
      %p256 = scmp.ne.s32.totalorder %s247, %s248
      %p257 = scmp.eq.s32.totalorder %s43, 0
      %p258 = por %p256, %p257
      %p259 = scmp.ne.s32.totalorder %s247, %s248
      %p260 = scmp.eq.s32.totalorder %s44, 1
      %p261 = por %p259, %p260
      %p263 = scmp.ne.s32.totalorder %s248, %s262
      %p264 = scmp.eq.s32.totalorder %s44, 0
      %p265 = por %p263, %p264
      %s267 = sadd.s32 %s266, 1
      %p270 = scmp.eq.s32.totalorder %s38, 1
      %p271 = scmp.ne.s32.totalorder %s266, %s268
      %p272 = scmp.eq.s32.totalorder %s38, 0
      %p273 = por %p271, %p272
      %p274 = scmp.ne.s32.totalorder %s266, %s268
      %p275 = scmp.eq.s32.totalorder %s43, 1
      %p276 = por %p274, %p275
      %p277 = scmp.ne.s32.totalorder %s268, %s269
      %p278 = scmp.eq.s32.totalorder %s43, 0
      %p279 = por %p277, %p278
      %p280 = scmp.ne.s32.totalorder %s268, %s269
      %p281 = scmp.eq.s32.totalorder %s44, 1
      %p282 = por %p280, %p281
      %p284 = scmp.ne.s32.totalorder %s269, %s283
      %p285 = scmp.eq.s32.totalorder %s44, 0
      %p286 = por %p284, %p285
      %s288 = sadd.s32 %s287, 1
      %p291 = scmp.eq.s32.totalorder %s38, 1
      %p292 = scmp.ne.s32.totalorder %s287, %s289
      %p293 = scmp.eq.s32.totalorder %s38, 0
      %p294 = por %p292, %p293
      %p295 = scmp.ne.s32.totalorder %s287, %s289
      %p296 = scmp.eq.s32.totalorder %s43, 1
      %p297 = por %p295, %p296
      %p298 = scmp.ne.s32.totalorder %s289, %s290
      %p299 = scmp.eq.s32.totalorder %s43, 0
      %p300 = por %p298, %p299
      %p301 = scmp.ne.s32.totalorder %s289, %s290
      %p302 = scmp.eq.s32.totalorder %s44, 1
      %p303 = por %p301, %p302
      %p305 = scmp.ne.s32.totalorder %s290, %s304
      %p306 = scmp.eq.s32.totalorder %s44, 0
      %p307 = por %p305, %p306
      %s309 = sadd.s32 %s308, 1
      %p312 = scmp.eq.s32.totalorder %s38, 1
      %p313 = scmp.ne.s32.totalorder %s308, %s310
      %p314 = scmp.eq.s32.totalorder %s38, 0
      %p315 = por %p313, %p314
      %p316 = scmp.ne.s32.totalorder %s308, %s310
      %p317 = scmp.eq.s32.totalorder %s43, 1
      %p318 = por %p316, %p317
      %p319 = scmp.ne.s32.totalorder %s310, %s311
      %p320 = scmp.eq.s32.totalorder %s43, 0
      %p321 = por %p319, %p320
      %p322 = scmp.ne.s32.totalorder %s310, %s311
      %p323 = scmp.eq.s32.totalorder %s44, 1
      %p324 = por %p322, %p323
      %p326 = scmp.ne.s32.totalorder %s311, %s325
      %p327 = scmp.eq.s32.totalorder %s44, 0
      %p328 = por %p326, %p327
      %s330 = sadd.s32 %s329, 1
      %p333 = scmp.eq.s32.totalorder %s38, 1
      %p334 = scmp.ne.s32.totalorder %s329, %s331
      %p335 = scmp.eq.s32.totalorder %s38, 0
      %p336 = por %p334, %p335
      %p337 = scmp.ne.s32.totalorder %s329, %s331
      %p338 = scmp.eq.s32.totalorder %s43, 1
      %p339 = por %p337, %p338
      %p340 = scmp.ne.s32.totalorder %s331, %s332
      %p341 = scmp.eq.s32.totalorder %s43, 0
      %p342 = por %p340, %p341
      %p343 = scmp.ne.s32.totalorder %s331, %s332
      %p344 = scmp.eq.s32.totalorder %s44, 1
      %p345 = por %p343, %p344
      %p347 = scmp.ne.s32.totalorder %s332, %s346
      %p348 = scmp.eq.s32.totalorder %s44, 0
      %p349 = por %p347, %p348
      %s351 = sadd.s32 %s350, 1
      %p354 = scmp.eq.s32.totalorder %s38, 1
      %p355 = scmp.ne.s32.totalorder %s350, %s352
      %p356 = scmp.eq.s32.totalorder %s38, 0
      %p357 = por %p355, %p356
      %p358 = scmp.ne.s32.totalorder %s350, %s352
      %p359 = scmp.eq.s32.totalorder %s43, 1
      %p360 = por %p358, %p359
      %p361 = scmp.ne.s32.totalorder %s352, %s353
      %p362 = scmp.eq.s32.totalorder %s43, 0
      %p363 = por %p361, %p362
      %p364 = scmp.ne.s32.totalorder %s352, %s353
      %p365 = scmp.eq.s32.totalorder %s44, 1
      %p366 = por %p364, %p365
      %p368 = scmp.ne.s32.totalorder %s353, %s367
      %p369 = scmp.eq.s32.totalorder %s44, 0
      %p370 = por %p368, %p369
      %s372 = sadd.s32 %s371, 1
      %p375 = scmp.eq.s32.totalorder %s38, 1
      %p376 = scmp.ne.s32.totalorder %s371, %s373
      %p377 = scmp.eq.s32.totalorder %s38, 0
      %p378 = por %p376, %p377
      %p379 = scmp.ne.s32.totalorder %s371, %s373
      %p380 = scmp.eq.s32.totalorder %s43, 1
      %p381 = por %p379, %p380
      %p382 = scmp.ne.s32.totalorder %s373, %s374
      %p383 = scmp.eq.s32.totalorder %s43, 0
      %p384 = por %p382, %p383
      %p385 = scmp.ne.s32.totalorder %s373, %s374
      %p386 = scmp.eq.s32.totalorder %s44, 1
      %p387 = por %p385, %p386
      %p389 = scmp.ne.s32.totalorder %s374, %s388
      %p390 = scmp.eq.s32.totalorder %s44, 0
      %p391 = por %p389, %p390
      %s392 = ssub.s32 %s38, %s45
      %p393 = scmp.eq.s32.totalorder %s392, 0
      %s395 = sadd.s32 %s394, 1
      %s396 = scalar_select %p393, %s394, %s395
      %p399 = pneg %p393
      %p400 = scmp.eq.s32.totalorder %s38, 1
      %p401 = por %p399, %p400
      %p402 = scmp.ne.s32.totalorder %s394, %s397
      %p403 = scmp.eq.s32.totalorder %s38, 0
      %p404 = por %p402, %p403
      %p405 = scmp.ne.s32.totalorder %s394, %s397
      %p406 = scmp.eq.s32.totalorder %s43, 1
      %p407 = por %p405, %p406
      %p408 = scmp.ne.s32.totalorder %s397, %s398
      %p409 = scmp.eq.s32.totalorder %s43, 0
      %p410 = por %p408, %p409
      %p411 = scmp.ne.s32.totalorder %s397, %s398
      %p412 = scmp.eq.s32.totalorder %s44, 1
      %p413 = por %p411, %p412
      %p415 = scmp.ne.s32.totalorder %s398, %s414
      %p416 = scmp.eq.s32.totalorder %s44, 0
      %p417 = por %p415, %p416
      %p418 = scmp.le.s32.totalorder 1, %s38
      %p419 = scmp.lt.s32.totalorder %s38, 3
      %p420 = pnand %p418, %p419
      %p421 = pneg %p420
      // Predicated region
      $region9: #{tpu_custom_call.1} parent=5 // pred_check
        _
      $region10: #{tpu_custom_call.1} parent=5 // pred_check_branch
        %423 = sbr.rel (%p420) target = $region12
      $region11: #{tpu_custom_call.1} parent=5 // pred_region
        %s424 = ssub.s32 %s38, 1
        // Predicated region
        $region13: #{tpu_custom_call.1} parent=11 // pred_check
          %p425 = pneg %p111
        $region14: #{tpu_custom_call.1} parent=11 // pred_check_branch
          %427 = sbr.rel (%p425) target = $region16
        $region15: #{tpu_custom_call.1} parent=11 // pred_region
          %s429 = ssub.s32 4608, 4608
          %430 = vsyncadd [#allocation9], %s429
          %s431 = sshll.u32 [#allocation10], 4
          %s432 = int_to_ptr.vmem [resolvable:$true] %s431
          %437 = dma.hbm_to_vmem [thread:$0]  %s2, 4608, %s432, [#allocation9], 128, 128, 8
        $region16: #{tpu_custom_call.1} parent=11 // pred_fallthru
          _
        // Predicated region
        $region17: #{tpu_custom_call.1} parent=11 // pred_check
          %p438 = pneg %p132
        $region18: #{tpu_custom_call.1} parent=11 // pred_check_branch
          %440 = sbr.rel (%p438) target = $region20
        $region19: #{tpu_custom_call.1} parent=11 // pred_region
          %s442 = ssub.s32 2048, 2048
          %443 = vsyncadd [#allocation12], %s442
          %s444 = sshll.u32 [#allocation11], 4
          %s445 = int_to_ptr.vmem [resolvable:$true] %s444
          %450 = dma.hbm_to_vmem [thread:$0]  %s3, 2048, %s445, [#allocation12], 128, 128, 8
        $region20: #{tpu_custom_call.1} parent=11 // pred_fallthru
          _
        // Predicated region
        $region21: #{tpu_custom_call.1} parent=11 // pred_check
          %p451 = pneg %p153
        $region22: #{tpu_custom_call.1} parent=11 // pred_check_branch
          %453 = sbr.rel (%p451) target = $region24
        $region23: #{tpu_custom_call.1} parent=11 // pred_region
          %s455 = ssub.s32 2048, 2048
          %456 = vsyncadd [#allocation12], %s455
          %s457 = sshll.u32 [#allocation13], 4
          %s458 = int_to_ptr.vmem [resolvable:$true] %s457
          %463 = dma.hbm_to_vmem [thread:$0]  %s4, 2048, %s458, [#allocation12], 128, 128, 8
        $region24: #{tpu_custom_call.1} parent=11 // pred_fallthru
          _
        // Predicated region
        $region25: #{tpu_custom_call.1} parent=11 // pred_check
          %p464 = pneg %p174
        $region26: #{tpu_custom_call.1} parent=11 // pred_check_branch
          %466 = sbr.rel (%p464) target = $region28
        $region27: #{tpu_custom_call.1} parent=11 // pred_region
          %s468 = ssub.s32 16, 16
          %469 = vsyncadd [#allocation15], %s468
          %s471 = sshll.u32 [#allocation14], 4
          %s472 = int_to_ptr.vmem [resolvable:$true] %s471
          %474 = dma.hbm_to_vmem [thread:$0]  %s5, 16, %s472, [#allocation15]
        $region28: #{tpu_custom_call.1} parent=11 // pred_fallthru
          _
        // Predicated region
        $region29: #{tpu_custom_call.1} parent=11 // pred_check
          %p475 = pneg %p195
        $region30: #{tpu_custom_call.1} parent=11 // pred_check_branch
          %477 = sbr.rel (%p475) target = $region32
        $region31: #{tpu_custom_call.1} parent=11 // pred_region
          %s479 = ssub.s32 16, 16
          %480 = vsyncadd [#allocation15], %s479
          %s482 = sshll.u32 [#allocation16], 4
          %s483 = int_to_ptr.vmem [resolvable:$true] %s482
          %485 = dma.hbm_to_vmem [thread:$0]  %s6, 16, %s483, [#allocation15]
        $region32: #{tpu_custom_call.1} parent=11 // pred_fallthru
          _
        // Predicated region
        $region33: #{tpu_custom_call.1} parent=11 // pred_check
          %p486 = pneg %p216
        $region34: #{tpu_custom_call.1} parent=11 // pred_check_branch
          %488 = sbr.rel (%p486) target = $region36
        $region35: #{tpu_custom_call.1} parent=11 // pred_region
          %s490 = ssub.s32 9216, 9216
          %491 = vsyncadd [#allocation18], %s490
          %s492 = sshll.u32 [#allocation17], 4
          %s493 = int_to_ptr.vmem [resolvable:$true] %s492
          %498 = dma.hbm_to_vmem [thread:$0]  %s7, 9216, %s493, [#allocation18], 64, 64, 4
        $region36: #{tpu_custom_call.1} parent=11 // pred_fallthru
          _
        // Predicated region
        $region37: #{tpu_custom_call.1} parent=11 // pred_check
          %p499 = pneg %p237
        $region38: #{tpu_custom_call.1} parent=11 // pred_check_branch
          %501 = sbr.rel (%p499) target = $region40
        $region39: #{tpu_custom_call.1} parent=11 // pred_region
          %s503 = ssub.s32 2048, 2048
          %504 = vsyncadd [#allocation18], %s503
          %s505 = sshll.u32 [#allocation19], 4
          %s506 = int_to_ptr.vmem [resolvable:$true] %s505
          %511 = dma.hbm_to_vmem [thread:$0]  %s8, 2048, %s506, [#allocation18], 128, 128, 8
        $region40: #{tpu_custom_call.1} parent=11 // pred_fallthru
          _
        // Predicated region
        $region41: #{tpu_custom_call.1} parent=11 // pred_check
          %p512 = pneg %p258
        $region42: #{tpu_custom_call.1} parent=11 // pred_check_branch
          %514 = sbr.rel (%p512) target = $region44
        $region43: #{tpu_custom_call.1} parent=11 // pred_region
          %s516 = ssub.s32 2048, 2048
          %517 = vsyncadd [#allocation21], %s516
          %s518 = sshll.u32 [#allocation20], 4
          %s519 = int_to_ptr.vmem [resolvable:$true] %s518
          %524 = dma.hbm_to_vmem [thread:$0]  %s9, 2048, %s519, [#allocation21], 128, 128, 8
        $region44: #{tpu_custom_call.1} parent=11 // pred_fallthru
          _
        // Predicated region
        $region45: #{tpu_custom_call.1} parent=11 // pred_check
          %p525 = pneg %p279
        $region46: #{tpu_custom_call.1} parent=11 // pred_check_branch
          %527 = sbr.rel (%p525) target = $region48
        $region47: #{tpu_custom_call.1} parent=11 // pred_region
          %s529 = ssub.s32 16, 16
          %530 = vsyncadd [#allocation21], %s529
          %s532 = sshll.u32 [#allocation22], 4
          %s533 = int_to_ptr.vmem [resolvable:$true] %s532
          %535 = dma.hbm_to_vmem [thread:$0]  %s10, 16, %s533, [#allocation21]
        $region48: #{tpu_custom_call.1} parent=11 // pred_fallthru
          _
        // Predicated region
        $region49: #{tpu_custom_call.1} parent=11 // pred_check
          %p536 = pneg %p300
        $region50: #{tpu_custom_call.1} parent=11 // pred_check_branch
          %538 = sbr.rel (%p536) target = $region52
        $region51: #{tpu_custom_call.1} parent=11 // pred_region
          %s540 = ssub.s32 16, 16
          %541 = vsyncadd [#allocation24], %s540
          %s543 = sshll.u32 [#allocation23], 4
          %s544 = int_to_ptr.vmem [resolvable:$true] %s543
          %546 = dma.hbm_to_vmem [thread:$0]  %s11, 16, %s544, [#allocation24]
        $region52: #{tpu_custom_call.1} parent=11 // pred_fallthru
          _
        // Predicated region
        $region53: #{tpu_custom_call.1} parent=11 // pred_check
          %p547 = pneg %p321
        $region54: #{tpu_custom_call.1} parent=11 // pred_check_branch
          %549 = sbr.rel (%p547) target = $region56
        $region55: #{tpu_custom_call.1} parent=11 // pred_region
          %s551 = ssub.s32 9216, 9216
          %552 = vsyncadd [#allocation24], %s551
          %s553 = sshll.u32 [#allocation25], 4
          %s554 = int_to_ptr.vmem [resolvable:$true] %s553
          %559 = dma.hbm_to_vmem [thread:$0]  %s12, 9216, %s554, [#allocation24], 64, 64, 4
        $region56: #{tpu_custom_call.1} parent=11 // pred_fallthru
          _
        // Predicated region
        $region57: #{tpu_custom_call.1} parent=11 // pred_check
          %p560 = pneg %p342
        $region58: #{tpu_custom_call.1} parent=11 // pred_check_branch
          %562 = sbr.rel (%p560) target = $region60
        $region59: #{tpu_custom_call.1} parent=11 // pred_region
          %s564 = ssub.s32 16, 16
          %565 = vsyncadd [#allocation27], %s564
          %s567 = sshll.u32 [#allocation26], 4
          %s568 = int_to_ptr.vmem [resolvable:$true] %s567
          %570 = dma.hbm_to_vmem [thread:$0]  %s13, 16, %s568, [#allocation27]
        $region60: #{tpu_custom_call.1} parent=11 // pred_fallthru
          _
        // Predicated region
        $region61: #{tpu_custom_call.1} parent=11 // pred_check
          %p571 = pneg %p363
        $region62: #{tpu_custom_call.1} parent=11 // pred_check_branch
          %573 = sbr.rel (%p571) target = $region64
        $region63: #{tpu_custom_call.1} parent=11 // pred_region
          %s575 = ssub.s32 1024, 1024
          %576 = vsyncadd [#allocation27], %s575
          %s577 = sshll.u32 [#allocation28], 4
          %s578 = int_to_ptr.vmem [resolvable:$true] %s577
          %583 = dma.hbm_to_vmem [thread:$0]  %s14, 1024, %s578, [#allocation27], 64, 64, 4
        $region64: #{tpu_custom_call.1} parent=11 // pred_fallthru
          _
        // Predicated region
        $region65: #{tpu_custom_call.1} parent=11 // pred_check
          %p584 = pneg %p384
        $region66: #{tpu_custom_call.1} parent=11 // pred_check_branch
          %586 = sbr.rel (%p584) target = $region68
        $region67: #{tpu_custom_call.1} parent=11 // pred_region
          %s588 = ssub.s32 16, 16
          %589 = vsyncadd [#allocation30], %s588
          %s591 = sshll.u32 [#allocation29], 4
          %s592 = int_to_ptr.vmem [resolvable:$true] %s591
          %594 = dma.hbm_to_vmem [thread:$0]  %s15, 16, %s592, [#allocation30]
        $region68: #{tpu_custom_call.1} parent=11 // pred_fallthru
          _
      $region12: #{tpu_custom_call.1} parent=5 // pred_fallthru
        _
      %p595 = scmp.lt.s32.totalorder %s38, 2
      // Predicated region
      $region69: #{tpu_custom_call.1} parent=5 // pred_check
        %p596 = pneg %p595
      $region70: #{tpu_custom_call.1} parent=5 // pred_check_branch
        %598 = sbr.rel (%p596) target = $region72
      $region71: #{tpu_custom_call.1} parent=5 // pred_region
        // Predicated region
        $region73: #{tpu_custom_call.1} parent=71 // pred_check
          %p599 = pneg %p58
        $region74: #{tpu_custom_call.1} parent=71 // pred_check_branch
          %601 = sbr.rel (%p599) target = $region76
        $region75: #{tpu_custom_call.1} parent=71 // pred_region
          %s602 = sand.u32 %s48, 1
          %s603 = scalar_lea.sflag [#allocation6], %s602
          %s604 = sand.u32 %s48, 1
          %s605 = smul.addr %s604, 168
          %s606 = scalar_lea.vmem [#allocation5], %s605
          %s608 = ssub.s32 2688, 2688
          %609 = vsyncadd %s603, %s608
          %s610 = smul.addr %s38, 42
          %s611 = smul.addr %s610, 64
          %s612 = scalar_lea.hbm %s0, %s611
          %s613 = sshll.u32 %s606, 4
          %s614 = int_to_ptr.vmem [resolvable:$true] %s613
          %619 = dma.hbm_to_vmem [thread:$0]  %s612, 2688, %s614, %s603, 64, 64, 4
        $region76: #{tpu_custom_call.1} parent=71 // pred_fallthru
          _
        // Predicated region
        $region77: #{tpu_custom_call.1} parent=71 // pred_check
          %p620 = pneg %p84
        $region78: #{tpu_custom_call.1} parent=71 // pred_check_branch
          %622 = sbr.rel (%p620) target = $region80
        $region79: #{tpu_custom_call.1} parent=71 // pred_region
          %s623 = sand.u32 %s38, 1
          %s624 = scalar_lea.sflag [#allocation9], %s623
          %s625 = sand.u32 %s74, 1
          %s626 = scalar_lea.vmem [#allocation8], %s625
          %s628 = ssub.s32 16, 16
          %629 = vsyncadd %s624, %s628
          %s630 = smul.addr %s38, 16
          %s631 = scalar_lea.hbm %s1, %s630
          %s633 = sshll.u32 %s626, 4
          %s634 = int_to_ptr.vmem [resolvable:$true] %s633
          %636 = dma.hbm_to_vmem [thread:$0]  %s631, 16, %s634, %s624
        $region80: #{tpu_custom_call.1} parent=71 // pred_fallthru
          _
      $region72: #{tpu_custom_call.1} parent=5 // pred_fallthru
        _
      %p637 = scmp.le.s32.totalorder 1, %s38
      %p638 = scmp.lt.s32.totalorder %s38, 3
      %p639 = pnand %p637, %p638
      %p640 = pneg %p639
      // Predicated region
      $region81: #{tpu_custom_call.1} parent=5 // pred_check
        _
      $region82: #{tpu_custom_call.1} parent=5 // pred_check_branch
        %642 = sbr.rel (%p639) target = $region84
      $region83: #{tpu_custom_call.1} parent=5 // pred_region
        %s643 = ssub.s32 %s38, 1
        %s644 = sand.u32 %s51, 1
        %s645 = scalar_lea.sflag [#allocation6], %s644
        %s646 = sand.u32 %s51, 1
        %s647 = smul.addr %s646, 168
        %s648 = scalar_lea.vmem [#allocation5], %s647
        // Predicated region
        $region85: #{tpu_custom_call.1} parent=83 // pred_check
          %p649 = pneg %p64
        $region86: #{tpu_custom_call.1} parent=83 // pred_check_branch
          %651 = sbr.rel (%p649) target = $region88
        $region87: #{tpu_custom_call.1} parent=83 // pred_region
          %652 = dma.done %s645, 2688
        $region88: #{tpu_custom_call.1} parent=83 // pred_fallthru
          _
        %s653 = sand.u32 %s43, 1
        %s654 = scalar_lea.sflag [#allocation9], %s653
        %s655 = sand.u32 %s77, 1
        %s656 = scalar_lea.vmem [#allocation8], %s655
        // Predicated region
        $region89: #{tpu_custom_call.1} parent=83 // pred_check
          %p657 = pneg %p90
        $region90: #{tpu_custom_call.1} parent=83 // pred_check_branch
          %659 = sbr.rel (%p657) target = $region92
        $region91: #{tpu_custom_call.1} parent=83 // pred_region
          %660 = dma.done %s654, 16
        $region92: #{tpu_custom_call.1} parent=83 // pred_fallthru
          _
        // Predicated region
        $region93: #{tpu_custom_call.1} parent=83 // pred_check
          %p661 = pneg %p111
        $region94: #{tpu_custom_call.1} parent=83 // pred_check_branch
          %663 = sbr.rel (%p661) target = $region96
        $region95: #{tpu_custom_call.1} parent=83 // pred_region
          %664 = dma.done [#allocation9], 4608
        $region96: #{tpu_custom_call.1} parent=83 // pred_fallthru
          _
        // Predicated region
        $region97: #{tpu_custom_call.1} parent=83 // pred_check
          %p665 = pneg %p132
        $region98: #{tpu_custom_call.1} parent=83 // pred_check_branch
          %667 = sbr.rel (%p665) target = $region100
        $region99: #{tpu_custom_call.1} parent=83 // pred_region
          %668 = dma.done [#allocation12], 2048
        $region100: #{tpu_custom_call.1} parent=83 // pred_fallthru
          _
        // Predicated region
        $region101: #{tpu_custom_call.1} parent=83 // pred_check
          %p669 = pneg %p153
        $region102: #{tpu_custom_call.1} parent=83 // pred_check_branch
          %671 = sbr.rel (%p669) target = $region104
        $region103: #{tpu_custom_call.1} parent=83 // pred_region
          %672 = dma.done [#allocation12], 2048
        $region104: #{tpu_custom_call.1} parent=83 // pred_fallthru
          _
        // Predicated region
        $region105: #{tpu_custom_call.1} parent=83 // pred_check
          %p673 = pneg %p174
        $region106: #{tpu_custom_call.1} parent=83 // pred_check_branch
          %675 = sbr.rel (%p673) target = $region108
        $region107: #{tpu_custom_call.1} parent=83 // pred_region
          %676 = dma.done [#allocation15], 16
        $region108: #{tpu_custom_call.1} parent=83 // pred_fallthru
          _
        // Predicated region
        $region109: #{tpu_custom_call.1} parent=83 // pred_check
          %p677 = pneg %p195
        $region110: #{tpu_custom_call.1} parent=83 // pred_check_branch
          %679 = sbr.rel (%p677) target = $region112
        $region111: #{tpu_custom_call.1} parent=83 // pred_region
          %680 = dma.done [#allocation15], 16
        $region112: #{tpu_custom_call.1} parent=83 // pred_fallthru
          _
        // Predicated region
        $region113: #{tpu_custom_call.1} parent=83 // pred_check
          %p681 = pneg %p216
        $region114: #{tpu_custom_call.1} parent=83 // pred_check_branch
          %683 = sbr.rel (%p681) target = $region116
        $region115: #{tpu_custom_call.1} parent=83 // pred_region
          %684 = dma.done [#allocation18], 9216
        $region116: #{tpu_custom_call.1} parent=83 // pred_fallthru
          _
        // Predicated region
        $region117: #{tpu_custom_call.1} parent=83 // pred_check
          %p685 = pneg %p237
        $region118: #{tpu_custom_call.1} parent=83 // pred_check_branch
          %687 = sbr.rel (%p685) target = $region120
        $region119: #{tpu_custom_call.1} parent=83 // pred_region
          %688 = dma.done [#allocation18], 2048
        $region120: #{tpu_custom_call.1} parent=83 // pred_fallthru
          _
        // Predicated region
        $region121: #{tpu_custom_call.1} parent=83 // pred_check
          %p689 = pneg %p258
        $region122: #{tpu_custom_call.1} parent=83 // pred_check_branch
          %691 = sbr.rel (%p689) target = $region124
        $region123: #{tpu_custom_call.1} parent=83 // pred_region
          %692 = dma.done [#allocation21], 2048
        $region124: #{tpu_custom_call.1} parent=83 // pred_fallthru
          _
        // Predicated region
        $region125: #{tpu_custom_call.1} parent=83 // pred_check
          %p693 = pneg %p279
        $region126: #{tpu_custom_call.1} parent=83 // pred_check_branch
          %695 = sbr.rel (%p693) target = $region128
        $region127: #{tpu_custom_call.1} parent=83 // pred_region
          %696 = dma.done [#allocation21], 16
        $region128: #{tpu_custom_call.1} parent=83 // pred_fallthru
          _
        // Predicated region
        $region129: #{tpu_custom_call.1} parent=83 // pred_check
          %p697 = pneg %p300
        $region130: #{tpu_custom_call.1} parent=83 // pred_check_branch
          %699 = sbr.rel (%p697) target = $region132
        $region131: #{tpu_custom_call.1} parent=83 // pred_region
          %700 = dma.done [#allocation24], 16
        $region132: #{tpu_custom_call.1} parent=83 // pred_fallthru
          _
        // Predicated region
        $region133: #{tpu_custom_call.1} parent=83 // pred_check
          %p701 = pneg %p321
        $region134: #{tpu_custom_call.1} parent=83 // pred_check_branch
          %703 = sbr.rel (%p701) target = $region136
        $region135: #{tpu_custom_call.1} parent=83 // pred_region
          %704 = dma.done [#allocation24], 9216
        $region136: #{tpu_custom_call.1} parent=83 // pred_fallthru
          _
        // Predicated region
        $region137: #{tpu_custom_call.1} parent=83 // pred_check
          %p705 = pneg %p342
        $region138: #{tpu_custom_call.1} parent=83 // pred_check_branch
          %707 = sbr.rel (%p705) target = $region140
        $region139: #{tpu_custom_call.1} parent=83 // pred_region
          %708 = dma.done [#allocation27], 16
        $region140: #{tpu_custom_call.1} parent=83 // pred_fallthru
          _
        // Predicated region
        $region141: #{tpu_custom_call.1} parent=83 // pred_check
          %p709 = pneg %p363
        $region142: #{tpu_custom_call.1} parent=83 // pred_check_branch
          %711 = sbr.rel (%p709) target = $region144
        $region143: #{tpu_custom_call.1} parent=83 // pred_region
          %712 = dma.done [#allocation27], 1024
        $region144: #{tpu_custom_call.1} parent=83 // pred_fallthru
          _
        // Predicated region
        $region145: #{tpu_custom_call.1} parent=83 // pred_check
          %p713 = pneg %p384
        $region146: #{tpu_custom_call.1} parent=83 // pred_check_branch
          %715 = sbr.rel (%p713) target = $region148
        $region147: #{tpu_custom_call.1} parent=83 // pred_region
          %716 = dma.done [#allocation30], 16
        $region148: #{tpu_custom_call.1} parent=83 // pred_fallthru
          _
        %s717 = sand.u32 %s51, 1
        %s718 = scalar_lea.sflag [#allocation6], %s717
        %s719 = sand.u32 %s51, 1
        %s720 = smul.addr %s719, 168
        %s721 = scalar_lea.vmem [#allocation5], %s720
        %p722 = pneg %p64
        %p723 = pneg %p61
        %s724 = sand.u32 %s43, 1
        %s725 = scalar_lea.sflag [#allocation9], %s724
        %s726 = sand.u32 %s77, 1
        %s727 = scalar_lea.vmem [#allocation8], %s726
        %p728 = pneg %p90
        %p729 = pneg %p87
        %p730 = pneg %p111
        %p731 = pneg %p108
        %p732 = pneg %p132
        %p733 = pneg %p129
        %p734 = pneg %p153
        %p735 = pneg %p150
        %p736 = pneg %p174
        %p737 = pneg %p171
        %p738 = pneg %p195
        %p739 = pneg %p192
        %p740 = pneg %p216
        %p741 = pneg %p213
        %p742 = pneg %p237
        %p743 = pneg %p234
        %p744 = pneg %p258
        %p745 = pneg %p255
        %p746 = pneg %p279
        %p747 = pneg %p276
        %p748 = pneg %p300
        %p749 = pneg %p297
        %p750 = pneg %p321
        %p751 = pneg %p318
        %p752 = pneg %p342
        %p753 = pneg %p339
        %p754 = pneg %p363
        %p755 = pneg %p360
        %p756 = pneg %p384
        %p757 = pneg %p381
        %p758 = pneg %p410
        %p759 = pneg %p407
        %s760 = sand.u32 %s397, 1
        %s761 = scalar_lea.sflag [#allocation7], %s760
        %s762 = sand.u32 %s397, 1
        %s763 = smul.addr %s762, 288
        %s764 = scalar_lea.vmem [#allocation31], %s763
        %v766 = vld [vmem:[#allocation10] sm:$0xff]
        %v767 = vld [vmem:[#allocation10 + $0x8] sm:$0xff]
        %v768 = vld [vmem:[#allocation10 + $0x10] sm:$0xff]
        %v769 = vld [vmem:[#allocation10 + $0x18] sm:$0xff]
        %v770 = vld [vmem:[#allocation10 + $0x20] sm:$0xff]
        %v771 = vld [vmem:[#allocation10 + $0x28] sm:$0xff]
        %v772 = vld [vmem:[#allocation10 + $0x30] sm:$0xff]
        %v773 = vld [vmem:[#allocation10 + $0x38] sm:$0xff]
        %v774 = vld [vmem:[#allocation10 + $0x40] sm:$0xff]
        %v775 = vld [vmem:[#allocation10 + $0x48] sm:$0xff]
        %v776 = vld [vmem:[#allocation10 + $0x50] sm:$0xff]
        %v777 = vld [vmem:[#allocation10 + $0x58] sm:$0xff]
        %v778 = vld [vmem:[#allocation10 + $0x60] sm:$0xff]
        %v779 = vld [vmem:[#allocation10 + $0x68] sm:$0xff]
        %v780 = vld [vmem:[#allocation10 + $0x70] sm:$0xff]
        %v781 = vld [vmem:[#allocation10 + $0x78] sm:$0xff]
        %v782 = vld [vmem:[#allocation10 + $0x80] sm:$0xff]
        %v783 = vld [vmem:[#allocation10 + $0x88] sm:$0xff]
        %v784 = vld [vmem:[#allocation10 + $0x90] sm:$0xff]
        %v785 = vld [vmem:[#allocation10 + $0x98] sm:$0xff]
        %v786 = vld [vmem:[#allocation10 + $0xa0] sm:$0xff]
        %v787 = vld [vmem:[#allocation10 + $0xa8] sm:$0xff]
        %v788 = vld [vmem:[#allocation10 + $0xb0] sm:$0xff]
        %v789 = vld [vmem:[#allocation10 + $0xb8] sm:$0xff]
        %v790 = vld [vmem:[#allocation10 + $0xc0] sm:$0xff]
        %v791 = vld [vmem:[#allocation10 + $0xc8] sm:$0xff]
        %v792 = vld [vmem:[#allocation10 + $0xd0] sm:$0xff]
        %v793 = vld [vmem:[#allocation10 + $0xd8] sm:$0xff]
        %v794 = vld [vmem:[#allocation10 + $0xe0] sm:$0xff]
        %v795 = vld [vmem:[#allocation10 + $0xe8] sm:$0xff]
        %v796 = vld [vmem:[#allocation10 + $0xf0] sm:$0xff]
        %v797 = vld [vmem:[#allocation10 + $0xf8] sm:$0xff]
        %v798 = vld [vmem:[#allocation10 + $0x100] sm:$0xff]
        %v799 = vld [vmem:[#allocation10 + $0x108] sm:$0xff]
        %v800 = vld [vmem:[#allocation10 + $0x110] sm:$0xff]
        %v801 = vld [vmem:[#allocation10 + $0x118] sm:$0xff]
        %802 = vst [vmem:[#allocation2] sm:$0xff] 0
        %803 = vst [vmem:[#allocation2 + $0x8] sm:$0xf] 0
        %804 = vst [vmem:[#allocation2 + $0x98] sm:$0xf0] 0
        %805 = vst [vmem:[#allocation2 + $0xa0] sm:$0xff] 0
        %806 = vst [vmem:[#allocation3] sm:$0xff] 0
        %807 = vst [vmem:[#allocation3 + $0x8] sm:$0xf] 0
        %808 = vst [vmem:[#allocation3 + $0x98] sm:$0xf0] 0
        %809 = vst [vmem:[#allocation3 + $0xa0] sm:$0xff] 0
        %v810 = vld [vmem:[%s648 + $0xc] sm:$0xf]
        %v811 = vld [vmem:[%s648 + $0x10] sm:$0xf]
        %v812 = vld [vmem:[%s648 + $0x14] sm:$0xf]
        %v813 = vld [vmem:[%s648 + $0x18] sm:$0xf]
        %v814 = vld [vmem:[%s648 + $0x1c] sm:$0xf]
        %v815 = vld [vmem:[%s648 + $0x20] sm:$0xf]
        %v816 = vld [vmem:[%s648 + $0x24] sm:$0xf]
        %v817 = vld [vmem:[%s648 + $0x28] sm:$0xf]
        %v818 = vld [vmem:[%s648 + $0x2c] sm:$0xf]
        %v819 = vld [vmem:[%s648 + $0x30] sm:$0xf]
        %v820 = vld [vmem:[%s648 + $0x34] sm:$0xf]
        %v821 = vld [vmem:[%s648 + $0x38] sm:$0xf]
        %v822 = vld [vmem:[%s648 + $0x3c] sm:$0xf]
        %v823 = vld [vmem:[%s648 + $0x40] sm:$0xf]
        %v824 = vld [vmem:[%s648 + $0x44] sm:$0xf]
        %v825 = vld [vmem:[%s648 + $0x48] sm:$0xf]
        %v826 = vld [vmem:[%s648 + $0x4c] sm:$0xf]
        %v827 = vld [vmem:[%s648 + $0x50] sm:$0xf]
        %v828 = vld [vmem:[%s648 + $0x54] sm:$0xf]
        %v829 = vld [vmem:[%s648 + $0x58] sm:$0xf]
        %v830 = vld [vmem:[%s648 + $0x5c] sm:$0xf]
        %v831 = vld [vmem:[%s648 + $0x60] sm:$0xf]
        %v832 = vld [vmem:[%s648 + $0x64] sm:$0xf]
        %v833 = vld [vmem:[%s648 + $0x68] sm:$0xf]
        %v834 = vld [vmem:[%s648 + $0x6c] sm:$0xf]
        %v835 = vld [vmem:[%s648 + $0x70] sm:$0xf]
        %v836 = vld [vmem:[%s648 + $0x74] sm:$0xf]
        %v837 = vld [vmem:[%s648 + $0x78] sm:$0xf]
        %v838 = vld [vmem:[%s648 + $0x7c] sm:$0xf]
        %v839 = vld [vmem:[%s648 + $0x80] sm:$0xf]
        %v840 = vld [vmem:[%s648 + $0x84] sm:$0xf]
        %v841 = vld [vmem:[%s648 + $0x88] sm:$0xf]
        %v842 = vld [vmem:[%s648 + $0x8c] sm:$0xf]
        %v843 = vld [vmem:[%s648 + $0x90] sm:$0xf]
        %v844 = vld [vmem:[%s648 + $0x94] sm:$0xf]
        %v845 = vld [vmem:[%s648 + $0x98] sm:$0xf]
        %v846 = vunpack.c.l.bf16 %v810
        %v847 = vunpack.c.l.bf16 %v811
        %v848 = vunpack.c.l.bf16 %v812
        %v849 = vunpack.c.l.bf16 %v813
        %v850 = vunpack.c.l.bf16 %v814
        %v851 = vunpack.c.l.bf16 %v815
        %v852 = vunpack.c.l.bf16 %v816
        %v853 = vunpack.c.l.bf16 %v817
        %v854 = vunpack.c.l.bf16 %v818
        %v855 = vunpack.c.l.bf16 %v819
        %v856 = vunpack.c.l.bf16 %v820
        %v857 = vunpack.c.l.bf16 %v821
        %v858 = vunpack.c.l.bf16 %v822
        %v859 = vunpack.c.l.bf16 %v823
        %v860 = vunpack.c.l.bf16 %v824
        %v861 = vunpack.c.l.bf16 %v825
        %v862 = vunpack.c.l.bf16 %v826
        %v863 = vunpack.c.l.bf16 %v827
        %v864 = vunpack.c.l.bf16 %v828
        %v865 = vunpack.c.l.bf16 %v829
        %v866 = vunpack.c.l.bf16 %v830
        %v867 = vunpack.c.l.bf16 %v831
        %v868 = vunpack.c.l.bf16 %v832
        %v869 = vunpack.c.l.bf16 %v833
        %v870 = vunpack.c.l.bf16 %v834
        %v871 = vunpack.c.l.bf16 %v835
        %v872 = vunpack.c.l.bf16 %v836
        %v873 = vunpack.c.l.bf16 %v837
        %v874 = vunpack.c.l.bf16 %v838
        %v875 = vunpack.c.l.bf16 %v839
        %v876 = vunpack.c.l.bf16 %v840
        %v877 = vunpack.c.l.bf16 %v841
        %v878 = vunpack.c.l.bf16 %v842
        %v879 = vunpack.c.l.bf16 %v843
        %v880 = vunpack.c.l.bf16 %v844
        %v881 = vunpack.c.l.bf16 %v845
        %v882 = vadd.f32 %v846, %v847
        %v883 = vadd.f32 %v882, %v848
        %v884 = vadd.f32 %v883, %v849
        %v885 = vadd.f32 %v884, %v850
        %v886 = vadd.f32 %v885, %v851
        %v887 = vadd.f32 %v886, %v852
        %v888 = vadd.f32 %v887, %v853
        %v889 = vadd.f32 %v888, %v854
        %v890 = vadd.f32 %v889, %v855
        %v891 = vadd.f32 %v890, %v856
        %v892 = vadd.f32 %v891, %v857
        %v893 = vadd.f32 %v892, %v858
        %v894 = vadd.f32 %v893, %v859
        %v895 = vadd.f32 %v894, %v860
        %v896 = vadd.f32 %v895, %v861
        %v897 = vadd.f32 %v896, %v862
        %v898 = vadd.f32 %v897, %v863
        %v899 = vadd.f32 %v898, %v864
        %v900 = vadd.f32 %v899, %v865
        %v901 = vadd.f32 %v900, %v866
        %v902 = vadd.f32 %v901, %v867
        %v903 = vadd.f32 %v902, %v868
        %v904 = vadd.f32 %v903, %v869
        %v905 = vadd.f32 %v904, %v870
        %v906 = vadd.f32 %v905, %v871
        %v907 = vadd.f32 %v906, %v872
        %v908 = vadd.f32 %v907, %v873
        %v909 = vadd.f32 %v908, %v874
        %v910 = vadd.f32 %v909, %v875
        %v911 = vadd.f32 %v910, %v876
        %v912 = vadd.f32 %v911, %v877
        %v913 = vadd.f32 %v912, %v878
        %v914 = vadd.f32 %v913, %v879
        %v915 = vadd.f32 %v914, %v880
        %v916 = vadd.f32 %v915, %v881
        %v917 = vrot.slane %v916, 4
        %v918 = vadd.f32 %v916, %v917
        %v919 = vrot.slane %v918, 2
        %v920 = vadd.f32 %v918, %v919
        %v921 = vrot.slane %v920, 1
        %v922 = vadd.f32 %v920, %v921
        %v923 = vmul.f32 %v846, %v846
        %v924 = vmul.f32 %v847, %v847
        %v925 = vmul.f32 %v848, %v848
        %v926 = vmul.f32 %v849, %v849
        %v927 = vmul.f32 %v850, %v850
        %v928 = vmul.f32 %v851, %v851
        %v929 = vmul.f32 %v852, %v852
        %v930 = vmul.f32 %v853, %v853
        %v931 = vmul.f32 %v854, %v854
        %v932 = vmul.f32 %v855, %v855
        %v933 = vmul.f32 %v856, %v856
        %v934 = vmul.f32 %v857, %v857
        %v935 = vmul.f32 %v858, %v858
        %v936 = vmul.f32 %v859, %v859
        %v937 = vmul.f32 %v860, %v860
        %v938 = vmul.f32 %v861, %v861
        %v939 = vmul.f32 %v862, %v862
        %v940 = vmul.f32 %v863, %v863
        %v941 = vmul.f32 %v864, %v864
        %v942 = vmul.f32 %v865, %v865
        %v943 = vmul.f32 %v866, %v866
        %v944 = vmul.f32 %v867, %v867
        %v945 = vmul.f32 %v868, %v868
        %v946 = vmul.f32 %v869, %v869
        %v947 = vmul.f32 %v870, %v870
        %v948 = vmul.f32 %v871, %v871
        %v949 = vmul.f32 %v872, %v872
        %v950 = vmul.f32 %v873, %v873
        %v951 = vmul.f32 %v874, %v874
        %v952 = vmul.f32 %v875, %v875
        %v953 = vmul.f32 %v876, %v876
        %v954 = vmul.f32 %v877, %v877
        %v955 = vmul.f32 %v878, %v878
        %v956 = vmul.f32 %v879, %v879
        %v957 = vmul.f32 %v880, %v880
        %v958 = vmul.f32 %v881, %v881
        %v959 = vadd.f32 %v923, %v924
        %v960 = vadd.f32 %v959, %v925
        %v961 = vadd.f32 %v960, %v926
        %v962 = vadd.f32 %v961, %v927
        %v963 = vadd.f32 %v962, %v928
        %v964 = vadd.f32 %v963, %v929
        %v965 = vadd.f32 %v964, %v930
        %v966 = vadd.f32 %v965, %v931
        %v967 = vadd.f32 %v966, %v932
        %v968 = vadd.f32 %v967, %v933
        %v969 = vadd.f32 %v968, %v934
        %v970 = vadd.f32 %v969, %v935
        %v971 = vadd.f32 %v970, %v936
        %v972 = vadd.f32 %v971, %v937
        %v973 = vadd.f32 %v972, %v938
        %v974 = vadd.f32 %v973, %v939
        %v975 = vadd.f32 %v974, %v940
        %v976 = vadd.f32 %v975, %v941
        %v977 = vadd.f32 %v976, %v942
        %v978 = vadd.f32 %v977, %v943
        %v979 = vadd.f32 %v978, %v944
        %v980 = vadd.f32 %v979, %v945
        %v981 = vadd.f32 %v980, %v946
        %v982 = vadd.f32 %v981, %v947
        %v983 = vadd.f32 %v982, %v948
        %v984 = vadd.f32 %v983, %v949
        %v985 = vadd.f32 %v984, %v950
        %v986 = vadd.f32 %v985, %v951
        %v987 = vadd.f32 %v986, %v952
        %v988 = vadd.f32 %v987, %v953
        %v989 = vadd.f32 %v988, %v954
        %v990 = vadd.f32 %v989, %v955
        %v991 = vadd.f32 %v990, %v956
        %v992 = vadd.f32 %v991, %v957
        %v993 = vadd.f32 %v992, %v958
        %v994 = vrot.slane %v993, 4
        %v995 = vadd.f32 %v993, %v994
        %v996 = vrot.slane %v995, 2
        %v997 = vadd.f32 %v995, %v996
        %v998 = vrot.slane %v997, 1
        %v999 = vadd.f32 %v997, %v998
        %v1000 = vld [vmem:[#allocation11] sm:$0xff]
        %v1001 = vld [vmem:[#allocation11 + $0x8] sm:$0xff]
        %v1002 = vld [vmem:[#allocation11 + $0x10] sm:$0xff]
        %v1003 = vld [vmem:[#allocation11 + $0x18] sm:$0xff]
        %v1004 = vld [vmem:[#allocation11 + $0x20] sm:$0xff]
        %v1005 = vld [vmem:[#allocation11 + $0x28] sm:$0xff]
        %v1006 = vld [vmem:[#allocation11 + $0x30] sm:$0xff]
        %v1007 = vld [vmem:[#allocation11 + $0x38] sm:$0xff]
        %v1008 = vld [vmem:[#allocation11 + $0x40] sm:$0xff]
        %v1009 = vld [vmem:[#allocation11 + $0x48] sm:$0xff]
        %v1010 = vld [vmem:[#allocation11 + $0x50] sm:$0xff]
        %v1011 = vld [vmem:[#allocation11 + $0x58] sm:$0xff]
        %v1012 = vld [vmem:[#allocation11 + $0x60] sm:$0xff]
        %v1013 = vld [vmem:[#allocation11 + $0x68] sm:$0xff]
        %v1014 = vld [vmem:[#allocation11 + $0x70] sm:$0xff]
        %v1015 = vld [vmem:[#allocation11 + $0x78] sm:$0xff]
        %1016 = vmatprep.subr.mxu0 0.0
        %1017 = vmatpush1.msra.mxu0 %v1000
        %1018 = vmatprep.subr.mxu0 0.0
        %1019 = vmatpush1.msra.mxu0 %v1001
        %1020 = vmatprep.subr.mxu0 0.0
        %1021 = vmatpush1.msra.mxu0 %v1002
        %1022 = vmatprep.subr.mxu0 0.0
        %1023 = vmatpush1.msra.mxu0 %v1003
        %1024 = vmatprep.subr.mxu0 0.0
        %1025 = vmatpush1.msra.mxu0 %v1004
        %1026 = vmatprep.subr.mxu0 0.0
        %1027 = vmatpush1.msra.mxu0 %v1005
        %1028 = vmatprep.subr.mxu0 0.0
        %1029 = vmatpush1.msra.mxu0 %v1006
        %1030 = vmatprep.subr.mxu0 0.0
        %1031 = vmatpush1.msra.mxu0 %v1007
        %1032 = vmatprep.subr.mxu0 0.0
        %1033 = vmatpush1.msra.mxu0 %v1008
        %1034 = vmatprep.subr.mxu0 0.0
        %1035 = vmatpush1.msra.mxu0 %v1009
        %1036 = vmatprep.subr.mxu0 0.0
        %1037 = vmatpush1.msra.mxu0 %v1010
        %1038 = vmatprep.subr.mxu0 0.0
        %1039 = vmatpush1.msra.mxu0 %v1011
        %1040 = vmatprep.subr.mxu0 0.0
        %1041 = vmatpush1.msra.mxu0 %v1012
        %1042 = vmatprep.subr.mxu0 0.0
        %1043 = vmatpush1.msra.mxu0 %v1013
        %1044 = vmatprep.subr.mxu0 0.0
        %1045 = vmatpush1.msra.mxu0 %v1014
        %1046 = vmatprep.subr.mxu0 0.0
        %1047 = vmatpush1.msra.mxu0 %v1015
        %1048 = vmatprep.subr.mxu0 0.0
        %1049 = vmatpush1.msra.mxu0 0.0
        %1050 = vmatprep.subr.mxu0 0.0
        %1051 = vmatpush1.msra.mxu0 0.0
        %1052 = vmatprep.subr.mxu0 0.0
        %1053 = vmatpush1.msra.mxu0 0.0
        %1054 = vmatprep.subr.mxu0 0.0
        %1055 = vmatpush1.msra.mxu0 0.0
        %1056 = vmatprep.subr.mxu0 0.0
        %1057 = vmatpush1.msra.mxu0 0.0
        %1058 = vmatprep.subr.mxu0 0.0
        %1059 = vmatpush1.msra.mxu0 0.0
        %1060 = vmatprep.subr.mxu0 0.0
        %1061 = vmatpush1.msra.mxu0 0.0
        %1062 = vmatprep.subr.mxu0 0.0
        %1063 = vmatpush1.msra.mxu0 0.0
        %1064 = vmatprep.subr.mxu0 0.0
        %1065 = vmatpush1.msra.mxu0 0.0
        %1066 = vmatprep.subr.mxu0 0.0
        %1067 = vmatpush1.msra.mxu0 0.0
        %1068 = vmatprep.subr.mxu0 0.0
        %1069 = vmatpush1.msra.mxu0 0.0
        %1070 = vmatprep.subr.mxu0 0.0
        %1071 = vmatpush1.msra.mxu0 0.0
        %1072 = vmatprep.subr.mxu0 0.0
        %1073 = vmatpush1.msra.mxu0 0.0
        %1074 = vmatprep.subr.mxu0 0.0
        %1075 = vmatpush1.msra.mxu0 0.0
        %1076 = vmatprep.subr.mxu0 0.0
        %1077 = vmatpush1.msra.mxu0 0.0
        %1078 = vmatprep.subr.mxu0 0.0
        %1079 = vmatpush1.msra.mxu0 0.0
        %1080 = vmatprep.mubr.f32.mxu0 0.0
        %1081 = vmatmul.mubr.f32.gmra.mrb[0].mxu0 %v922
        %v1082 = vpop.f32.mrb[0].mxu0
        %v1083 = vadd.f32 0.0, %v1082
        %v1084 = vpop.f32.mrb[0].mxu0
        %1085 = vdwg.mxu0
        %1086 = vmatprep.subr.mxu0 0.0
        %1087 = vmatpush1.msra.mxu0 %v1000
        %1088 = vmatprep.subr.mxu0 0.0
        %1089 = vmatpush1.msra.mxu0 %v1001
        %1090 = vmatprep.subr.mxu0 0.0
        %1091 = vmatpush1.msra.mxu0 %v1002
        %1092 = vmatprep.subr.mxu0 0.0
        %1093 = vmatpush1.msra.mxu0 %v1003
        %1094 = vmatprep.subr.mxu0 0.0
        %1095 = vmatpush1.msra.mxu0 %v1004
        %1096 = vmatprep.subr.mxu0 0.0
        %1097 = vmatpush1.msra.mxu0 %v1005
        %1098 = vmatprep.subr.mxu0 0.0
        %1099 = vmatpush1.msra.mxu0 %v1006
        %1100 = vmatprep.subr.mxu0 0.0
        %1101 = vmatpush1.msra.mxu0 %v1007
        %1102 = vmatprep.subr.mxu0 0.0
        %1103 = vmatpush1.msra.mxu0 %v1008
        %1104 = vmatprep.subr.mxu0 0.0
        %1105 = vmatpush1.msra.mxu0 %v1009
        %1106 = vmatprep.subr.mxu0 0.0
        %1107 = vmatpush1.msra.mxu0 %v1010
        %1108 = vmatprep.subr.mxu0 0.0
        %1109 = vmatpush1.msra.mxu0 %v1011
        %1110 = vmatprep.subr.mxu0 0.0
        %1111 = vmatpush1.msra.mxu0 %v1012
        %1112 = vmatprep.subr.mxu0 0.0
        %1113 = vmatpush1.msra.mxu0 %v1013
        %1114 = vmatprep.subr.mxu0 0.0
        %1115 = vmatpush1.msra.mxu0 %v1014
        %1116 = vmatprep.subr.mxu0 0.0
        %1117 = vmatpush1.msra.mxu0 %v1015
        %1118 = vmatprep.subr.mxu0 0.0
        %1119 = vmatpush1.msra.mxu0 0.0
        %1120 = vmatprep.subr.mxu0 0.0
        %1121 = vmatpush1.msra.mxu0 0.0
        %1122 = vmatprep.subr.mxu0 0.0
        %1123 = vmatpush1.msra.mxu0 0.0
        %1124 = vmatprep.subr.mxu0 0.0
        %1125 = vmatpush1.msra.mxu0 0.0
        %1126 = vmatprep.subr.mxu0 0.0
        %1127 = vmatpush1.msra.mxu0 0.0
        %1128 = vmatprep.subr.mxu0 0.0
        %1129 = vmatpush1.msra.mxu0 0.0
        %1130 = vmatprep.subr.mxu0 0.0
        %1131 = vmatpush1.msra.mxu0 0.0
        %1132 = vmatprep.subr.mxu0 0.0
        %1133 = vmatpush1.msra.mxu0 0.0
        %1134 = vmatprep.subr.mxu0 0.0
        %1135 = vmatpush1.msra.mxu0 0.0
        %1136 = vmatprep.subr.mxu0 0.0
        %1137 = vmatpush1.msra.mxu0 0.0
        %1138 = vmatprep.subr.mxu0 0.0
        %1139 = vmatpush1.msra.mxu0 0.0
        %1140 = vmatprep.subr.mxu0 0.0
        %1141 = vmatpush1.msra.mxu0 0.0
        %1142 = vmatprep.subr.mxu0 0.0
        %1143 = vmatpush1.msra.mxu0 0.0
        %1144 = vmatprep.subr.mxu0 0.0
        %1145 = vmatpush1.msra.mxu0 0.0
        %1146 = vmatprep.subr.mxu0 0.0
        %1147 = vmatpush1.msra.mxu0 0.0
        %1148 = vmatprep.subr.mxu0 0.0
        %1149 = vmatpush1.msra.mxu0 0.0
        %1150 = vmatprep.mubr.f32.mxu0 0.0
        %1151 = vmatmul.mubr.f32.gmra.mrb[0].mxu0 %v999
        %v1152 = vpop.f32.mrb[0].mxu0
        %v1153 = vadd.f32 0.0, %v1152
        %v1154 = vpop.f32.mrb[0].mxu0
        %1155 = vdwg.mxu0
        %v1156 = vmul.f32 %v1083, 0.001953125
        %v1157 = vmul.f32 %v1153, 0.001953125
        %v1158 = vmul.f32 %v1156, %v1156
        %v1159 = vsub.f32 %v1157, %v1158
        %v1160 = vmax.f32 %v1159, 0.0
        %v1161 = vadd.f32 %v1160, 1e-06
        %v1162 = vrsqrt.pop %v1161
        %v1163 = vld [vmem:[#allocation13] sm:$0xff]
        %v1164 = vld [vmem:[#allocation13 + $0x8] sm:$0xff]
        %v1165 = vld [vmem:[#allocation13 + $0x10] sm:$0xff]
        %v1166 = vld [vmem:[#allocation13 + $0x18] sm:$0xff]
        %v1167 = vld [vmem:[#allocation13 + $0x20] sm:$0xff]
        %v1168 = vld [vmem:[#allocation13 + $0x28] sm:$0xff]
        %v1169 = vld [vmem:[#allocation13 + $0x30] sm:$0xff]
        %v1170 = vld [vmem:[#allocation13 + $0x38] sm:$0xff]
        %v1171 = vld [vmem:[#allocation13 + $0x40] sm:$0xff]
        %v1172 = vld [vmem:[#allocation13 + $0x48] sm:$0xff]
        %v1173 = vld [vmem:[#allocation13 + $0x50] sm:$0xff]
        %v1174 = vld [vmem:[#allocation13 + $0x58] sm:$0xff]
        %v1175 = vld [vmem:[#allocation13 + $0x60] sm:$0xff]
        %v1176 = vld [vmem:[#allocation13 + $0x68] sm:$0xff]
        %v1177 = vld [vmem:[#allocation13 + $0x70] sm:$0xff]
        %v1178 = vld [vmem:[#allocation13 + $0x78] sm:$0xff]
        %1179 = vmatprep.subr.mxu0 0.0
        %1180 = vmatpush1.msra.mxu0 %v1163
        %1181 = vmatprep.subr.mxu0 0.0
        %1182 = vmatpush1.msra.mxu0 %v1164
        %1183 = vmatprep.subr.mxu0 0.0
        %1184 = vmatpush1.msra.mxu0 %v1165
        %1185 = vmatprep.subr.mxu0 0.0
        %1186 = vmatpush1.msra.mxu0 %v1166
        %1187 = vmatprep.subr.mxu0 0.0
        %1188 = vmatpush1.msra.mxu0 %v1167
        %1189 = vmatprep.subr.mxu0 0.0
        %1190 = vmatpush1.msra.mxu0 %v1168
        %1191 = vmatprep.subr.mxu0 0.0
        %1192 = vmatpush1.msra.mxu0 %v1169
        %1193 = vmatprep.subr.mxu0 0.0
        %1194 = vmatpush1.msra.mxu0 %v1170
        %1195 = vmatprep.subr.mxu0 0.0
        %1196 = vmatpush1.msra.mxu0 %v1171
        %1197 = vmatprep.subr.mxu0 0.0
        %1198 = vmatpush1.msra.mxu0 %v1172
        %1199 = vmatprep.subr.mxu0 0.0
        %1200 = vmatpush1.msra.mxu0 %v1173
        %1201 = vmatprep.subr.mxu0 0.0
        %1202 = vmatpush1.msra.mxu0 %v1174
        %1203 = vmatprep.subr.mxu0 0.0
        %1204 = vmatpush1.msra.mxu0 %v1175
        %1205 = vmatprep.subr.mxu0 0.0
        %1206 = vmatpush1.msra.mxu0 %v1176
        %1207 = vmatprep.subr.mxu0 0.0
        %1208 = vmatpush1.msra.mxu0 %v1177
        %1209 = vmatprep.subr.mxu0 0.0
        %1210 = vmatpush1.msra.mxu0 %v1178
        %1211 = vmatprep.subr.mxu0 0.0
        %1212 = vmatpush1.msra.mxu0 0.0
        %1213 = vmatprep.subr.mxu0 0.0
        %1214 = vmatpush1.msra.mxu0 0.0
        %1215 = vmatprep.subr.mxu0 0.0
        %1216 = vmatpush1.msra.mxu0 0.0
        %1217 = vmatprep.subr.mxu0 0.0
        %1218 = vmatpush1.msra.mxu0 0.0
        %1219 = vmatprep.subr.mxu0 0.0
        %1220 = vmatpush1.msra.mxu0 0.0
        %1221 = vmatprep.subr.mxu0 0.0
        %1222 = vmatpush1.msra.mxu0 0.0
        %1223 = vmatprep.subr.mxu0 0.0
        %1224 = vmatpush1.msra.mxu0 0.0
        %1225 = vmatprep.subr.mxu0 0.0
        %1226 = vmatpush1.msra.mxu0 0.0
        %1227 = vmatprep.subr.mxu0 0.0
        %1228 = vmatpush1.msra.mxu0 0.0
        %1229 = vmatprep.subr.mxu0 0.0
        %1230 = vmatpush1.msra.mxu0 0.0
        %1231 = vmatprep.subr.mxu0 0.0
        %1232 = vmatpush1.msra.mxu0 0.0
        %1233 = vmatprep.subr.mxu0 0.0
        %1234 = vmatpush1.msra.mxu0 0.0
        %1235 = vmatprep.subr.mxu0 0.0
        %1236 = vmatpush1.msra.mxu0 0.0
        %1237 = vmatprep.subr.mxu0 0.0
        %1238 = vmatpush1.msra.mxu0 0.0
        %1239 = vmatprep.subr.mxu0 0.0
        %1240 = vmatpush1.msra.mxu0 0.0
        %1241 = vmatprep.subr.mxu0 0.0
        %1242 = vmatpush1.msra.mxu0 0.0
        %1243 = vmatprep.mubr.f32.mxu0 0.0
        %1244 = vmatmul.mubr.f32.gmra.mrb[0].mxu0 %v1162
        %v1245 = vpop.f32.mrb[0].mxu0
        %v1246 = vadd.f32 0.0, %v1245
        %v1247 = vpop.f32.mrb[0].mxu0
        %1248 = vdwg.mxu0
        %1249 = vmatprep.subr.mxu0 0.0
        %1250 = vmatpush1.msra.mxu0 %v1163
        %1251 = vmatprep.subr.mxu0 0.0
        %1252 = vmatpush1.msra.mxu0 %v1164
        %1253 = vmatprep.subr.mxu0 0.0
        %1254 = vmatpush1.msra.mxu0 %v1165
        %1255 = vmatprep.subr.mxu0 0.0
        %1256 = vmatpush1.msra.mxu0 %v1166
        %1257 = vmatprep.subr.mxu0 0.0
        %1258 = vmatpush1.msra.mxu0 %v1167
        %1259 = vmatprep.subr.mxu0 0.0
        %1260 = vmatpush1.msra.mxu0 %v1168
        %1261 = vmatprep.subr.mxu0 0.0
        %1262 = vmatpush1.msra.mxu0 %v1169
        %1263 = vmatprep.subr.mxu0 0.0
        %1264 = vmatpush1.msra.mxu0 %v1170
        %1265 = vmatprep.subr.mxu0 0.0
        %1266 = vmatpush1.msra.mxu0 %v1171
        %1267 = vmatprep.subr.mxu0 0.0
        %1268 = vmatpush1.msra.mxu0 %v1172
        %1269 = vmatprep.subr.mxu0 0.0
        %1270 = vmatpush1.msra.mxu0 %v1173
        %1271 = vmatprep.subr.mxu0 0.0
        %1272 = vmatpush1.msra.mxu0 %v1174
        %1273 = vmatprep.subr.mxu0 0.0
        %1274 = vmatpush1.msra.mxu0 %v1175
        %1275 = vmatprep.subr.mxu0 0.0
        %1276 = vmatpush1.msra.mxu0 %v1176
        %1277 = vmatprep.subr.mxu0 0.0
        %1278 = vmatpush1.msra.mxu0 %v1177
        %1279 = vmatprep.subr.mxu0 0.0
        %1280 = vmatpush1.msra.mxu0 %v1178
        %1281 = vmatprep.subr.mxu0 0.0
        %1282 = vmatpush1.msra.mxu0 0.0
        %1283 = vmatprep.subr.mxu0 0.0
        %1284 = vmatpush1.msra.mxu0 0.0
        %1285 = vmatprep.subr.mxu0 0.0
        %1286 = vmatpush1.msra.mxu0 0.0
        %1287 = vmatprep.subr.mxu0 0.0
        %1288 = vmatpush1.msra.mxu0 0.0
        %1289 = vmatprep.subr.mxu0 0.0
        %1290 = vmatpush1.msra.mxu0 0.0
        %1291 = vmatprep.subr.mxu0 0.0
        %1292 = vmatpush1.msra.mxu0 0.0
        %1293 = vmatprep.subr.mxu0 0.0
        %1294 = vmatpush1.msra.mxu0 0.0
        %1295 = vmatprep.subr.mxu0 0.0
        %1296 = vmatpush1.msra.mxu0 0.0
        %1297 = vmatprep.subr.mxu0 0.0
        %1298 = vmatpush1.msra.mxu0 0.0
        %1299 = vmatprep.subr.mxu0 0.0
        %1300 = vmatpush1.msra.mxu0 0.0
        %1301 = vmatprep.subr.mxu0 0.0
        %1302 = vmatpush1.msra.mxu0 0.0
        %1303 = vmatprep.subr.mxu0 0.0
        %1304 = vmatpush1.msra.mxu0 0.0
        %1305 = vmatprep.subr.mxu0 0.0
        %1306 = vmatpush1.msra.mxu0 0.0
        %1307 = vmatprep.subr.mxu0 0.0
        %1308 = vmatpush1.msra.mxu0 0.0
        %1309 = vmatprep.subr.mxu0 0.0
        %1310 = vmatpush1.msra.mxu0 0.0
        %1311 = vmatprep.subr.mxu0 0.0
        %1312 = vmatpush1.msra.mxu0 0.0
        %1313 = vmatprep.mubr.f32.mxu0 0.0
        %1314 = vmatmul.mubr.f32.gmra.mrb[0].mxu0 %v1156
        %v1315 = vpop.f32.mrb[0].mxu0
        %v1316 = vadd.f32 0.0, %v1315
        %v1317 = vpop.f32.mrb[0].mxu0
        %1318 = vdwg.mxu0
        %v1319 = vld [vmem:[#allocation14] sm:$0x1]
        %v1320 = vmul.f32 %v1246, %v1319
        %v1321 = vld [vmem:[#allocation16] sm:$0x1]
        %v1322 = vmul.f32 %v1316, %v1320
        %v1323 = vsub.f32 %v1321, %v1322
        %v1324 = vlaneseq
        %v1325 = vshrl.u32 %v1324, 7
        %v1326 = vsub.s32 0, %v1325
        %v1327 = vrot.slane %v1320, %v1326
        %v1328 = vmul.f32 %v846, %v1327
        %v1329 = vmul.f32 %v847, %v1327
        %v1330 = vmul.f32 %v848, %v1327
        %v1331 = vmul.f32 %v849, %v1327
        %v1332 = vmul.f32 %v850, %v1327
        %v1333 = vmul.f32 %v851, %v1327
        %v1334 = vmul.f32 %v852, %v1327
        %v1335 = vmul.f32 %v853, %v1327
        %v1336 = vmul.f32 %v854, %v1327
        %v1337 = vmul.f32 %v855, %v1327
        %v1338 = vmul.f32 %v856, %v1327
        %v1339 = vmul.f32 %v857, %v1327
        %v1340 = vmul.f32 %v858, %v1327
        %v1341 = vmul.f32 %v859, %v1327
        %v1342 = vmul.f32 %v860, %v1327
        %v1343 = vmul.f32 %v861, %v1327
        %v1344 = vmul.f32 %v862, %v1327
        %v1345 = vmul.f32 %v863, %v1327
        %v1346 = vmul.f32 %v864, %v1327
        %v1347 = vmul.f32 %v865, %v1327
        %v1348 = vmul.f32 %v866, %v1327
        %v1349 = vmul.f32 %v867, %v1327
        %v1350 = vmul.f32 %v868, %v1327
        %v1351 = vmul.f32 %v869, %v1327
        %v1352 = vmul.f32 %v870, %v1327
        %v1353 = vmul.f32 %v871, %v1327
        %v1354 = vmul.f32 %v872, %v1327
        %v1355 = vmul.f32 %v873, %v1327
        %v1356 = vmul.f32 %v874, %v1327
        %v1357 = vmul.f32 %v875, %v1327
        %v1358 = vmul.f32 %v876, %v1327
        %v1359 = vmul.f32 %v877, %v1327
        %v1360 = vmul.f32 %v878, %v1327
        %v1361 = vmul.f32 %v879, %v1327
        %v1362 = vmul.f32 %v880, %v1327
        %v1363 = vmul.f32 %v881, %v1327
        %v1365 = vlaneseq
        %v1366 = vshrl.u32 %v1365, 7
        %v1367 = vsub.s32 0, %v1366
        %v1368 = vrot.slane %v1323, %v1367
        %v1370 = vadd.f32 %v1328, %v1368
        %v1371 = vadd.f32 %v1329, %v1368
        %v1372 = vadd.f32 %v1330, %v1368
        %v1373 = vadd.f32 %v1331, %v1368
        %v1374 = vadd.f32 %v1332, %v1368
        %v1375 = vadd.f32 %v1333, %v1368
        %v1376 = vadd.f32 %v1334, %v1368
        %v1377 = vadd.f32 %v1335, %v1368
        %v1378 = vadd.f32 %v1336, %v1368
        %v1379 = vadd.f32 %v1337, %v1368
        %v1380 = vadd.f32 %v1338, %v1368
        %v1381 = vadd.f32 %v1339, %v1368
        %v1382 = vadd.f32 %v1340, %v1368
        %v1383 = vadd.f32 %v1341, %v1368
        %v1384 = vadd.f32 %v1342, %v1368
        %v1385 = vadd.f32 %v1343, %v1368
        %v1386 = vadd.f32 %v1344, %v1368
        %v1387 = vadd.f32 %v1345, %v1368
        %v1388 = vadd.f32 %v1346, %v1368
        %v1389 = vadd.f32 %v1347, %v1368
        %v1390 = vadd.f32 %v1348, %v1368
        %v1391 = vadd.f32 %v1349, %v1368
        %v1392 = vadd.f32 %v1350, %v1368
        %v1393 = vadd.f32 %v1351, %v1368
        %v1394 = vadd.f32 %v1352, %v1368
        %v1395 = vadd.f32 %v1353, %v1368
        %v1396 = vadd.f32 %v1354, %v1368
        %v1397 = vadd.f32 %v1355, %v1368
        %v1398 = vadd.f32 %v1356, %v1368
        %v1399 = vadd.f32 %v1357, %v1368
        %v1400 = vadd.f32 %v1358, %v1368
        %v1401 = vadd.f32 %v1359, %v1368
        %v1402 = vadd.f32 %v1360, %v1368
        %v1403 = vadd.f32 %v1361, %v1368
        %v1404 = vadd.f32 %v1362, %v1368
        %v1405 = vadd.f32 %v1363, %v1368
        %v1406 = vsub.f32 0.0, %v1370
        %v1407 = vsub.f32 0.0, %v1371
        %v1408 = vsub.f32 0.0, %v1372
        %v1409 = vsub.f32 0.0, %v1373
        %v1410 = vsub.f32 0.0, %v1374
        %v1411 = vsub.f32 0.0, %v1375
        %v1412 = vsub.f32 0.0, %v1376
        %v1413 = vsub.f32 0.0, %v1377
        %v1414 = vsub.f32 0.0, %v1378
        %v1415 = vsub.f32 0.0, %v1379
        %v1416 = vsub.f32 0.0, %v1380
        %v1417 = vsub.f32 0.0, %v1381
        %v1418 = vsub.f32 0.0, %v1382
        %v1419 = vsub.f32 0.0, %v1383
        %v1420 = vsub.f32 0.0, %v1384
        %v1421 = vsub.f32 0.0, %v1385
        %v1422 = vsub.f32 0.0, %v1386
        %v1423 = vsub.f32 0.0, %v1387
        %v1424 = vsub.f32 0.0, %v1388
        %v1425 = vsub.f32 0.0, %v1389
        %v1426 = vsub.f32 0.0, %v1390
        %v1427 = vsub.f32 0.0, %v1391
        %v1428 = vsub.f32 0.0, %v1392
        %v1429 = vsub.f32 0.0, %v1393
        %v1430 = vsub.f32 0.0, %v1394
        %v1431 = vsub.f32 0.0, %v1395
        %v1432 = vsub.f32 0.0, %v1396
        %v1433 = vsub.f32 0.0, %v1397
        %v1434 = vsub.f32 0.0, %v1398
        %v1435 = vsub.f32 0.0, %v1399
        %v1436 = vsub.f32 0.0, %v1400
        %v1437 = vsub.f32 0.0, %v1401
        %v1438 = vsub.f32 0.0, %v1402
        %v1439 = vsub.f32 0.0, %v1403
        %v1440 = vsub.f32 0.0, %v1404
        %v1441 = vsub.f32 0.0, %v1405
        %v1442 = vmul.f32 %v1406, 1.442695
        %v1443 = vpow.pop %v1442
        %v1444 = vmul.f32 %v1407, 1.442695
        %v1445 = vpow.pop %v1444
        %v1446 = vmul.f32 %v1408, 1.442695
        %v1447 = vpow.pop %v1446
        %v1448 = vmul.f32 %v1409, 1.442695
        %v1449 = vpow.pop %v1448
        %v1450 = vmul.f32 %v1410, 1.442695
        %v1451 = vpow.pop %v1450
        %v1452 = vmul.f32 %v1411, 1.442695
        %v1453 = vpow.pop %v1452
        %v1454 = vmul.f32 %v1412, 1.442695
        %v1455 = vpow.pop %v1454
        %v1456 = vmul.f32 %v1413, 1.442695
        %v1457 = vpow.pop %v1456
        %v1458 = vmul.f32 %v1414, 1.442695
        %v1459 = vpow.pop %v1458
        %v1460 = vmul.f32 %v1415, 1.442695
        %v1461 = vpow.pop %v1460
        %v1462 = vmul.f32 %v1416, 1.442695
        %v1463 = vpow.pop %v1462
        %v1464 = vmul.f32 %v1417, 1.442695
        %v1465 = vpow.pop %v1464
        %v1466 = vmul.f32 %v1418, 1.442695
        %v1467 = vpow.pop %v1466
        %v1468 = vmul.f32 %v1419, 1.442695
        %v1469 = vpow.pop %v1468
        %v1470 = vmul.f32 %v1420, 1.442695
        %v1471 = vpow.pop %v1470
        %v1472 = vmul.f32 %v1421, 1.442695
        %v1473 = vpow.pop %v1472
        %v1474 = vmul.f32 %v1422, 1.442695
        %v1475 = vpow.pop %v1474
        %v1476 = vmul.f32 %v1423, 1.442695
        %v1477 = vpow.pop %v1476
        %v1478 = vmul.f32 %v1424, 1.442695
        %v1479 = vpow.pop %v1478
        %v1480 = vmul.f32 %v1425, 1.442695
        %v1481 = vpow.pop %v1480
        %v1482 = vmul.f32 %v1426, 1.442695
        %v1483 = vpow.pop %v1482
        %v1484 = vmul.f32 %v1427, 1.442695
        %v1485 = vpow.pop %v1484
        %v1486 = vmul.f32 %v1428, 1.442695
        %v1487 = vpow.pop %v1486
        %v1488 = vmul.f32 %v1429, 1.442695
        %v1489 = vpow.pop %v1488
        %v1490 = vmul.f32 %v1430, 1.442695
        %v1491 = vpow.pop %v1490
        %v1492 = vmul.f32 %v1431, 1.442695
        %v1493 = vpow.pop %v1492
        %v1494 = vmul.f32 %v1432, 1.442695
        %v1495 = vpow.pop %v1494
        %v1496 = vmul.f32 %v1433, 1.442695
        %v1497 = vpow.pop %v1496
        %v1498 = vmul.f32 %v1434, 1.442695
        %v1499 = vpow.pop %v1498
        %v1500 = vmul.f32 %v1435, 1.442695
        %v1501 = vpow.pop %v1500
        %v1502 = vmul.f32 %v1436, 1.442695
        %v1503 = vpow.pop %v1502
        %v1504 = vmul.f32 %v1437, 1.442695
        %v1505 = vpow.pop %v1504
        %v1506 = vmul.f32 %v1438, 1.442695
        %v1507 = vpow.pop %v1506
        %v1508 = vmul.f32 %v1439, 1.442695
        %v1509 = vpow.pop %v1508
        %v1510 = vmul.f32 %v1440, 1.442695
        %v1511 = vpow.pop %v1510
        %v1512 = vmul.f32 %v1441, 1.442695
        %v1513 = vpow.pop %v1512
        %v1514 = vadd.f32 %v1443, 1.0
        %v1515 = vadd.f32 %v1445, 1.0
        %v1516 = vadd.f32 %v1447, 1.0
        %v1517 = vadd.f32 %v1449, 1.0
        %v1518 = vadd.f32 %v1451, 1.0
        %v1519 = vadd.f32 %v1453, 1.0
        %v1520 = vadd.f32 %v1455, 1.0
        %v1521 = vadd.f32 %v1457, 1.0
        %v1522 = vadd.f32 %v1459, 1.0
        %v1523 = vadd.f32 %v1461, 1.0
        %v1524 = vadd.f32 %v1463, 1.0
        %v1525 = vadd.f32 %v1465, 1.0
        %v1526 = vadd.f32 %v1467, 1.0
        %v1527 = vadd.f32 %v1469, 1.0
        %v1528 = vadd.f32 %v1471, 1.0
        %v1529 = vadd.f32 %v1473, 1.0
        %v1530 = vadd.f32 %v1475, 1.0
        %v1531 = vadd.f32 %v1477, 1.0
        %v1532 = vadd.f32 %v1479, 1.0
        %v1533 = vadd.f32 %v1481, 1.0
        %v1534 = vadd.f32 %v1483, 1.0
        %v1535 = vadd.f32 %v1485, 1.0
        %v1536 = vadd.f32 %v1487, 1.0
        %v1537 = vadd.f32 %v1489, 1.0
        %v1538 = vadd.f32 %v1491, 1.0
        %v1539 = vadd.f32 %v1493, 1.0
        %v1540 = vadd.f32 %v1495, 1.0
        %v1541 = vadd.f32 %v1497, 1.0
        %v1542 = vadd.f32 %v1499, 1.0
        %v1543 = vadd.f32 %v1501, 1.0
        %v1544 = vadd.f32 %v1503, 1.0
        %v1545 = vadd.f32 %v1505, 1.0
        %v1546 = vadd.f32 %v1507, 1.0
        %v1547 = vadd.f32 %v1509, 1.0
        %v1548 = vadd.f32 %v1511, 1.0
        %v1549 = vadd.f32 %v1513, 1.0
        %v1550 = vrcp.pop %v1514
        %v1551 = vrcp.pop %v1515
        %v1552 = vrcp.pop %v1516
        %v1553 = vrcp.pop %v1517
        %v1554 = vrcp.pop %v1518
        %v1555 = vrcp.pop %v1519
        %v1556 = vrcp.pop %v1520
        %v1557 = vrcp.pop %v1521
        %v1558 = vrcp.pop %v1522
        %v1559 = vrcp.pop %v1523
        %v1560 = vrcp.pop %v1524
        %v1561 = vrcp.pop %v1525
        %v1562 = vrcp.pop %v1526
        %v1563 = vrcp.pop %v1527
        %v1564 = vrcp.pop %v1528
        %v1565 = vrcp.pop %v1529
        %v1566 = vrcp.pop %v1530
        %v1567 = vrcp.pop %v1531
        %v1568 = vrcp.pop %v1532
        %v1569 = vrcp.pop %v1533
        %v1570 = vrcp.pop %v1534
        %v1571 = vrcp.pop %v1535
        %v1572 = vrcp.pop %v1536
        %v1573 = vrcp.pop %v1537
        %v1574 = vrcp.pop %v1538
        %v1575 = vrcp.pop %v1539
        %v1576 = vrcp.pop %v1540
        %v1577 = vrcp.pop %v1541
        %v1578 = vrcp.pop %v1542
        %v1579 = vrcp.pop %v1543
        %v1580 = vrcp.pop %v1544
        %v1581 = vrcp.pop %v1545
        %v1582 = vrcp.pop %v1546
        %v1583 = vrcp.pop %v1547
        %v1584 = vrcp.pop %v1548
        %v1585 = vrcp.pop %v1549
        %v1586 = vmul.f32 %v1370, %v1550
        %v1587 = vmul.f32 %v1371, %v1551
        %v1588 = vmul.f32 %v1372, %v1552
        %v1589 = vmul.f32 %v1373, %v1553
        %v1590 = vmul.f32 %v1374, %v1554
        %v1591 = vmul.f32 %v1375, %v1555
        %v1592 = vmul.f32 %v1376, %v1556
        %v1593 = vmul.f32 %v1377, %v1557
        %v1594 = vmul.f32 %v1378, %v1558
        %v1595 = vmul.f32 %v1379, %v1559
        %v1596 = vmul.f32 %v1380, %v1560
        %v1597 = vmul.f32 %v1381, %v1561
        %v1598 = vmul.f32 %v1382, %v1562
        %v1599 = vmul.f32 %v1383, %v1563
        %v1600 = vmul.f32 %v1384, %v1564
        %v1601 = vmul.f32 %v1385, %v1565
        %v1602 = vmul.f32 %v1386, %v1566
        %v1603 = vmul.f32 %v1387, %v1567
        %v1604 = vmul.f32 %v1388, %v1568
        %v1605 = vmul.f32 %v1389, %v1569
        %v1606 = vmul.f32 %v1390, %v1570
        %v1607 = vmul.f32 %v1391, %v1571
        %v1608 = vmul.f32 %v1392, %v1572
        %v1609 = vmul.f32 %v1393, %v1573
        %v1610 = vmul.f32 %v1394, %v1574
        %v1611 = vmul.f32 %v1395, %v1575
        %v1612 = vmul.f32 %v1396, %v1576
        %v1613 = vmul.f32 %v1397, %v1577
        %v1614 = vmul.f32 %v1398, %v1578
        %v1615 = vmul.f32 %v1399, %v1579
        %v1616 = vmul.f32 %v1400, %v1580
        %v1617 = vmul.f32 %v1401, %v1581
        %v1618 = vmul.f32 %v1402, %v1582
        %v1619 = vmul.f32 %v1403, %v1583
        %v1620 = vmul.f32 %v1404, %v1584
        %v1621 = vmul.f32 %v1405, %v1585
        %1623 = vset.pattern.permute.xlu0 0
        %1624 = vperm.xlu0 %1623, %v766
        %v1625 = vpop.permute.xlu0 %1624
        %1628 = vset.pattern.permute.xlu0 0
        %1629 = vperm.xlu0 %1628, %v767
        %v1630 = vpop.permute.xlu0 %1629
        %1633 = vset.pattern.permute.xlu0 0
        %1634 = vperm.xlu0 %1633, %v768
        %v1635 = vpop.permute.xlu0 %1634
        %1638 = vset.pattern.permute.xlu0 0
        %1639 = vperm.xlu0 %1638, %v769
        %v1640 = vpop.permute.xlu0 %1639
        %1643 = vset.pattern.permute.xlu0 0
        %1644 = vperm.xlu0 %1643, %v770
        %v1645 = vpop.permute.xlu0 %1644
        %1648 = vset.pattern.permute.xlu0 0
        %1649 = vperm.xlu0 %1648, %v771
        %v1650 = vpop.permute.xlu0 %1649
        %1653 = vset.pattern.permute.xlu0 0
        %1654 = vperm.xlu0 %1653, %v772
        %v1655 = vpop.permute.xlu0 %1654
        %1658 = vset.pattern.permute.xlu0 0
        %1659 = vperm.xlu0 %1658, %v773
        %v1660 = vpop.permute.xlu0 %1659
        %1663 = vset.pattern.permute.xlu0 0
        %1664 = vperm.xlu0 %1663, %v774
        %v1665 = vpop.permute.xlu0 %1664
        %1668 = vset.pattern.permute.xlu0 0
        %1669 = vperm.xlu0 %1668, %v775
        %v1670 = vpop.permute.xlu0 %1669
        %1673 = vset.pattern.permute.xlu0 0
        %1674 = vperm.xlu0 %1673, %v776
        %v1675 = vpop.permute.xlu0 %1674
        %1678 = vset.pattern.permute.xlu0 0
        %1679 = vperm.xlu0 %1678, %v777
        %v1680 = vpop.permute.xlu0 %1679
        %1683 = vset.pattern.permute.xlu0 0
        %1684 = vperm.xlu0 %1683, %v778
        %v1685 = vpop.permute.xlu0 %1684
        %1688 = vset.pattern.permute.xlu0 0
        %1689 = vperm.xlu0 %1688, %v779
        %v1690 = vpop.permute.xlu0 %1689
        %1693 = vset.pattern.permute.xlu0 0
        %1694 = vperm.xlu0 %1693, %v780
        %v1695 = vpop.permute.xlu0 %1694
        %1698 = vset.pattern.permute.xlu0 0
        %1699 = vperm.xlu0 %1698, %v781
        %v1700 = vpop.permute.xlu0 %1699
        %1703 = vset.pattern.permute.xlu0 0
        %1704 = vperm.xlu0 %1703, %v782
        %v1705 = vpop.permute.xlu0 %1704
        %1708 = vset.pattern.permute.xlu0 0
        %1709 = vperm.xlu0 %1708, %v783
        %v1710 = vpop.permute.xlu0 %1709
        %1713 = vset.pattern.permute.xlu0 0
        %1714 = vperm.xlu0 %1713, %v784
        %v1715 = vpop.permute.xlu0 %1714
        %1718 = vset.pattern.permute.xlu0 0
        %1719 = vperm.xlu0 %1718, %v785
        %v1720 = vpop.permute.xlu0 %1719
        %1723 = vset.pattern.permute.xlu0 0
        %1724 = vperm.xlu0 %1723, %v786
        %v1725 = vpop.permute.xlu0 %1724
        %1728 = vset.pattern.permute.xlu0 0
        %1729 = vperm.xlu0 %1728, %v787
        %v1730 = vpop.permute.xlu0 %1729
        %1733 = vset.pattern.permute.xlu0 0
        %1734 = vperm.xlu0 %1733, %v788
        %v1735 = vpop.permute.xlu0 %1734
        %1738 = vset.pattern.permute.xlu0 0
        %1739 = vperm.xlu0 %1738, %v789
        %v1740 = vpop.permute.xlu0 %1739
        %1743 = vset.pattern.permute.xlu0 0
        %1744 = vperm.xlu0 %1743, %v790
        %v1745 = vpop.permute.xlu0 %1744
        %1748 = vset.pattern.permute.xlu0 0
        %1749 = vperm.xlu0 %1748, %v791
        %v1750 = vpop.permute.xlu0 %1749
        %1753 = vset.pattern.permute.xlu0 0
        %1754 = vperm.xlu0 %1753, %v792
        %v1755 = vpop.permute.xlu0 %1754
        %1758 = vset.pattern.permute.xlu0 0
        %1759 = vperm.xlu0 %1758, %v793
        %v1760 = vpop.permute.xlu0 %1759
        %1763 = vset.pattern.permute.xlu0 0
        %1764 = vperm.xlu0 %1763, %v794
        %v1765 = vpop.permute.xlu0 %1764
        %1768 = vset.pattern.permute.xlu0 0
        %1769 = vperm.xlu0 %1768, %v795
        %v1770 = vpop.permute.xlu0 %1769
        %1773 = vset.pattern.permute.xlu0 0
        %1774 = vperm.xlu0 %1773, %v796
        %v1775 = vpop.permute.xlu0 %1774
        %1778 = vset.pattern.permute.xlu0 0
        %1779 = vperm.xlu0 %1778, %v797
        %v1780 = vpop.permute.xlu0 %1779
        %1783 = vset.pattern.permute.xlu0 0
        %1784 = vperm.xlu0 %1783, %v798
        %v1785 = vpop.permute.xlu0 %1784
        %1788 = vset.pattern.permute.xlu0 0
        %1789 = vperm.xlu0 %1788, %v799
        %v1790 = vpop.permute.xlu0 %1789
        %1793 = vset.pattern.permute.xlu0 0
        %1794 = vperm.xlu0 %1793, %v800
        %v1795 = vpop.permute.xlu0 %1794
        %1798 = vset.pattern.permute.xlu0 0
        %1799 = vperm.xlu0 %1798, %v801
        %v1800 = vpop.permute.xlu0 %1799
        %v1802 = vmul.f32 %v1586, %v1625
        %v1803 = vmul.f32 %v1587, %v1630
        %v1804 = vmul.f32 %v1588, %v1635
        %v1805 = vmul.f32 %v1589, %v1640
        %v1806 = vmul.f32 %v1590, %v1645
        %v1807 = vmul.f32 %v1591, %v1650
        %v1808 = vmul.f32 %v1592, %v1655
        %v1809 = vmul.f32 %v1593, %v1660
        %v1810 = vmul.f32 %v1594, %v1665
        %v1811 = vmul.f32 %v1595, %v1670
        %v1812 = vmul.f32 %v1596, %v1675
        %v1813 = vmul.f32 %v1597, %v1680
        %v1814 = vmul.f32 %v1598, %v1685
        %v1815 = vmul.f32 %v1599, %v1690
        %v1816 = vmul.f32 %v1600, %v1695
        %v1817 = vmul.f32 %v1601, %v1700
        %v1818 = vmul.f32 %v1602, %v1705
        %v1819 = vmul.f32 %v1603, %v1710
        %v1820 = vmul.f32 %v1604, %v1715
        %v1821 = vmul.f32 %v1605, %v1720
        %v1822 = vmul.f32 %v1606, %v1725
        %v1823 = vmul.f32 %v1607, %v1730
        %v1824 = vmul.f32 %v1608, %v1735
        %v1825 = vmul.f32 %v1609, %v1740
        %v1826 = vmul.f32 %v1610, %v1745
        %v1827 = vmul.f32 %v1611, %v1750
        %v1828 = vmul.f32 %v1612, %v1755
        %v1829 = vmul.f32 %v1613, %v1760
        %v1830 = vmul.f32 %v1614, %v1765
        %v1831 = vmul.f32 %v1615, %v1770
        %v1832 = vmul.f32 %v1616, %v1775
        %v1833 = vmul.f32 %v1617, %v1780
        %v1834 = vmul.f32 %v1618, %v1785
        %v1835 = vmul.f32 %v1619, %v1790
        %v1836 = vmul.f32 %v1620, %v1795
        %v1837 = vmul.f32 %v1621, %v1800
        %v1838 = vpack.c.bf16 %v1803, %v1802
        %v1839 = vpack.c.bf16 %v1805, %v1804
        %v1840 = vpack.c.bf16 %v1807, %v1806
        %v1841 = vpack.c.bf16 %v1809, %v1808
        %v1842 = vpack.c.bf16 %v1811, %v1810
        %v1843 = vpack.c.bf16 %v1813, %v1812
        %v1844 = vpack.c.bf16 %v1815, %v1814
        %v1845 = vpack.c.bf16 %v1817, %v1816
        %v1846 = vpack.c.bf16 %v1819, %v1818
        %v1847 = vpack.c.bf16 %v1821, %v1820
        %v1848 = vpack.c.bf16 %v1823, %v1822
        %v1849 = vpack.c.bf16 %v1825, %v1824
        %v1850 = vpack.c.bf16 %v1827, %v1826
        %v1851 = vpack.c.bf16 %v1829, %v1828
        %v1852 = vpack.c.bf16 %v1831, %v1830
        %v1853 = vpack.c.bf16 %v1833, %v1832
        %v1854 = vpack.c.bf16 %v1835, %v1834
        %v1855 = vpack.c.bf16 %v1837, %v1836
        %vm1874 = vcmask 1043456
        %v1875 = vrot.slane %v1838, 4
        %v1876 = vrot.slane %v1839, 4
        %v1877 = vsel %vm1874, %v1875, %v1876
        %v1878 = vrot.slane %v1840, 4
        %v1879 = vsel %vm1874, %v1876, %v1878
        %v1880 = vrot.slane %v1841, 4
        %v1881 = vsel %vm1874, %v1878, %v1880
        %v1882 = vrot.slane %v1842, 4
        %v1883 = vsel %vm1874, %v1880, %v1882
        %v1884 = vrot.slane %v1843, 4
        %v1885 = vsel %vm1874, %v1882, %v1884
        %v1886 = vrot.slane %v1844, 4
        %v1887 = vsel %vm1874, %v1884, %v1886
        %v1888 = vrot.slane %v1845, 4
        %v1889 = vsel %vm1874, %v1886, %v1888
        %v1890 = vrot.slane %v1846, 4
        %v1891 = vsel %vm1874, %v1888, %v1890
        %v1892 = vrot.slane %v1847, 4
        %v1893 = vsel %vm1874, %v1890, %v1892
        %v1894 = vrot.slane %v1848, 4
        %v1895 = vsel %vm1874, %v1892, %v1894
        %v1896 = vrot.slane %v1849, 4
        %v1897 = vsel %vm1874, %v1894, %v1896
        %v1898 = vrot.slane %v1850, 4
        %v1899 = vsel %vm1874, %v1896, %v1898
        %v1900 = vrot.slane %v1851, 4
        %v1901 = vsel %vm1874, %v1898, %v1900
        %v1902 = vrot.slane %v1852, 4
        %v1903 = vsel %vm1874, %v1900, %v1902
        %v1904 = vrot.slane %v1853, 4
        %v1905 = vsel %vm1874, %v1902, %v1904
        %v1906 = vrot.slane %v1854, 4
        %v1907 = vsel %vm1874, %v1904, %v1906
        %v1908 = vrot.slane %v1855, 4
        %v1909 = vsel %vm1874, %v1906, %v1908
        %1929 = vst [vmem:[#allocation2 + $0x8] sm:$0xf0] %v1875
        %1930 = vst [vmem:[#allocation2 + $0x10] sm:$0xff] %v1877
        %1931 = vst [vmem:[#allocation2 + $0x18] sm:$0xff] %v1879
        %1932 = vst [vmem:[#allocation2 + $0x20] sm:$0xff] %v1881
        %1933 = vst [vmem:[#allocation2 + $0x28] sm:$0xff] %v1883
        %1934 = vst [vmem:[#allocation2 + $0x30] sm:$0xff] %v1885
        %1935 = vst [vmem:[#allocation2 + $0x38] sm:$0xff] %v1887
        %1936 = vst [vmem:[#allocation2 + $0x40] sm:$0xff] %v1889
        %1937 = vst [vmem:[#allocation2 + $0x48] sm:$0xff] %v1891
        %1938 = vst [vmem:[#allocation2 + $0x50] sm:$0xff] %v1893
        %1939 = vst [vmem:[#allocation2 + $0x58] sm:$0xff] %v1895
        %1940 = vst [vmem:[#allocation2 + $0x60] sm:$0xff] %v1897
        %1941 = vst [vmem:[#allocation2 + $0x68] sm:$0xff] %v1899
        %1942 = vst [vmem:[#allocation2 + $0x70] sm:$0xff] %v1901
        %1943 = vst [vmem:[#allocation2 + $0x78] sm:$0xff] %v1903
        %1944 = vst [vmem:[#allocation2 + $0x80] sm:$0xff] %v1905
        %1945 = vst [vmem:[#allocation2 + $0x88] sm:$0xff] %v1907
        %1946 = vst [vmem:[#allocation2 + $0x90] sm:$0xff] %v1909
        %1947 = vst [vmem:[#allocation2 + $0x98] sm:$0xf] %v1908
        %v1948 = vld [vmem:[#allocation2] sm:$0xfc]
        %v1949 = vld [vmem:[#allocation2 + $0x8] sm:$0xff]
        %v1950 = vld [vmem:[#allocation2 + $0x10] sm:$0xff]
        %v1951 = vld [vmem:[#allocation2 + $0x18] sm:$0xff]
        %v1952 = vld [vmem:[#allocation2 + $0x20] sm:$0xff]
        %v1953 = vld [vmem:[#allocation2 + $0x28] sm:$0xff]
        %v1954 = vld [vmem:[#allocation2 + $0x30] sm:$0xff]
        %v1955 = vld [vmem:[#allocation2 + $0x38] sm:$0xff]
        %v1956 = vld [vmem:[#allocation2 + $0x40] sm:$0xff]
        %v1957 = vld [vmem:[#allocation2 + $0x48] sm:$0xff]
        %v1958 = vld [vmem:[#allocation2 + $0x50] sm:$0xff]
        %v1959 = vld [vmem:[#allocation2 + $0x58] sm:$0xff]
        %v1960 = vld [vmem:[#allocation2 + $0x60] sm:$0xff]
        %v1961 = vld [vmem:[#allocation2 + $0x68] sm:$0xff]
        %v1962 = vld [vmem:[#allocation2 + $0x70] sm:$0xff]
        %v1963 = vld [vmem:[#allocation2 + $0x78] sm:$0xff]
        %v1964 = vld [vmem:[#allocation2 + $0x80] sm:$0xff]
        %v1965 = vld [vmem:[#allocation2 + $0x88] sm:$0xff]
        %v1966 = vld [vmem:[#allocation2 + $0x90] sm:$0x7]
        %vm1967 = vsmask.f32 5376
        %v1969 = vshrl.u32 %v1948, 16
        %v1971 = vrot.slane %v1969, 2
        %v1972 = vshll.u32 %v1948, 16
        %v1974 = vrot.slane %v1972, 3
        %v1975 = vor.u32 %v1971, %v1974
        %v1977 = vshrl.u32 %v1949, 16
        %v1979 = vrot.slane %v1977, 2
        %v1980 = vshll.u32 %v1949, 16
        %v1982 = vrot.slane %v1980, 3
        %v1983 = vor.u32 %v1979, %v1982
        %v1984 = vsel %vm1967, %v1975, %v1983
        %v1986 = vshrl.u32 %v1950, 16
        %v1988 = vrot.slane %v1986, 2
        %v1989 = vshll.u32 %v1950, 16
        %v1991 = vrot.slane %v1989, 3
        %v1992 = vor.u32 %v1988, %v1991
        %v1993 = vsel %vm1967, %v1983, %v1992
        %v1995 = vshrl.u32 %v1951, 16
        %v1997 = vrot.slane %v1995, 2
        %v1998 = vshll.u32 %v1951, 16
        %v2000 = vrot.slane %v1998, 3
        %v2001 = vor.u32 %v1997, %v2000
        %v2002 = vsel %vm1967, %v1992, %v2001
        %v2004 = vshrl.u32 %v1952, 16
        %v2006 = vrot.slane %v2004, 2
        %v2007 = vshll.u32 %v1952, 16
        %v2009 = vrot.slane %v2007, 3
        %v2010 = vor.u32 %v2006, %v2009
        %v2011 = vsel %vm1967, %v2001, %v2010
        %v2013 = vshrl.u32 %v1953, 16
        %v2015 = vrot.slane %v2013, 2
        %v2016 = vshll.u32 %v1953, 16
        %v2018 = vrot.slane %v2016, 3
        %v2019 = vor.u32 %v2015, %v2018
        %v2020 = vsel %vm1967, %v2010, %v2019
        %v2022 = vshrl.u32 %v1954, 16
        %v2024 = vrot.slane %v2022, 2
        %v2025 = vshll.u32 %v1954, 16
        %v2027 = vrot.slane %v2025, 3
        %v2028 = vor.u32 %v2024, %v2027
        %v2029 = vsel %vm1967, %v2019, %v2028
        %v2031 = vshrl.u32 %v1955, 16
        %v2033 = vrot.slane %v2031, 2
        %v2034 = vshll.u32 %v1955, 16
        %v2036 = vrot.slane %v2034, 3
        %v2037 = vor.u32 %v2033, %v2036
        %v2038 = vsel %vm1967, %v2028, %v2037
        %v2040 = vshrl.u32 %v1956, 16
        %v2042 = vrot.slane %v2040, 2
        %v2043 = vshll.u32 %v1956, 16
        %v2045 = vrot.slane %v2043, 3
        %v2046 = vor.u32 %v2042, %v2045
        %v2047 = vsel %vm1967, %v2037, %v2046
        %v2049 = vshrl.u32 %v1957, 16
        %v2051 = vrot.slane %v2049, 2
        %v2052 = vshll.u32 %v1957, 16
        %v2054 = vrot.slane %v2052, 3
        %v2055 = vor.u32 %v2051, %v2054
        %v2056 = vsel %vm1967, %v2046, %v2055
        %v2058 = vshrl.u32 %v1958, 16
        %v2060 = vrot.slane %v2058, 2
        %v2061 = vshll.u32 %v1958, 16
        %v2063 = vrot.slane %v2061, 3
        %v2064 = vor.u32 %v2060, %v2063
        %v2065 = vsel %vm1967, %v2055, %v2064
        %v2067 = vshrl.u32 %v1959, 16
        %v2069 = vrot.slane %v2067, 2
        %v2070 = vshll.u32 %v1959, 16
        %v2072 = vrot.slane %v2070, 3
        %v2073 = vor.u32 %v2069, %v2072
        %v2074 = vsel %vm1967, %v2064, %v2073
        %v2076 = vshrl.u32 %v1960, 16
        %v2078 = vrot.slane %v2076, 2
        %v2079 = vshll.u32 %v1960, 16
        %v2081 = vrot.slane %v2079, 3
        %v2082 = vor.u32 %v2078, %v2081
        %v2083 = vsel %vm1967, %v2073, %v2082
        %v2085 = vshrl.u32 %v1961, 16
        %v2087 = vrot.slane %v2085, 2
        %v2088 = vshll.u32 %v1961, 16
        %v2090 = vrot.slane %v2088, 3
        %v2091 = vor.u32 %v2087, %v2090
        %v2092 = vsel %vm1967, %v2082, %v2091
        %v2094 = vshrl.u32 %v1962, 16
        %v2096 = vrot.slane %v2094, 2
        %v2097 = vshll.u32 %v1962, 16
        %v2099 = vrot.slane %v2097, 3
        %v2100 = vor.u32 %v2096, %v2099
        %v2101 = vsel %vm1967, %v2091, %v2100
        %v2103 = vshrl.u32 %v1963, 16
        %v2105 = vrot.slane %v2103, 2
        %v2106 = vshll.u32 %v1963, 16
        %v2108 = vrot.slane %v2106, 3
        %v2109 = vor.u32 %v2105, %v2108
        %v2110 = vsel %vm1967, %v2100, %v2109
        %v2112 = vshrl.u32 %v1964, 16
        %v2114 = vrot.slane %v2112, 2
        %v2115 = vshll.u32 %v1964, 16
        %v2117 = vrot.slane %v2115, 3
        %v2118 = vor.u32 %v2114, %v2117
        %v2119 = vsel %vm1967, %v2109, %v2118
        %v2121 = vshrl.u32 %v1965, 16
        %v2123 = vrot.slane %v2121, 2
        %v2124 = vshll.u32 %v1965, 16
        %v2126 = vrot.slane %v2124, 3
        %v2127 = vor.u32 %v2123, %v2126
        %v2128 = vsel %vm1967, %v2118, %v2127
        %v2130 = vshrl.u32 %v1966, 16
        %v2132 = vrot.slane %v2130, 2
        %v2133 = vshll.u32 %v1966, 16
        %v2135 = vrot.slane %v2133, 3
        %v2136 = vor.u32 %v2132, %v2135
        %v2137 = vsel %vm1967, %v2127, %v2136
        %2156 = vst [vmem:[#allocation4] sm:$0xff] %v1984
        %2157 = vst [vmem:[#allocation4 + $0x18] sm:$0xff] %v1993
        %2158 = vst [vmem:[#allocation4 + $0x30] sm:$0xff] %v2002
        %2159 = vst [vmem:[#allocation4 + $0x48] sm:$0xff] %v2011
        %2160 = vst [vmem:[#allocation4 + $0x60] sm:$0xff] %v2020
        %2161 = vst [vmem:[#allocation4 + $0x78] sm:$0xff] %v2029
        %2162 = vst [vmem:[#allocation4 + $0x90] sm:$0xff] %v2038
        %2163 = vst [vmem:[#allocation4 + $0xa8] sm:$0xff] %v2047
        %2164 = vst [vmem:[#allocation4 + $0xc0] sm:$0xff] %v2056
        %2165 = vst [vmem:[#allocation4 + $0xd8] sm:$0xff] %v2065
        %2166 = vst [vmem:[#allocation4 + $0xf0] sm:$0xff] %v2074
        %2167 = vst [vmem:[#allocation4 + $0x108] sm:$0xff] %v2083
        %2168 = vst [vmem:[#allocation4 + $0x120] sm:$0xff] %v2092
        %2169 = vst [vmem:[#allocation4 + $0x138] sm:$0xff] %v2101
        %2170 = vst [vmem:[#allocation4 + $0x150] sm:$0xff] %v2110
        %2171 = vst [vmem:[#allocation4 + $0x168] sm:$0xff] %v2119
        %2172 = vst [vmem:[#allocation4 + $0x180] sm:$0xff] %v2128
        %2173 = vst [vmem:[#allocation4 + $0x198] sm:$0xff] %v2137
        %v2174 = vld [vmem:[#allocation2] sm:$0xf8]
        %v2175 = vld [vmem:[#allocation2 + $0x8] sm:$0xff]
        %v2176 = vld [vmem:[#allocation2 + $0x10] sm:$0xff]
        %v2177 = vld [vmem:[#allocation2 + $0x18] sm:$0xff]
        %v2178 = vld [vmem:[#allocation2 + $0x20] sm:$0xff]
        %v2179 = vld [vmem:[#allocation2 + $0x28] sm:$0xff]
        %v2180 = vld [vmem:[#allocation2 + $0x30] sm:$0xff]
        %v2181 = vld [vmem:[#allocation2 + $0x38] sm:$0xff]
        %v2182 = vld [vmem:[#allocation2 + $0x40] sm:$0xff]
        %v2183 = vld [vmem:[#allocation2 + $0x48] sm:$0xff]
        %v2184 = vld [vmem:[#allocation2 + $0x50] sm:$0xff]
        %v2185 = vld [vmem:[#allocation2 + $0x58] sm:$0xff]
        %v2186 = vld [vmem:[#allocation2 + $0x60] sm:$0xff]
        %v2187 = vld [vmem:[#allocation2 + $0x68] sm:$0xff]
        %v2188 = vld [vmem:[#allocation2 + $0x70] sm:$0xff]
        %v2189 = vld [vmem:[#allocation2 + $0x78] sm:$0xff]
        %v2190 = vld [vmem:[#allocation2 + $0x80] sm:$0xff]
        %v2191 = vld [vmem:[#allocation2 + $0x88] sm:$0xff]
        %v2192 = vld [vmem:[#allocation2 + $0x90] sm:$0x7]
        %vm2212 = vcmask 1044480
        %v2213 = vrot.slane %v2174, 3
        %v2214 = vrot.slane %v2175, 3
        %v2215 = vsel %vm2212, %v2213, %v2214
        %v2216 = vrot.slane %v2176, 3
        %v2217 = vsel %vm2212, %v2214, %v2216
        %v2218 = vrot.slane %v2177, 3
        %v2219 = vsel %vm2212, %v2216, %v2218
        %v2220 = vrot.slane %v2178, 3
        %v2221 = vsel %vm2212, %v2218, %v2220
        %v2222 = vrot.slane %v2179, 3
        %v2223 = vsel %vm2212, %v2220, %v2222
        %v2224 = vrot.slane %v2180, 3
        %v2225 = vsel %vm2212, %v2222, %v2224
        %v2226 = vrot.slane %v2181, 3
        %v2227 = vsel %vm2212, %v2224, %v2226
        %v2228 = vrot.slane %v2182, 3
        %v2229 = vsel %vm2212, %v2226, %v2228
        %v2230 = vrot.slane %v2183, 3
        %v2231 = vsel %vm2212, %v2228, %v2230
        %v2232 = vrot.slane %v2184, 3
        %v2233 = vsel %vm2212, %v2230, %v2232
        %v2234 = vrot.slane %v2185, 3
        %v2235 = vsel %vm2212, %v2232, %v2234
        %v2236 = vrot.slane %v2186, 3
        %v2237 = vsel %vm2212, %v2234, %v2236
        %v2238 = vrot.slane %v2187, 3
        %v2239 = vsel %vm2212, %v2236, %v2238
        %v2240 = vrot.slane %v2188, 3
        %v2241 = vsel %vm2212, %v2238, %v2240
        %v2242 = vrot.slane %v2189, 3
        %v2243 = vsel %vm2212, %v2240, %v2242
        %v2244 = vrot.slane %v2190, 3
        %v2245 = vsel %vm2212, %v2242, %v2244
        %v2246 = vrot.slane %v2191, 3
        %v2247 = vsel %vm2212, %v2244, %v2246
        %v2248 = vrot.slane %v2192, 3
        %v2249 = vsel %vm2212, %v2246, %v2248
        %2268 = vst [vmem:[#allocation4 + $0x8] sm:$0xff] %v2215
        %2269 = vst [vmem:[#allocation4 + $0x20] sm:$0xff] %v2217
        %2270 = vst [vmem:[#allocation4 + $0x38] sm:$0xff] %v2219
        %2271 = vst [vmem:[#allocation4 + $0x50] sm:$0xff] %v2221
        %2272 = vst [vmem:[#allocation4 + $0x68] sm:$0xff] %v2223
        %2273 = vst [vmem:[#allocation4 + $0x80] sm:$0xff] %v2225
        %2274 = vst [vmem:[#allocation4 + $0x98] sm:$0xff] %v2227
        %2275 = vst [vmem:[#allocation4 + $0xb0] sm:$0xff] %v2229
        %2276 = vst [vmem:[#allocation4 + $0xc8] sm:$0xff] %v2231
        %2277 = vst [vmem:[#allocation4 + $0xe0] sm:$0xff] %v2233
        %2278 = vst [vmem:[#allocation4 + $0xf8] sm:$0xff] %v2235
        %2279 = vst [vmem:[#allocation4 + $0x110] sm:$0xff] %v2237
        %2280 = vst [vmem:[#allocation4 + $0x128] sm:$0xff] %v2239
        %2281 = vst [vmem:[#allocation4 + $0x140] sm:$0xff] %v2241
        %2282 = vst [vmem:[#allocation4 + $0x158] sm:$0xff] %v2243
        %2283 = vst [vmem:[#allocation4 + $0x170] sm:$0xff] %v2245
        %2284 = vst [vmem:[#allocation4 + $0x188] sm:$0xff] %v2247
        %2285 = vst [vmem:[#allocation4 + $0x1a0] sm:$0xff] %v2249
        %v2286 = vld [vmem:[#allocation2] sm:$0xf8]
        %v2287 = vld [vmem:[#allocation2 + $0x8] sm:$0xff]
        %v2288 = vld [vmem:[#allocation2 + $0x10] sm:$0xff]
        %v2289 = vld [vmem:[#allocation2 + $0x18] sm:$0xff]
        %v2290 = vld [vmem:[#allocation2 + $0x20] sm:$0xff]
        %v2291 = vld [vmem:[#allocation2 + $0x28] sm:$0xff]
        %v2292 = vld [vmem:[#allocation2 + $0x30] sm:$0xff]
        %v2293 = vld [vmem:[#allocation2 + $0x38] sm:$0xff]
        %v2294 = vld [vmem:[#allocation2 + $0x40] sm:$0xff]
        %v2295 = vld [vmem:[#allocation2 + $0x48] sm:$0xff]
        %v2296 = vld [vmem:[#allocation2 + $0x50] sm:$0xff]
        %v2297 = vld [vmem:[#allocation2 + $0x58] sm:$0xff]
        %v2298 = vld [vmem:[#allocation2 + $0x60] sm:$0xff]
        %v2299 = vld [vmem:[#allocation2 + $0x68] sm:$0xff]
        %v2300 = vld [vmem:[#allocation2 + $0x70] sm:$0xff]
        %v2301 = vld [vmem:[#allocation2 + $0x78] sm:$0xff]
        %v2302 = vld [vmem:[#allocation2 + $0x80] sm:$0xff]
        %v2303 = vld [vmem:[#allocation2 + $0x88] sm:$0xff]
        %v2304 = vld [vmem:[#allocation2 + $0x90] sm:$0xf]
        %vm2305 = vsmask.f32 4352
        %v2307 = vshrl.u32 %v2286, 16
        %v2309 = vrot.slane %v2307, 3
        %v2310 = vshll.u32 %v2286, 16
        %v2312 = vrot.slane %v2310, 4
        %v2313 = vor.u32 %v2309, %v2312
        %v2315 = vshrl.u32 %v2287, 16
        %v2317 = vrot.slane %v2315, 3
        %v2318 = vshll.u32 %v2287, 16
        %v2320 = vrot.slane %v2318, 4
        %v2321 = vor.u32 %v2317, %v2320
        %v2322 = vsel %vm2305, %v2313, %v2321
        %v2324 = vshrl.u32 %v2288, 16
        %v2326 = vrot.slane %v2324, 3
        %v2327 = vshll.u32 %v2288, 16
        %v2329 = vrot.slane %v2327, 4
        %v2330 = vor.u32 %v2326, %v2329
        %v2331 = vsel %vm2305, %v2321, %v2330
        %v2333 = vshrl.u32 %v2289, 16
        %v2335 = vrot.slane %v2333, 3
        %v2336 = vshll.u32 %v2289, 16
        %v2338 = vrot.slane %v2336, 4
        %v2339 = vor.u32 %v2335, %v2338
        %v2340 = vsel %vm2305, %v2330, %v2339
        %v2342 = vshrl.u32 %v2290, 16
        %v2344 = vrot.slane %v2342, 3
        %v2345 = vshll.u32 %v2290, 16
        %v2347 = vrot.slane %v2345, 4
        %v2348 = vor.u32 %v2344, %v2347
        %v2349 = vsel %vm2305, %v2339, %v2348
        %v2351 = vshrl.u32 %v2291, 16
        %v2353 = vrot.slane %v2351, 3
        %v2354 = vshll.u32 %v2291, 16
        %v2356 = vrot.slane %v2354, 4
        %v2357 = vor.u32 %v2353, %v2356
        %v2358 = vsel %vm2305, %v2348, %v2357
        %v2360 = vshrl.u32 %v2292, 16
        %v2362 = vrot.slane %v2360, 3
        %v2363 = vshll.u32 %v2292, 16
        %v2365 = vrot.slane %v2363, 4
        %v2366 = vor.u32 %v2362, %v2365
        %v2367 = vsel %vm2305, %v2357, %v2366
        %v2369 = vshrl.u32 %v2293, 16
        %v2371 = vrot.slane %v2369, 3
        %v2372 = vshll.u32 %v2293, 16
        %v2374 = vrot.slane %v2372, 4
        %v2375 = vor.u32 %v2371, %v2374
        %v2376 = vsel %vm2305, %v2366, %v2375
        %v2378 = vshrl.u32 %v2294, 16
        %v2380 = vrot.slane %v2378, 3
        %v2381 = vshll.u32 %v2294, 16
        %v2383 = vrot.slane %v2381, 4
        %v2384 = vor.u32 %v2380, %v2383
        %v2385 = vsel %vm2305, %v2375, %v2384
        %v2387 = vshrl.u32 %v2295, 16
        %v2389 = vrot.slane %v2387, 3
        %v2390 = vshll.u32 %v2295, 16
        %v2392 = vrot.slane %v2390, 4
        %v2393 = vor.u32 %v2389, %v2392
        %v2394 = vsel %vm2305, %v2384, %v2393
        %v2396 = vshrl.u32 %v2296, 16
        %v2398 = vrot.slane %v2396, 3
        %v2399 = vshll.u32 %v2296, 16
        %v2401 = vrot.slane %v2399, 4
        %v2402 = vor.u32 %v2398, %v2401
        %v2403 = vsel %vm2305, %v2393, %v2402
        %v2405 = vshrl.u32 %v2297, 16
        %v2407 = vrot.slane %v2405, 3
        %v2408 = vshll.u32 %v2297, 16
        %v2410 = vrot.slane %v2408, 4
        %v2411 = vor.u32 %v2407, %v2410
        %v2412 = vsel %vm2305, %v2402, %v2411
        %v2414 = vshrl.u32 %v2298, 16
        %v2416 = vrot.slane %v2414, 3
        %v2417 = vshll.u32 %v2298, 16
        %v2419 = vrot.slane %v2417, 4
        %v2420 = vor.u32 %v2416, %v2419
        %v2421 = vsel %vm2305, %v2411, %v2420
        %v2423 = vshrl.u32 %v2299, 16
        %v2425 = vrot.slane %v2423, 3
        %v2426 = vshll.u32 %v2299, 16
        %v2428 = vrot.slane %v2426, 4
        %v2429 = vor.u32 %v2425, %v2428
        %v2430 = vsel %vm2305, %v2420, %v2429
        %v2432 = vshrl.u32 %v2300, 16
        %v2434 = vrot.slane %v2432, 3
        %v2435 = vshll.u32 %v2300, 16
        %v2437 = vrot.slane %v2435, 4
        %v2438 = vor.u32 %v2434, %v2437
        %v2439 = vsel %vm2305, %v2429, %v2438
        %v2441 = vshrl.u32 %v2301, 16
        %v2443 = vrot.slane %v2441, 3
        %v2444 = vshll.u32 %v2301, 16
        %v2446 = vrot.slane %v2444, 4
        %v2447 = vor.u32 %v2443, %v2446
        %v2448 = vsel %vm2305, %v2438, %v2447
        %v2450 = vshrl.u32 %v2302, 16
        %v2452 = vrot.slane %v2450, 3
        %v2453 = vshll.u32 %v2302, 16
        %v2455 = vrot.slane %v2453, 4
        %v2456 = vor.u32 %v2452, %v2455
        %v2457 = vsel %vm2305, %v2447, %v2456
        %v2459 = vshrl.u32 %v2303, 16
        %v2461 = vrot.slane %v2459, 3
        %v2462 = vshll.u32 %v2303, 16
        %v2464 = vrot.slane %v2462, 4
        %v2465 = vor.u32 %v2461, %v2464
        %v2466 = vsel %vm2305, %v2456, %v2465
        %v2468 = vshrl.u32 %v2304, 16
        %v2470 = vrot.slane %v2468, 3
        %v2471 = vshll.u32 %v2304, 16
        %v2473 = vrot.slane %v2471, 4
        %v2474 = vor.u32 %v2470, %v2473
        %v2475 = vsel %vm2305, %v2465, %v2474
        %2494 = vst [vmem:[#allocation4 + $0x10] sm:$0xff] %v2322
        %2495 = vst [vmem:[#allocation4 + $0x28] sm:$0xff] %v2331
        %2496 = vst [vmem:[#allocation4 + $0x40] sm:$0xff] %v2340
        %2497 = vst [vmem:[#allocation4 + $0x58] sm:$0xff] %v2349
        %2498 = vst [vmem:[#allocation4 + $0x70] sm:$0xff] %v2358
        %2499 = vst [vmem:[#allocation4 + $0x88] sm:$0xff] %v2367
        %2500 = vst [vmem:[#allocation4 + $0xa0] sm:$0xff] %v2376
        %2501 = vst [vmem:[#allocation4 + $0xb8] sm:$0xff] %v2385
        %2502 = vst [vmem:[#allocation4 + $0xd0] sm:$0xff] %v2394
        %2503 = vst [vmem:[#allocation4 + $0xe8] sm:$0xff] %v2403
        %2504 = vst [vmem:[#allocation4 + $0x100] sm:$0xff] %v2412
        %2505 = vst [vmem:[#allocation4 + $0x118] sm:$0xff] %v2421
        %2506 = vst [vmem:[#allocation4 + $0x130] sm:$0xff] %v2430
        %2507 = vst [vmem:[#allocation4 + $0x148] sm:$0xff] %v2439
        %2508 = vst [vmem:[#allocation4 + $0x160] sm:$0xff] %v2448
        %2509 = vst [vmem:[#allocation4 + $0x178] sm:$0xff] %v2457
        %2510 = vst [vmem:[#allocation4 + $0x190] sm:$0xff] %v2466
        %2511 = vst [vmem:[#allocation4 + $0x1a8] sm:$0xff] %v2475
        %v2512 = vld [vmem:[#allocation4] sm:$0xff]
        %v2513 = vld [vmem:[#allocation4 + $0x8] sm:$0xff]
        %v2514 = vld [vmem:[#allocation4 + $0x10] sm:$0xff]
        %v2515 = vld [vmem:[#allocation4 + $0x18] sm:$0xff]
        %v2516 = vld [vmem:[#allocation4 + $0x20] sm:$0xff]
        %v2517 = vld [vmem:[#allocation4 + $0x28] sm:$0xff]
        %v2518 = vld [vmem:[#allocation4 + $0x30] sm:$0xff]
        %v2519 = vld [vmem:[#allocation4 + $0x38] sm:$0xff]
        %v2520 = vld [vmem:[#allocation4 + $0x40] sm:$0xff]
        %v2521 = vld [vmem:[#allocation4 + $0x48] sm:$0xff]
        %v2522 = vld [vmem:[#allocation4 + $0x50] sm:$0xff]
        %v2523 = vld [vmem:[#allocation4 + $0x58] sm:$0xff]
        %v2524 = vld [vmem:[#allocation4 + $0x60] sm:$0xff]
        %v2525 = vld [vmem:[#allocation4 + $0x68] sm:$0xff]
        %v2526 = vld [vmem:[#allocation4 + $0x70] sm:$0xff]
        %v2527 = vld [vmem:[#allocation4 + $0x78] sm:$0xff]
        %v2528 = vld [vmem:[#allocation4 + $0x80] sm:$0xff]
        %v2529 = vld [vmem:[#allocation4 + $0x88] sm:$0xff]
        %v2530 = vld [vmem:[#allocation4 + $0x90] sm:$0xff]
        %v2531 = vld [vmem:[#allocation4 + $0x98] sm:$0xff]
        %v2532 = vld [vmem:[#allocation4 + $0xa0] sm:$0xff]
        %v2533 = vld [vmem:[#allocation4 + $0xa8] sm:$0xff]
        %v2534 = vld [vmem:[#allocation4 + $0xb0] sm:$0xff]
        %v2535 = vld [vmem:[#allocation4 + $0xb8] sm:$0xff]
        %v2536 = vld [vmem:[#allocation4 + $0xc0] sm:$0xff]
        %v2537 = vld [vmem:[#allocation4 + $0xc8] sm:$0xff]
        %v2538 = vld [vmem:[#allocation4 + $0xd0] sm:$0xff]
        %v2539 = vld [vmem:[#allocation4 + $0xd8] sm:$0xff]
        %v2540 = vld [vmem:[#allocation4 + $0xe0] sm:$0xff]
        %v2541 = vld [vmem:[#allocation4 + $0xe8] sm:$0xff]
        %v2542 = vld [vmem:[#allocation4 + $0xf0] sm:$0xff]
        %v2543 = vld [vmem:[#allocation4 + $0xf8] sm:$0xff]
        %v2544 = vld [vmem:[#allocation4 + $0x100] sm:$0xff]
        %v2545 = vld [vmem:[#allocation4 + $0x108] sm:$0xff]
        %v2546 = vld [vmem:[#allocation4 + $0x110] sm:$0xff]
        %v2547 = vld [vmem:[#allocation4 + $0x118] sm:$0xff]
        %v2548 = vld [vmem:[#allocation4 + $0x120] sm:$0xff]
        %v2549 = vld [vmem:[#allocation4 + $0x128] sm:$0xff]
        %v2550 = vld [vmem:[#allocation4 + $0x130] sm:$0xff]
        %v2551 = vld [vmem:[#allocation4 + $0x138] sm:$0xff]
        %v2552 = vld [vmem:[#allocation4 + $0x140] sm:$0xff]
        %v2553 = vld [vmem:[#allocation4 + $0x148] sm:$0xff]
        %v2554 = vld [vmem:[#allocation4 + $0x150] sm:$0xff]
        %v2555 = vld [vmem:[#allocation4 + $0x158] sm:$0xff]
        %v2556 = vld [vmem:[#allocation4 + $0x160] sm:$0xff]
        %v2557 = vld [vmem:[#allocation4 + $0x168] sm:$0xff]
        %v2558 = vld [vmem:[#allocation4 + $0x170] sm:$0xff]
        %v2559 = vld [vmem:[#allocation4 + $0x178] sm:$0xff]
        %v2560 = vld [vmem:[#allocation4 + $0x180] sm:$0xff]
        %v2561 = vld [vmem:[#allocation4 + $0x188] sm:$0xff]
        %v2562 = vld [vmem:[#allocation4 + $0x190] sm:$0xff]
        %v2563 = vld [vmem:[#allocation4 + $0x198] sm:$0xff]
        %v2564 = vld [vmem:[#allocation4 + $0x1a0] sm:$0xff]
        %v2565 = vld [vmem:[#allocation4 + $0x1a8] sm:$0xff]
        %v2566 = vld [vmem:[#allocation17] sm:$0xf]
        %v2567 = vld [vmem:[#allocation17 + $0x4] sm:$0xf]
        %v2568 = vld [vmem:[#allocation17 + $0x8] sm:$0xf]
        %v2569 = vld [vmem:[#allocation17 + $0xc] sm:$0xf]
        %v2570 = vld [vmem:[#allocation17 + $0x10] sm:$0xf]
        %v2571 = vld [vmem:[#allocation17 + $0x14] sm:$0xf]
        %v2572 = vld [vmem:[#allocation17 + $0x18] sm:$0xf]
        %v2573 = vld [vmem:[#allocation17 + $0x1c] sm:$0xf]
        %v2574 = vld [vmem:[#allocation17 + $0x20] sm:$0xf]
        %v2575 = vld [vmem:[#allocation17 + $0x24] sm:$0xf]
        %v2576 = vld [vmem:[#allocation17 + $0x28] sm:$0xf]
        %v2577 = vld [vmem:[#allocation17 + $0x2c] sm:$0xf]
        %v2578 = vld [vmem:[#allocation17 + $0x30] sm:$0xf]
        %v2579 = vld [vmem:[#allocation17 + $0x34] sm:$0xf]
        %v2580 = vld [vmem:[#allocation17 + $0x38] sm:$0xf]
        %v2581 = vld [vmem:[#allocation17 + $0x3c] sm:$0xf]
        %v2582 = vld [vmem:[#allocation17 + $0x40] sm:$0xf]
        %v2583 = vld [vmem:[#allocation17 + $0x44] sm:$0xf]
        %v2584 = vld [vmem:[#allocation17 + $0x48] sm:$0xf]
        %v2585 = vld [vmem:[#allocation17 + $0x4c] sm:$0xf]
        %v2586 = vld [vmem:[#allocation17 + $0x50] sm:$0xf]
        %v2587 = vld [vmem:[#allocation17 + $0x54] sm:$0xf]
        %v2588 = vld [vmem:[#allocation17 + $0x58] sm:$0xf]
        %v2589 = vld [vmem:[#allocation17 + $0x5c] sm:$0xf]
        %v2590 = vld [vmem:[#allocation17 + $0x60] sm:$0xf]
        %v2591 = vld [vmem:[#allocation17 + $0x64] sm:$0xf]
        %v2592 = vld [vmem:[#allocation17 + $0x68] sm:$0xf]
        %v2593 = vld [vmem:[#allocation17 + $0x6c] sm:$0xf]
        %v2594 = vld [vmem:[#allocation17 + $0x70] sm:$0xf]
        %v2595 = vld [vmem:[#allocation17 + $0x74] sm:$0xf]
        %v2596 = vld [vmem:[#allocation17 + $0x78] sm:$0xf]
        %v2597 = vld [vmem:[#allocation17 + $0x7c] sm:$0xf]
        %v2598 = vld [vmem:[#allocation17 + $0x80] sm:$0xf]
        %v2599 = vld [vmem:[#allocation17 + $0x84] sm:$0xf]
        %v2600 = vld [vmem:[#allocation17 + $0x88] sm:$0xf]
        %v2601 = vld [vmem:[#allocation17 + $0x8c] sm:$0xf]
        %v2602 = vld [vmem:[#allocation17 + $0x90] sm:$0xf]
        %v2603 = vld [vmem:[#allocation17 + $0x94] sm:$0xf]
        %v2604 = vld [vmem:[#allocation17 + $0x98] sm:$0xf]
        %v2605 = vld [vmem:[#allocation17 + $0x9c] sm:$0xf]
        %v2606 = vld [vmem:[#allocation17 + $0xa0] sm:$0xf]
        %v2607 = vld [vmem:[#allocation17 + $0xa4] sm:$0xf]
        %v2608 = vld [vmem:[#allocation17 + $0xa8] sm:$0xf]
        %v2609 = vld [vmem:[#allocation17 + $0xac] sm:$0xf]
        %v2610 = vld [vmem:[#allocation17 + $0xb0] sm:$0xf]
        %v2611 = vld [vmem:[#allocation17 + $0xb4] sm:$0xf]
        %v2612 = vld [vmem:[#allocation17 + $0xb8] sm:$0xf]
        %v2613 = vld [vmem:[#allocation17 + $0xbc] sm:$0xf]
        %v2614 = vld [vmem:[#allocation2 + $0x8] sm:$0xf8]
        %v2615 = vld [vmem:[#allocation2 + $0x10] sm:$0xff]
        %v2616 = vld [vmem:[#allocation2 + $0x18] sm:$0xff]
        %v2617 = vld [vmem:[#allocation2 + $0x20] sm:$0xff]
        %v2618 = vld [vmem:[#allocation2 + $0x28] sm:$0xff]
        %v2619 = vld [vmem:[#allocation2 + $0x30] sm:$0xff]
        %v2620 = vld [vmem:[#allocation2 + $0x38] sm:$0xff]
        %v2621 = vld [vmem:[#allocation2 + $0x40] sm:$0xff]
        %v2622 = vld [vmem:[#allocation2 + $0x48] sm:$0xff]
        %v2623 = vld [vmem:[#allocation2 + $0x50] sm:$0xff]
        %v2624 = vld [vmem:[#allocation2 + $0x58] sm:$0xff]
        %v2625 = vld [vmem:[#allocation2 + $0x60] sm:$0xff]
        %v2626 = vld [vmem:[#allocation2 + $0x68] sm:$0xff]
        %v2627 = vld [vmem:[#allocation2 + $0x70] sm:$0xff]
        %v2628 = vld [vmem:[#allocation2 + $0x78] sm:$0xff]
        %v2629 = vld [vmem:[#allocation2 + $0x80] sm:$0xff]
        %v2630 = vld [vmem:[#allocation2 + $0x88] sm:$0xff]
        %v2631 = vld [vmem:[#allocation2 + $0x90] sm:$0xff]
        %v2632 = vld [vmem:[#allocation2 + $0x98] sm:$0xf]
        %v2634 = vshrl.u32 %v2614, 16
        %v2636 = vrot.slane %v2634, 3
        %v2637 = vshll.u32 %v2614, 16
        %v2639 = vrot.slane %v2637, 4
        %v2640 = vor.u32 %v2636, %v2639
        %v2642 = vshrl.u32 %v2615, 16
        %v2644 = vrot.slane %v2642, 3
        %v2645 = vshll.u32 %v2615, 16
        %v2647 = vrot.slane %v2645, 4
        %v2648 = vor.u32 %v2644, %v2647
        %v2649 = vsel %vm2305, %v2640, %v2648
        %v2651 = vshrl.u32 %v2616, 16
        %v2653 = vrot.slane %v2651, 3
        %v2654 = vshll.u32 %v2616, 16
        %v2656 = vrot.slane %v2654, 4
        %v2657 = vor.u32 %v2653, %v2656
        %v2658 = vsel %vm2305, %v2648, %v2657
        %v2660 = vshrl.u32 %v2617, 16
        %v2662 = vrot.slane %v2660, 3
        %v2663 = vshll.u32 %v2617, 16
        %v2665 = vrot.slane %v2663, 4
        %v2666 = vor.u32 %v2662, %v2665
        %v2667 = vsel %vm2305, %v2657, %v2666
        %v2669 = vshrl.u32 %v2618, 16
        %v2671 = vrot.slane %v2669, 3
        %v2672 = vshll.u32 %v2618, 16
        %v2674 = vrot.slane %v2672, 4
        %v2675 = vor.u32 %v2671, %v2674
        %v2676 = vsel %vm2305, %v2666, %v2675
        %v2678 = vshrl.u32 %v2619, 16
        %v2680 = vrot.slane %v2678, 3
        %v2681 = vshll.u32 %v2619, 16
        %v2683 = vrot.slane %v2681, 4
        %v2684 = vor.u32 %v2680, %v2683
        %v2685 = vsel %vm2305, %v2675, %v2684
        %v2687 = vshrl.u32 %v2620, 16
        %v2689 = vrot.slane %v2687, 3
        %v2690 = vshll.u32 %v2620, 16
        %v2692 = vrot.slane %v2690, 4
        %v2693 = vor.u32 %v2689, %v2692
        %v2694 = vsel %vm2305, %v2684, %v2693
        %v2696 = vshrl.u32 %v2621, 16
        %v2698 = vrot.slane %v2696, 3
        %v2699 = vshll.u32 %v2621, 16
        %v2701 = vrot.slane %v2699, 4
        %v2702 = vor.u32 %v2698, %v2701
        %v2703 = vsel %vm2305, %v2693, %v2702
        %v2705 = vshrl.u32 %v2622, 16
        %v2707 = vrot.slane %v2705, 3
        %v2708 = vshll.u32 %v2622, 16
        %v2710 = vrot.slane %v2708, 4
        %v2711 = vor.u32 %v2707, %v2710
        %v2712 = vsel %vm2305, %v2702, %v2711
        %v2714 = vshrl.u32 %v2623, 16
        %v2716 = vrot.slane %v2714, 3
        %v2717 = vshll.u32 %v2623, 16
        %v2719 = vrot.slane %v2717, 4
        %v2720 = vor.u32 %v2716, %v2719
        %v2721 = vsel %vm2305, %v2711, %v2720
        %v2723 = vshrl.u32 %v2624, 16
        %v2725 = vrot.slane %v2723, 3
        %v2726 = vshll.u32 %v2624, 16
        %v2728 = vrot.slane %v2726, 4
        %v2729 = vor.u32 %v2725, %v2728
        %v2730 = vsel %vm2305, %v2720, %v2729
        %v2732 = vshrl.u32 %v2625, 16
        %v2734 = vrot.slane %v2732, 3
        %v2735 = vshll.u32 %v2625, 16
        %v2737 = vrot.slane %v2735, 4
        %v2738 = vor.u32 %v2734, %v2737
        %v2739 = vsel %vm2305, %v2729, %v2738
        %v2741 = vshrl.u32 %v2626, 16
        %v2743 = vrot.slane %v2741, 3
        %v2744 = vshll.u32 %v2626, 16
        %v2746 = vrot.slane %v2744, 4
        %v2747 = vor.u32 %v2743, %v2746
        %v2748 = vsel %vm2305, %v2738, %v2747
        %v2750 = vshrl.u32 %v2627, 16
        %v2752 = vrot.slane %v2750, 3
        %v2753 = vshll.u32 %v2627, 16
        %v2755 = vrot.slane %v2753, 4
        %v2756 = vor.u32 %v2752, %v2755
        %v2757 = vsel %vm2305, %v2747, %v2756
        %v2759 = vshrl.u32 %v2628, 16
        %v2761 = vrot.slane %v2759, 3
        %v2762 = vshll.u32 %v2628, 16
        %v2764 = vrot.slane %v2762, 4
        %v2765 = vor.u32 %v2761, %v2764
        %v2766 = vsel %vm2305, %v2756, %v2765
        %v2768 = vshrl.u32 %v2629, 16
        %v2770 = vrot.slane %v2768, 3
        %v2771 = vshll.u32 %v2629, 16
        %v2773 = vrot.slane %v2771, 4
        %v2774 = vor.u32 %v2770, %v2773
        %v2775 = vsel %vm2305, %v2765, %v2774
        %v2777 = vshrl.u32 %v2630, 16
        %v2779 = vrot.slane %v2777, 3
        %v2780 = vshll.u32 %v2630, 16
        %v2782 = vrot.slane %v2780, 4
        %v2783 = vor.u32 %v2779, %v2782
        %v2784 = vsel %vm2305, %v2774, %v2783
        %v2786 = vshrl.u32 %v2631, 16
        %v2788 = vrot.slane %v2786, 3
        %v2789 = vshll.u32 %v2631, 16
        %v2791 = vrot.slane %v2789, 4
        %v2792 = vor.u32 %v2788, %v2791
        %v2793 = vsel %vm2305, %v2783, %v2792
        %v2795 = vshrl.u32 %v2632, 16
        %v2797 = vrot.slane %v2795, 3
        %v2798 = vshll.u32 %v2632, 16
        %v2800 = vrot.slane %v2798, 4
        %v2801 = vor.u32 %v2797, %v2800
        %v2802 = vsel %vm2305, %v2792, %v2801
        %2821 = vst [vmem:[#allocation4] sm:$0xff] %v2649
        %2822 = vst [vmem:[#allocation4 + $0x18] sm:$0xff] %v2658
        %2823 = vst [vmem:[#allocation4 + $0x30] sm:$0xff] %v2667
        %2824 = vst [vmem:[#allocation4 + $0x48] sm:$0xff] %v2676
        %2825 = vst [vmem:[#allocation4 + $0x60] sm:$0xff] %v2685
        %2826 = vst [vmem:[#allocation4 + $0x78] sm:$0xff] %v2694
        %2827 = vst [vmem:[#allocation4 + $0x90] sm:$0xff] %v2703
        %2828 = vst [vmem:[#allocation4 + $0xa8] sm:$0xff] %v2712
        %2829 = vst [vmem:[#allocation4 + $0xc0] sm:$0xff] %v2721
        %2830 = vst [vmem:[#allocation4 + $0xd8] sm:$0xff] %v2730
        %2831 = vst [vmem:[#allocation4 + $0xf0] sm:$0xff] %v2739
        %2832 = vst [vmem:[#allocation4 + $0x108] sm:$0xff] %v2748
        %2833 = vst [vmem:[#allocation4 + $0x120] sm:$0xff] %v2757
        %2834 = vst [vmem:[#allocation4 + $0x138] sm:$0xff] %v2766
        %2835 = vst [vmem:[#allocation4 + $0x150] sm:$0xff] %v2775
        %2836 = vst [vmem:[#allocation4 + $0x168] sm:$0xff] %v2784
        %2837 = vst [vmem:[#allocation4 + $0x180] sm:$0xff] %v2793
        %2838 = vst [vmem:[#allocation4 + $0x198] sm:$0xff] %v2802
        %v2839 = vld [vmem:[#allocation2 + $0x8] sm:$0xf0]
        %v2840 = vld [vmem:[#allocation2 + $0x10] sm:$0xff]
        %v2841 = vld [vmem:[#allocation2 + $0x18] sm:$0xff]
        %v2842 = vld [vmem:[#allocation2 + $0x20] sm:$0xff]
        %v2843 = vld [vmem:[#allocation2 + $0x28] sm:$0xff]
        %v2844 = vld [vmem:[#allocation2 + $0x30] sm:$0xff]
        %v2845 = vld [vmem:[#allocation2 + $0x38] sm:$0xff]
        %v2846 = vld [vmem:[#allocation2 + $0x40] sm:$0xff]
        %v2847 = vld [vmem:[#allocation2 + $0x48] sm:$0xff]
        %v2848 = vld [vmem:[#allocation2 + $0x50] sm:$0xff]
        %v2849 = vld [vmem:[#allocation2 + $0x58] sm:$0xff]
        %v2850 = vld [vmem:[#allocation2 + $0x60] sm:$0xff]
        %v2851 = vld [vmem:[#allocation2 + $0x68] sm:$0xff]
        %v2852 = vld [vmem:[#allocation2 + $0x70] sm:$0xff]
        %v2853 = vld [vmem:[#allocation2 + $0x78] sm:$0xff]
        %v2854 = vld [vmem:[#allocation2 + $0x80] sm:$0xff]
        %v2855 = vld [vmem:[#allocation2 + $0x88] sm:$0xff]
        %v2856 = vld [vmem:[#allocation2 + $0x90] sm:$0xff]
        %v2857 = vld [vmem:[#allocation2 + $0x98] sm:$0xf]
        %v2877 = vrot.slane %v2839, 4
        %v2878 = vrot.slane %v2840, 4
        %v2879 = vsel %vm1874, %v2877, %v2878
        %v2880 = vrot.slane %v2841, 4
        %v2881 = vsel %vm1874, %v2878, %v2880
        %v2882 = vrot.slane %v2842, 4
        %v2883 = vsel %vm1874, %v2880, %v2882
        %v2884 = vrot.slane %v2843, 4
        %v2885 = vsel %vm1874, %v2882, %v2884
        %v2886 = vrot.slane %v2844, 4
        %v2887 = vsel %vm1874, %v2884, %v2886
        %v2888 = vrot.slane %v2845, 4
        %v2889 = vsel %vm1874, %v2886, %v2888
        %v2890 = vrot.slane %v2846, 4
        %v2891 = vsel %vm1874, %v2888, %v2890
        %v2892 = vrot.slane %v2847, 4
        %v2893 = vsel %vm1874, %v2890, %v2892
        %v2894 = vrot.slane %v2848, 4
        %v2895 = vsel %vm1874, %v2892, %v2894
        %v2896 = vrot.slane %v2849, 4
        %v2897 = vsel %vm1874, %v2894, %v2896
        %v2898 = vrot.slane %v2850, 4
        %v2899 = vsel %vm1874, %v2896, %v2898
        %v2900 = vrot.slane %v2851, 4
        %v2901 = vsel %vm1874, %v2898, %v2900
        %v2902 = vrot.slane %v2852, 4
        %v2903 = vsel %vm1874, %v2900, %v2902
        %v2904 = vrot.slane %v2853, 4
        %v2905 = vsel %vm1874, %v2902, %v2904
        %v2906 = vrot.slane %v2854, 4
        %v2907 = vsel %vm1874, %v2904, %v2906
        %v2908 = vrot.slane %v2855, 4
        %v2909 = vsel %vm1874, %v2906, %v2908
        %v2910 = vrot.slane %v2856, 4
        %v2911 = vsel %vm1874, %v2908, %v2910
        %v2912 = vrot.slane %v2857, 4
        %v2913 = vsel %vm1874, %v2910, %v2912
        %2932 = vst [vmem:[#allocation4 + $0x8] sm:$0xff] %v2879
        %2933 = vst [vmem:[#allocation4 + $0x20] sm:$0xff] %v2881
        %2934 = vst [vmem:[#allocation4 + $0x38] sm:$0xff] %v2883
        %2935 = vst [vmem:[#allocation4 + $0x50] sm:$0xff] %v2885
        %2936 = vst [vmem:[#allocation4 + $0x68] sm:$0xff] %v2887
        %2937 = vst [vmem:[#allocation4 + $0x80] sm:$0xff] %v2889
        %2938 = vst [vmem:[#allocation4 + $0x98] sm:$0xff] %v2891
        %2939 = vst [vmem:[#allocation4 + $0xb0] sm:$0xff] %v2893
        %2940 = vst [vmem:[#allocation4 + $0xc8] sm:$0xff] %v2895
        %2941 = vst [vmem:[#allocation4 + $0xe0] sm:$0xff] %v2897
        %2942 = vst [vmem:[#allocation4 + $0xf8] sm:$0xff] %v2899
        %2943 = vst [vmem:[#allocation4 + $0x110] sm:$0xff] %v2901
        %2944 = vst [vmem:[#allocation4 + $0x128] sm:$0xff] %v2903
        %2945 = vst [vmem:[#allocation4 + $0x140] sm:$0xff] %v2905
        %2946 = vst [vmem:[#allocation4 + $0x158] sm:$0xff] %v2907
        %2947 = vst [vmem:[#allocation4 + $0x170] sm:$0xff] %v2909
        %2948 = vst [vmem:[#allocation4 + $0x188] sm:$0xff] %v2911
        %2949 = vst [vmem:[#allocation4 + $0x1a0] sm:$0xff] %v2913
        %v2950 = vld [vmem:[#allocation2 + $0x8] sm:$0xf0]
        %v2951 = vld [vmem:[#allocation2 + $0x10] sm:$0xff]
        %v2952 = vld [vmem:[#allocation2 + $0x18] sm:$0xff]
        %v2953 = vld [vmem:[#allocation2 + $0x20] sm:$0xff]
        %v2954 = vld [vmem:[#allocation2 + $0x28] sm:$0xff]
        %v2955 = vld [vmem:[#allocation2 + $0x30] sm:$0xff]
        %v2956 = vld [vmem:[#allocation2 + $0x38] sm:$0xff]
        %v2957 = vld [vmem:[#allocation2 + $0x40] sm:$0xff]
        %v2958 = vld [vmem:[#allocation2 + $0x48] sm:$0xff]
        %v2959 = vld [vmem:[#allocation2 + $0x50] sm:$0xff]
        %v2960 = vld [vmem:[#allocation2 + $0x58] sm:$0xff]
        %v2961 = vld [vmem:[#allocation2 + $0x60] sm:$0xff]
        %v2962 = vld [vmem:[#allocation2 + $0x68] sm:$0xff]
        %v2963 = vld [vmem:[#allocation2 + $0x70] sm:$0xff]
        %v2964 = vld [vmem:[#allocation2 + $0x78] sm:$0xff]
        %v2965 = vld [vmem:[#allocation2 + $0x80] sm:$0xff]
        %v2966 = vld [vmem:[#allocation2 + $0x88] sm:$0xff]
        %v2967 = vld [vmem:[#allocation2 + $0x90] sm:$0xff]
        %v2968 = vld [vmem:[#allocation2 + $0x98] sm:$0x1f]
        %vm2969 = vsmask.f32 3328
        %v2971 = vshrl.u32 %v2950, 16
        %v2973 = vrot.slane %v2971, 4
        %v2974 = vshll.u32 %v2950, 16
        %v2976 = vrot.slane %v2974, 5
        %v2977 = vor.u32 %v2973, %v2976
        %v2979 = vshrl.u32 %v2951, 16
        %v2981 = vrot.slane %v2979, 4
        %v2982 = vshll.u32 %v2951, 16
        %v2984 = vrot.slane %v2982, 5
        %v2985 = vor.u32 %v2981, %v2984
        %v2986 = vsel %vm2969, %v2977, %v2985
        %v2988 = vshrl.u32 %v2952, 16
        %v2990 = vrot.slane %v2988, 4
        %v2991 = vshll.u32 %v2952, 16
        %v2993 = vrot.slane %v2991, 5
        %v2994 = vor.u32 %v2990, %v2993
        %v2995 = vsel %vm2969, %v2985, %v2994
        %v2997 = vshrl.u32 %v2953, 16
        %v2999 = vrot.slane %v2997, 4
        %v3000 = vshll.u32 %v2953, 16
        %v3002 = vrot.slane %v3000, 5
        %v3003 = vor.u32 %v2999, %v3002
        %v3004 = vsel %vm2969, %v2994, %v3003
        %v3006 = vshrl.u32 %v2954, 16
        %v3008 = vrot.slane %v3006, 4
        %v3009 = vshll.u32 %v2954, 16
        %v3011 = vrot.slane %v3009, 5
        %v3012 = vor.u32 %v3008, %v3011
        %v3013 = vsel %vm2969, %v3003, %v3012
        %v3015 = vshrl.u32 %v2955, 16
        %v3017 = vrot.slane %v3015, 4
        %v3018 = vshll.u32 %v2955, 16
        %v3020 = vrot.slane %v3018, 5
        %v3021 = vor.u32 %v3017, %v3020
        %v3022 = vsel %vm2969, %v3012, %v3021
        %v3024 = vshrl.u32 %v2956, 16
        %v3026 = vrot.slane %v3024, 4
        %v3027 = vshll.u32 %v2956, 16
        %v3029 = vrot.slane %v3027, 5
        %v3030 = vor.u32 %v3026, %v3029
        %v3031 = vsel %vm2969, %v3021, %v3030
        %v3033 = vshrl.u32 %v2957, 16
        %v3035 = vrot.slane %v3033, 4
        %v3036 = vshll.u32 %v2957, 16
        %v3038 = vrot.slane %v3036, 5
        %v3039 = vor.u32 %v3035, %v3038
        %v3040 = vsel %vm2969, %v3030, %v3039
        %v3042 = vshrl.u32 %v2958, 16
        %v3044 = vrot.slane %v3042, 4
        %v3045 = vshll.u32 %v2958, 16
        %v3047 = vrot.slane %v3045, 5
        %v3048 = vor.u32 %v3044, %v3047
        %v3049 = vsel %vm2969, %v3039, %v3048
        %v3051 = vshrl.u32 %v2959, 16
        %v3053 = vrot.slane %v3051, 4
        %v3054 = vshll.u32 %v2959, 16
        %v3056 = vrot.slane %v3054, 5
        %v3057 = vor.u32 %v3053, %v3056
        %v3058 = vsel %vm2969, %v3048, %v3057
        %v3060 = vshrl.u32 %v2960, 16
        %v3062 = vrot.slane %v3060, 4
        %v3063 = vshll.u32 %v2960, 16
        %v3065 = vrot.slane %v3063, 5
        %v3066 = vor.u32 %v3062, %v3065
        %v3067 = vsel %vm2969, %v3057, %v3066
        %v3069 = vshrl.u32 %v2961, 16
        %v3071 = vrot.slane %v3069, 4
        %v3072 = vshll.u32 %v2961, 16
        %v3074 = vrot.slane %v3072, 5
        %v3075 = vor.u32 %v3071, %v3074
        %v3076 = vsel %vm2969, %v3066, %v3075
        %v3078 = vshrl.u32 %v2962, 16
        %v3080 = vrot.slane %v3078, 4
        %v3081 = vshll.u32 %v2962, 16
        %v3083 = vrot.slane %v3081, 5
        %v3084 = vor.u32 %v3080, %v3083
        %v3085 = vsel %vm2969, %v3075, %v3084
        %v3087 = vshrl.u32 %v2963, 16
        %v3089 = vrot.slane %v3087, 4
        %v3090 = vshll.u32 %v2963, 16
        %v3092 = vrot.slane %v3090, 5
        %v3093 = vor.u32 %v3089, %v3092
        %v3094 = vsel %vm2969, %v3084, %v3093
        %v3096 = vshrl.u32 %v2964, 16
        %v3098 = vrot.slane %v3096, 4
        %v3099 = vshll.u32 %v2964, 16
        %v3101 = vrot.slane %v3099, 5
        %v3102 = vor.u32 %v3098, %v3101
        %v3103 = vsel %vm2969, %v3093, %v3102
        %v3105 = vshrl.u32 %v2965, 16
        %v3107 = vrot.slane %v3105, 4
        %v3108 = vshll.u32 %v2965, 16
        %v3110 = vrot.slane %v3108, 5
        %v3111 = vor.u32 %v3107, %v3110
        %v3112 = vsel %vm2969, %v3102, %v3111
        %v3114 = vshrl.u32 %v2966, 16
        %v3116 = vrot.slane %v3114, 4
        %v3117 = vshll.u32 %v2966, 16
        %v3119 = vrot.slane %v3117, 5
        %v3120 = vor.u32 %v3116, %v3119
        %v3121 = vsel %vm2969, %v3111, %v3120
        %v3123 = vshrl.u32 %v2967, 16
        %v3125 = vrot.slane %v3123, 4
        %v3126 = vshll.u32 %v2967, 16
        %v3128 = vrot.slane %v3126, 5
        %v3129 = vor.u32 %v3125, %v3128
        %v3130 = vsel %vm2969, %v3120, %v3129
        %v3132 = vshrl.u32 %v2968, 16
        %v3134 = vrot.slane %v3132, 4
        %v3135 = vshll.u32 %v2968, 16
        %v3137 = vrot.slane %v3135, 5
        %v3138 = vor.u32 %v3134, %v3137
        %v3139 = vsel %vm2969, %v3129, %v3138
        %3158 = vst [vmem:[#allocation4 + $0x10] sm:$0xff] %v2986
        %3159 = vst [vmem:[#allocation4 + $0x28] sm:$0xff] %v2995
        %3160 = vst [vmem:[#allocation4 + $0x40] sm:$0xff] %v3004
        %3161 = vst [vmem:[#allocation4 + $0x58] sm:$0xff] %v3013
        %3162 = vst [vmem:[#allocation4 + $0x70] sm:$0xff] %v3022
        %3163 = vst [vmem:[#allocation4 + $0x88] sm:$0xff] %v3031
        %3164 = vst [vmem:[#allocation4 + $0xa0] sm:$0xff] %v3040
        %3165 = vst [vmem:[#allocation4 + $0xb8] sm:$0xff] %v3049
        %3166 = vst [vmem:[#allocation4 + $0xd0] sm:$0xff] %v3058
        %3167 = vst [vmem:[#allocation4 + $0xe8] sm:$0xff] %v3067
        %3168 = vst [vmem:[#allocation4 + $0x100] sm:$0xff] %v3076
        %3169 = vst [vmem:[#allocation4 + $0x118] sm:$0xff] %v3085
        %3170 = vst [vmem:[#allocation4 + $0x130] sm:$0xff] %v3094
        %3171 = vst [vmem:[#allocation4 + $0x148] sm:$0xff] %v3103
        %3172 = vst [vmem:[#allocation4 + $0x160] sm:$0xff] %v3112
        %3173 = vst [vmem:[#allocation4 + $0x178] sm:$0xff] %v3121
        %3174 = vst [vmem:[#allocation4 + $0x190] sm:$0xff] %v3130
        %3175 = vst [vmem:[#allocation4 + $0x1a8] sm:$0xff] %v3139
        %v3176 = vld [vmem:[#allocation4] sm:$0xff]
        %v3177 = vld [vmem:[#allocation4 + $0x8] sm:$0xff]
        %v3178 = vld [vmem:[#allocation4 + $0x10] sm:$0xff]
        %v3179 = vld [vmem:[#allocation4 + $0x18] sm:$0xff]
        %v3180 = vld [vmem:[#allocation4 + $0x20] sm:$0xff]
        %v3181 = vld [vmem:[#allocation4 + $0x28] sm:$0xff]
        %v3182 = vld [vmem:[#allocation4 + $0x30] sm:$0xff]
        %v3183 = vld [vmem:[#allocation4 + $0x38] sm:$0xff]
        %v3184 = vld [vmem:[#allocation4 + $0x40] sm:$0xff]
        %v3185 = vld [vmem:[#allocation4 + $0x48] sm:$0xff]
        %v3186 = vld [vmem:[#allocation4 + $0x50] sm:$0xff]
        %v3187 = vld [vmem:[#allocation4 + $0x58] sm:$0xff]
        %v3188 = vld [vmem:[#allocation4 + $0x60] sm:$0xff]
        %v3189 = vld [vmem:[#allocation4 + $0x68] sm:$0xff]
        %v3190 = vld [vmem:[#allocation4 + $0x70] sm:$0xff]
        %v3191 = vld [vmem:[#allocation4 + $0x78] sm:$0xff]
        %v3192 = vld [vmem:[#allocation4 + $0x80] sm:$0xff]
        %v3193 = vld [vmem:[#allocation4 + $0x88] sm:$0xff]
        %v3194 = vld [vmem:[#allocation4 + $0x90] sm:$0xff]
        %v3195 = vld [vmem:[#allocation4 + $0x98] sm:$0xff]
        %v3196 = vld [vmem:[#allocation4 + $0xa0] sm:$0xff]
        %v3197 = vld [vmem:[#allocation4 + $0xa8] sm:$0xff]
        %v3198 = vld [vmem:[#allocation4 + $0xb0] sm:$0xff]
        %v3199 = vld [vmem:[#allocation4 + $0xb8] sm:$0xff]
        %v3200 = vld [vmem:[#allocation4 + $0xc0] sm:$0xff]
        %v3201 = vld [vmem:[#allocation4 + $0xc8] sm:$0xff]
        %v3202 = vld [vmem:[#allocation4 + $0xd0] sm:$0xff]
        %v3203 = vld [vmem:[#allocation4 + $0xd8] sm:$0xff]
        %v3204 = vld [vmem:[#allocation4 + $0xe0] sm:$0xff]
        %v3205 = vld [vmem:[#allocation4 + $0xe8] sm:$0xff]
        %v3206 = vld [vmem:[#allocation4 + $0xf0] sm:$0xff]
        %v3207 = vld [vmem:[#allocation4 + $0xf8] sm:$0xff]
        %v3208 = vld [vmem:[#allocation4 + $0x100] sm:$0xff]
        %v3209 = vld [vmem:[#allocation4 + $0x108] sm:$0xff]
        %v3210 = vld [vmem:[#allocation4 + $0x110] sm:$0xff]
        %v3211 = vld [vmem:[#allocation4 + $0x118] sm:$0xff]
        %v3212 = vld [vmem:[#allocation4 + $0x120] sm:$0xff]
        %v3213 = vld [vmem:[#allocation4 + $0x128] sm:$0xff]
        %v3214 = vld [vmem:[#allocation4 + $0x130] sm:$0xff]
        %v3215 = vld [vmem:[#allocation4 + $0x138] sm:$0xff]
        %v3216 = vld [vmem:[#allocation4 + $0x140] sm:$0xff]
        %v3217 = vld [vmem:[#allocation4 + $0x148] sm:$0xff]
        %v3218 = vld [vmem:[#allocation4 + $0x150] sm:$0xff]
        %v3219 = vld [vmem:[#allocation4 + $0x158] sm:$0xff]
        %v3220 = vld [vmem:[#allocation4 + $0x160] sm:$0xff]
        %v3221 = vld [vmem:[#allocation4 + $0x168] sm:$0xff]
        %v3222 = vld [vmem:[#allocation4 + $0x170] sm:$0xff]
        %v3223 = vld [vmem:[#allocation4 + $0x178] sm:$0xff]
        %v3224 = vld [vmem:[#allocation4 + $0x180] sm:$0xff]
        %v3225 = vld [vmem:[#allocation4 + $0x188] sm:$0xff]
        %v3226 = vld [vmem:[#allocation4 + $0x190] sm:$0xff]
        %v3227 = vld [vmem:[#allocation4 + $0x198] sm:$0xff]
        %v3228 = vld [vmem:[#allocation4 + $0x1a0] sm:$0xff]
        %v3229 = vld [vmem:[#allocation4 + $0x1a8] sm:$0xff]
        %s3230 = scalar_lea.vmem [#allocation17], 192
        %v3231 = vld [vmem:[%s3230] sm:$0xf]
        %v3232 = vld [vmem:[%s3230 + $0x4] sm:$0xf]
        %v3233 = vld [vmem:[%s3230 + $0x8] sm:$0xf]
        %v3234 = vld [vmem:[%s3230 + $0xc] sm:$0xf]
        %v3235 = vld [vmem:[%s3230 + $0x10] sm:$0xf]
        %v3236 = vld [vmem:[%s3230 + $0x14] sm:$0xf]
        %v3237 = vld [vmem:[%s3230 + $0x18] sm:$0xf]
        %v3238 = vld [vmem:[%s3230 + $0x1c] sm:$0xf]
        %v3239 = vld [vmem:[%s3230 + $0x20] sm:$0xf]
        %v3240 = vld [vmem:[%s3230 + $0x24] sm:$0xf]
        %v3241 = vld [vmem:[%s3230 + $0x28] sm:$0xf]
        %v3242 = vld [vmem:[%s3230 + $0x2c] sm:$0xf]
        %v3243 = vld [vmem:[%s3230 + $0x30] sm:$0xf]
        %v3244 = vld [vmem:[%s3230 + $0x34] sm:$0xf]
        %v3245 = vld [vmem:[%s3230 + $0x38] sm:$0xf]
        %v3246 = vld [vmem:[%s3230 + $0x3c] sm:$0xf]
        %v3247 = vld [vmem:[%s3230 + $0x40] sm:$0xf]
        %v3248 = vld [vmem:[%s3230 + $0x44] sm:$0xf]
        %v3249 = vld [vmem:[%s3230 + $0x48] sm:$0xf]
        %v3250 = vld [vmem:[%s3230 + $0x4c] sm:$0xf]
        %v3251 = vld [vmem:[%s3230 + $0x50] sm:$0xf]
        %v3252 = vld [vmem:[%s3230 + $0x54] sm:$0xf]
        %v3253 = vld [vmem:[%s3230 + $0x58] sm:$0xf]
        %v3254 = vld [vmem:[%s3230 + $0x5c] sm:$0xf]
        %v3255 = vld [vmem:[%s3230 + $0x60] sm:$0xf]
        %v3256 = vld [vmem:[%s3230 + $0x64] sm:$0xf]
        %v3257 = vld [vmem:[%s3230 + $0x68] sm:$0xf]
        %v3258 = vld [vmem:[%s3230 + $0x6c] sm:$0xf]
        %v3259 = vld [vmem:[%s3230 + $0x70] sm:$0xf]
        %v3260 = vld [vmem:[%s3230 + $0x74] sm:$0xf]
        %v3261 = vld [vmem:[%s3230 + $0x78] sm:$0xf]
        %v3262 = vld [vmem:[%s3230 + $0x7c] sm:$0xf]
        %v3263 = vld [vmem:[%s3230 + $0x80] sm:$0xf]
        %v3264 = vld [vmem:[%s3230 + $0x84] sm:$0xf]
        %v3265 = vld [vmem:[%s3230 + $0x88] sm:$0xf]
        %v3266 = vld [vmem:[%s3230 + $0x8c] sm:$0xf]
        %v3267 = vld [vmem:[%s3230 + $0x90] sm:$0xf]
        %v3268 = vld [vmem:[%s3230 + $0x94] sm:$0xf]
        %v3269 = vld [vmem:[%s3230 + $0x98] sm:$0xf]
        %v3270 = vld [vmem:[%s3230 + $0x9c] sm:$0xf]
        %v3271 = vld [vmem:[%s3230 + $0xa0] sm:$0xf]
        %v3272 = vld [vmem:[%s3230 + $0xa4] sm:$0xf]
        %v3273 = vld [vmem:[%s3230 + $0xa8] sm:$0xf]
        %v3274 = vld [vmem:[%s3230 + $0xac] sm:$0xf]
        %v3275 = vld [vmem:[%s3230 + $0xb0] sm:$0xf]
        %v3276 = vld [vmem:[%s3230 + $0xb4] sm:$0xf]
        %v3277 = vld [vmem:[%s3230 + $0xb8] sm:$0xf]
        %v3278 = vld [vmem:[%s3230 + $0xbc] sm:$0xf]
        %v3327 = vunpack.c.l.b16 %v3231
        %v3328 = vunpack.c.l.b16 %v3232
        %v3329 = vunpack.c.l.b16 %v3233
        %v3330 = vunpack.c.l.b16 %v3234
        %v3331 = vunpack.c.l.b16 %v3235
        %v3332 = vunpack.c.l.b16 %v3236
        %v3333 = vunpack.c.l.b16 %v3237
        %v3334 = vunpack.c.l.b16 %v3238
        %v3335 = vunpack.c.l.b16 %v3239
        %v3336 = vunpack.c.l.b16 %v3240
        %v3337 = vunpack.c.l.b16 %v3241
        %v3338 = vunpack.c.l.b16 %v3242
        %v3339 = vunpack.c.l.b16 %v3243
        %v3340 = vunpack.c.l.b16 %v3244
        %v3341 = vunpack.c.l.b16 %v3245
        %v3342 = vunpack.c.l.b16 %v3246
        %v3343 = vunpack.c.l.b16 %v3247
        %v3344 = vunpack.c.l.b16 %v3248
        %v3345 = vunpack.c.l.b16 %v3249
        %v3346 = vunpack.c.l.b16 %v3250
        %v3347 = vunpack.c.l.b16 %v3251
        %v3348 = vunpack.c.l.b16 %v3252
        %v3349 = vunpack.c.l.b16 %v3253
        %v3350 = vunpack.c.l.b16 %v3254
        %v3351 = vunpack.c.l.b16 %v3255
        %v3352 = vunpack.c.l.b16 %v3256
        %v3353 = vunpack.c.l.b16 %v3257
        %v3354 = vunpack.c.l.b16 %v3258
        %v3355 = vunpack.c.l.b16 %v3259
        %v3356 = vunpack.c.l.b16 %v3260
        %v3357 = vunpack.c.l.b16 %v3261
        %v3358 = vunpack.c.l.b16 %v3262
        %v3359 = vunpack.c.l.b16 %v3263
        %v3360 = vunpack.c.l.b16 %v3264
        %v3361 = vunpack.c.l.b16 %v3265
        %v3362 = vunpack.c.l.b16 %v3266
        %v3363 = vunpack.c.l.b16 %v3267
        %v3364 = vunpack.c.l.b16 %v3268
        %v3365 = vunpack.c.l.b16 %v3269
        %v3366 = vunpack.c.l.b16 %v3270
        %v3367 = vunpack.c.l.b16 %v3271
        %v3368 = vunpack.c.l.b16 %v3272
        %v3369 = vunpack.c.l.b16 %v3273
        %v3370 = vunpack.c.l.b16 %v3274
        %v3371 = vunpack.c.l.b16 %v3275
        %v3372 = vunpack.c.l.b16 %v3276
        %v3373 = vunpack.c.l.b16 %v3277
        %v3374 = vunpack.c.l.b16 %v3278
        %v3375 = vpack.c.b16 %v3328, %v3327
        %v3376 = vpack.c.b16 %v3330, %v3329
        %v3377 = vpack.c.b16 %v3332, %v3331
        %v3378 = vpack.c.b16 %v3334, %v3333
        %v3379 = vpack.c.b16 %v3336, %v3335
        %v3380 = vpack.c.b16 %v3338, %v3337
        %v3381 = vpack.c.b16 %v3340, %v3339
        %v3382 = vpack.c.b16 %v3342, %v3341
        %v3383 = vpack.c.b16 %v3344, %v3343
        %v3384 = vpack.c.b16 %v3346, %v3345
        %v3385 = vpack.c.b16 %v3348, %v3347
        %v3386 = vpack.c.b16 %v3350, %v3349
        %v3387 = vpack.c.b16 %v3352, %v3351
        %v3388 = vpack.c.b16 %v3354, %v3353
        %v3389 = vpack.c.b16 %v3356, %v3355
        %v3390 = vpack.c.b16 %v3358, %v3357
        %v3391 = vpack.c.b16 %v3360, %v3359
        %v3392 = vpack.c.b16 %v3362, %v3361
        %v3393 = vpack.c.b16 %v3364, %v3363
        %v3394 = vpack.c.b16 %v3366, %v3365
        %v3395 = vpack.c.b16 %v3368, %v3367
        %v3396 = vpack.c.b16 %v3370, %v3369
        %v3397 = vpack.c.b16 %v3372, %v3371
        %v3398 = vpack.c.b16 %v3374, %v3373
        %3423 = vmatprep.subr.bf16.mxu0 0
        %3424 = vmatpush1.bf16.msra.mxu0 %v3375
        %3425 = vmatprep.subr.bf16.mxu0 0
        %3426 = vmatpush1.bf16.msra.mxu0 %v3376
        %3427 = vmatprep.subr.bf16.mxu0 0
        %3428 = vmatpush1.bf16.msra.mxu0 %v3377
        %3429 = vmatprep.subr.bf16.mxu0 0
        %3430 = vmatpush1.bf16.msra.mxu0 %v3378
        %3431 = vmatprep.subr.bf16.mxu0 0
        %3432 = vmatpush1.bf16.msra.mxu0 %v3379
        %3433 = vmatprep.subr.bf16.mxu0 0
        %3434 = vmatpush1.bf16.msra.mxu0 %v3380
        %3435 = vmatprep.subr.bf16.mxu0 0
        %3436 = vmatpush1.bf16.msra.mxu0 %v3381
        %3437 = vmatprep.subr.bf16.mxu0 0
        %3438 = vmatpush1.bf16.msra.mxu0 %v3382
        %3439 = vmatprep.subr.bf16.mxu0 0
        %3440 = vmatpush1.bf16.msra.mxu0 %v3383
        %3441 = vmatprep.subr.bf16.mxu0 0
        %3442 = vmatpush1.bf16.msra.mxu0 %v3384
        %3443 = vmatprep.subr.bf16.mxu0 0
        %3444 = vmatpush1.bf16.msra.mxu0 %v3385
        %3445 = vmatprep.subr.bf16.mxu0 0
        %3446 = vmatpush1.bf16.msra.mxu0 %v3386
        %3447 = vmatprep.subr.bf16.mxu0 0
        %3448 = vmatpush1.bf16.msra.mxu0 %v3387
        %3449 = vmatprep.subr.bf16.mxu0 0
        %3450 = vmatpush1.bf16.msra.mxu0 %v3388
        %3451 = vmatprep.subr.bf16.mxu0 0
        %3452 = vmatpush1.bf16.msra.mxu0 %v3389
        %3453 = vmatprep.subr.bf16.mxu0 0
        %3454 = vmatpush1.bf16.msra.mxu0 %v3390
        %3455 = vmatprep.mubr.bf16.mxu0 %v3177
        %3456 = vmatmul.mubr.bf16.gmra.mrb[0].mxu0 %v3176
        %v3457 = vpop.f32.mrb[0].mxu0
        %v3458 = vadd.f32 0.0, %v3457
        %v3459 = vpop.f32.mrb[0].mxu0
        %v3460 = vpop.f32.mrb[0].mxu0
        %v3461 = vadd.f32 0.0, %v3460
        %v3462 = vpop.f32.mrb[0].mxu0
        %3463 = vmatprep.mubr.bf16.mxu0 %v3180
        %3464 = vmatmul.mubr.bf16.gmra.mrb[0].mxu0 %v3179
        %v3465 = vpop.f32.mrb[0].mxu0
        %v3466 = vadd.f32 0.0, %v3465
        %v3467 = vpop.f32.mrb[0].mxu0
        %v3468 = vpop.f32.mrb[0].mxu0
        %v3469 = vadd.f32 0.0, %v3468
        %v3470 = vpop.f32.mrb[0].mxu0
        %3471 = vmatprep.mubr.bf16.mxu0 %v3183
        %3472 = vmatmul.mubr.bf16.gmra.mrb[0].mxu0 %v3182
        %v3473 = vpop.f32.mrb[0].mxu0
        %v3474 = vadd.f32 0.0, %v3473
        %v3475 = vpop.f32.mrb[0].mxu0
        %v3476 = vpop.f32.mrb[0].mxu0
        %v3477 = vadd.f32 0.0, %v3476
        %v3478 = vpop.f32.mrb[0].mxu0
        %3479 = vmatprep.mubr.bf16.mxu0 %v3186
        %3480 = vmatmul.mubr.bf16.gmra.mrb[0].mxu0 %v3185
        %v3481 = vpop.f32.mrb[0].mxu0
        %v3482 = vadd.f32 0.0, %v3481
        %v3483 = vpop.f32.mrb[0].mxu0
        %v3484 = vpop.f32.mrb[0].mxu0
        %v3485 = vadd.f32 0.0, %v3484
        %v3486 = vpop.f32.mrb[0].mxu0
        %3487 = vmatprep.mubr.bf16.mxu0 %v3189
        %3488 = vmatmul.mubr.bf16.gmra.mrb[0].mxu0 %v3188
        %v3489 = vpop.f32.mrb[0].mxu0
        %v3490 = vadd.f32 0.0, %v3489
        %v3491 = vpop.f32.mrb[0].mxu0
        %v3492 = vpop.f32.mrb[0].mxu0
        %v3493 = vadd.f32 0.0, %v3492
        %v3494 = vpop.f32.mrb[0].mxu0
        %3495 = vmatprep.mubr.bf16.mxu0 %v3192
        %3496 = vmatmul.mubr.bf16.gmra.mrb[0].mxu0 %v3191
        %v3497 = vpop.f32.mrb[0].mxu0
        %v3498 = vadd.f32 0.0, %v3497
        %v3499 = vpop.f32.mrb[0].mxu0
        %v3500 = vpop.f32.mrb[0].mxu0
        %v3501 = vadd.f32 0.0, %v3500
        %v3502 = vpop.f32.mrb[0].mxu0
        %3503 = vmatprep.mubr.bf16.mxu0 %v3195
        %3504 = vmatmul.mubr.bf16.gmra.mrb[0].mxu0 %v3194
        %v3505 = vpop.f32.mrb[0].mxu0
        %v3506 = vadd.f32 0.0, %v3505
        %v3507 = vpop.f32.mrb[0].mxu0
        %v3508 = vpop.f32.mrb[0].mxu0
        %v3509 = vadd.f32 0.0, %v3508
        %v3510 = vpop.f32.mrb[0].mxu0
        %3511 = vmatprep.mubr.bf16.mxu0 %v3198
        %3512 = vmatmul.mubr.bf16.gmra.mrb[0].mxu0 %v3197
        %v3513 = vpop.f32.mrb[0].mxu0
        %v3514 = vadd.f32 0.0, %v3513
        %v3515 = vpop.f32.mrb[0].mxu0
        %v3516 = vpop.f32.mrb[0].mxu0
        %v3517 = vadd.f32 0.0, %v3516
        %v3518 = vpop.f32.mrb[0].mxu0
        %3519 = vmatprep.mubr.bf16.mxu0 %v3201
        %3520 = vmatmul.mubr.bf16.gmra.mrb[0].mxu0 %v3200
        %v3521 = vpop.f32.mrb[0].mxu0
        %v3522 = vadd.f32 0.0, %v3521
        %v3523 = vpop.f32.mrb[0].mxu0
        %v3524 = vpop.f32.mrb[0].mxu0
        %v3525 = vadd.f32 0.0, %v3524
        %v3526 = vpop.f32.mrb[0].mxu0
        %3527 = vmatprep.mubr.bf16.mxu0 %v3204
        %3528 = vmatmul.mubr.bf16.gmra.mrb[0].mxu0 %v3203
        %v3529 = vpop.f32.mrb[0].mxu0
        %v3530 = vadd.f32 0.0, %v3529
        %v3531 = vpop.f32.mrb[0].mxu0
        %v3532 = vpop.f32.mrb[0].mxu0
        %v3533 = vadd.f32 0.0, %v3532
        %v3534 = vpop.f32.mrb[0].mxu0
        %3535 = vmatprep.mubr.bf16.mxu0 %v3207
        %3536 = vmatmul.mubr.bf16.gmra.mrb[0].mxu0 %v3206
        %v3537 = vpop.f32.mrb[0].mxu0
        %v3538 = vadd.f32 0.0, %v3537
        %v3539 = vpop.f32.mrb[0].mxu0
        %v3540 = vpop.f32.mrb[0].mxu0
        %v3541 = vadd.f32 0.0, %v3540
        %v3542 = vpop.f32.mrb[0].mxu0
        %3543 = vmatprep.mubr.bf16.mxu0 %v3210
        %3544 = vmatmul.mubr.bf16.gmra.mrb[0].mxu0 %v3209
        %v3545 = vpop.f32.mrb[0].mxu0
        %v3546 = vadd.f32 0.0, %v3545
        %v3547 = vpop.f32.mrb[0].mxu0
        %v3548 = vpop.f32.mrb[0].mxu0
        %v3549 = vadd.f32 0.0, %v3548
        %v3550 = vpop.f32.mrb[0].mxu0
        %3551 = vmatprep.mubr.bf16.mxu0 %v3213
        %3552 = vmatmul.mubr.bf16.gmra.mrb[0].mxu0 %v3212
        %v3553 = vpop.f32.mrb[0].mxu0
        %v3554 = vadd.f32 0.0, %v3553
        %v3555 = vpop.f32.mrb[0].mxu0
        %v3556 = vpop.f32.mrb[0].mxu0
        %v3557 = vadd.f32 0.0, %v3556
        %v3558 = vpop.f32.mrb[0].mxu0
        %3559 = vmatprep.mubr.bf16.mxu0 %v3216
        %3560 = vmatmul.mubr.bf16.gmra.mrb[0].mxu0 %v3215
        %v3561 = vpop.f32.mrb[0].mxu0
        %v3562 = vadd.f32 0.0, %v3561
        %v3563 = vpop.f32.mrb[0].mxu0
        %v3564 = vpop.f32.mrb[0].mxu0
        %v3565 = vadd.f32 0.0, %v3564
        %v3566 = vpop.f32.mrb[0].mxu0
        %3567 = vmatprep.mubr.bf16.mxu0 %v3219
        %3568 = vmatmul.mubr.bf16.gmra.mrb[0].mxu0 %v3218
        %v3569 = vpop.f32.mrb[0].mxu0
        %v3570 = vadd.f32 0.0, %v3569
        %v3571 = vpop.f32.mrb[0].mxu0
        %v3572 = vpop.f32.mrb[0].mxu0
        %v3573 = vadd.f32 0.0, %v3572
        %v3574 = vpop.f32.mrb[0].mxu0
        %3575 = vmatprep.mubr.bf16.mxu0 %v3222
        %3576 = vmatmul.mubr.bf16.gmra.mrb[0].mxu0 %v3221
        %v3577 = vpop.f32.mrb[0].mxu0
        %v3578 = vadd.f32 0.0, %v3577
        %v3579 = vpop.f32.mrb[0].mxu0
        %v3580 = vpop.f32.mrb[0].mxu0
        %v3581 = vadd.f32 0.0, %v3580
        %v3582 = vpop.f32.mrb[0].mxu0
        %3583 = vmatprep.mubr.bf16.mxu0 %v3225
        %3584 = vmatmul.mubr.bf16.gmra.mrb[0].mxu0 %v3224
        %v3585 = vpop.f32.mrb[0].mxu0
        %v3586 = vadd.f32 0.0, %v3585
        %v3587 = vpop.f32.mrb[0].mxu0
        %v3588 = vpop.f32.mrb[0].mxu0
        %v3589 = vadd.f32 0.0, %v3588
        %v3590 = vpop.f32.mrb[0].mxu0
        %3591 = vmatprep.mubr.bf16.mxu0 %v3228
        %3592 = vmatmul.mubr.bf16.gmra.mrb[0].mxu0 %v3227
        %v3593 = vpop.f32.mrb[0].mxu0
        %v3594 = vadd.f32 0.0, %v3593
        %v3595 = vpop.f32.mrb[0].mxu0
        %v3596 = vpop.f32.mrb[0].mxu0
        %v3597 = vadd.f32 0.0, %v3596
        %v3598 = vpop.f32.mrb[0].mxu0
        %3599 = vdwg.mxu0
        %3600 = vmatprep.subr.bf16.mxu0 0
        %3601 = vmatpush1.bf16.msra.mxu0 %v3391
        %3602 = vmatprep.subr.bf16.mxu0 0
        %3603 = vmatpush1.bf16.msra.mxu0 %v3392
        %3604 = vmatprep.subr.bf16.mxu0 0
        %3605 = vmatpush1.bf16.msra.mxu0 %v3393
        %3606 = vmatprep.subr.bf16.mxu0 0
        %3607 = vmatpush1.bf16.msra.mxu0 %v3394
        %3608 = vmatprep.subr.bf16.mxu0 0
        %3609 = vmatpush1.bf16.msra.mxu0 %v3395
        %3610 = vmatprep.subr.bf16.mxu0 0
        %3611 = vmatpush1.bf16.msra.mxu0 %v3396
        %3612 = vmatprep.subr.bf16.mxu0 0
        %3613 = vmatpush1.bf16.msra.mxu0 %v3397
        %3614 = vmatprep.subr.bf16.mxu0 0
        %3615 = vmatpush1.bf16.msra.mxu0 %v3398
        %3616 = vmatprep.subr.bf16.mxu0 0
        %3617 = vmatpush1.bf16.msra.mxu0 0
        %3618 = vmatprep.subr.bf16.mxu0 0
        %3619 = vmatpush1.bf16.msra.mxu0 0
        %3620 = vmatprep.subr.bf16.mxu0 0
        %3621 = vmatpush1.bf16.msra.mxu0 0
        %3622 = vmatprep.subr.bf16.mxu0 0
        %3623 = vmatpush1.bf16.msra.mxu0 0
        %3624 = vmatprep.subr.bf16.mxu0 0
        %3625 = vmatpush1.bf16.msra.mxu0 0
        %3626 = vmatprep.subr.bf16.mxu0 0
        %3627 = vmatpush1.bf16.msra.mxu0 0
        %3628 = vmatprep.subr.bf16.mxu0 0
        %3629 = vmatpush1.bf16.msra.mxu0 0
        %3630 = vmatprep.subr.bf16.mxu0 0
        %3631 = vmatpush1.bf16.msra.mxu0 0
        %3632 = vmatprep.mubr.bf16.mxu0 0
        %3633 = vmatmul.mubr.bf16.gmra.mrb[0].mxu0 %v3178
        %v3634 = vpop.f32.mrb[0].mxu0
        %v3635 = vadd.f32 %v3458, %v3634
        %v3636 = vpop.f32.mrb[0].mxu0
        %v3637 = vpop.f32.mrb[0].mxu0
        %v3638 = vadd.f32 %v3461, %v3637
        %v3639 = vpop.f32.mrb[0].mxu0
        %3640 = vmatprep.mubr.bf16.mxu0 0
        %3641 = vmatmul.mubr.bf16.gmra.mrb[0].mxu0 %v3181
        %v3642 = vpop.f32.mrb[0].mxu0
        %v3643 = vadd.f32 %v3466, %v3642
        %v3644 = vpop.f32.mrb[0].mxu0
        %v3645 = vpop.f32.mrb[0].mxu0
        %v3646 = vadd.f32 %v3469, %v3645
        %v3647 = vpop.f32.mrb[0].mxu0
        %3648 = vmatprep.mubr.bf16.mxu0 0
        %3649 = vmatmul.mubr.bf16.gmra.mrb[0].mxu0 %v3184
        %v3650 = vpop.f32.mrb[0].mxu0
        %v3651 = vadd.f32 %v3474, %v3650
        %v3652 = vpop.f32.mrb[0].mxu0
        %v3653 = vpop.f32.mrb[0].mxu0
        %v3654 = vadd.f32 %v3477, %v3653
        %v3655 = vpop.f32.mrb[0].mxu0
        %3656 = vmatprep.mubr.bf16.mxu0 0
        %3657 = vmatmul.mubr.bf16.gmra.mrb[0].mxu0 %v3187
        %v3658 = vpop.f32.mrb[0].mxu0
        %v3659 = vadd.f32 %v3482, %v3658
        %v3660 = vpop.f32.mrb[0].mxu0
        %v3661 = vpop.f32.mrb[0].mxu0
        %v3662 = vadd.f32 %v3485, %v3661
        %v3663 = vpop.f32.mrb[0].mxu0
        %3664 = vmatprep.mubr.bf16.mxu0 0
        %3665 = vmatmul.mubr.bf16.gmra.mrb[0].mxu0 %v3190
        %v3666 = vpop.f32.mrb[0].mxu0
        %v3667 = vadd.f32 %v3490, %v3666
        %v3668 = vpop.f32.mrb[0].mxu0
        %v3669 = vpop.f32.mrb[0].mxu0
        %v3670 = vadd.f32 %v3493, %v3669
        %v3671 = vpop.f32.mrb[0].mxu0
        %3672 = vmatprep.mubr.bf16.mxu0 0
        %3673 = vmatmul.mubr.bf16.gmra.mrb[0].mxu0 %v3193
        %v3674 = vpop.f32.mrb[0].mxu0
        %v3675 = vadd.f32 %v3498, %v3674
        %v3676 = vpop.f32.mrb[0].mxu0
        %v3677 = vpop.f32.mrb[0].mxu0
        %v3678 = vadd.f32 %v3501, %v3677
        %v3679 = vpop.f32.mrb[0].mxu0
        %3680 = vmatprep.mubr.bf16.mxu0 0
        %3681 = vmatmul.mubr.bf16.gmra.mrb[0].mxu0 %v3196
        %v3682 = vpop.f32.mrb[0].mxu0
        %v3683 = vadd.f32 %v3506, %v3682
        %v3684 = vpop.f32.mrb[0].mxu0
        %v3685 = vpop.f32.mrb[0].mxu0
        %v3686 = vadd.f32 %v3509, %v3685
        %v3687 = vpop.f32.mrb[0].mxu0
        %3688 = vmatprep.mubr.bf16.mxu0 0
        %3689 = vmatmul.mubr.bf16.gmra.mrb[0].mxu0 %v3199
        %v3690 = vpop.f32.mrb[0].mxu0
        %v3691 = vadd.f32 %v3514, %v3690
        %v3692 = vpop.f32.mrb[0].mxu0
        %v3693 = vpop.f32.mrb[0].mxu0
        %v3694 = vadd.f32 %v3517, %v3693
        %v3695 = vpop.f32.mrb[0].mxu0
        %3696 = vmatprep.mubr.bf16.mxu0 0
        %3697 = vmatmul.mubr.bf16.gmra.mrb[0].mxu0 %v3202
        %v3698 = vpop.f32.mrb[0].mxu0
        %v3699 = vadd.f32 %v3522, %v3698
        %v3700 = vpop.f32.mrb[0].mxu0
        %v3701 = vpop.f32.mrb[0].mxu0
        %v3702 = vadd.f32 %v3525, %v3701
        %v3703 = vpop.f32.mrb[0].mxu0
        %3704 = vmatprep.mubr.bf16.mxu0 0
        %3705 = vmatmul.mubr.bf16.gmra.mrb[0].mxu0 %v3205
        %v3706 = vpop.f32.mrb[0].mxu0
        %v3707 = vadd.f32 %v3530, %v3706
        %v3708 = vpop.f32.mrb[0].mxu0
        %v3709 = vpop.f32.mrb[0].mxu0
        %v3710 = vadd.f32 %v3533, %v3709
        %v3711 = vpop.f32.mrb[0].mxu0
        %3712 = vmatprep.mubr.bf16.mxu0 0
        %3713 = vmatmul.mubr.bf16.gmra.mrb[0].mxu0 %v3208
        %v3714 = vpop.f32.mrb[0].mxu0
        %v3715 = vadd.f32 %v3538, %v3714
        %v3716 = vpop.f32.mrb[0].mxu0
        %v3717 = vpop.f32.mrb[0].mxu0
        %v3718 = vadd.f32 %v3541, %v3717
        %v3719 = vpop.f32.mrb[0].mxu0
        %3720 = vmatprep.mubr.bf16.mxu0 0
        %3721 = vmatmul.mubr.bf16.gmra.mrb[0].mxu0 %v3211
        %v3722 = vpop.f32.mrb[0].mxu0
        %v3723 = vadd.f32 %v3546, %v3722
        %v3724 = vpop.f32.mrb[0].mxu0
        %v3725 = vpop.f32.mrb[0].mxu0
        %v3726 = vadd.f32 %v3549, %v3725
        %v3727 = vpop.f32.mrb[0].mxu0
        %3728 = vmatprep.mubr.bf16.mxu0 0
        %3729 = vmatmul.mubr.bf16.gmra.mrb[0].mxu0 %v3214
        %v3730 = vpop.f32.mrb[0].mxu0
        %v3731 = vadd.f32 %v3554, %v3730
        %v3732 = vpop.f32.mrb[0].mxu0
        %v3733 = vpop.f32.mrb[0].mxu0
        %v3734 = vadd.f32 %v3557, %v3733
        %v3735 = vpop.f32.mrb[0].mxu0
        %3736 = vmatprep.mubr.bf16.mxu0 0
        %3737 = vmatmul.mubr.bf16.gmra.mrb[0].mxu0 %v3217
        %v3738 = vpop.f32.mrb[0].mxu0
        %v3739 = vadd.f32 %v3562, %v3738
        %v3740 = vpop.f32.mrb[0].mxu0
        %v3741 = vpop.f32.mrb[0].mxu0
        %v3742 = vadd.f32 %v3565, %v3741
        %v3743 = vpop.f32.mrb[0].mxu0
        %3744 = vmatprep.mubr.bf16.mxu0 0
        %3745 = vmatmul.mubr.bf16.gmra.mrb[0].mxu0 %v3220
        %v3746 = vpop.f32.mrb[0].mxu0
        %v3747 = vadd.f32 %v3570, %v3746
        %v3748 = vpop.f32.mrb[0].mxu0
        %v3749 = vpop.f32.mrb[0].mxu0
        %v3750 = vadd.f32 %v3573, %v3749
        %v3751 = vpop.f32.mrb[0].mxu0
        %3752 = vmatprep.mubr.bf16.mxu0 0
        %3753 = vmatmul.mubr.bf16.gmra.mrb[0].mxu0 %v3223
        %v3754 = vpop.f32.mrb[0].mxu0
        %v3755 = vadd.f32 %v3578, %v3754
        %v3756 = vpop.f32.mrb[0].mxu0
        %v3757 = vpop.f32.mrb[0].mxu0
        %v3758 = vadd.f32 %v3581, %v3757
        %v3759 = vpop.f32.mrb[0].mxu0
        %3760 = vmatprep.mubr.bf16.mxu0 0
        %3761 = vmatmul.mubr.bf16.gmra.mrb[0].mxu0 %v3226
        %v3762 = vpop.f32.mrb[0].mxu0
        %v3763 = vadd.f32 %v3586, %v3762
        %v3764 = vpop.f32.mrb[0].mxu0
        %v3765 = vpop.f32.mrb[0].mxu0
        %v3766 = vadd.f32 %v3589, %v3765
        %v3767 = vpop.f32.mrb[0].mxu0
        %3768 = vmatprep.mubr.bf16.mxu0 0
        %3769 = vmatmul.mubr.bf16.gmra.mrb[0].mxu0 %v3229
        %v3770 = vpop.f32.mrb[0].mxu0
        %v3771 = vadd.f32 %v3594, %v3770
        %v3772 = vpop.f32.mrb[0].mxu0
        %v3773 = vpop.f32.mrb[0].mxu0
        %v3774 = vadd.f32 %v3597, %v3773
        %v3775 = vpop.f32.mrb[0].mxu0
        %3776 = vdwg.mxu0
        %v3825 = vunpack.c.l.b16 %v2566
        %v3826 = vunpack.c.l.b16 %v2567
        %v3827 = vunpack.c.l.b16 %v2568
        %v3828 = vunpack.c.l.b16 %v2569
        %v3829 = vunpack.c.l.b16 %v2570
        %v3830 = vunpack.c.l.b16 %v2571
        %v3831 = vunpack.c.l.b16 %v2572
        %v3832 = vunpack.c.l.b16 %v2573
        %v3833 = vunpack.c.l.b16 %v2574
        %v3834 = vunpack.c.l.b16 %v2575
        %v3835 = vunpack.c.l.b16 %v2576
        %v3836 = vunpack.c.l.b16 %v2577
        %v3837 = vunpack.c.l.b16 %v2578
        %v3838 = vunpack.c.l.b16 %v2579
        %v3839 = vunpack.c.l.b16 %v2580
        %v3840 = vunpack.c.l.b16 %v2581
        %v3841 = vunpack.c.l.b16 %v2582
        %v3842 = vunpack.c.l.b16 %v2583
        %v3843 = vunpack.c.l.b16 %v2584
        %v3844 = vunpack.c.l.b16 %v2585
        %v3845 = vunpack.c.l.b16 %v2586
        %v3846 = vunpack.c.l.b16 %v2587
        %v3847 = vunpack.c.l.b16 %v2588
        %v3848 = vunpack.c.l.b16 %v2589
        %v3849 = vunpack.c.l.b16 %v2590
        %v3850 = vunpack.c.l.b16 %v2591
        %v3851 = vunpack.c.l.b16 %v2592
        %v3852 = vunpack.c.l.b16 %v2593
        %v3853 = vunpack.c.l.b16 %v2594
        %v3854 = vunpack.c.l.b16 %v2595
        %v3855 = vunpack.c.l.b16 %v2596
        %v3856 = vunpack.c.l.b16 %v2597
        %v3857 = vunpack.c.l.b16 %v2598
        %v3858 = vunpack.c.l.b16 %v2599
        %v3859 = vunpack.c.l.b16 %v2600
        %v3860 = vunpack.c.l.b16 %v2601
        %v3861 = vunpack.c.l.b16 %v2602
        %v3862 = vunpack.c.l.b16 %v2603
        %v3863 = vunpack.c.l.b16 %v2604
        %v3864 = vunpack.c.l.b16 %v2605
        %v3865 = vunpack.c.l.b16 %v2606
        %v3866 = vunpack.c.l.b16 %v2607
        %v3867 = vunpack.c.l.b16 %v2608
        %v3868 = vunpack.c.l.b16 %v2609
        %v3869 = vunpack.c.l.b16 %v2610
        %v3870 = vunpack.c.l.b16 %v2611
        %v3871 = vunpack.c.l.b16 %v2612
        %v3872 = vunpack.c.l.b16 %v2613
        %v3873 = vpack.c.b16 %v3826, %v3825
        %v3874 = vpack.c.b16 %v3828, %v3827
        %v3875 = vpack.c.b16 %v3830, %v3829
        %v3876 = vpack.c.b16 %v3832, %v3831
        %v3877 = vpack.c.b16 %v3834, %v3833
        %v3878 = vpack.c.b16 %v3836, %v3835
        %v3879 = vpack.c.b16 %v3838, %v3837
        %v3880 = vpack.c.b16 %v3840, %v3839
        %v3881 = vpack.c.b16 %v3842, %v3841
        %v3882 = vpack.c.b16 %v3844, %v3843
        %v3883 = vpack.c.b16 %v3846, %v3845
        %v3884 = vpack.c.b16 %v3848, %v3847
        %v3885 = vpack.c.b16 %v3850, %v3849
        %v3886 = vpack.c.b16 %v3852, %v3851
        %v3887 = vpack.c.b16 %v3854, %v3853
        %v3888 = vpack.c.b16 %v3856, %v3855
        %v3889 = vpack.c.b16 %v3858, %v3857
        %v3890 = vpack.c.b16 %v3860, %v3859
        %v3891 = vpack.c.b16 %v3862, %v3861
        %v3892 = vpack.c.b16 %v3864, %v3863
        %v3893 = vpack.c.b16 %v3866, %v3865
        %v3894 = vpack.c.b16 %v3868, %v3867
        %v3895 = vpack.c.b16 %v3870, %v3869
        %v3896 = vpack.c.b16 %v3872, %v3871
        %3921 = vmatprep.subr.bf16.mxu0 0
        %3922 = vmatpush1.bf16.msra.mxu0 %v3873
        %3923 = vmatprep.subr.bf16.mxu0 0
        %3924 = vmatpush1.bf16.msra.mxu0 %v3874
        %3925 = vmatprep.subr.bf16.mxu0 0
        %3926 = vmatpush1.bf16.msra.mxu0 %v3875
        %3927 = vmatprep.subr.bf16.mxu0 0
        %3928 = vmatpush1.bf16.msra.mxu0 %v3876
        %3929 = vmatprep.subr.bf16.mxu0 0
        %3930 = vmatpush1.bf16.msra.mxu0 %v3877
        %3931 = vmatprep.subr.bf16.mxu0 0
        %3932 = vmatpush1.bf16.msra.mxu0 %v3878
        %3933 = vmatprep.subr.bf16.mxu0 0
        %3934 = vmatpush1.bf16.msra.mxu0 %v3879
        %3935 = vmatprep.subr.bf16.mxu0 0
        %3936 = vmatpush1.bf16.msra.mxu0 %v3880
        %3937 = vmatprep.subr.bf16.mxu0 0
        %3938 = vmatpush1.bf16.msra.mxu0 %v3881
        %3939 = vmatprep.subr.bf16.mxu0 0
        %3940 = vmatpush1.bf16.msra.mxu0 %v3882
        %3941 = vmatprep.subr.bf16.mxu0 0
        %3942 = vmatpush1.bf16.msra.mxu0 %v3883
        %3943 = vmatprep.subr.bf16.mxu0 0
        %3944 = vmatpush1.bf16.msra.mxu0 %v3884
        %3945 = vmatprep.subr.bf16.mxu0 0
        %3946 = vmatpush1.bf16.msra.mxu0 %v3885
        %3947 = vmatprep.subr.bf16.mxu0 0
        %3948 = vmatpush1.bf16.msra.mxu0 %v3886
        %3949 = vmatprep.subr.bf16.mxu0 0
        %3950 = vmatpush1.bf16.msra.mxu0 %v3887
        %3951 = vmatprep.subr.bf16.mxu0 0
        %3952 = vmatpush1.bf16.msra.mxu0 %v3888
        %3953 = vmatprep.mubr.bf16.mxu0 %v2513
        %3954 = vmatmul.mubr.bf16.gmra.mrb[0].mxu0 %v2512
        %v3955 = vpop.f32.mrb[0].mxu0
        %v3956 = vadd.f32 %v3635, %v3955
        %v3957 = vpop.f32.mrb[0].mxu0
        %v3958 = vpop.f32.mrb[0].mxu0
        %v3959 = vadd.f32 %v3638, %v3958
        %v3960 = vpop.f32.mrb[0].mxu0
        %3961 = vmatprep.mubr.bf16.mxu0 %v2516
        %3962 = vmatmul.mubr.bf16.gmra.mrb[0].mxu0 %v2515
        %v3963 = vpop.f32.mrb[0].mxu0
        %v3964 = vadd.f32 %v3643, %v3963
        %v3965 = vpop.f32.mrb[0].mxu0
        %v3966 = vpop.f32.mrb[0].mxu0
        %v3967 = vadd.f32 %v3646, %v3966
        %v3968 = vpop.f32.mrb[0].mxu0
        %3969 = vmatprep.mubr.bf16.mxu0 %v2519
        %3970 = vmatmul.mubr.bf16.gmra.mrb[0].mxu0 %v2518
        %v3971 = vpop.f32.mrb[0].mxu0
        %v3972 = vadd.f32 %v3651, %v3971
        %v3973 = vpop.f32.mrb[0].mxu0
        %v3974 = vpop.f32.mrb[0].mxu0
        %v3975 = vadd.f32 %v3654, %v3974
        %v3976 = vpop.f32.mrb[0].mxu0
        %3977 = vmatprep.mubr.bf16.mxu0 %v2522
        %3978 = vmatmul.mubr.bf16.gmra.mrb[0].mxu0 %v2521
        %v3979 = vpop.f32.mrb[0].mxu0
        %v3980 = vadd.f32 %v3659, %v3979
        %v3981 = vpop.f32.mrb[0].mxu0
        %v3982 = vpop.f32.mrb[0].mxu0
        %v3983 = vadd.f32 %v3662, %v3982
        %v3984 = vpop.f32.mrb[0].mxu0
        %3985 = vmatprep.mubr.bf16.mxu0 %v2525
        %3986 = vmatmul.mubr.bf16.gmra.mrb[0].mxu0 %v2524
        %v3987 = vpop.f32.mrb[0].mxu0
        %v3988 = vadd.f32 %v3667, %v3987
        %v3989 = vpop.f32.mrb[0].mxu0
        %v3990 = vpop.f32.mrb[0].mxu0
        %v3991 = vadd.f32 %v3670, %v3990
        %v3992 = vpop.f32.mrb[0].mxu0
        %3993 = vmatprep.mubr.bf16.mxu0 %v2528
        %3994 = vmatmul.mubr.bf16.gmra.mrb[0].mxu0 %v2527
        %v3995 = vpop.f32.mrb[0].mxu0
        %v3996 = vadd.f32 %v3675, %v3995
        %v3997 = vpop.f32.mrb[0].mxu0
        %v3998 = vpop.f32.mrb[0].mxu0
        %v3999 = vadd.f32 %v3678, %v3998
        %v4000 = vpop.f32.mrb[0].mxu0
        %4001 = vmatprep.mubr.bf16.mxu0 %v2531
        %4002 = vmatmul.mubr.bf16.gmra.mrb[0].mxu0 %v2530
        %v4003 = vpop.f32.mrb[0].mxu0
        %v4004 = vadd.f32 %v3683, %v4003
        %v4005 = vpop.f32.mrb[0].mxu0
        %v4006 = vpop.f32.mrb[0].mxu0
        %v4007 = vadd.f32 %v3686, %v4006
        %v4008 = vpop.f32.mrb[0].mxu0
        %4009 = vmatprep.mubr.bf16.mxu0 %v2534
        %4010 = vmatmul.mubr.bf16.gmra.mrb[0].mxu0 %v2533
        %v4011 = vpop.f32.mrb[0].mxu0
        %v4012 = vadd.f32 %v3691, %v4011
        %v4013 = vpop.f32.mrb[0].mxu0
        %v4014 = vpop.f32.mrb[0].mxu0
        %v4015 = vadd.f32 %v3694, %v4014
        %v4016 = vpop.f32.mrb[0].mxu0
        %4017 = vmatprep.mubr.bf16.mxu0 %v2537
        %4018 = vmatmul.mubr.bf16.gmra.mrb[0].mxu0 %v2536
        %v4019 = vpop.f32.mrb[0].mxu0
        %v4020 = vadd.f32 %v3699, %v4019
        %v4021 = vpop.f32.mrb[0].mxu0
        %v4022 = vpop.f32.mrb[0].mxu0
        %v4023 = vadd.f32 %v3702, %v4022
        %v4024 = vpop.f32.mrb[0].mxu0
        %4025 = vmatprep.mubr.bf16.mxu0 %v2540
        %4026 = vmatmul.mubr.bf16.gmra.mrb[0].mxu0 %v2539
        %v4027 = vpop.f32.mrb[0].mxu0
        %v4028 = vadd.f32 %v3707, %v4027
        %v4029 = vpop.f32.mrb[0].mxu0
        %v4030 = vpop.f32.mrb[0].mxu0
        %v4031 = vadd.f32 %v3710, %v4030
        %v4032 = vpop.f32.mrb[0].mxu0
        %4033 = vmatprep.mubr.bf16.mxu0 %v2543
        %4034 = vmatmul.mubr.bf16.gmra.mrb[0].mxu0 %v2542
        %v4035 = vpop.f32.mrb[0].mxu0
        %v4036 = vadd.f32 %v3715, %v4035
        %v4037 = vpop.f32.mrb[0].mxu0
        %v4038 = vpop.f32.mrb[0].mxu0
        %v4039 = vadd.f32 %v3718, %v4038
        %v4040 = vpop.f32.mrb[0].mxu0
        %4041 = vmatprep.mubr.bf16.mxu0 %v2546
        %4042 = vmatmul.mubr.bf16.gmra.mrb[0].mxu0 %v2545
        %v4043 = vpop.f32.mrb[0].mxu0
        %v4044 = vadd.f32 %v3723, %v4043
        %v4045 = vpop.f32.mrb[0].mxu0
        %v4046 = vpop.f32.mrb[0].mxu0
        %v4047 = vadd.f32 %v3726, %v4046
        %v4048 = vpop.f32.mrb[0].mxu0
        %4049 = vmatprep.mubr.bf16.mxu0 %v2549
        %4050 = vmatmul.mubr.bf16.gmra.mrb[0].mxu0 %v2548
        %v4051 = vpop.f32.mrb[0].mxu0
        %v4052 = vadd.f32 %v3731, %v4051
        %v4053 = vpop.f32.mrb[0].mxu0
        %v4054 = vpop.f32.mrb[0].mxu0
        %v4055 = vadd.f32 %v3734, %v4054
        %v4056 = vpop.f32.mrb[0].mxu0
        %4057 = vmatprep.mubr.bf16.mxu0 %v2552
        %4058 = vmatmul.mubr.bf16.gmra.mrb[0].mxu0 %v2551
        %v4059 = vpop.f32.mrb[0].mxu0
        %v4060 = vadd.f32 %v3739, %v4059
        %v4061 = vpop.f32.mrb[0].mxu0
        %v4062 = vpop.f32.mrb[0].mxu0
        %v4063 = vadd.f32 %v3742, %v4062
        %v4064 = vpop.f32.mrb[0].mxu0
        %4065 = vmatprep.mubr.bf16.mxu0 %v2555
        %4066 = vmatmul.mubr.bf16.gmra.mrb[0].mxu0 %v2554
        %v4067 = vpop.f32.mrb[0].mxu0
        %v4068 = vadd.f32 %v3747, %v4067
        %v4069 = vpop.f32.mrb[0].mxu0
        %v4070 = vpop.f32.mrb[0].mxu0
        %v4071 = vadd.f32 %v3750, %v4070
        %v4072 = vpop.f32.mrb[0].mxu0
        %4073 = vmatprep.mubr.bf16.mxu0 %v2558
        %4074 = vmatmul.mubr.bf16.gmra.mrb[0].mxu0 %v2557
        %v4075 = vpop.f32.mrb[0].mxu0
        %v4076 = vadd.f32 %v3755, %v4075
        %v4077 = vpop.f32.mrb[0].mxu0
        %v4078 = vpop.f32.mrb[0].mxu0
        %v4079 = vadd.f32 %v3758, %v4078
        %v4080 = vpop.f32.mrb[0].mxu0
        %4081 = vmatprep.mubr.bf16.mxu0 %v2561
        %4082 = vmatmul.mubr.bf16.gmra.mrb[0].mxu0 %v2560
        %v4083 = vpop.f32.mrb[0].mxu0
        %v4084 = vadd.f32 %v3763, %v4083
        %v4085 = vpop.f32.mrb[0].mxu0
        %v4086 = vpop.f32.mrb[0].mxu0
        %v4087 = vadd.f32 %v3766, %v4086
        %v4088 = vpop.f32.mrb[0].mxu0
        %4089 = vmatprep.mubr.bf16.mxu0 %v2564
        %4090 = vmatmul.mubr.bf16.gmra.mrb[0].mxu0 %v2563
        %v4091 = vpop.f32.mrb[0].mxu0
        %v4092 = vadd.f32 %v3771, %v4091
        %v4093 = vpop.f32.mrb[0].mxu0
        %v4094 = vpop.f32.mrb[0].mxu0
        %v4095 = vadd.f32 %v3774, %v4094
        %v4096 = vpop.f32.mrb[0].mxu0
        %4097 = vdwg.mxu0
        %4098 = vmatprep.subr.bf16.mxu0 0
        %4099 = vmatpush1.bf16.msra.mxu0 %v3889
        %4100 = vmatprep.subr.bf16.mxu0 0
        %4101 = vmatpush1.bf16.msra.mxu0 %v3890
        %4102 = vmatprep.subr.bf16.mxu0 0
        %4103 = vmatpush1.bf16.msra.mxu0 %v3891
        %4104 = vmatprep.subr.bf16.mxu0 0
        %4105 = vmatpush1.bf16.msra.mxu0 %v3892
        %4106 = vmatprep.subr.bf16.mxu0 0
        %4107 = vmatpush1.bf16.msra.mxu0 %v3893
        %4108 = vmatprep.subr.bf16.mxu0 0
        %4109 = vmatpush1.bf16.msra.mxu0 %v3894
        %4110 = vmatprep.subr.bf16.mxu0 0
        %4111 = vmatpush1.bf16.msra.mxu0 %v3895
        %4112 = vmatprep.subr.bf16.mxu0 0
        %4113 = vmatpush1.bf16.msra.mxu0 %v3896
        %4114 = vmatprep.subr.bf16.mxu0 0
        %4115 = vmatpush1.bf16.msra.mxu0 0
        %4116 = vmatprep.subr.bf16.mxu0 0
        %4117 = vmatpush1.bf16.msra.mxu0 0
        %4118 = vmatprep.subr.bf16.mxu0 0
        %4119 = vmatpush1.bf16.msra.mxu0 0
        %4120 = vmatprep.subr.bf16.mxu0 0
        %4121 = vmatpush1.bf16.msra.mxu0 0
        %4122 = vmatprep.subr.bf16.mxu0 0
        %4123 = vmatpush1.bf16.msra.mxu0 0
        %4124 = vmatprep.subr.bf16.mxu0 0
        %4125 = vmatpush1.bf16.msra.mxu0 0
        %4126 = vmatprep.subr.bf16.mxu0 0
        %4127 = vmatpush1.bf16.msra.mxu0 0
        %4128 = vmatprep.subr.bf16.mxu0 0
        %4129 = vmatpush1.bf16.msra.mxu0 0
        %4130 = vmatprep.mubr.bf16.mxu0 0
        %4131 = vmatmul.mubr.bf16.gmra.mrb[0].mxu0 %v2514
        %v4132 = vpop.f32.mrb[0].mxu0
        %v4133 = vadd.f32 %v3956, %v4132
        %v4134 = vpop.f32.mrb[0].mxu0
        %v4135 = vpop.f32.mrb[0].mxu0
        %v4136 = vadd.f32 %v3959, %v4135
        %v4137 = vpop.f32.mrb[0].mxu0
        %4138 = vmatprep.mubr.bf16.mxu0 0
        %4139 = vmatmul.mubr.bf16.gmra.mrb[0].mxu0 %v2517
        %v4140 = vpop.f32.mrb[0].mxu0
        %v4141 = vadd.f32 %v3964, %v4140
        %v4142 = vpop.f32.mrb[0].mxu0
        %v4143 = vpop.f32.mrb[0].mxu0
        %v4144 = vadd.f32 %v3967, %v4143
        %v4145 = vpop.f32.mrb[0].mxu0
        %4146 = vmatprep.mubr.bf16.mxu0 0
        %4147 = vmatmul.mubr.bf16.gmra.mrb[0].mxu0 %v2520
        %v4148 = vpop.f32.mrb[0].mxu0
        %v4149 = vadd.f32 %v3972, %v4148
        %v4150 = vpop.f32.mrb[0].mxu0
        %v4151 = vpop.f32.mrb[0].mxu0
        %v4152 = vadd.f32 %v3975, %v4151
        %v4153 = vpop.f32.mrb[0].mxu0
        %4154 = vmatprep.mubr.bf16.mxu0 0
        %4155 = vmatmul.mubr.bf16.gmra.mrb[0].mxu0 %v2523
        %v4156 = vpop.f32.mrb[0].mxu0
        %v4157 = vadd.f32 %v3980, %v4156
        %v4158 = vpop.f32.mrb[0].mxu0
        %v4159 = vpop.f32.mrb[0].mxu0
        %v4160 = vadd.f32 %v3983, %v4159
        %v4161 = vpop.f32.mrb[0].mxu0
        %4162 = vmatprep.mubr.bf16.mxu0 0
        %4163 = vmatmul.mubr.bf16.gmra.mrb[0].mxu0 %v2526
        %v4164 = vpop.f32.mrb[0].mxu0
        %v4165 = vadd.f32 %v3988, %v4164
        %v4166 = vpop.f32.mrb[0].mxu0
        %v4167 = vpop.f32.mrb[0].mxu0
        %v4168 = vadd.f32 %v3991, %v4167
        %v4169 = vpop.f32.mrb[0].mxu0
        %4170 = vmatprep.mubr.bf16.mxu0 0
        %4171 = vmatmul.mubr.bf16.gmra.mrb[0].mxu0 %v2529
        %v4172 = vpop.f32.mrb[0].mxu0
        %v4173 = vadd.f32 %v3996, %v4172
        %v4174 = vpop.f32.mrb[0].mxu0
        %v4175 = vpop.f32.mrb[0].mxu0
        %v4176 = vadd.f32 %v3999, %v4175
        %v4177 = vpop.f32.mrb[0].mxu0
        %4178 = vmatprep.mubr.bf16.mxu0 0
        %4179 = vmatmul.mubr.bf16.gmra.mrb[0].mxu0 %v2532
        %v4180 = vpop.f32.mrb[0].mxu0
        %v4181 = vadd.f32 %v4004, %v4180
        %v4182 = vpop.f32.mrb[0].mxu0
        %v4183 = vpop.f32.mrb[0].mxu0
        %v4184 = vadd.f32 %v4007, %v4183
        %v4185 = vpop.f32.mrb[0].mxu0
        %4186 = vmatprep.mubr.bf16.mxu0 0
        %4187 = vmatmul.mubr.bf16.gmra.mrb[0].mxu0 %v2535
        %v4188 = vpop.f32.mrb[0].mxu0
        %v4189 = vadd.f32 %v4012, %v4188
        %v4190 = vpop.f32.mrb[0].mxu0
        %v4191 = vpop.f32.mrb[0].mxu0
        %v4192 = vadd.f32 %v4015, %v4191
        %v4193 = vpop.f32.mrb[0].mxu0
        %4194 = vmatprep.mubr.bf16.mxu0 0
        %4195 = vmatmul.mubr.bf16.gmra.mrb[0].mxu0 %v2538
        %v4196 = vpop.f32.mrb[0].mxu0
        %v4197 = vadd.f32 %v4020, %v4196
        %v4198 = vpop.f32.mrb[0].mxu0
        %v4199 = vpop.f32.mrb[0].mxu0
        %v4200 = vadd.f32 %v4023, %v4199
        %v4201 = vpop.f32.mrb[0].mxu0
        %4202 = vmatprep.mubr.bf16.mxu0 0
        %4203 = vmatmul.mubr.bf16.gmra.mrb[0].mxu0 %v2541
        %v4204 = vpop.f32.mrb[0].mxu0
        %v4205 = vadd.f32 %v4028, %v4204
        %v4206 = vpop.f32.mrb[0].mxu0
        %v4207 = vpop.f32.mrb[0].mxu0
        %v4208 = vadd.f32 %v4031, %v4207
        %v4209 = vpop.f32.mrb[0].mxu0
        %4210 = vmatprep.mubr.bf16.mxu0 0
        %4211 = vmatmul.mubr.bf16.gmra.mrb[0].mxu0 %v2544
        %v4212 = vpop.f32.mrb[0].mxu0
        %v4213 = vadd.f32 %v4036, %v4212
        %v4214 = vpop.f32.mrb[0].mxu0
        %v4215 = vpop.f32.mrb[0].mxu0
        %v4216 = vadd.f32 %v4039, %v4215
        %v4217 = vpop.f32.mrb[0].mxu0
        %4218 = vmatprep.mubr.bf16.mxu0 0
        %4219 = vmatmul.mubr.bf16.gmra.mrb[0].mxu0 %v2547
        %v4220 = vpop.f32.mrb[0].mxu0
        %v4221 = vadd.f32 %v4044, %v4220
        %v4222 = vpop.f32.mrb[0].mxu0
        %v4223 = vpop.f32.mrb[0].mxu0
        %v4224 = vadd.f32 %v4047, %v4223
        %v4225 = vpop.f32.mrb[0].mxu0
        %4226 = vmatprep.mubr.bf16.mxu0 0
        %4227 = vmatmul.mubr.bf16.gmra.mrb[0].mxu0 %v2550
        %v4228 = vpop.f32.mrb[0].mxu0
        %v4229 = vadd.f32 %v4052, %v4228
        %v4230 = vpop.f32.mrb[0].mxu0
        %v4231 = vpop.f32.mrb[0].mxu0
        %v4232 = vadd.f32 %v4055, %v4231
        %v4233 = vpop.f32.mrb[0].mxu0
        %4234 = vmatprep.mubr.bf16.mxu0 0
        %4235 = vmatmul.mubr.bf16.gmra.mrb[0].mxu0 %v2553
        %v4236 = vpop.f32.mrb[0].mxu0
        %v4237 = vadd.f32 %v4060, %v4236
        %v4238 = vpop.f32.mrb[0].mxu0
        %v4239 = vpop.f32.mrb[0].mxu0
        %v4240 = vadd.f32 %v4063, %v4239
        %v4241 = vpop.f32.mrb[0].mxu0
        %4242 = vmatprep.mubr.bf16.mxu0 0
        %4243 = vmatmul.mubr.bf16.gmra.mrb[0].mxu0 %v2556
        %v4244 = vpop.f32.mrb[0].mxu0
        %v4245 = vadd.f32 %v4068, %v4244
        %v4246 = vpop.f32.mrb[0].mxu0
        %v4247 = vpop.f32.mrb[0].mxu0
        %v4248 = vadd.f32 %v4071, %v4247
        %v4249 = vpop.f32.mrb[0].mxu0
        %4250 = vmatprep.mubr.bf16.mxu0 0
        %4251 = vmatmul.mubr.bf16.gmra.mrb[0].mxu0 %v2559
        %v4252 = vpop.f32.mrb[0].mxu0
        %v4253 = vadd.f32 %v4076, %v4252
        %v4254 = vpop.f32.mrb[0].mxu0
        %v4255 = vpop.f32.mrb[0].mxu0
        %v4256 = vadd.f32 %v4079, %v4255
        %v4257 = vpop.f32.mrb[0].mxu0
        %4258 = vmatprep.mubr.bf16.mxu0 0
        %4259 = vmatmul.mubr.bf16.gmra.mrb[0].mxu0 %v2562
        %v4260 = vpop.f32.mrb[0].mxu0
        %v4261 = vadd.f32 %v4084, %v4260
        %v4262 = vpop.f32.mrb[0].mxu0
        %v4263 = vpop.f32.mrb[0].mxu0
        %v4264 = vadd.f32 %v4087, %v4263
        %v4265 = vpop.f32.mrb[0].mxu0
        %4266 = vmatprep.mubr.bf16.mxu0 0
        %4267 = vmatmul.mubr.bf16.gmra.mrb[0].mxu0 %v2565
        %v4268 = vpop.f32.mrb[0].mxu0
        %v4269 = vadd.f32 %v4092, %v4268
        %v4270 = vpop.f32.mrb[0].mxu0
        %v4271 = vpop.f32.mrb[0].mxu0
        %v4272 = vadd.f32 %v4095, %v4271
        %v4273 = vpop.f32.mrb[0].mxu0
        %4274 = vdwg.mxu0
        %v4275 = vld [vmem:[#allocation2 + $0x10] sm:$0xf0]
        %v4276 = vld [vmem:[#allocation2 + $0x18] sm:$0xff]
        %v4277 = vld [vmem:[#allocation2 + $0x20] sm:$0xff]
        %v4278 = vld [vmem:[#allocation2 + $0x28] sm:$0xff]
        %v4279 = vld [vmem:[#allocation2 + $0x30] sm:$0xff]
        %v4280 = vld [vmem:[#allocation2 + $0x38] sm:$0xff]
        %v4281 = vld [vmem:[#allocation2 + $0x40] sm:$0xff]
        %v4282 = vld [vmem:[#allocation2 + $0x48] sm:$0xff]
        %v4283 = vld [vmem:[#allocation2 + $0x50] sm:$0xff]
        %v4284 = vld [vmem:[#allocation2 + $0x58] sm:$0xff]
        %v4285 = vld [vmem:[#allocation2 + $0x60] sm:$0xff]
        %v4286 = vld [vmem:[#allocation2 + $0x68] sm:$0xff]
        %v4287 = vld [vmem:[#allocation2 + $0x70] sm:$0xff]
        %v4288 = vld [vmem:[#allocation2 + $0x78] sm:$0xff]
        %v4289 = vld [vmem:[#allocation2 + $0x80] sm:$0xff]
        %v4290 = vld [vmem:[#allocation2 + $0x88] sm:$0xff]
        %v4291 = vld [vmem:[#allocation2 + $0x90] sm:$0xff]
        %v4292 = vld [vmem:[#allocation2 + $0x98] sm:$0xff]
        %v4293 = vld [vmem:[#allocation2 + $0xa0] sm:$0x1f]
        %v4295 = vshrl.u32 %v4275, 16
        %v4297 = vrot.slane %v4295, 4
        %v4298 = vshll.u32 %v4275, 16
        %v4300 = vrot.slane %v4298, 5
        %v4301 = vor.u32 %v4297, %v4300
        %v4303 = vshrl.u32 %v4276, 16
        %v4305 = vrot.slane %v4303, 4
        %v4306 = vshll.u32 %v4276, 16
        %v4308 = vrot.slane %v4306, 5
        %v4309 = vor.u32 %v4305, %v4308
        %v4310 = vsel %vm2969, %v4301, %v4309
        %v4312 = vshrl.u32 %v4277, 16
        %v4314 = vrot.slane %v4312, 4
        %v4315 = vshll.u32 %v4277, 16
        %v4317 = vrot.slane %v4315, 5
        %v4318 = vor.u32 %v4314, %v4317
        %v4319 = vsel %vm2969, %v4309, %v4318
        %v4321 = vshrl.u32 %v4278, 16
        %v4323 = vrot.slane %v4321, 4
        %v4324 = vshll.u32 %v4278, 16
        %v4326 = vrot.slane %v4324, 5
        %v4327 = vor.u32 %v4323, %v4326
        %v4328 = vsel %vm2969, %v4318, %v4327
        %v4330 = vshrl.u32 %v4279, 16
        %v4332 = vrot.slane %v4330, 4
        %v4333 = vshll.u32 %v4279, 16
        %v4335 = vrot.slane %v4333, 5
        %v4336 = vor.u32 %v4332, %v4335
        %v4337 = vsel %vm2969, %v4327, %v4336
        %v4339 = vshrl.u32 %v4280, 16
        %v4341 = vrot.slane %v4339, 4
        %v4342 = vshll.u32 %v4280, 16
        %v4344 = vrot.slane %v4342, 5
        %v4345 = vor.u32 %v4341, %v4344
        %v4346 = vsel %vm2969, %v4336, %v4345
        %v4348 = vshrl.u32 %v4281, 16
        %v4350 = vrot.slane %v4348, 4
        %v4351 = vshll.u32 %v4281, 16
        %v4353 = vrot.slane %v4351, 5
        %v4354 = vor.u32 %v4350, %v4353
        %v4355 = vsel %vm2969, %v4345, %v4354
        %v4357 = vshrl.u32 %v4282, 16
        %v4359 = vrot.slane %v4357, 4
        %v4360 = vshll.u32 %v4282, 16
        %v4362 = vrot.slane %v4360, 5
        %v4363 = vor.u32 %v4359, %v4362
        %v4364 = vsel %vm2969, %v4354, %v4363
        %v4366 = vshrl.u32 %v4283, 16
        %v4368 = vrot.slane %v4366, 4
        %v4369 = vshll.u32 %v4283, 16
        %v4371 = vrot.slane %v4369, 5
        %v4372 = vor.u32 %v4368, %v4371
        %v4373 = vsel %vm2969, %v4363, %v4372
        %v4375 = vshrl.u32 %v4284, 16
        %v4377 = vrot.slane %v4375, 4
        %v4378 = vshll.u32 %v4284, 16
        %v4380 = vrot.slane %v4378, 5
        %v4381 = vor.u32 %v4377, %v4380
        %v4382 = vsel %vm2969, %v4372, %v4381
        %v4384 = vshrl.u32 %v4285, 16
        %v4386 = vrot.slane %v4384, 4
        %v4387 = vshll.u32 %v4285, 16
        %v4389 = vrot.slane %v4387, 5
        %v4390 = vor.u32 %v4386, %v4389
        %v4391 = vsel %vm2969, %v4381, %v4390
        %v4393 = vshrl.u32 %v4286, 16
        %v4395 = vrot.slane %v4393, 4
        %v4396 = vshll.u32 %v4286, 16
        %v4398 = vrot.slane %v4396, 5
        %v4399 = vor.u32 %v4395, %v4398
        %v4400 = vsel %vm2969, %v4390, %v4399
        %v4402 = vshrl.u32 %v4287, 16
        %v4404 = vrot.slane %v4402, 4
        %v4405 = vshll.u32 %v4287, 16
        %v4407 = vrot.slane %v4405, 5
        %v4408 = vor.u32 %v4404, %v4407
        %v4409 = vsel %vm2969, %v4399, %v4408
        %v4411 = vshrl.u32 %v4288, 16
        %v4413 = vrot.slane %v4411, 4
        %v4414 = vshll.u32 %v4288, 16
        %v4416 = vrot.slane %v4414, 5
        %v4417 = vor.u32 %v4413, %v4416
        %v4418 = vsel %vm2969, %v4408, %v4417
        %v4420 = vshrl.u32 %v4289, 16
        %v4422 = vrot.slane %v4420, 4
        %v4423 = vshll.u32 %v4289, 16
        %v4425 = vrot.slane %v4423, 5
        %v4426 = vor.u32 %v4422, %v4425
        %v4427 = vsel %vm2969, %v4417, %v4426
        %v4429 = vshrl.u32 %v4290, 16
        %v4431 = vrot.slane %v4429, 4
        %v4432 = vshll.u32 %v4290, 16
        %v4434 = vrot.slane %v4432, 5
        %v4435 = vor.u32 %v4431, %v4434
        %v4436 = vsel %vm2969, %v4426, %v4435
        %v4438 = vshrl.u32 %v4291, 16
        %v4440 = vrot.slane %v4438, 4
        %v4441 = vshll.u32 %v4291, 16
        %v4443 = vrot.slane %v4441, 5
        %v4444 = vor.u32 %v4440, %v4443
        %v4445 = vsel %vm2969, %v4435, %v4444
        %v4447 = vshrl.u32 %v4292, 16
        %v4449 = vrot.slane %v4447, 4
        %v4450 = vshll.u32 %v4292, 16
        %v4452 = vrot.slane %v4450, 5
        %v4453 = vor.u32 %v4449, %v4452
        %v4454 = vsel %vm2969, %v4444, %v4453
        %v4456 = vshrl.u32 %v4293, 16
        %v4458 = vrot.slane %v4456, 4
        %v4459 = vshll.u32 %v4293, 16
        %v4461 = vrot.slane %v4459, 5
        %v4462 = vor.u32 %v4458, %v4461
        %v4463 = vsel %vm2969, %v4453, %v4462
        %4482 = vst [vmem:[#allocation4] sm:$0xff] %v4310
        %4483 = vst [vmem:[#allocation4 + $0x18] sm:$0xff] %v4319
        %4484 = vst [vmem:[#allocation4 + $0x30] sm:$0xff] %v4328
        %4485 = vst [vmem:[#allocation4 + $0x48] sm:$0xff] %v4337
        %4486 = vst [vmem:[#allocation4 + $0x60] sm:$0xff] %v4346
        %4487 = vst [vmem:[#allocation4 + $0x78] sm:$0xff] %v4355
        %4488 = vst [vmem:[#allocation4 + $0x90] sm:$0xff] %v4364
        %4489 = vst [vmem:[#allocation4 + $0xa8] sm:$0xff] %v4373
        %4490 = vst [vmem:[#allocation4 + $0xc0] sm:$0xff] %v4382
        %4491 = vst [vmem:[#allocation4 + $0xd8] sm:$0xff] %v4391
        %4492 = vst [vmem:[#allocation4 + $0xf0] sm:$0xff] %v4400
        %4493 = vst [vmem:[#allocation4 + $0x108] sm:$0xff] %v4409
        %4494 = vst [vmem:[#allocation4 + $0x120] sm:$0xff] %v4418
        %4495 = vst [vmem:[#allocation4 + $0x138] sm:$0xff] %v4427
        %4496 = vst [vmem:[#allocation4 + $0x150] sm:$0xff] %v4436
        %4497 = vst [vmem:[#allocation4 + $0x168] sm:$0xff] %v4445
        %4498 = vst [vmem:[#allocation4 + $0x180] sm:$0xff] %v4454
        %4499 = vst [vmem:[#allocation4 + $0x198] sm:$0xff] %v4463
        %v4500 = vld [vmem:[#allocation2 + $0x10] sm:$0xe0]
        %v4501 = vld [vmem:[#allocation2 + $0x18] sm:$0xff]
        %v4502 = vld [vmem:[#allocation2 + $0x20] sm:$0xff]
        %v4503 = vld [vmem:[#allocation2 + $0x28] sm:$0xff]
        %v4504 = vld [vmem:[#allocation2 + $0x30] sm:$0xff]
        %v4505 = vld [vmem:[#allocation2 + $0x38] sm:$0xff]
        %v4506 = vld [vmem:[#allocation2 + $0x40] sm:$0xff]
        %v4507 = vld [vmem:[#allocation2 + $0x48] sm:$0xff]
        %v4508 = vld [vmem:[#allocation2 + $0x50] sm:$0xff]
        %v4509 = vld [vmem:[#allocation2 + $0x58] sm:$0xff]
        %v4510 = vld [vmem:[#allocation2 + $0x60] sm:$0xff]
        %v4511 = vld [vmem:[#allocation2 + $0x68] sm:$0xff]
        %v4512 = vld [vmem:[#allocation2 + $0x70] sm:$0xff]
        %v4513 = vld [vmem:[#allocation2 + $0x78] sm:$0xff]
        %v4514 = vld [vmem:[#allocation2 + $0x80] sm:$0xff]
        %v4515 = vld [vmem:[#allocation2 + $0x88] sm:$0xff]
        %v4516 = vld [vmem:[#allocation2 + $0x90] sm:$0xff]
        %v4517 = vld [vmem:[#allocation2 + $0x98] sm:$0xff]
        %v4518 = vld [vmem:[#allocation2 + $0xa0] sm:$0x1f]
        %vm4538 = vcmask 1042432
        %v4539 = vrot.slane %v4500, 5
        %v4540 = vrot.slane %v4501, 5
        %v4541 = vsel %vm4538, %v4539, %v4540
        %v4542 = vrot.slane %v4502, 5
        %v4543 = vsel %vm4538, %v4540, %v4542
        %v4544 = vrot.slane %v4503, 5
        %v4545 = vsel %vm4538, %v4542, %v4544
        %v4546 = vrot.slane %v4504, 5
        %v4547 = vsel %vm4538, %v4544, %v4546
        %v4548 = vrot.slane %v4505, 5
        %v4549 = vsel %vm4538, %v4546, %v4548
        %v4550 = vrot.slane %v4506, 5
        %v4551 = vsel %vm4538, %v4548, %v4550
        %v4552 = vrot.slane %v4507, 5
        %v4553 = vsel %vm4538, %v4550, %v4552
        %v4554 = vrot.slane %v4508, 5
        %v4555 = vsel %vm4538, %v4552, %v4554
        %v4556 = vrot.slane %v4509, 5
        %v4557 = vsel %vm4538, %v4554, %v4556
        %v4558 = vrot.slane %v4510, 5
        %v4559 = vsel %vm4538, %v4556, %v4558
        %v4560 = vrot.slane %v4511, 5
        %v4561 = vsel %vm4538, %v4558, %v4560
        %v4562 = vrot.slane %v4512, 5
        %v4563 = vsel %vm4538, %v4560, %v4562
        %v4564 = vrot.slane %v4513, 5
        %v4565 = vsel %vm4538, %v4562, %v4564
        %v4566 = vrot.slane %v4514, 5
        %v4567 = vsel %vm4538, %v4564, %v4566
        %v4568 = vrot.slane %v4515, 5
        %v4569 = vsel %vm4538, %v4566, %v4568
        %v4570 = vrot.slane %v4516, 5
        %v4571 = vsel %vm4538, %v4568, %v4570
        %v4572 = vrot.slane %v4517, 5
        %v4573 = vsel %vm4538, %v4570, %v4572
        %v4574 = vrot.slane %v4518, 5
        %v4575 = vsel %vm4538, %v4572, %v4574
        %4594 = vst [vmem:[#allocation4 + $0x8] sm:$0xff] %v4541
        %4595 = vst [vmem:[#allocation4 + $0x20] sm:$0xff] %v4543
        %4596 = vst [vmem:[#allocation4 + $0x38] sm:$0xff] %v4545
        %4597 = vst [vmem:[#allocation4 + $0x50] sm:$0xff] %v4547
        %4598 = vst [vmem:[#allocation4 + $0x68] sm:$0xff] %v4549
        %4599 = vst [vmem:[#allocation4 + $0x80] sm:$0xff] %v4551
        %4600 = vst [vmem:[#allocation4 + $0x98] sm:$0xff] %v4553
        %4601 = vst [vmem:[#allocation4 + $0xb0] sm:$0xff] %v4555
        %4602 = vst [vmem:[#allocation4 + $0xc8] sm:$0xff] %v4557
        %4603 = vst [vmem:[#allocation4 + $0xe0] sm:$0xff] %v4559
        %4604 = vst [vmem:[#allocation4 + $0xf8] sm:$0xff] %v4561
        %4605 = vst [vmem:[#allocation4 + $0x110] sm:$0xff] %v4563
        %4606 = vst [vmem:[#allocation4 + $0x128] sm:$0xff] %v4565
        %4607 = vst [vmem:[#allocation4 + $0x140] sm:$0xff] %v4567
        %4608 = vst [vmem:[#allocation4 + $0x158] sm:$0xff] %v4569
        %4609 = vst [vmem:[#allocation4 + $0x170] sm:$0xff] %v4571
        %4610 = vst [vmem:[#allocation4 + $0x188] sm:$0xff] %v4573
        %4611 = vst [vmem:[#allocation4 + $0x1a0] sm:$0xff] %v4575
        %v4612 = vld [vmem:[#allocation2 + $0x10] sm:$0xe0]
        %v4613 = vld [vmem:[#allocation2 + $0x18] sm:$0xff]
        %v4614 = vld [vmem:[#allocation2 + $0x20] sm:$0xff]
        %v4615 = vld [vmem:[#allocation2 + $0x28] sm:$0xff]
        %v4616 = vld [vmem:[#allocation2 + $0x30] sm:$0xff]
        %v4617 = vld [vmem:[#allocation2 + $0x38] sm:$0xff]
        %v4618 = vld [vmem:[#allocation2 + $0x40] sm:$0xff]
        %v4619 = vld [vmem:[#allocation2 + $0x48] sm:$0xff]
        %v4620 = vld [vmem:[#allocation2 + $0x50] sm:$0xff]
        %v4621 = vld [vmem:[#allocation2 + $0x58] sm:$0xff]
        %v4622 = vld [vmem:[#allocation2 + $0x60] sm:$0xff]
        %v4623 = vld [vmem:[#allocation2 + $0x68] sm:$0xff]
        %v4624 = vld [vmem:[#allocation2 + $0x70] sm:$0xff]
        %v4625 = vld [vmem:[#allocation2 + $0x78] sm:$0xff]
        %v4626 = vld [vmem:[#allocation2 + $0x80] sm:$0xff]
        %v4627 = vld [vmem:[#allocation2 + $0x88] sm:$0xff]
        %v4628 = vld [vmem:[#allocation2 + $0x90] sm:$0xff]
        %v4629 = vld [vmem:[#allocation2 + $0x98] sm:$0xff]
        %v4630 = vld [vmem:[#allocation2 + $0xa0] sm:$0x3f]
        %vm4631 = vsmask.f32 2304
        %v4633 = vshrl.u32 %v4612, 16
        %v4635 = vrot.slane %v4633, 5
        %v4636 = vshll.u32 %v4612, 16
        %v4638 = vrot.slane %v4636, 6
        %v4639 = vor.u32 %v4635, %v4638
        %v4641 = vshrl.u32 %v4613, 16
        %v4643 = vrot.slane %v4641, 5
        %v4644 = vshll.u32 %v4613, 16
        %v4646 = vrot.slane %v4644, 6
        %v4647 = vor.u32 %v4643, %v4646
        %v4648 = vsel %vm4631, %v4639, %v4647
        %v4650 = vshrl.u32 %v4614, 16
        %v4652 = vrot.slane %v4650, 5
        %v4653 = vshll.u32 %v4614, 16
        %v4655 = vrot.slane %v4653, 6
        %v4656 = vor.u32 %v4652, %v4655
        %v4657 = vsel %vm4631, %v4647, %v4656
        %v4659 = vshrl.u32 %v4615, 16
        %v4661 = vrot.slane %v4659, 5
        %v4662 = vshll.u32 %v4615, 16
        %v4664 = vrot.slane %v4662, 6
        %v4665 = vor.u32 %v4661, %v4664
        %v4666 = vsel %vm4631, %v4656, %v4665
        %v4668 = vshrl.u32 %v4616, 16
        %v4670 = vrot.slane %v4668, 5
        %v4671 = vshll.u32 %v4616, 16
        %v4673 = vrot.slane %v4671, 6
        %v4674 = vor.u32 %v4670, %v4673
        %v4675 = vsel %vm4631, %v4665, %v4674
        %v4677 = vshrl.u32 %v4617, 16
        %v4679 = vrot.slane %v4677, 5
        %v4680 = vshll.u32 %v4617, 16
        %v4682 = vrot.slane %v4680, 6
        %v4683 = vor.u32 %v4679, %v4682
        %v4684 = vsel %vm4631, %v4674, %v4683
        %v4686 = vshrl.u32 %v4618, 16
        %v4688 = vrot.slane %v4686, 5
        %v4689 = vshll.u32 %v4618, 16
        %v4691 = vrot.slane %v4689, 6
        %v4692 = vor.u32 %v4688, %v4691
        %v4693 = vsel %vm4631, %v4683, %v4692
        %v4695 = vshrl.u32 %v4619, 16
        %v4697 = vrot.slane %v4695, 5
        %v4698 = vshll.u32 %v4619, 16
        %v4700 = vrot.slane %v4698, 6
        %v4701 = vor.u32 %v4697, %v4700
        %v4702 = vsel %vm4631, %v4692, %v4701
        %v4704 = vshrl.u32 %v4620, 16
        %v4706 = vrot.slane %v4704, 5
        %v4707 = vshll.u32 %v4620, 16
        %v4709 = vrot.slane %v4707, 6
        %v4710 = vor.u32 %v4706, %v4709
        %v4711 = vsel %vm4631, %v4701, %v4710
        %v4713 = vshrl.u32 %v4621, 16
        %v4715 = vrot.slane %v4713, 5
        %v4716 = vshll.u32 %v4621, 16
        %v4718 = vrot.slane %v4716, 6
        %v4719 = vor.u32 %v4715, %v4718
        %v4720 = vsel %vm4631, %v4710, %v4719
        %v4722 = vshrl.u32 %v4622, 16
        %v4724 = vrot.slane %v4722, 5
        %v4725 = vshll.u32 %v4622, 16
        %v4727 = vrot.slane %v4725, 6
        %v4728 = vor.u32 %v4724, %v4727
        %v4729 = vsel %vm4631, %v4719, %v4728
        %v4731 = vshrl.u32 %v4623, 16
        %v4733 = vrot.slane %v4731, 5
        %v4734 = vshll.u32 %v4623, 16
        %v4736 = vrot.slane %v4734, 6
        %v4737 = vor.u32 %v4733, %v4736
        %v4738 = vsel %vm4631, %v4728, %v4737
        %v4740 = vshrl.u32 %v4624, 16
        %v4742 = vrot.slane %v4740, 5
        %v4743 = vshll.u32 %v4624, 16
        %v4745 = vrot.slane %v4743, 6
        %v4746 = vor.u32 %v4742, %v4745
        %v4747 = vsel %vm4631, %v4737, %v4746
        %v4749 = vshrl.u32 %v4625, 16
        %v4751 = vrot.slane %v4749, 5
        %v4752 = vshll.u32 %v4625, 16
        %v4754 = vrot.slane %v4752, 6
        %v4755 = vor.u32 %v4751, %v4754
        %v4756 = vsel %vm4631, %v4746, %v4755
        %v4758 = vshrl.u32 %v4626, 16
        %v4760 = vrot.slane %v4758, 5
        %v4761 = vshll.u32 %v4626, 16
        %v4763 = vrot.slane %v4761, 6
        %v4764 = vor.u32 %v4760, %v4763
        %v4765 = vsel %vm4631, %v4755, %v4764
        %v4767 = vshrl.u32 %v4627, 16
        %v4769 = vrot.slane %v4767, 5
        %v4770 = vshll.u32 %v4627, 16
        %v4772 = vrot.slane %v4770, 6
        %v4773 = vor.u32 %v4769, %v4772
        %v4774 = vsel %vm4631, %v4764, %v4773
        %v4776 = vshrl.u32 %v4628, 16
        %v4778 = vrot.slane %v4776, 5
        %v4779 = vshll.u32 %v4628, 16
        %v4781 = vrot.slane %v4779, 6
        %v4782 = vor.u32 %v4778, %v4781
        %v4783 = vsel %vm4631, %v4773, %v4782
        %v4785 = vshrl.u32 %v4629, 16
        %v4787 = vrot.slane %v4785, 5
        %v4788 = vshll.u32 %v4629, 16
        %v4790 = vrot.slane %v4788, 6
        %v4791 = vor.u32 %v4787, %v4790
        %v4792 = vsel %vm4631, %v4782, %v4791
        %v4794 = vshrl.u32 %v4630, 16
        %v4796 = vrot.slane %v4794, 5
        %v4797 = vshll.u32 %v4630, 16
        %v4799 = vrot.slane %v4797, 6
        %v4800 = vor.u32 %v4796, %v4799
        %v4801 = vsel %vm4631, %v4791, %v4800
        %4820 = vst [vmem:[#allocation4 + $0x10] sm:$0xff] %v4648
        %4821 = vst [vmem:[#allocation4 + $0x28] sm:$0xff] %v4657
        %4822 = vst [vmem:[#allocation4 + $0x40] sm:$0xff] %v4666
        %4823 = vst [vmem:[#allocation4 + $0x58] sm:$0xff] %v4675
        %4824 = vst [vmem:[#allocation4 + $0x70] sm:$0xff] %v4684
        %4825 = vst [vmem:[#allocation4 + $0x88] sm:$0xff] %v4693
        %4826 = vst [vmem:[#allocation4 + $0xa0] sm:$0xff] %v4702
        %4827 = vst [vmem:[#allocation4 + $0xb8] sm:$0xff] %v4711
        %4828 = vst [vmem:[#allocation4 + $0xd0] sm:$0xff] %v4720
        %4829 = vst [vmem:[#allocation4 + $0xe8] sm:$0xff] %v4729
        %4830 = vst [vmem:[#allocation4 + $0x100] sm:$0xff] %v4738
        %4831 = vst [vmem:[#allocation4 + $0x118] sm:$0xff] %v4747
        %4832 = vst [vmem:[#allocation4 + $0x130] sm:$0xff] %v4756
        %4833 = vst [vmem:[#allocation4 + $0x148] sm:$0xff] %v4765
        %4834 = vst [vmem:[#allocation4 + $0x160] sm:$0xff] %v4774
        %4835 = vst [vmem:[#allocation4 + $0x178] sm:$0xff] %v4783
        %4836 = vst [vmem:[#allocation4 + $0x190] sm:$0xff] %v4792
        %4837 = vst [vmem:[#allocation4 + $0x1a8] sm:$0xff] %v4801
        %v4838 = vld [vmem:[#allocation4] sm:$0xff]
        %v4839 = vld [vmem:[#allocation4 + $0x8] sm:$0xff]
        %v4840 = vld [vmem:[#allocation4 + $0x10] sm:$0xff]
        %v4841 = vld [vmem:[#allocation4 + $0x18] sm:$0xff]
        %v4842 = vld [vmem:[#allocation4 + $0x20] sm:$0xff]
        %v4843 = vld [vmem:[#allocation4 + $0x28] sm:$0xff]
        %v4844 = vld [vmem:[#allocation4 + $0x30] sm:$0xff]
        %v4845 = vld [vmem:[#allocation4 + $0x38] sm:$0xff]
        %v4846 = vld [vmem:[#allocation4 + $0x40] sm:$0xff]
        %v4847 = vld [vmem:[#allocation4 + $0x48] sm:$0xff]
        %v4848 = vld [vmem:[#allocation4 + $0x50] sm:$0xff]
        %v4849 = vld [vmem:[#allocation4 + $0x58] sm:$0xff]
        %v4850 = vld [vmem:[#allocation4 + $0x60] sm:$0xff]
        %v4851 = vld [vmem:[#allocation4 + $0x68] sm:$0xff]
        %v4852 = vld [vmem:[#allocation4 + $0x70] sm:$0xff]
        %v4853 = vld [vmem:[#allocation4 + $0x78] sm:$0xff]
        %v4854 = vld [vmem:[#allocation4 + $0x80] sm:$0xff]
        %v4855 = vld [vmem:[#allocation4 + $0x88] sm:$0xff]
        %v4856 = vld [vmem:[#allocation4 + $0x90] sm:$0xff]
        %v4857 = vld [vmem:[#allocation4 + $0x98] sm:$0xff]
        %v4858 = vld [vmem:[#allocation4 + $0xa0] sm:$0xff]
        %v4859 = vld [vmem:[#allocation4 + $0xa8] sm:$0xff]
        %v4860 = vld [vmem:[#allocation4 + $0xb0] sm:$0xff]
        %v4861 = vld [vmem:[#allocation4 + $0xb8] sm:$0xff]
        %v4862 = vld [vmem:[#allocation4 + $0xc0] sm:$0xff]
        %v4863 = vld [vmem:[#allocation4 + $0xc8] sm:$0xff]
        %v4864 = vld [vmem:[#allocation4 + $0xd0] sm:$0xff]
        %v4865 = vld [vmem:[#allocation4 + $0xd8] sm:$0xff]
        %v4866 = vld [vmem:[#allocation4 + $0xe0] sm:$0xff]
        %v4867 = vld [vmem:[#allocation4 + $0xe8] sm:$0xff]
        %v4868 = vld [vmem:[#allocation4 + $0xf0] sm:$0xff]
        %v4869 = vld [vmem:[#allocation4 + $0xf8] sm:$0xff]
        %v4870 = vld [vmem:[#allocation4 + $0x100] sm:$0xff]
        %v4871 = vld [vmem:[#allocation4 + $0x108] sm:$0xff]
        %v4872 = vld [vmem:[#allocation4 + $0x110] sm:$0xff]
        %v4873 = vld [vmem:[#allocation4 + $0x118] sm:$0xff]
        %v4874 = vld [vmem:[#allocation4 + $0x120] sm:$0xff]
        %v4875 = vld [vmem:[#allocation4 + $0x128] sm:$0xff]
        %v4876 = vld [vmem:[#allocation4 + $0x130] sm:$0xff]
        %v4877 = vld [vmem:[#allocation4 + $0x138] sm:$0xff]
        %v4878 = vld [vmem:[#allocation4 + $0x140] sm:$0xff]
        %v4879 = vld [vmem:[#allocation4 + $0x148] sm:$0xff]
        %v4880 = vld [vmem:[#allocation4 + $0x150] sm:$0xff]
        %v4881 = vld [vmem:[#allocation4 + $0x158] sm:$0xff]
        %v4882 = vld [vmem:[#allocation4 + $0x160] sm:$0xff]
        %v4883 = vld [vmem:[#allocation4 + $0x168] sm:$0xff]
        %v4884 = vld [vmem:[#allocation4 + $0x170] sm:$0xff]
        %v4885 = vld [vmem:[#allocation4 + $0x178] sm:$0xff]
        %v4886 = vld [vmem:[#allocation4 + $0x180] sm:$0xff]
        %v4887 = vld [vmem:[#allocation4 + $0x188] sm:$0xff]
        %v4888 = vld [vmem:[#allocation4 + $0x190] sm:$0xff]
        %v4889 = vld [vmem:[#allocation4 + $0x198] sm:$0xff]
        %v4890 = vld [vmem:[#allocation4 + $0x1a0] sm:$0xff]
        %v4891 = vld [vmem:[#allocation4 + $0x1a8] sm:$0xff]
        %s4892 = scalar_lea.vmem [#allocation17], 384
        %v4893 = vld [vmem:[%s4892] sm:$0xf]
        %v4894 = vld [vmem:[%s4892 + $0x4] sm:$0xf]
        %v4895 = vld [vmem:[%s4892 + $0x8] sm:$0xf]
        %v4896 = vld [vmem:[%s4892 + $0xc] sm:$0xf]
        %v4897 = vld [vmem:[%s4892 + $0x10] sm:$0xf]
        %v4898 = vld [vmem:[%s4892 + $0x14] sm:$0xf]
        %v4899 = vld [vmem:[%s4892 + $0x18] sm:$0xf]
        %v4900 = vld [vmem:[%s4892 + $0x1c] sm:$0xf]
        %v4901 = vld [vmem:[%s4892 + $0x20] sm:$0xf]
        %v4902 = vld [vmem:[%s4892 + $0x24] sm:$0xf]
        %v4903 = vld [vmem:[%s4892 + $0x28] sm:$0xf]
        %v4904 = vld [vmem:[%s4892 + $0x2c] sm:$0xf]
        %v4905 = vld [vmem:[%s4892 + $0x30] sm:$0xf]
        %v4906 = vld [vmem:[%s4892 + $0x34] sm:$0xf]
        %v4907 = vld [vmem:[%s4892 + $0x38] sm:$0xf]
        %v4908 = vld [vmem:[%s4892 + $0x3c] sm:$0xf]
        %v4909 = vld [vmem:[%s4892 + $0x40] sm:$0xf]
        %v4910 = vld [vmem:[%s4892 + $0x44] sm:$0xf]
        %v4911 = vld [vmem:[%s4892 + $0x48] sm:$0xf]
        %v4912 = vld [vmem:[%s4892 + $0x4c] sm:$0xf]
        %v4913 = vld [vmem:[%s4892 + $0x50] sm:$0xf]
        %v4914 = vld [vmem:[%s4892 + $0x54] sm:$0xf]
        %v4915 = vld [vmem:[%s4892 + $0x58] sm:$0xf]
        %v4916 = vld [vmem:[%s4892 + $0x5c] sm:$0xf]
        %v4917 = vld [vmem:[%s4892 + $0x60] sm:$0xf]
        %v4918 = vld [vmem:[%s4892 + $0x64] sm:$0xf]
        %v4919 = vld [vmem:[%s4892 + $0x68] sm:$0xf]
        %v4920 = vld [vmem:[%s4892 + $0x6c] sm:$0xf]
        %v4921 = vld [vmem:[%s4892 + $0x70] sm:$0xf]
        %v4922 = vld [vmem:[%s4892 + $0x74] sm:$0xf]
        %v4923 = vld [vmem:[%s4892 + $0x78] sm:$0xf]
        %v4924 = vld [vmem:[%s4892 + $0x7c] sm:$0xf]
        %v4925 = vld [vmem:[%s4892 + $0x80] sm:$0xf]
        %v4926 = vld [vmem:[%s4892 + $0x84] sm:$0xf]
        %v4927 = vld [vmem:[%s4892 + $0x88] sm:$0xf]
        %v4928 = vld [vmem:[%s4892 + $0x8c] sm:$0xf]
        %v4929 = vld [vmem:[%s4892 + $0x90] sm:$0xf]
        %v4930 = vld [vmem:[%s4892 + $0x94] sm:$0xf]
        %v4931 = vld [vmem:[%s4892 + $0x98] sm:$0xf]
        %v4932 = vld [vmem:[%s4892 + $0x9c] sm:$0xf]
        %v4933 = vld [vmem:[%s4892 + $0xa0] sm:$0xf]
        %v4934 = vld [vmem:[%s4892 + $0xa4] sm:$0xf]
        %v4935 = vld [vmem:[%s4892 + $0xa8] sm:$0xf]
        %v4936 = vld [vmem:[%s4892 + $0xac] sm:$0xf]
        %v4937 = vld [vmem:[%s4892 + $0xb0] sm:$0xf]
        %v4938 = vld [vmem:[%s4892 + $0xb4] sm:$0xf]
        %v4939 = vld [vmem:[%s4892 + $0xb8] sm:$0xf]
        %v4940 = vld [vmem:[%s4892 + $0xbc] sm:$0xf]
        %v4989 = vunpack.c.l.b16 %v4893
        %v4990 = vunpack.c.l.b16 %v4894
        %v4991 = vunpack.c.l.b16 %v4895
        %v4992 = vunpack.c.l.b16 %v4896
        %v4993 = vunpack.c.l.b16 %v4897
        %v4994 = vunpack.c.l.b16 %v4898
        %v4995 = vunpack.c.l.b16 %v4899
        %v4996 = vunpack.c.l.b16 %v4900
        %v4997 = vunpack.c.l.b16 %v4901
        %v4998 = vunpack.c.l.b16 %v4902
        %v4999 = vunpack.c.l.b16 %v4903
        %v5000 = vunpack.c.l.b16 %v4904
        %v5001 = vunpack.c.l.b16 %v4905
        %v5002 = vunpack.c.l.b16 %v4906
        %v5003 = vunpack.c.l.b16 %v4907
        %v5004 = vunpack.c.l.b16 %v4908
        %v5005 = vunpack.c.l.b16 %v4909
        %v5006 = vunpack.c.l.b16 %v4910
        %v5007 = vunpack.c.l.b16 %v4911
        %v5008 = vunpack.c.l.b16 %v4912
        %v5009 = vunpack.c.l.b16 %v4913
        %v5010 = vunpack.c.l.b16 %v4914
        %v5011 = vunpack.c.l.b16 %v4915
        %v5012 = vunpack.c.l.b16 %v4916
        %v5013 = vunpack.c.l.b16 %v4917
        %v5014 = vunpack.c.l.b16 %v4918
        %v5015 = vunpack.c.l.b16 %v4919
        %v5016 = vunpack.c.l.b16 %v4920
        %v5017 = vunpack.c.l.b16 %v4921
        %v5018 = vunpack.c.l.b16 %v4922
        %v5019 = vunpack.c.l.b16 %v4923
        %v5020 = vunpack.c.l.b16 %v4924
        %v5021 = vunpack.c.l.b16 %v4925
        %v5022 = vunpack.c.l.b16 %v4926
        %v5023 = vunpack.c.l.b16 %v4927
        %v5024 = vunpack.c.l.b16 %v4928
        %v5025 = vunpack.c.l.b16 %v4929
        %v5026 = vunpack.c.l.b16 %v4930
        %v5027 = vunpack.c.l.b16 %v4931
        %v5028 = vunpack.c.l.b16 %v4932
        %v5029 = vunpack.c.l.b16 %v4933
        %v5030 = vunpack.c.l.b16 %v4934
        %v5031 = vunpack.c.l.b16 %v4935
        %v5032 = vunpack.c.l.b16 %v4936
        %v5033 = vunpack.c.l.b16 %v4937
        %v5034 = vunpack.c.l.b16 %v4938
        %v5035 = vunpack.c.l.b16 %v4939
        %v5036 = vunpack.c.l.b16 %v4940
        %v5037 = vpack.c.b16 %v4990, %v4989
        %v5038 = vpack.c.b16 %v4992, %v4991
        %v5039 = vpack.c.b16 %v4994, %v4993
        %v5040 = vpack.c.b16 %v4996, %v4995
        %v5041 = vpack.c.b16 %v4998, %v4997
        %v5042 = vpack.c.b16 %v5000, %v4999
        %v5043 = vpack.c.b16 %v5002, %v5001
        %v5044 = vpack.c.b16 %v5004, %v5003
        %v5045 = vpack.c.b16 %v5006, %v5005
        %v5046 = vpack.c.b16 %v5008, %v5007
        %v5047 = vpack.c.b16 %v5010, %v5009
        %v5048 = vpack.c.b16 %v5012, %v5011
        %v5049 = vpack.c.b16 %v5014, %v5013
        %v5050 = vpack.c.b16 %v5016, %v5015
        %v5051 = vpack.c.b16 %v5018, %v5017
        %v5052 = vpack.c.b16 %v5020, %v5019
        %v5053 = vpack.c.b16 %v5022, %v5021
        %v5054 = vpack.c.b16 %v5024, %v5023
        %v5055 = vpack.c.b16 %v5026, %v5025
        %v5056 = vpack.c.b16 %v5028, %v5027
        %v5057 = vpack.c.b16 %v5030, %v5029
        %v5058 = vpack.c.b16 %v5032, %v5031
        %v5059 = vpack.c.b16 %v5034, %v5033
        %v5060 = vpack.c.b16 %v5036, %v5035
        %5085 = vmatprep.subr.bf16.mxu0 0
        %5086 = vmatpush1.bf16.msra.mxu0 %v5037
        %5087 = vmatprep.subr.bf16.mxu0 0
        %5088 = vmatpush1.bf16.msra.mxu0 %v5038
        %5089 = vmatprep.subr.bf16.mxu0 0
        %5090 = vmatpush1.bf16.msra.mxu0 %v5039
        %5091 = vmatprep.subr.bf16.mxu0 0
        %5092 = vmatpush1.bf16.msra.mxu0 %v5040
        %5093 = vmatprep.subr.bf16.mxu0 0
        %5094 = vmatpush1.bf16.msra.mxu0 %v5041
        %5095 = vmatprep.subr.bf16.mxu0 0
        %5096 = vmatpush1.bf16.msra.mxu0 %v5042
        %5097 = vmatprep.subr.bf16.mxu0 0
        %5098 = vmatpush1.bf16.msra.mxu0 %v5043
        %5099 = vmatprep.subr.bf16.mxu0 0
        %5100 = vmatpush1.bf16.msra.mxu0 %v5044
        %5101 = vmatprep.subr.bf16.mxu0 0
        %5102 = vmatpush1.bf16.msra.mxu0 %v5045
        %5103 = vmatprep.subr.bf16.mxu0 0
        %5104 = vmatpush1.bf16.msra.mxu0 %v5046
        %5105 = vmatprep.subr.bf16.mxu0 0
        %5106 = vmatpush1.bf16.msra.mxu0 %v5047
        %5107 = vmatprep.subr.bf16.mxu0 0
        %5108 = vmatpush1.bf16.msra.mxu0 %v5048
        %5109 = vmatprep.subr.bf16.mxu0 0
        %5110 = vmatpush1.bf16.msra.mxu0 %v5049
        %5111 = vmatprep.subr.bf16.mxu0 0
        %5112 = vmatpush1.bf16.msra.mxu0 %v5050
        %5113 = vmatprep.subr.bf16.mxu0 0
        %5114 = vmatpush1.bf16.msra.mxu0 %v5051
        %5115 = vmatprep.subr.bf16.mxu0 0
        %5116 = vmatpush1.bf16.msra.mxu0 %v5052
        %5117 = vmatprep.mubr.bf16.mxu0 %v4839
        %5118 = vmatmul.mubr.bf16.gmra.mrb[0].mxu0 %v4838
        %v5119 = vpop.f32.mrb[0].mxu0
        %v5120 = vadd.f32 0.0, %v5119
        %v5121 = vpop.f32.mrb[0].mxu0
        %v5122 = vpop.f32.mrb[0].mxu0
        %v5123 = vadd.f32 0.0, %v5122
        %v5124 = vpop.f32.mrb[0].mxu0
        %5125 = vmatprep.mubr.bf16.mxu0 %v4842
        %5126 = vmatmul.mubr.bf16.gmra.mrb[0].mxu0 %v4841
        %v5127 = vpop.f32.mrb[0].mxu0
        %v5128 = vadd.f32 0.0, %v5127
        %v5129 = vpop.f32.mrb[0].mxu0
        %v5130 = vpop.f32.mrb[0].mxu0
        %v5131 = vadd.f32 0.0, %v5130
        %v5132 = vpop.f32.mrb[0].mxu0
        %5133 = vmatprep.mubr.bf16.mxu0 %v4845
        %5134 = vmatmul.mubr.bf16.gmra.mrb[0].mxu0 %v4844
        %v5135 = vpop.f32.mrb[0].mxu0
        %v5136 = vadd.f32 0.0, %v5135
        %v5137 = vpop.f32.mrb[0].mxu0
        %v5138 = vpop.f32.mrb[0].mxu0
        %v5139 = vadd.f32 0.0, %v5138
        %v5140 = vpop.f32.mrb[0].mxu0
        %5141 = vmatprep.mubr.bf16.mxu0 %v4848
        %5142 = vmatmul.mubr.bf16.gmra.mrb[0].mxu0 %v4847
        %v5143 = vpop.f32.mrb[0].mxu0
        %v5144 = vadd.f32 0.0, %v5143
        %v5145 = vpop.f32.mrb[0].mxu0
        %v5146 = vpop.f32.mrb[0].mxu0
        %v5147 = vadd.f32 0.0, %v5146
        %v5148 = vpop.f32.mrb[0].mxu0
        %5149 = vmatprep.mubr.bf16.mxu0 %v4851
        %5150 = vmatmul.mubr.bf16.gmra.mrb[0].mxu0 %v4850
        %v5151 = vpop.f32.mrb[0].mxu0
        %v5152 = vadd.f32 0.0, %v5151
        %v5153 = vpop.f32.mrb[0].mxu0
        %v5154 = vpop.f32.mrb[0].mxu0
        %v5155 = vadd.f32 0.0, %v5154
        %v5156 = vpop.f32.mrb[0].mxu0
        %5157 = vmatprep.mubr.bf16.mxu0 %v4854
        %5158 = vmatmul.mubr.bf16.gmra.mrb[0].mxu0 %v4853
        %v5159 = vpop.f32.mrb[0].mxu0
        %v5160 = vadd.f32 0.0, %v5159
        %v5161 = vpop.f32.mrb[0].mxu0
        %v5162 = vpop.f32.mrb[0].mxu0
        %v5163 = vadd.f32 0.0, %v5162
        %v5164 = vpop.f32.mrb[0].mxu0
        %5165 = vmatprep.mubr.bf16.mxu0 %v4857
        %5166 = vmatmul.mubr.bf16.gmra.mrb[0].mxu0 %v4856
        %v5167 = vpop.f32.mrb[0].mxu0
        %v5168 = vadd.f32 0.0, %v5167
        %v5169 = vpop.f32.mrb[0].mxu0
        %v5170 = vpop.f32.mrb[0].mxu0
        %v5171 = vadd.f32 0.0, %v5170
        %v5172 = vpop.f32.mrb[0].mxu0
        %5173 = vmatprep.mubr.bf16.mxu0 %v4860
        %5174 = vmatmul.mubr.bf16.gmra.mrb[0].mxu0 %v4859
        %v5175 = vpop.f32.mrb[0].mxu0
        %v5176 = vadd.f32 0.0, %v5175
        %v5177 = vpop.f32.mrb[0].mxu0
        %v5178 = vpop.f32.mrb[0].mxu0
        %v5179 = vadd.f32 0.0, %v5178
        %v5180 = vpop.f32.mrb[0].mxu0
        %5181 = vmatprep.mubr.bf16.mxu0 %v4863
        %5182 = vmatmul.mubr.bf16.gmra.mrb[0].mxu0 %v4862
        %v5183 = vpop.f32.mrb[0].mxu0
        %v5184 = vadd.f32 0.0, %v5183
        %v5185 = vpop.f32.mrb[0].mxu0
        %v5186 = vpop.f32.mrb[0].mxu0
        %v5187 = vadd.f32 0.0, %v5186
        %v5188 = vpop.f32.mrb[0].mxu0
        %5189 = vmatprep.mubr.bf16.mxu0 %v4866
        %5190 = vmatmul.mubr.bf16.gmra.mrb[0].mxu0 %v4865
        %v5191 = vpop.f32.mrb[0].mxu0
        %v5192 = vadd.f32 0.0, %v5191
        %v5193 = vpop.f32.mrb[0].mxu0
        %v5194 = vpop.f32.mrb[0].mxu0
        %v5195 = vadd.f32 0.0, %v5194
        %v5196 = vpop.f32.mrb[0].mxu0
        %5197 = vmatprep.mubr.bf16.mxu0 %v4869
        %5198 = vmatmul.mubr.bf16.gmra.mrb[0].mxu0 %v4868
        %v5199 = vpop.f32.mrb[0].mxu0
        %v5200 = vadd.f32 0.0, %v5199
        %v5201 = vpop.f32.mrb[0].mxu0
        %v5202 = vpop.f32.mrb[0].mxu0
        %v5203 = vadd.f32 0.0, %v5202
        %v5204 = vpop.f32.mrb[0].mxu0
        %5205 = vmatprep.mubr.bf16.mxu0 %v4872
        %5206 = vmatmul.mubr.bf16.gmra.mrb[0].mxu0 %v4871
        %v5207 = vpop.f32.mrb[0].mxu0
        %v5208 = vadd.f32 0.0, %v5207
        %v5209 = vpop.f32.mrb[0].mxu0
        %v5210 = vpop.f32.mrb[0].mxu0
        %v5211 = vadd.f32 0.0, %v5210
        %v5212 = vpop.f32.mrb[0].mxu0
        %5213 = vmatprep.mubr.bf16.mxu0 %v4875
        %5214 = vmatmul.mubr.bf16.gmra.mrb[0].mxu0 %v4874
        %v5215 = vpop.f32.mrb[0].mxu0
        %v5216 = vadd.f32 0.0, %v5215
        %v5217 = vpop.f32.mrb[0].mxu0
        %v5218 = vpop.f32.mrb[0].mxu0
        %v5219 = vadd.f32 0.0, %v5218
        %v5220 = vpop.f32.mrb[0].mxu0
        %5221 = vmatprep.mubr.bf16.mxu0 %v4878
        %5222 = vmatmul.mubr.bf16.gmra.mrb[0].mxu0 %v4877
        %v5223 = vpop.f32.mrb[0].mxu0
        %v5224 = vadd.f32 0.0, %v5223
        %v5225 = vpop.f32.mrb[0].mxu0
        %v5226 = vpop.f32.mrb[0].mxu0
        %v5227 = vadd.f32 0.0, %v5226
        %v5228 = vpop.f32.mrb[0].mxu0
        %5229 = vmatprep.mubr.bf16.mxu0 %v4881
        %5230 = vmatmul.mubr.bf16.gmra.mrb[0].mxu0 %v4880
        %v5231 = vpop.f32.mrb[0].mxu0
        %v5232 = vadd.f32 0.0, %v5231
        %v5233 = vpop.f32.mrb[0].mxu0
        %v5234 = vpop.f32.mrb[0].mxu0
        %v5235 = vadd.f32 0.0, %v5234
        %v5236 = vpop.f32.mrb[0].mxu0
        %5237 = vmatprep.mubr.bf16.mxu0 %v4884
        %5238 = vmatmul.mubr.bf16.gmra.mrb[0].mxu0 %v4883
        %v5239 = vpop.f32.mrb[0].mxu0
        %v5240 = vadd.f32 0.0, %v5239
        %v5241 = vpop.f32.mrb[0].mxu0
        %v5242 = vpop.f32.mrb[0].mxu0
        %v5243 = vadd.f32 0.0, %v5242
        %v5244 = vpop.f32.mrb[0].mxu0
        %5245 = vmatprep.mubr.bf16.mxu0 %v4887
        %5246 = vmatmul.mubr.bf16.gmra.mrb[0].mxu0 %v4886
        %v5247 = vpop.f32.mrb[0].mxu0
        %v5248 = vadd.f32 0.0, %v5247
        %v5249 = vpop.f32.mrb[0].mxu0
        %v5250 = vpop.f32.mrb[0].mxu0
        %v5251 = vadd.f32 0.0, %v5250
        %v5252 = vpop.f32.mrb[0].mxu0
        %5253 = vmatprep.mubr.bf16.mxu0 %v4890
        %5254 = vmatmul.mubr.bf16.gmra.mrb[0].mxu0 %v4889
        %v5255 = vpop.f32.mrb[0].mxu0
        %v5256 = vadd.f32 0.0, %v5255
        %v5257 = vpop.f32.mrb[0].mxu0
        %v5258 = vpop.f32.mrb[0].mxu0
        %v5259 = vadd.f32 0.0, %v5258
        %v5260 = vpop.f32.mrb[0].mxu0
        %5261 = vdwg.mxu0
        %5262 = vmatprep.subr.bf16.mxu0 0
        %5263 = vmatpush1.bf16.msra.mxu0 %v5053
        %5264 = vmatprep.subr.bf16.mxu0 0
        %5265 = vmatpush1.bf16.msra.mxu0 %v5054
        %5266 = vmatprep.subr.bf16.mxu0 0
        %5267 = vmatpush1.bf16.msra.mxu0 %v5055
        %5268 = vmatprep.subr.bf16.mxu0 0
        %5269 = vmatpush1.bf16.msra.mxu0 %v5056
        %5270 = vmatprep.subr.bf16.mxu0 0
        %5271 = vmatpush1.bf16.msra.mxu0 %v5057
        %5272 = vmatprep.subr.bf16.mxu0 0
        %5273 = vmatpush1.bf16.msra.mxu0 %v5058
        %5274 = vmatprep.subr.bf16.mxu0 0
        %5275 = vmatpush1.bf16.msra.mxu0 %v5059
        %5276 = vmatprep.subr.bf16.mxu0 0
        %5277 = vmatpush1.bf16.msra.mxu0 %v5060
        %5278 = vmatprep.subr.bf16.mxu0 0
        %5279 = vmatpush1.bf16.msra.mxu0 0
        %5280 = vmatprep.subr.bf16.mxu0 0
        %5281 = vmatpush1.bf16.msra.mxu0 0
        %5282 = vmatprep.subr.bf16.mxu0 0
        %5283 = vmatpush1.bf16.msra.mxu0 0
        %5284 = vmatprep.subr.bf16.mxu0 0
        %5285 = vmatpush1.bf16.msra.mxu0 0
        %5286 = vmatprep.subr.bf16.mxu0 0
        %5287 = vmatpush1.bf16.msra.mxu0 0
        %5288 = vmatprep.subr.bf16.mxu0 0
        %5289 = vmatpush1.bf16.msra.mxu0 0
        %5290 = vmatprep.subr.bf16.mxu0 0
        %5291 = vmatpush1.bf16.msra.mxu0 0
        %5292 = vmatprep.subr.bf16.mxu0 0
        %5293 = vmatpush1.bf16.msra.mxu0 0
        %5294 = vmatprep.mubr.bf16.mxu0 0
        %5295 = vmatmul.mubr.bf16.gmra.mrb[0].mxu0 %v4840
        %v5296 = vpop.f32.mrb[0].mxu0
        %v5297 = vadd.f32 %v5120, %v5296
        %v5298 = vpop.f32.mrb[0].mxu0
        %v5299 = vpop.f32.mrb[0].mxu0
        %v5300 = vadd.f32 %v5123, %v5299
        %v5301 = vpop.f32.mrb[0].mxu0
        %5302 = vmatprep.mubr.bf16.mxu0 0
        %5303 = vmatmul.mubr.bf16.gmra.mrb[0].mxu0 %v4843
        %v5304 = vpop.f32.mrb[0].mxu0
        %v5305 = vadd.f32 %v5128, %v5304
        %v5306 = vpop.f32.mrb[0].mxu0
        %v5307 = vpop.f32.mrb[0].mxu0
        %v5308 = vadd.f32 %v5131, %v5307
        %v5309 = vpop.f32.mrb[0].mxu0
        %5310 = vmatprep.mubr.bf16.mxu0 0
        %5311 = vmatmul.mubr.bf16.gmra.mrb[0].mxu0 %v4846
        %v5312 = vpop.f32.mrb[0].mxu0
        %v5313 = vadd.f32 %v5136, %v5312
        %v5314 = vpop.f32.mrb[0].mxu0
        %v5315 = vpop.f32.mrb[0].mxu0
        %v5316 = vadd.f32 %v5139, %v5315
        %v5317 = vpop.f32.mrb[0].mxu0
        %5318 = vmatprep.mubr.bf16.mxu0 0
        %5319 = vmatmul.mubr.bf16.gmra.mrb[0].mxu0 %v4849
        %v5320 = vpop.f32.mrb[0].mxu0
        %v5321 = vadd.f32 %v5144, %v5320
        %v5322 = vpop.f32.mrb[0].mxu0
        %v5323 = vpop.f32.mrb[0].mxu0
        %v5324 = vadd.f32 %v5147, %v5323
        %v5325 = vpop.f32.mrb[0].mxu0
        %5326 = vmatprep.mubr.bf16.mxu0 0
        %5327 = vmatmul.mubr.bf16.gmra.mrb[0].mxu0 %v4852
        %v5328 = vpop.f32.mrb[0].mxu0
        %v5329 = vadd.f32 %v5152, %v5328
        %v5330 = vpop.f32.mrb[0].mxu0
        %v5331 = vpop.f32.mrb[0].mxu0
        %v5332 = vadd.f32 %v5155, %v5331
        %v5333 = vpop.f32.mrb[0].mxu0
        %5334 = vmatprep.mubr.bf16.mxu0 0
        %5335 = vmatmul.mubr.bf16.gmra.mrb[0].mxu0 %v4855
        %v5336 = vpop.f32.mrb[0].mxu0
        %v5337 = vadd.f32 %v5160, %v5336
        %v5338 = vpop.f32.mrb[0].mxu0
        %v5339 = vpop.f32.mrb[0].mxu0
        %v5340 = vadd.f32 %v5163, %v5339
        %v5341 = vpop.f32.mrb[0].mxu0
        %5342 = vmatprep.mubr.bf16.mxu0 0
        %5343 = vmatmul.mubr.bf16.gmra.mrb[0].mxu0 %v4858
        %v5344 = vpop.f32.mrb[0].mxu0
        %v5345 = vadd.f32 %v5168, %v5344
        %v5346 = vpop.f32.mrb[0].mxu0
        %v5347 = vpop.f32.mrb[0].mxu0
        %v5348 = vadd.f32 %v5171, %v5347
        %v5349 = vpop.f32.mrb[0].mxu0
        %5350 = vmatprep.mubr.bf16.mxu0 0
        %5351 = vmatmul.mubr.bf16.gmra.mrb[0].mxu0 %v4861
        %v5352 = vpop.f32.mrb[0].mxu0
        %v5353 = vadd.f32 %v5176, %v5352
        %v5354 = vpop.f32.mrb[0].mxu0
        %v5355 = vpop.f32.mrb[0].mxu0
        %v5356 = vadd.f32 %v5179, %v5355
        %v5357 = vpop.f32.mrb[0].mxu0
        %5358 = vmatprep.mubr.bf16.mxu0 0
        %5359 = vmatmul.mubr.bf16.gmra.mrb[0].mxu0 %v4864
        %v5360 = vpop.f32.mrb[0].mxu0
        %v5361 = vadd.f32 %v5184, %v5360
        %v5362 = vpop.f32.mrb[0].mxu0
        %v5363 = vpop.f32.mrb[0].mxu0
        %v5364 = vadd.f32 %v5187, %v5363
        %v5365 = vpop.f32.mrb[0].mxu0
        %5366 = vmatprep.mubr.bf16.mxu0 0
        %5367 = vmatmul.mubr.bf16.gmra.mrb[0].mxu0 %v4867
        %v5368 = vpop.f32.mrb[0].mxu0
        %v5369 = vadd.f32 %v5192, %v5368
        %v5370 = vpop.f32.mrb[0].mxu0
        %v5371 = vpop.f32.mrb[0].mxu0
        %v5372 = vadd.f32 %v5195, %v5371
        %v5373 = vpop.f32.mrb[0].mxu0
        %5374 = vmatprep.mubr.bf16.mxu0 0
        %5375 = vmatmul.mubr.bf16.gmra.mrb[0].mxu0 %v4870
        %v5376 = vpop.f32.mrb[0].mxu0
        %v5377 = vadd.f32 %v5200, %v5376
        %v5378 = vpop.f32.mrb[0].mxu0
        %v5379 = vpop.f32.mrb[0].mxu0
        %v5380 = vadd.f32 %v5203, %v5379
        %v5381 = vpop.f32.mrb[0].mxu0
        %5382 = vmatprep.mubr.bf16.mxu0 0
        %5383 = vmatmul.mubr.bf16.gmra.mrb[0].mxu0 %v4873
        %v5384 = vpop.f32.mrb[0].mxu0
        %v5385 = vadd.f32 %v5208, %v5384
        %v5386 = vpop.f32.mrb[0].mxu0
        %v5387 = vpop.f32.mrb[0].mxu0
        %v5388 = vadd.f32 %v5211, %v5387
        %v5389 = vpop.f32.mrb[0].mxu0
        %5390 = vmatprep.mubr.bf16.mxu0 0
        %5391 = vmatmul.mubr.bf16.gmra.mrb[0].mxu0 %v4876
        %v5392 = vpop.f32.mrb[0].mxu0
        %v5393 = vadd.f32 %v5216, %v5392
        %v5394 = vpop.f32.mrb[0].mxu0
        %v5395 = vpop.f32.mrb[0].mxu0
        %v5396 = vadd.f32 %v5219, %v5395
        %v5397 = vpop.f32.mrb[0].mxu0
        %5398 = vmatprep.mubr.bf16.mxu0 0
        %5399 = vmatmul.mubr.bf16.gmra.mrb[0].mxu0 %v4879
        %v5400 = vpop.f32.mrb[0].mxu0
        %v5401 = vadd.f32 %v5224, %v5400
        %v5402 = vpop.f32.mrb[0].mxu0
        %v5403 = vpop.f32.mrb[0].mxu0
        %v5404 = vadd.f32 %v5227, %v5403
        %v5405 = vpop.f32.mrb[0].mxu0
        %5406 = vmatprep.mubr.bf16.mxu0 0
        %5407 = vmatmul.mubr.bf16.gmra.mrb[0].mxu0 %v4882
        %v5408 = vpop.f32.mrb[0].mxu0
        %v5409 = vadd.f32 %v5232, %v5408
        %v5410 = vpop.f32.mrb[0].mxu0
        %v5411 = vpop.f32.mrb[0].mxu0
        %v5412 = vadd.f32 %v5235, %v5411
        %v5413 = vpop.f32.mrb[0].mxu0
        %5414 = vmatprep.mubr.bf16.mxu0 0
        %5415 = vmatmul.mubr.bf16.gmra.mrb[0].mxu0 %v4885
        %v5416 = vpop.f32.mrb[0].mxu0
        %v5417 = vadd.f32 %v5240, %v5416
        %v5418 = vpop.f32.mrb[0].mxu0
        %v5419 = vpop.f32.mrb[0].mxu0
        %v5420 = vadd.f32 %v5243, %v5419
        %v5421 = vpop.f32.mrb[0].mxu0
        %5422 = vmatprep.mubr.bf16.mxu0 0
        %5423 = vmatmul.mubr.bf16.gmra.mrb[0].mxu0 %v4888
        %v5424 = vpop.f32.mrb[0].mxu0
        %v5425 = vadd.f32 %v5248, %v5424
        %v5426 = vpop.f32.mrb[0].mxu0
        %v5427 = vpop.f32.mrb[0].mxu0
        %v5428 = vadd.f32 %v5251, %v5427
        %v5429 = vpop.f32.mrb[0].mxu0
        %5430 = vmatprep.mubr.bf16.mxu0 0
        %5431 = vmatmul.mubr.bf16.gmra.mrb[0].mxu0 %v4891
        %v5432 = vpop.f32.mrb[0].mxu0
        %v5433 = vadd.f32 %v5256, %v5432
        %v5434 = vpop.f32.mrb[0].mxu0
        %v5435 = vpop.f32.mrb[0].mxu0
        %v5436 = vadd.f32 %v5259, %v5435
        %v5437 = vpop.f32.mrb[0].mxu0
        %5438 = vdwg.mxu0
        %v5439 = vadd.f32 %v4133, %v5297
        %v5440 = vadd.f32 %v4136, %v5300
        %v5441 = vadd.f32 %v4141, %v5305
        %v5442 = vadd.f32 %v4144, %v5308
        %v5443 = vadd.f32 %v4149, %v5313
        %v5444 = vadd.f32 %v4152, %v5316
        %v5445 = vadd.f32 %v4157, %v5321
        %v5446 = vadd.f32 %v4160, %v5324
        %v5447 = vadd.f32 %v4165, %v5329
        %v5448 = vadd.f32 %v4168, %v5332
        %v5449 = vadd.f32 %v4173, %v5337
        %v5450 = vadd.f32 %v4176, %v5340
        %v5451 = vadd.f32 %v4181, %v5345
        %v5452 = vadd.f32 %v4184, %v5348
        %v5453 = vadd.f32 %v4189, %v5353
        %v5454 = vadd.f32 %v4192, %v5356
        %v5455 = vadd.f32 %v4197, %v5361
        %v5456 = vadd.f32 %v4200, %v5364
        %v5457 = vadd.f32 %v4205, %v5369
        %v5458 = vadd.f32 %v4208, %v5372
        %v5459 = vadd.f32 %v4213, %v5377
        %v5460 = vadd.f32 %v4216, %v5380
        %v5461 = vadd.f32 %v4221, %v5385
        %v5462 = vadd.f32 %v4224, %v5388
        %v5463 = vadd.f32 %v4229, %v5393
        %v5464 = vadd.f32 %v4232, %v5396
        %v5465 = vadd.f32 %v4237, %v5401
        %v5466 = vadd.f32 %v4240, %v5404
        %v5467 = vadd.f32 %v4245, %v5409
        %v5468 = vadd.f32 %v4248, %v5412
        %v5469 = vadd.f32 %v4253, %v5417
        %v5470 = vadd.f32 %v4256, %v5420
        %v5471 = vadd.f32 %v4261, %v5425
        %v5472 = vadd.f32 %v4264, %v5428
        %v5473 = vadd.f32 %v4269, %v5433
        %v5474 = vadd.f32 %v4272, %v5436
        %v5475 = vld [vmem:[%s656] sm:$0x1]
        %v5477 = vlaneseq
        %v5478 = vshrl.u32 %v5477, 7
        %v5479 = vsub.s32 0, %v5478
        %v5480 = vrot.slane %v5475, %v5479
        %v5482 = vadd.f32 %v5439, %v5480
        %v5483 = vadd.f32 %v5440, %v5480
        %v5484 = vadd.f32 %v5441, %v5480
        %v5485 = vadd.f32 %v5442, %v5480
        %v5486 = vadd.f32 %v5443, %v5480
        %v5487 = vadd.f32 %v5444, %v5480
        %v5488 = vadd.f32 %v5445, %v5480
        %v5489 = vadd.f32 %v5446, %v5480
        %v5490 = vadd.f32 %v5447, %v5480
        %v5491 = vadd.f32 %v5448, %v5480
        %v5492 = vadd.f32 %v5449, %v5480
        %v5493 = vadd.f32 %v5450, %v5480
        %v5494 = vadd.f32 %v5451, %v5480
        %v5495 = vadd.f32 %v5452, %v5480
        %v5496 = vadd.f32 %v5453, %v5480
        %v5497 = vadd.f32 %v5454, %v5480
        %v5498 = vadd.f32 %v5455, %v5480
        %v5499 = vadd.f32 %v5456, %v5480
        %v5500 = vadd.f32 %v5457, %v5480
        %v5501 = vadd.f32 %v5458, %v5480
        %v5502 = vadd.f32 %v5459, %v5480
        %v5503 = vadd.f32 %v5460, %v5480
        %v5504 = vadd.f32 %v5461, %v5480
        %v5505 = vadd.f32 %v5462, %v5480
        %v5506 = vadd.f32 %v5463, %v5480
        %v5507 = vadd.f32 %v5464, %v5480
        %v5508 = vadd.f32 %v5465, %v5480
        %v5509 = vadd.f32 %v5466, %v5480
        %v5510 = vadd.f32 %v5467, %v5480
        %v5511 = vadd.f32 %v5468, %v5480
        %v5512 = vadd.f32 %v5469, %v5480
        %v5513 = vadd.f32 %v5470, %v5480
        %v5514 = vadd.f32 %v5471, %v5480
        %v5515 = vadd.f32 %v5472, %v5480
        %v5516 = vadd.f32 %v5473, %v5480
        %v5517 = vadd.f32 %v5474, %v5480
        %v5518 = vmul.f32 %v5482, %v1625
        %v5519 = vmul.f32 %v5483, %v1630
        %v5520 = vmul.f32 %v5484, %v1635
        %v5521 = vmul.f32 %v5485, %v1640
        %v5522 = vmul.f32 %v5486, %v1645
        %v5523 = vmul.f32 %v5487, %v1650
        %v5524 = vmul.f32 %v5488, %v1655
        %v5525 = vmul.f32 %v5489, %v1660
        %v5526 = vmul.f32 %v5490, %v1665
        %v5527 = vmul.f32 %v5491, %v1670
        %v5528 = vmul.f32 %v5492, %v1675
        %v5529 = vmul.f32 %v5493, %v1680
        %v5530 = vmul.f32 %v5494, %v1685
        %v5531 = vmul.f32 %v5495, %v1690
        %v5532 = vmul.f32 %v5496, %v1695
        %v5533 = vmul.f32 %v5497, %v1700
        %v5534 = vmul.f32 %v5498, %v1705
        %v5535 = vmul.f32 %v5499, %v1710
        %v5536 = vmul.f32 %v5500, %v1715
        %v5537 = vmul.f32 %v5501, %v1720
        %v5538 = vmul.f32 %v5502, %v1725
        %v5539 = vmul.f32 %v5503, %v1730
        %v5540 = vmul.f32 %v5504, %v1735
        %v5541 = vmul.f32 %v5505, %v1740
        %v5542 = vmul.f32 %v5506, %v1745
        %v5543 = vmul.f32 %v5507, %v1750
        %v5544 = vmul.f32 %v5508, %v1755
        %v5545 = vmul.f32 %v5509, %v1760
        %v5546 = vmul.f32 %v5510, %v1765
        %v5547 = vmul.f32 %v5511, %v1770
        %v5548 = vmul.f32 %v5512, %v1775
        %v5549 = vmul.f32 %v5513, %v1780
        %v5550 = vmul.f32 %v5514, %v1785
        %v5551 = vmul.f32 %v5515, %v1790
        %v5552 = vmul.f32 %v5516, %v1795
        %v5553 = vmul.f32 %v5517, %v1800
        %v5554 = vadd.f32 %v5518, %v5519
        %v5555 = vadd.f32 %v5554, %v5520
        %v5556 = vadd.f32 %v5555, %v5521
        %v5557 = vadd.f32 %v5556, %v5522
        %v5558 = vadd.f32 %v5557, %v5523
        %v5559 = vadd.f32 %v5558, %v5524
        %v5560 = vadd.f32 %v5559, %v5525
        %v5561 = vadd.f32 %v5560, %v5526
        %v5562 = vadd.f32 %v5561, %v5527
        %v5563 = vadd.f32 %v5562, %v5528
        %v5564 = vadd.f32 %v5563, %v5529
        %v5565 = vadd.f32 %v5564, %v5530
        %v5566 = vadd.f32 %v5565, %v5531
        %v5567 = vadd.f32 %v5566, %v5532
        %v5568 = vadd.f32 %v5567, %v5533
        %v5569 = vadd.f32 %v5568, %v5534
        %v5570 = vadd.f32 %v5569, %v5535
        %v5571 = vadd.f32 %v5570, %v5536
        %v5572 = vadd.f32 %v5571, %v5537
        %v5573 = vadd.f32 %v5572, %v5538
        %v5574 = vadd.f32 %v5573, %v5539
        %v5575 = vadd.f32 %v5574, %v5540
        %v5576 = vadd.f32 %v5575, %v5541
        %v5577 = vadd.f32 %v5576, %v5542
        %v5578 = vadd.f32 %v5577, %v5543
        %v5579 = vadd.f32 %v5578, %v5544
        %v5580 = vadd.f32 %v5579, %v5545
        %v5581 = vadd.f32 %v5580, %v5546
        %v5582 = vadd.f32 %v5581, %v5547
        %v5583 = vadd.f32 %v5582, %v5548
        %v5584 = vadd.f32 %v5583, %v5549
        %v5585 = vadd.f32 %v5584, %v5550
        %v5586 = vadd.f32 %v5585, %v5551
        %v5587 = vadd.f32 %v5586, %v5552
        %v5588 = vadd.f32 %v5587, %v5553
        %v5589 = vrot.slane %v5588, 4
        %v5590 = vadd.f32 %v5588, %v5589
        %v5591 = vrot.slane %v5590, 2
        %v5592 = vadd.f32 %v5590, %v5591
        %v5593 = vrot.slane %v5592, 1
        %v5594 = vadd.f32 %v5592, %v5593
        %v5595 = vmul.f32 %v5518, %v5518
        %v5596 = vmul.f32 %v5519, %v5519
        %v5597 = vmul.f32 %v5520, %v5520
        %v5598 = vmul.f32 %v5521, %v5521
        %v5599 = vmul.f32 %v5522, %v5522
        %v5600 = vmul.f32 %v5523, %v5523
        %v5601 = vmul.f32 %v5524, %v5524
        %v5602 = vmul.f32 %v5525, %v5525
        %v5603 = vmul.f32 %v5526, %v5526
        %v5604 = vmul.f32 %v5527, %v5527
        %v5605 = vmul.f32 %v5528, %v5528
        %v5606 = vmul.f32 %v5529, %v5529
        %v5607 = vmul.f32 %v5530, %v5530
        %v5608 = vmul.f32 %v5531, %v5531
        %v5609 = vmul.f32 %v5532, %v5532
        %v5610 = vmul.f32 %v5533, %v5533
        %v5611 = vmul.f32 %v5534, %v5534
        %v5612 = vmul.f32 %v5535, %v5535
        %v5613 = vmul.f32 %v5536, %v5536
        %v5614 = vmul.f32 %v5537, %v5537
        %v5615 = vmul.f32 %v5538, %v5538
        %v5616 = vmul.f32 %v5539, %v5539
        %v5617 = vmul.f32 %v5540, %v5540
        %v5618 = vmul.f32 %v5541, %v5541
        %v5619 = vmul.f32 %v5542, %v5542
        %v5620 = vmul.f32 %v5543, %v5543
        %v5621 = vmul.f32 %v5544, %v5544
        %v5622 = vmul.f32 %v5545, %v5545
        %v5623 = vmul.f32 %v5546, %v5546
        %v5624 = vmul.f32 %v5547, %v5547
        %v5625 = vmul.f32 %v5548, %v5548
        %v5626 = vmul.f32 %v5549, %v5549
        %v5627 = vmul.f32 %v5550, %v5550
        %v5628 = vmul.f32 %v5551, %v5551
        %v5629 = vmul.f32 %v5552, %v5552
        %v5630 = vmul.f32 %v5553, %v5553
        %v5631 = vadd.f32 %v5595, %v5596
        %v5632 = vadd.f32 %v5631, %v5597
        %v5633 = vadd.f32 %v5632, %v5598
        %v5634 = vadd.f32 %v5633, %v5599
        %v5635 = vadd.f32 %v5634, %v5600
        %v5636 = vadd.f32 %v5635, %v5601
        %v5637 = vadd.f32 %v5636, %v5602
        %v5638 = vadd.f32 %v5637, %v5603
        %v5639 = vadd.f32 %v5638, %v5604
        %v5640 = vadd.f32 %v5639, %v5605
        %v5641 = vadd.f32 %v5640, %v5606
        %v5642 = vadd.f32 %v5641, %v5607
        %v5643 = vadd.f32 %v5642, %v5608
        %v5644 = vadd.f32 %v5643, %v5609
        %v5645 = vadd.f32 %v5644, %v5610
        %v5646 = vadd.f32 %v5645, %v5611
        %v5647 = vadd.f32 %v5646, %v5612
        %v5648 = vadd.f32 %v5647, %v5613
        %v5649 = vadd.f32 %v5648, %v5614
        %v5650 = vadd.f32 %v5649, %v5615
        %v5651 = vadd.f32 %v5650, %v5616
        %v5652 = vadd.f32 %v5651, %v5617
        %v5653 = vadd.f32 %v5652, %v5618
        %v5654 = vadd.f32 %v5653, %v5619
        %v5655 = vadd.f32 %v5654, %v5620
        %v5656 = vadd.f32 %v5655, %v5621
        %v5657 = vadd.f32 %v5656, %v5622
        %v5658 = vadd.f32 %v5657, %v5623
        %v5659 = vadd.f32 %v5658, %v5624
        %v5660 = vadd.f32 %v5659, %v5625
        %v5661 = vadd.f32 %v5660, %v5626
        %v5662 = vadd.f32 %v5661, %v5627
        %v5663 = vadd.f32 %v5662, %v5628
        %v5664 = vadd.f32 %v5663, %v5629
        %v5665 = vadd.f32 %v5664, %v5630
        %v5666 = vrot.slane %v5665, 4
        %v5667 = vadd.f32 %v5665, %v5666
        %v5668 = vrot.slane %v5667, 2
        %v5669 = vadd.f32 %v5667, %v5668
        %v5670 = vrot.slane %v5669, 1
        %v5671 = vadd.f32 %v5669, %v5670
        %v5672 = vld [vmem:[#allocation19] sm:$0xff]
        %v5673 = vld [vmem:[#allocation19 + $0x8] sm:$0xff]
        %v5674 = vld [vmem:[#allocation19 + $0x10] sm:$0xff]
        %v5675 = vld [vmem:[#allocation19 + $0x18] sm:$0xff]
        %v5676 = vld [vmem:[#allocation19 + $0x20] sm:$0xff]
        %v5677 = vld [vmem:[#allocation19 + $0x28] sm:$0xff]
        %v5678 = vld [vmem:[#allocation19 + $0x30] sm:$0xff]
        %v5679 = vld [vmem:[#allocation19 + $0x38] sm:$0xff]
        %v5680 = vld [vmem:[#allocation19 + $0x40] sm:$0xff]
        %v5681 = vld [vmem:[#allocation19 + $0x48] sm:$0xff]
        %v5682 = vld [vmem:[#allocation19 + $0x50] sm:$0xff]
        %v5683 = vld [vmem:[#allocation19 + $0x58] sm:$0xff]
        %v5684 = vld [vmem:[#allocation19 + $0x60] sm:$0xff]
        %v5685 = vld [vmem:[#allocation19 + $0x68] sm:$0xff]
        %v5686 = vld [vmem:[#allocation19 + $0x70] sm:$0xff]
        %v5687 = vld [vmem:[#allocation19 + $0x78] sm:$0xff]
        %5688 = vmatprep.subr.mxu0 0.0
        %5689 = vmatpush1.msra.mxu0 %v5672
        %5690 = vmatprep.subr.mxu0 0.0
        %5691 = vmatpush1.msra.mxu0 %v5673
        %5692 = vmatprep.subr.mxu0 0.0
        %5693 = vmatpush1.msra.mxu0 %v5674
        %5694 = vmatprep.subr.mxu0 0.0
        %5695 = vmatpush1.msra.mxu0 %v5675
        %5696 = vmatprep.subr.mxu0 0.0
        %5697 = vmatpush1.msra.mxu0 %v5676
        %5698 = vmatprep.subr.mxu0 0.0
        %5699 = vmatpush1.msra.mxu0 %v5677
        %5700 = vmatprep.subr.mxu0 0.0
        %5701 = vmatpush1.msra.mxu0 %v5678
        %5702 = vmatprep.subr.mxu0 0.0
        %5703 = vmatpush1.msra.mxu0 %v5679
        %5704 = vmatprep.subr.mxu0 0.0
        %5705 = vmatpush1.msra.mxu0 %v5680
        %5706 = vmatprep.subr.mxu0 0.0
        %5707 = vmatpush1.msra.mxu0 %v5681
        %5708 = vmatprep.subr.mxu0 0.0
        %5709 = vmatpush1.msra.mxu0 %v5682
        %5710 = vmatprep.subr.mxu0 0.0
        %5711 = vmatpush1.msra.mxu0 %v5683
        %5712 = vmatprep.subr.mxu0 0.0
        %5713 = vmatpush1.msra.mxu0 %v5684
        %5714 = vmatprep.subr.mxu0 0.0
        %5715 = vmatpush1.msra.mxu0 %v5685
        %5716 = vmatprep.subr.mxu0 0.0
        %5717 = vmatpush1.msra.mxu0 %v5686
        %5718 = vmatprep.subr.mxu0 0.0
        %5719 = vmatpush1.msra.mxu0 %v5687
        %5720 = vmatprep.subr.mxu0 0.0
        %5721 = vmatpush1.msra.mxu0 0.0
        %5722 = vmatprep.subr.mxu0 0.0
        %5723 = vmatpush1.msra.mxu0 0.0
        %5724 = vmatprep.subr.mxu0 0.0
        %5725 = vmatpush1.msra.mxu0 0.0
        %5726 = vmatprep.subr.mxu0 0.0
        %5727 = vmatpush1.msra.mxu0 0.0
        %5728 = vmatprep.subr.mxu0 0.0
        %5729 = vmatpush1.msra.mxu0 0.0
        %5730 = vmatprep.subr.mxu0 0.0
        %5731 = vmatpush1.msra.mxu0 0.0
        %5732 = vmatprep.subr.mxu0 0.0
        %5733 = vmatpush1.msra.mxu0 0.0
        %5734 = vmatprep.subr.mxu0 0.0
        %5735 = vmatpush1.msra.mxu0 0.0
        %5736 = vmatprep.subr.mxu0 0.0
        %5737 = vmatpush1.msra.mxu0 0.0
        %5738 = vmatprep.subr.mxu0 0.0
        %5739 = vmatpush1.msra.mxu0 0.0
        %5740 = vmatprep.subr.mxu0 0.0
        %5741 = vmatpush1.msra.mxu0 0.0
        %5742 = vmatprep.subr.mxu0 0.0
        %5743 = vmatpush1.msra.mxu0 0.0
        %5744 = vmatprep.subr.mxu0 0.0
        %5745 = vmatpush1.msra.mxu0 0.0
        %5746 = vmatprep.subr.mxu0 0.0
        %5747 = vmatpush1.msra.mxu0 0.0
        %5748 = vmatprep.subr.mxu0 0.0
        %5749 = vmatpush1.msra.mxu0 0.0
        %5750 = vmatprep.subr.mxu0 0.0
        %5751 = vmatpush1.msra.mxu0 0.0
        %5752 = vmatprep.mubr.f32.mxu0 0.0
        %5753 = vmatmul.mubr.f32.gmra.mrb[0].mxu0 %v5594
        %v5754 = vpop.f32.mrb[0].mxu0
        %v5755 = vadd.f32 0.0, %v5754
        %v5756 = vpop.f32.mrb[0].mxu0
        %5757 = vdwg.mxu0
        %5758 = vmatprep.subr.mxu0 0.0
        %5759 = vmatpush1.msra.mxu0 %v5672
        %5760 = vmatprep.subr.mxu0 0.0
        %5761 = vmatpush1.msra.mxu0 %v5673
        %5762 = vmatprep.subr.mxu0 0.0
        %5763 = vmatpush1.msra.mxu0 %v5674
        %5764 = vmatprep.subr.mxu0 0.0
        %5765 = vmatpush1.msra.mxu0 %v5675
        %5766 = vmatprep.subr.mxu0 0.0
        %5767 = vmatpush1.msra.mxu0 %v5676
        %5768 = vmatprep.subr.mxu0 0.0
        %5769 = vmatpush1.msra.mxu0 %v5677
        %5770 = vmatprep.subr.mxu0 0.0
        %5771 = vmatpush1.msra.mxu0 %v5678
        %5772 = vmatprep.subr.mxu0 0.0
        %5773 = vmatpush1.msra.mxu0 %v5679
        %5774 = vmatprep.subr.mxu0 0.0
        %5775 = vmatpush1.msra.mxu0 %v5680
        %5776 = vmatprep.subr.mxu0 0.0
        %5777 = vmatpush1.msra.mxu0 %v5681
        %5778 = vmatprep.subr.mxu0 0.0
        %5779 = vmatpush1.msra.mxu0 %v5682
        %5780 = vmatprep.subr.mxu0 0.0
        %5781 = vmatpush1.msra.mxu0 %v5683
        %5782 = vmatprep.subr.mxu0 0.0
        %5783 = vmatpush1.msra.mxu0 %v5684
        %5784 = vmatprep.subr.mxu0 0.0
        %5785 = vmatpush1.msra.mxu0 %v5685
        %5786 = vmatprep.subr.mxu0 0.0
        %5787 = vmatpush1.msra.mxu0 %v5686
        %5788 = vmatprep.subr.mxu0 0.0
        %5789 = vmatpush1.msra.mxu0 %v5687
        %5790 = vmatprep.subr.mxu0 0.0
        %5791 = vmatpush1.msra.mxu0 0.0
        %5792 = vmatprep.subr.mxu0 0.0
        %5793 = vmatpush1.msra.mxu0 0.0
        %5794 = vmatprep.subr.mxu0 0.0
        %5795 = vmatpush1.msra.mxu0 0.0
        %5796 = vmatprep.subr.mxu0 0.0
        %5797 = vmatpush1.msra.mxu0 0.0
        %5798 = vmatprep.subr.mxu0 0.0
        %5799 = vmatpush1.msra.mxu0 0.0
        %5800 = vmatprep.subr.mxu0 0.0
        %5801 = vmatpush1.msra.mxu0 0.0
        %5802 = vmatprep.subr.mxu0 0.0
        %5803 = vmatpush1.msra.mxu0 0.0
        %5804 = vmatprep.subr.mxu0 0.0
        %5805 = vmatpush1.msra.mxu0 0.0
        %5806 = vmatprep.subr.mxu0 0.0
        %5807 = vmatpush1.msra.mxu0 0.0
        %5808 = vmatprep.subr.mxu0 0.0
        %5809 = vmatpush1.msra.mxu0 0.0
        %5810 = vmatprep.subr.mxu0 0.0
        %5811 = vmatpush1.msra.mxu0 0.0
        %5812 = vmatprep.subr.mxu0 0.0
        %5813 = vmatpush1.msra.mxu0 0.0
        %5814 = vmatprep.subr.mxu0 0.0
        %5815 = vmatpush1.msra.mxu0 0.0
        %5816 = vmatprep.subr.mxu0 0.0
        %5817 = vmatpush1.msra.mxu0 0.0
        %5818 = vmatprep.subr.mxu0 0.0
        %5819 = vmatpush1.msra.mxu0 0.0
        %5820 = vmatprep.subr.mxu0 0.0
        %5821 = vmatpush1.msra.mxu0 0.0
        %5822 = vmatprep.mubr.f32.mxu0 0.0
        %5823 = vmatmul.mubr.f32.gmra.mrb[0].mxu0 %v5671
        %v5824 = vpop.f32.mrb[0].mxu0
        %v5825 = vadd.f32 0.0, %v5824
        %v5826 = vpop.f32.mrb[0].mxu0
        %5827 = vdwg.mxu0
        %v5828 = vmul.f32 %v5755, 0.0009765625
        %v5829 = vmul.f32 %v5825, 0.0009765625
        %v5830 = vmul.f32 %v5828, %v5828
        %v5831 = vsub.f32 %v5829, %v5830
        %v5832 = vmax.f32 %v5831, 0.0
        %v5833 = vadd.f32 %v5832, 1e-06
        %v5834 = vrsqrt.pop %v5833
        %v5835 = vld [vmem:[#allocation20] sm:$0xff]
        %v5836 = vld [vmem:[#allocation20 + $0x8] sm:$0xff]
        %v5837 = vld [vmem:[#allocation20 + $0x10] sm:$0xff]
        %v5838 = vld [vmem:[#allocation20 + $0x18] sm:$0xff]
        %v5839 = vld [vmem:[#allocation20 + $0x20] sm:$0xff]
        %v5840 = vld [vmem:[#allocation20 + $0x28] sm:$0xff]
        %v5841 = vld [vmem:[#allocation20 + $0x30] sm:$0xff]
        %v5842 = vld [vmem:[#allocation20 + $0x38] sm:$0xff]
        %v5843 = vld [vmem:[#allocation20 + $0x40] sm:$0xff]
        %v5844 = vld [vmem:[#allocation20 + $0x48] sm:$0xff]
        %v5845 = vld [vmem:[#allocation20 + $0x50] sm:$0xff]
        %v5846 = vld [vmem:[#allocation20 + $0x58] sm:$0xff]
        %v5847 = vld [vmem:[#allocation20 + $0x60] sm:$0xff]
        %v5848 = vld [vmem:[#allocation20 + $0x68] sm:$0xff]
        %v5849 = vld [vmem:[#allocation20 + $0x70] sm:$0xff]
        %v5850 = vld [vmem:[#allocation20 + $0x78] sm:$0xff]
        %5851 = vmatprep.subr.mxu0 0.0
        %5852 = vmatpush1.msra.mxu0 %v5835
        %5853 = vmatprep.subr.mxu0 0.0
        %5854 = vmatpush1.msra.mxu0 %v5836
        %5855 = vmatprep.subr.mxu0 0.0
        %5856 = vmatpush1.msra.mxu0 %v5837
        %5857 = vmatprep.subr.mxu0 0.0
        %5858 = vmatpush1.msra.mxu0 %v5838
        %5859 = vmatprep.subr.mxu0 0.0
        %5860 = vmatpush1.msra.mxu0 %v5839
        %5861 = vmatprep.subr.mxu0 0.0
        %5862 = vmatpush1.msra.mxu0 %v5840
        %5863 = vmatprep.subr.mxu0 0.0
        %5864 = vmatpush1.msra.mxu0 %v5841
        %5865 = vmatprep.subr.mxu0 0.0
        %5866 = vmatpush1.msra.mxu0 %v5842
        %5867 = vmatprep.subr.mxu0 0.0
        %5868 = vmatpush1.msra.mxu0 %v5843
        %5869 = vmatprep.subr.mxu0 0.0
        %5870 = vmatpush1.msra.mxu0 %v5844
        %5871 = vmatprep.subr.mxu0 0.0
        %5872 = vmatpush1.msra.mxu0 %v5845
        %5873 = vmatprep.subr.mxu0 0.0
        %5874 = vmatpush1.msra.mxu0 %v5846
        %5875 = vmatprep.subr.mxu0 0.0
        %5876 = vmatpush1.msra.mxu0 %v5847
        %5877 = vmatprep.subr.mxu0 0.0
        %5878 = vmatpush1.msra.mxu0 %v5848
        %5879 = vmatprep.subr.mxu0 0.0
        %5880 = vmatpush1.msra.mxu0 %v5849
        %5881 = vmatprep.subr.mxu0 0.0
        %5882 = vmatpush1.msra.mxu0 %v5850
        %5883 = vmatprep.subr.mxu0 0.0
        %5884 = vmatpush1.msra.mxu0 0.0
        %5885 = vmatprep.subr.mxu0 0.0
        %5886 = vmatpush1.msra.mxu0 0.0
        %5887 = vmatprep.subr.mxu0 0.0
        %5888 = vmatpush1.msra.mxu0 0.0
        %5889 = vmatprep.subr.mxu0 0.0
        %5890 = vmatpush1.msra.mxu0 0.0
        %5891 = vmatprep.subr.mxu0 0.0
        %5892 = vmatpush1.msra.mxu0 0.0
        %5893 = vmatprep.subr.mxu0 0.0
        %5894 = vmatpush1.msra.mxu0 0.0
        %5895 = vmatprep.subr.mxu0 0.0
        %5896 = vmatpush1.msra.mxu0 0.0
        %5897 = vmatprep.subr.mxu0 0.0
        %5898 = vmatpush1.msra.mxu0 0.0
        %5899 = vmatprep.subr.mxu0 0.0
        %5900 = vmatpush1.msra.mxu0 0.0
        %5901 = vmatprep.subr.mxu0 0.0
        %5902 = vmatpush1.msra.mxu0 0.0
        %5903 = vmatprep.subr.mxu0 0.0
        %5904 = vmatpush1.msra.mxu0 0.0
        %5905 = vmatprep.subr.mxu0 0.0
        %5906 = vmatpush1.msra.mxu0 0.0
        %5907 = vmatprep.subr.mxu0 0.0
        %5908 = vmatpush1.msra.mxu0 0.0
        %5909 = vmatprep.subr.mxu0 0.0
        %5910 = vmatpush1.msra.mxu0 0.0
        %5911 = vmatprep.subr.mxu0 0.0
        %5912 = vmatpush1.msra.mxu0 0.0
        %5913 = vmatprep.subr.mxu0 0.0
        %5914 = vmatpush1.msra.mxu0 0.0
        %5915 = vmatprep.mubr.f32.mxu0 0.0
        %5916 = vmatmul.mubr.f32.gmra.mrb[0].mxu0 %v5834
        %v5917 = vpop.f32.mrb[0].mxu0
        %v5918 = vadd.f32 0.0, %v5917
        %v5919 = vpop.f32.mrb[0].mxu0
        %5920 = vdwg.mxu0
        %5921 = vmatprep.subr.mxu0 0.0
        %5922 = vmatpush1.msra.mxu0 %v5835
        %5923 = vmatprep.subr.mxu0 0.0
        %5924 = vmatpush1.msra.mxu0 %v5836
        %5925 = vmatprep.subr.mxu0 0.0
        %5926 = vmatpush1.msra.mxu0 %v5837
        %5927 = vmatprep.subr.mxu0 0.0
        %5928 = vmatpush1.msra.mxu0 %v5838
        %5929 = vmatprep.subr.mxu0 0.0
        %5930 = vmatpush1.msra.mxu0 %v5839
        %5931 = vmatprep.subr.mxu0 0.0
        %5932 = vmatpush1.msra.mxu0 %v5840
        %5933 = vmatprep.subr.mxu0 0.0
        %5934 = vmatpush1.msra.mxu0 %v5841
        %5935 = vmatprep.subr.mxu0 0.0
        %5936 = vmatpush1.msra.mxu0 %v5842
        %5937 = vmatprep.subr.mxu0 0.0
        %5938 = vmatpush1.msra.mxu0 %v5843
        %5939 = vmatprep.subr.mxu0 0.0
        %5940 = vmatpush1.msra.mxu0 %v5844
        %5941 = vmatprep.subr.mxu0 0.0
        %5942 = vmatpush1.msra.mxu0 %v5845
        %5943 = vmatprep.subr.mxu0 0.0
        %5944 = vmatpush1.msra.mxu0 %v5846
        %5945 = vmatprep.subr.mxu0 0.0
        %5946 = vmatpush1.msra.mxu0 %v5847
        %5947 = vmatprep.subr.mxu0 0.0
        %5948 = vmatpush1.msra.mxu0 %v5848
        %5949 = vmatprep.subr.mxu0 0.0
        %5950 = vmatpush1.msra.mxu0 %v5849
        %5951 = vmatprep.subr.mxu0 0.0
        %5952 = vmatpush1.msra.mxu0 %v5850
        %5953 = vmatprep.subr.mxu0 0.0
        %5954 = vmatpush1.msra.mxu0 0.0
        %5955 = vmatprep.subr.mxu0 0.0
        %5956 = vmatpush1.msra.mxu0 0.0
        %5957 = vmatprep.subr.mxu0 0.0
        %5958 = vmatpush1.msra.mxu0 0.0
        %5959 = vmatprep.subr.mxu0 0.0
        %5960 = vmatpush1.msra.mxu0 0.0
        %5961 = vmatprep.subr.mxu0 0.0
        %5962 = vmatpush1.msra.mxu0 0.0
        %5963 = vmatprep.subr.mxu0 0.0
        %5964 = vmatpush1.msra.mxu0 0.0
        %5965 = vmatprep.subr.mxu0 0.0
        %5966 = vmatpush1.msra.mxu0 0.0
        %5967 = vmatprep.subr.mxu0 0.0
        %5968 = vmatpush1.msra.mxu0 0.0
        %5969 = vmatprep.subr.mxu0 0.0
        %5970 = vmatpush1.msra.mxu0 0.0
        %5971 = vmatprep.subr.mxu0 0.0
        %5972 = vmatpush1.msra.mxu0 0.0
        %5973 = vmatprep.subr.mxu0 0.0
        %5974 = vmatpush1.msra.mxu0 0.0
        %5975 = vmatprep.subr.mxu0 0.0
        %5976 = vmatpush1.msra.mxu0 0.0
        %5977 = vmatprep.subr.mxu0 0.0
        %5978 = vmatpush1.msra.mxu0 0.0
        %5979 = vmatprep.subr.mxu0 0.0
        %5980 = vmatpush1.msra.mxu0 0.0
        %5981 = vmatprep.subr.mxu0 0.0
        %5982 = vmatpush1.msra.mxu0 0.0
        %5983 = vmatprep.subr.mxu0 0.0
        %5984 = vmatpush1.msra.mxu0 0.0
        %5985 = vmatprep.mubr.f32.mxu0 0.0
        %5986 = vmatmul.mubr.f32.gmra.mrb[0].mxu0 %v5828
        %v5987 = vpop.f32.mrb[0].mxu0
        %v5988 = vadd.f32 0.0, %v5987
        %v5989 = vpop.f32.mrb[0].mxu0
        %5990 = vdwg.mxu0
        %v5991 = vld [vmem:[#allocation22] sm:$0x1]
        %v5992 = vmul.f32 %v5918, %v5991
        %v5993 = vld [vmem:[#allocation23] sm:$0x1]
        %v5994 = vmul.f32 %v5988, %v5992
        %v5995 = vsub.f32 %v5993, %v5994
        %v5996 = vlaneseq
        %v5997 = vshrl.u32 %v5996, 7
        %v5998 = vsub.s32 0, %v5997
        %v5999 = vrot.slane %v5992, %v5998
        %v6000 = vmul.f32 %v5518, %v5999
        %v6001 = vmul.f32 %v5519, %v5999
        %v6002 = vmul.f32 %v5520, %v5999
        %v6003 = vmul.f32 %v5521, %v5999
        %v6004 = vmul.f32 %v5522, %v5999
        %v6005 = vmul.f32 %v5523, %v5999
        %v6006 = vmul.f32 %v5524, %v5999
        %v6007 = vmul.f32 %v5525, %v5999
        %v6008 = vmul.f32 %v5526, %v5999
        %v6009 = vmul.f32 %v5527, %v5999
        %v6010 = vmul.f32 %v5528, %v5999
        %v6011 = vmul.f32 %v5529, %v5999
        %v6012 = vmul.f32 %v5530, %v5999
        %v6013 = vmul.f32 %v5531, %v5999
        %v6014 = vmul.f32 %v5532, %v5999
        %v6015 = vmul.f32 %v5533, %v5999
        %v6016 = vmul.f32 %v5534, %v5999
        %v6017 = vmul.f32 %v5535, %v5999
        %v6018 = vmul.f32 %v5536, %v5999
        %v6019 = vmul.f32 %v5537, %v5999
        %v6020 = vmul.f32 %v5538, %v5999
        %v6021 = vmul.f32 %v5539, %v5999
        %v6022 = vmul.f32 %v5540, %v5999
        %v6023 = vmul.f32 %v5541, %v5999
        %v6024 = vmul.f32 %v5542, %v5999
        %v6025 = vmul.f32 %v5543, %v5999
        %v6026 = vmul.f32 %v5544, %v5999
        %v6027 = vmul.f32 %v5545, %v5999
        %v6028 = vmul.f32 %v5546, %v5999
        %v6029 = vmul.f32 %v5547, %v5999
        %v6030 = vmul.f32 %v5548, %v5999
        %v6031 = vmul.f32 %v5549, %v5999
        %v6032 = vmul.f32 %v5550, %v5999
        %v6033 = vmul.f32 %v5551, %v5999
        %v6034 = vmul.f32 %v5552, %v5999
        %v6035 = vmul.f32 %v5553, %v5999
        %v6037 = vlaneseq
        %v6038 = vshrl.u32 %v6037, 7
        %v6039 = vsub.s32 0, %v6038
        %v6040 = vrot.slane %v5995, %v6039
        %v6042 = vadd.f32 %v6000, %v6040
        %v6043 = vadd.f32 %v6001, %v6040
        %v6044 = vadd.f32 %v6002, %v6040
        %v6045 = vadd.f32 %v6003, %v6040
        %v6046 = vadd.f32 %v6004, %v6040
        %v6047 = vadd.f32 %v6005, %v6040
        %v6048 = vadd.f32 %v6006, %v6040
        %v6049 = vadd.f32 %v6007, %v6040
        %v6050 = vadd.f32 %v6008, %v6040
        %v6051 = vadd.f32 %v6009, %v6040
        %v6052 = vadd.f32 %v6010, %v6040
        %v6053 = vadd.f32 %v6011, %v6040
        %v6054 = vadd.f32 %v6012, %v6040
        %v6055 = vadd.f32 %v6013, %v6040
        %v6056 = vadd.f32 %v6014, %v6040
        %v6057 = vadd.f32 %v6015, %v6040
        %v6058 = vadd.f32 %v6016, %v6040
        %v6059 = vadd.f32 %v6017, %v6040
        %v6060 = vadd.f32 %v6018, %v6040
        %v6061 = vadd.f32 %v6019, %v6040
        %v6062 = vadd.f32 %v6020, %v6040
        %v6063 = vadd.f32 %v6021, %v6040
        %v6064 = vadd.f32 %v6022, %v6040
        %v6065 = vadd.f32 %v6023, %v6040
        %v6066 = vadd.f32 %v6024, %v6040
        %v6067 = vadd.f32 %v6025, %v6040
        %v6068 = vadd.f32 %v6026, %v6040
        %v6069 = vadd.f32 %v6027, %v6040
        %v6070 = vadd.f32 %v6028, %v6040
        %v6071 = vadd.f32 %v6029, %v6040
        %v6072 = vadd.f32 %v6030, %v6040
        %v6073 = vadd.f32 %v6031, %v6040
        %v6074 = vadd.f32 %v6032, %v6040
        %v6075 = vadd.f32 %v6033, %v6040
        %v6076 = vadd.f32 %v6034, %v6040
        %v6077 = vadd.f32 %v6035, %v6040
        %v6078 = vsub.f32 0.0, %v6042
        %v6079 = vsub.f32 0.0, %v6043
        %v6080 = vsub.f32 0.0, %v6044
        %v6081 = vsub.f32 0.0, %v6045
        %v6082 = vsub.f32 0.0, %v6046
        %v6083 = vsub.f32 0.0, %v6047
        %v6084 = vsub.f32 0.0, %v6048
        %v6085 = vsub.f32 0.0, %v6049
        %v6086 = vsub.f32 0.0, %v6050
        %v6087 = vsub.f32 0.0, %v6051
        %v6088 = vsub.f32 0.0, %v6052
        %v6089 = vsub.f32 0.0, %v6053
        %v6090 = vsub.f32 0.0, %v6054
        %v6091 = vsub.f32 0.0, %v6055
        %v6092 = vsub.f32 0.0, %v6056
        %v6093 = vsub.f32 0.0, %v6057
        %v6094 = vsub.f32 0.0, %v6058
        %v6095 = vsub.f32 0.0, %v6059
        %v6096 = vsub.f32 0.0, %v6060
        %v6097 = vsub.f32 0.0, %v6061
        %v6098 = vsub.f32 0.0, %v6062
        %v6099 = vsub.f32 0.0, %v6063
        %v6100 = vsub.f32 0.0, %v6064
        %v6101 = vsub.f32 0.0, %v6065
        %v6102 = vsub.f32 0.0, %v6066
        %v6103 = vsub.f32 0.0, %v6067
        %v6104 = vsub.f32 0.0, %v6068
        %v6105 = vsub.f32 0.0, %v6069
        %v6106 = vsub.f32 0.0, %v6070
        %v6107 = vsub.f32 0.0, %v6071
        %v6108 = vsub.f32 0.0, %v6072
        %v6109 = vsub.f32 0.0, %v6073
        %v6110 = vsub.f32 0.0, %v6074
        %v6111 = vsub.f32 0.0, %v6075
        %v6112 = vsub.f32 0.0, %v6076
        %v6113 = vsub.f32 0.0, %v6077
        %v6114 = vmul.f32 %v6078, 1.442695
        %v6115 = vpow.pop %v6114
        %v6116 = vmul.f32 %v6079, 1.442695
        %v6117 = vpow.pop %v6116
        %v6118 = vmul.f32 %v6080, 1.442695
        %v6119 = vpow.pop %v6118
        %v6120 = vmul.f32 %v6081, 1.442695
        %v6121 = vpow.pop %v6120
        %v6122 = vmul.f32 %v6082, 1.442695
        %v6123 = vpow.pop %v6122
        %v6124 = vmul.f32 %v6083, 1.442695
        %v6125 = vpow.pop %v6124
        %v6126 = vmul.f32 %v6084, 1.442695
        %v6127 = vpow.pop %v6126
        %v6128 = vmul.f32 %v6085, 1.442695
        %v6129 = vpow.pop %v6128
        %v6130 = vmul.f32 %v6086, 1.442695
        %v6131 = vpow.pop %v6130
        %v6132 = vmul.f32 %v6087, 1.442695
        %v6133 = vpow.pop %v6132
        %v6134 = vmul.f32 %v6088, 1.442695
        %v6135 = vpow.pop %v6134
        %v6136 = vmul.f32 %v6089, 1.442695
        %v6137 = vpow.pop %v6136
        %v6138 = vmul.f32 %v6090, 1.442695
        %v6139 = vpow.pop %v6138
        %v6140 = vmul.f32 %v6091, 1.442695
        %v6141 = vpow.pop %v6140
        %v6142 = vmul.f32 %v6092, 1.442695
        %v6143 = vpow.pop %v6142
        %v6144 = vmul.f32 %v6093, 1.442695
        %v6145 = vpow.pop %v6144
        %v6146 = vmul.f32 %v6094, 1.442695
        %v6147 = vpow.pop %v6146
        %v6148 = vmul.f32 %v6095, 1.442695
        %v6149 = vpow.pop %v6148
        %v6150 = vmul.f32 %v6096, 1.442695
        %v6151 = vpow.pop %v6150
        %v6152 = vmul.f32 %v6097, 1.442695
        %v6153 = vpow.pop %v6152
        %v6154 = vmul.f32 %v6098, 1.442695
        %v6155 = vpow.pop %v6154
        %v6156 = vmul.f32 %v6099, 1.442695
        %v6157 = vpow.pop %v6156
        %v6158 = vmul.f32 %v6100, 1.442695
        %v6159 = vpow.pop %v6158
        %v6160 = vmul.f32 %v6101, 1.442695
        %v6161 = vpow.pop %v6160
        %v6162 = vmul.f32 %v6102, 1.442695
        %v6163 = vpow.pop %v6162
        %v6164 = vmul.f32 %v6103, 1.442695
        %v6165 = vpow.pop %v6164
        %v6166 = vmul.f32 %v6104, 1.442695
        %v6167 = vpow.pop %v6166
        %v6168 = vmul.f32 %v6105, 1.442695
        %v6169 = vpow.pop %v6168
        %v6170 = vmul.f32 %v6106, 1.442695
        %v6171 = vpow.pop %v6170
        %v6172 = vmul.f32 %v6107, 1.442695
        %v6173 = vpow.pop %v6172
        %v6174 = vmul.f32 %v6108, 1.442695
        %v6175 = vpow.pop %v6174
        %v6176 = vmul.f32 %v6109, 1.442695
        %v6177 = vpow.pop %v6176
        %v6178 = vmul.f32 %v6110, 1.442695
        %v6179 = vpow.pop %v6178
        %v6180 = vmul.f32 %v6111, 1.442695
        %v6181 = vpow.pop %v6180
        %v6182 = vmul.f32 %v6112, 1.442695
        %v6183 = vpow.pop %v6182
        %v6184 = vmul.f32 %v6113, 1.442695
        %v6185 = vpow.pop %v6184
        %v6186 = vadd.f32 %v6115, 1.0
        %v6187 = vadd.f32 %v6117, 1.0
        %v6188 = vadd.f32 %v6119, 1.0
        %v6189 = vadd.f32 %v6121, 1.0
        %v6190 = vadd.f32 %v6123, 1.0
        %v6191 = vadd.f32 %v6125, 1.0
        %v6192 = vadd.f32 %v6127, 1.0
        %v6193 = vadd.f32 %v6129, 1.0
        %v6194 = vadd.f32 %v6131, 1.0
        %v6195 = vadd.f32 %v6133, 1.0
        %v6196 = vadd.f32 %v6135, 1.0
        %v6197 = vadd.f32 %v6137, 1.0
        %v6198 = vadd.f32 %v6139, 1.0
        %v6199 = vadd.f32 %v6141, 1.0
        %v6200 = vadd.f32 %v6143, 1.0
        %v6201 = vadd.f32 %v6145, 1.0
        %v6202 = vadd.f32 %v6147, 1.0
        %v6203 = vadd.f32 %v6149, 1.0
        %v6204 = vadd.f32 %v6151, 1.0
        %v6205 = vadd.f32 %v6153, 1.0
        %v6206 = vadd.f32 %v6155, 1.0
        %v6207 = vadd.f32 %v6157, 1.0
        %v6208 = vadd.f32 %v6159, 1.0
        %v6209 = vadd.f32 %v6161, 1.0
        %v6210 = vadd.f32 %v6163, 1.0
        %v6211 = vadd.f32 %v6165, 1.0
        %v6212 = vadd.f32 %v6167, 1.0
        %v6213 = vadd.f32 %v6169, 1.0
        %v6214 = vadd.f32 %v6171, 1.0
        %v6215 = vadd.f32 %v6173, 1.0
        %v6216 = vadd.f32 %v6175, 1.0
        %v6217 = vadd.f32 %v6177, 1.0
        %v6218 = vadd.f32 %v6179, 1.0
        %v6219 = vadd.f32 %v6181, 1.0
        %v6220 = vadd.f32 %v6183, 1.0
        %v6221 = vadd.f32 %v6185, 1.0
        %v6222 = vrcp.pop %v6186
        %v6223 = vrcp.pop %v6187
        %v6224 = vrcp.pop %v6188
        %v6225 = vrcp.pop %v6189
        %v6226 = vrcp.pop %v6190
        %v6227 = vrcp.pop %v6191
        %v6228 = vrcp.pop %v6192
        %v6229 = vrcp.pop %v6193
        %v6230 = vrcp.pop %v6194
        %v6231 = vrcp.pop %v6195
        %v6232 = vrcp.pop %v6196
        %v6233 = vrcp.pop %v6197
        %v6234 = vrcp.pop %v6198
        %v6235 = vrcp.pop %v6199
        %v6236 = vrcp.pop %v6200
        %v6237 = vrcp.pop %v6201
        %v6238 = vrcp.pop %v6202
        %v6239 = vrcp.pop %v6203
        %v6240 = vrcp.pop %v6204
        %v6241 = vrcp.pop %v6205
        %v6242 = vrcp.pop %v6206
        %v6243 = vrcp.pop %v6207
        %v6244 = vrcp.pop %v6208
        %v6245 = vrcp.pop %v6209
        %v6246 = vrcp.pop %v6210
        %v6247 = vrcp.pop %v6211
        %v6248 = vrcp.pop %v6212
        %v6249 = vrcp.pop %v6213
        %v6250 = vrcp.pop %v6214
        %v6251 = vrcp.pop %v6215
        %v6252 = vrcp.pop %v6216
        %v6253 = vrcp.pop %v6217
        %v6254 = vrcp.pop %v6218
        %v6255 = vrcp.pop %v6219
        %v6256 = vrcp.pop %v6220
        %v6257 = vrcp.pop %v6221
        %v6258 = vmul.f32 %v6042, %v6222
        %v6259 = vmul.f32 %v6043, %v6223
        %v6260 = vmul.f32 %v6044, %v6224
        %v6261 = vmul.f32 %v6045, %v6225
        %v6262 = vmul.f32 %v6046, %v6226
        %v6263 = vmul.f32 %v6047, %v6227
        %v6264 = vmul.f32 %v6048, %v6228
        %v6265 = vmul.f32 %v6049, %v6229
        %v6266 = vmul.f32 %v6050, %v6230
        %v6267 = vmul.f32 %v6051, %v6231
        %v6268 = vmul.f32 %v6052, %v6232
        %v6269 = vmul.f32 %v6053, %v6233
        %v6270 = vmul.f32 %v6054, %v6234
        %v6271 = vmul.f32 %v6055, %v6235
        %v6272 = vmul.f32 %v6056, %v6236
        %v6273 = vmul.f32 %v6057, %v6237
        %v6274 = vmul.f32 %v6058, %v6238
        %v6275 = vmul.f32 %v6059, %v6239
        %v6276 = vmul.f32 %v6060, %v6240
        %v6277 = vmul.f32 %v6061, %v6241
        %v6278 = vmul.f32 %v6062, %v6242
        %v6279 = vmul.f32 %v6063, %v6243
        %v6280 = vmul.f32 %v6064, %v6244
        %v6281 = vmul.f32 %v6065, %v6245
        %v6282 = vmul.f32 %v6066, %v6246
        %v6283 = vmul.f32 %v6067, %v6247
        %v6284 = vmul.f32 %v6068, %v6248
        %v6285 = vmul.f32 %v6069, %v6249
        %v6286 = vmul.f32 %v6070, %v6250
        %v6287 = vmul.f32 %v6071, %v6251
        %v6288 = vmul.f32 %v6072, %v6252
        %v6289 = vmul.f32 %v6073, %v6253
        %v6290 = vmul.f32 %v6074, %v6254
        %v6291 = vmul.f32 %v6075, %v6255
        %v6292 = vmul.f32 %v6076, %v6256
        %v6293 = vmul.f32 %v6077, %v6257
        %v6294 = vmul.f32 %v6258, %v1625
        %v6295 = vmul.f32 %v6259, %v1630
        %v6296 = vmul.f32 %v6260, %v1635
        %v6297 = vmul.f32 %v6261, %v1640
        %v6298 = vmul.f32 %v6262, %v1645
        %v6299 = vmul.f32 %v6263, %v1650
        %v6300 = vmul.f32 %v6264, %v1655
        %v6301 = vmul.f32 %v6265, %v1660
        %v6302 = vmul.f32 %v6266, %v1665
        %v6303 = vmul.f32 %v6267, %v1670
        %v6304 = vmul.f32 %v6268, %v1675
        %v6305 = vmul.f32 %v6269, %v1680
        %v6306 = vmul.f32 %v6270, %v1685
        %v6307 = vmul.f32 %v6271, %v1690
        %v6308 = vmul.f32 %v6272, %v1695
        %v6309 = vmul.f32 %v6273, %v1700
        %v6310 = vmul.f32 %v6274, %v1705
        %v6311 = vmul.f32 %v6275, %v1710
        %v6312 = vmul.f32 %v6276, %v1715
        %v6313 = vmul.f32 %v6277, %v1720
        %v6314 = vmul.f32 %v6278, %v1725
        %v6315 = vmul.f32 %v6279, %v1730
        %v6316 = vmul.f32 %v6280, %v1735
        %v6317 = vmul.f32 %v6281, %v1740
        %v6318 = vmul.f32 %v6282, %v1745
        %v6319 = vmul.f32 %v6283, %v1750
        %v6320 = vmul.f32 %v6284, %v1755
        %v6321 = vmul.f32 %v6285, %v1760
        %v6322 = vmul.f32 %v6286, %v1765
        %v6323 = vmul.f32 %v6287, %v1770
        %v6324 = vmul.f32 %v6288, %v1775
        %v6325 = vmul.f32 %v6289, %v1780
        %v6326 = vmul.f32 %v6290, %v1785
        %v6327 = vmul.f32 %v6291, %v1790
        %v6328 = vmul.f32 %v6292, %v1795
        %v6329 = vmul.f32 %v6293, %v1800
        %v6330 = vpack.c.bf16 %v6295, %v6294
        %v6331 = vpack.c.bf16 %v6297, %v6296
        %v6332 = vpack.c.bf16 %v6299, %v6298
        %v6333 = vpack.c.bf16 %v6301, %v6300
        %v6334 = vpack.c.bf16 %v6303, %v6302
        %v6335 = vpack.c.bf16 %v6305, %v6304
        %v6336 = vpack.c.bf16 %v6307, %v6306
        %v6337 = vpack.c.bf16 %v6309, %v6308
        %v6338 = vpack.c.bf16 %v6311, %v6310
        %v6339 = vpack.c.bf16 %v6313, %v6312
        %v6340 = vpack.c.bf16 %v6315, %v6314
        %v6341 = vpack.c.bf16 %v6317, %v6316
        %v6342 = vpack.c.bf16 %v6319, %v6318
        %v6343 = vpack.c.bf16 %v6321, %v6320
        %v6344 = vpack.c.bf16 %v6323, %v6322
        %v6345 = vpack.c.bf16 %v6325, %v6324
        %v6346 = vpack.c.bf16 %v6327, %v6326
        %v6347 = vpack.c.bf16 %v6329, %v6328
        %v6366 = vrot.slane %v6330, 4
        %v6367 = vrot.slane %v6331, 4
        %v6368 = vsel %vm1874, %v6366, %v6367
        %v6369 = vrot.slane %v6332, 4
        %v6370 = vsel %vm1874, %v6367, %v6369
        %v6371 = vrot.slane %v6333, 4
        %v6372 = vsel %vm1874, %v6369, %v6371
        %v6373 = vrot.slane %v6334, 4
        %v6374 = vsel %vm1874, %v6371, %v6373
        %v6375 = vrot.slane %v6335, 4
        %v6376 = vsel %vm1874, %v6373, %v6375
        %v6377 = vrot.slane %v6336, 4
        %v6378 = vsel %vm1874, %v6375, %v6377
        %v6379 = vrot.slane %v6337, 4
        %v6380 = vsel %vm1874, %v6377, %v6379
        %v6381 = vrot.slane %v6338, 4
        %v6382 = vsel %vm1874, %v6379, %v6381
        %v6383 = vrot.slane %v6339, 4
        %v6384 = vsel %vm1874, %v6381, %v6383
        %v6385 = vrot.slane %v6340, 4
        %v6386 = vsel %vm1874, %v6383, %v6385
        %v6387 = vrot.slane %v6341, 4
        %v6388 = vsel %vm1874, %v6385, %v6387
        %v6389 = vrot.slane %v6342, 4
        %v6390 = vsel %vm1874, %v6387, %v6389
        %v6391 = vrot.slane %v6343, 4
        %v6392 = vsel %vm1874, %v6389, %v6391
        %v6393 = vrot.slane %v6344, 4
        %v6394 = vsel %vm1874, %v6391, %v6393
        %v6395 = vrot.slane %v6345, 4
        %v6396 = vsel %vm1874, %v6393, %v6395
        %v6397 = vrot.slane %v6346, 4
        %v6398 = vsel %vm1874, %v6395, %v6397
        %v6399 = vrot.slane %v6347, 4
        %v6400 = vsel %vm1874, %v6397, %v6399
        %6420 = vst [vmem:[#allocation3 + $0x8] sm:$0xf0] %v6366
        %6421 = vst [vmem:[#allocation3 + $0x10] sm:$0xff] %v6368
        %6422 = vst [vmem:[#allocation3 + $0x18] sm:$0xff] %v6370
        %6423 = vst [vmem:[#allocation3 + $0x20] sm:$0xff] %v6372
        %6424 = vst [vmem:[#allocation3 + $0x28] sm:$0xff] %v6374
        %6425 = vst [vmem:[#allocation3 + $0x30] sm:$0xff] %v6376
        %6426 = vst [vmem:[#allocation3 + $0x38] sm:$0xff] %v6378
        %6427 = vst [vmem:[#allocation3 + $0x40] sm:$0xff] %v6380
        %6428 = vst [vmem:[#allocation3 + $0x48] sm:$0xff] %v6382
        %6429 = vst [vmem:[#allocation3 + $0x50] sm:$0xff] %v6384
        %6430 = vst [vmem:[#allocation3 + $0x58] sm:$0xff] %v6386
        %6431 = vst [vmem:[#allocation3 + $0x60] sm:$0xff] %v6388
        %6432 = vst [vmem:[#allocation3 + $0x68] sm:$0xff] %v6390
        %6433 = vst [vmem:[#allocation3 + $0x70] sm:$0xff] %v6392
        %6434 = vst [vmem:[#allocation3 + $0x78] sm:$0xff] %v6394
        %6435 = vst [vmem:[#allocation3 + $0x80] sm:$0xff] %v6396
        %6436 = vst [vmem:[#allocation3 + $0x88] sm:$0xff] %v6398
        %6437 = vst [vmem:[#allocation3 + $0x90] sm:$0xff] %v6400
        %6438 = vst [vmem:[#allocation3 + $0x98] sm:$0xf] %v6399
        %v6439 = vld [vmem:[#allocation3] sm:$0xfc]
        %v6440 = vld [vmem:[#allocation3 + $0x8] sm:$0xff]
        %v6441 = vld [vmem:[#allocation3 + $0x10] sm:$0xff]
        %v6442 = vld [vmem:[#allocation3 + $0x18] sm:$0xff]
        %v6443 = vld [vmem:[#allocation3 + $0x20] sm:$0xff]
        %v6444 = vld [vmem:[#allocation3 + $0x28] sm:$0xff]
        %v6445 = vld [vmem:[#allocation3 + $0x30] sm:$0xff]
        %v6446 = vld [vmem:[#allocation3 + $0x38] sm:$0xff]
        %v6447 = vld [vmem:[#allocation3 + $0x40] sm:$0xff]
        %v6448 = vld [vmem:[#allocation3 + $0x48] sm:$0xff]
        %v6449 = vld [vmem:[#allocation3 + $0x50] sm:$0xff]
        %v6450 = vld [vmem:[#allocation3 + $0x58] sm:$0xff]
        %v6451 = vld [vmem:[#allocation3 + $0x60] sm:$0xff]
        %v6452 = vld [vmem:[#allocation3 + $0x68] sm:$0xff]
        %v6453 = vld [vmem:[#allocation3 + $0x70] sm:$0xff]
        %v6454 = vld [vmem:[#allocation3 + $0x78] sm:$0xff]
        %v6455 = vld [vmem:[#allocation3 + $0x80] sm:$0xff]
        %v6456 = vld [vmem:[#allocation3 + $0x88] sm:$0xff]
        %v6457 = vld [vmem:[#allocation3 + $0x90] sm:$0x7]
        %v6459 = vshrl.u32 %v6439, 16
        %v6461 = vrot.slane %v6459, 2
        %v6462 = vshll.u32 %v6439, 16
        %v6464 = vrot.slane %v6462, 3
        %v6465 = vor.u32 %v6461, %v6464
        %v6467 = vshrl.u32 %v6440, 16
        %v6469 = vrot.slane %v6467, 2
        %v6470 = vshll.u32 %v6440, 16
        %v6472 = vrot.slane %v6470, 3
        %v6473 = vor.u32 %v6469, %v6472
        %v6474 = vsel %vm1967, %v6465, %v6473
        %v6476 = vshrl.u32 %v6441, 16
        %v6478 = vrot.slane %v6476, 2
        %v6479 = vshll.u32 %v6441, 16
        %v6481 = vrot.slane %v6479, 3
        %v6482 = vor.u32 %v6478, %v6481
        %v6483 = vsel %vm1967, %v6473, %v6482
        %v6485 = vshrl.u32 %v6442, 16
        %v6487 = vrot.slane %v6485, 2
        %v6488 = vshll.u32 %v6442, 16
        %v6490 = vrot.slane %v6488, 3
        %v6491 = vor.u32 %v6487, %v6490
        %v6492 = vsel %vm1967, %v6482, %v6491
        %v6494 = vshrl.u32 %v6443, 16
        %v6496 = vrot.slane %v6494, 2
        %v6497 = vshll.u32 %v6443, 16
        %v6499 = vrot.slane %v6497, 3
        %v6500 = vor.u32 %v6496, %v6499
        %v6501 = vsel %vm1967, %v6491, %v6500
        %v6503 = vshrl.u32 %v6444, 16
        %v6505 = vrot.slane %v6503, 2
        %v6506 = vshll.u32 %v6444, 16
        %v6508 = vrot.slane %v6506, 3
        %v6509 = vor.u32 %v6505, %v6508
        %v6510 = vsel %vm1967, %v6500, %v6509
        %v6512 = vshrl.u32 %v6445, 16
        %v6514 = vrot.slane %v6512, 2
        %v6515 = vshll.u32 %v6445, 16
        %v6517 = vrot.slane %v6515, 3
        %v6518 = vor.u32 %v6514, %v6517
        %v6519 = vsel %vm1967, %v6509, %v6518
        %v6521 = vshrl.u32 %v6446, 16
        %v6523 = vrot.slane %v6521, 2
        %v6524 = vshll.u32 %v6446, 16
        %v6526 = vrot.slane %v6524, 3
        %v6527 = vor.u32 %v6523, %v6526
        %v6528 = vsel %vm1967, %v6518, %v6527
        %v6530 = vshrl.u32 %v6447, 16
        %v6532 = vrot.slane %v6530, 2
        %v6533 = vshll.u32 %v6447, 16
        %v6535 = vrot.slane %v6533, 3
        %v6536 = vor.u32 %v6532, %v6535
        %v6537 = vsel %vm1967, %v6527, %v6536
        %v6539 = vshrl.u32 %v6448, 16
        %v6541 = vrot.slane %v6539, 2
        %v6542 = vshll.u32 %v6448, 16
        %v6544 = vrot.slane %v6542, 3
        %v6545 = vor.u32 %v6541, %v6544
        %v6546 = vsel %vm1967, %v6536, %v6545
        %v6548 = vshrl.u32 %v6449, 16
        %v6550 = vrot.slane %v6548, 2
        %v6551 = vshll.u32 %v6449, 16
        %v6553 = vrot.slane %v6551, 3
        %v6554 = vor.u32 %v6550, %v6553
        %v6555 = vsel %vm1967, %v6545, %v6554
        %v6557 = vshrl.u32 %v6450, 16
        %v6559 = vrot.slane %v6557, 2
        %v6560 = vshll.u32 %v6450, 16
        %v6562 = vrot.slane %v6560, 3
        %v6563 = vor.u32 %v6559, %v6562
        %v6564 = vsel %vm1967, %v6554, %v6563
        %v6566 = vshrl.u32 %v6451, 16
        %v6568 = vrot.slane %v6566, 2
        %v6569 = vshll.u32 %v6451, 16
        %v6571 = vrot.slane %v6569, 3
        %v6572 = vor.u32 %v6568, %v6571
        %v6573 = vsel %vm1967, %v6563, %v6572
        %v6575 = vshrl.u32 %v6452, 16
        %v6577 = vrot.slane %v6575, 2
        %v6578 = vshll.u32 %v6452, 16
        %v6580 = vrot.slane %v6578, 3
        %v6581 = vor.u32 %v6577, %v6580
        %v6582 = vsel %vm1967, %v6572, %v6581
        %v6584 = vshrl.u32 %v6453, 16
        %v6586 = vrot.slane %v6584, 2
        %v6587 = vshll.u32 %v6453, 16
        %v6589 = vrot.slane %v6587, 3
        %v6590 = vor.u32 %v6586, %v6589
        %v6591 = vsel %vm1967, %v6581, %v6590
        %v6593 = vshrl.u32 %v6454, 16
        %v6595 = vrot.slane %v6593, 2
        %v6596 = vshll.u32 %v6454, 16
        %v6598 = vrot.slane %v6596, 3
        %v6599 = vor.u32 %v6595, %v6598
        %v6600 = vsel %vm1967, %v6590, %v6599
        %v6602 = vshrl.u32 %v6455, 16
        %v6604 = vrot.slane %v6602, 2
        %v6605 = vshll.u32 %v6455, 16
        %v6607 = vrot.slane %v6605, 3
        %v6608 = vor.u32 %v6604, %v6607
        %v6609 = vsel %vm1967, %v6599, %v6608
        %v6611 = vshrl.u32 %v6456, 16
        %v6613 = vrot.slane %v6611, 2
        %v6614 = vshll.u32 %v6456, 16
        %v6616 = vrot.slane %v6614, 3
        %v6617 = vor.u32 %v6613, %v6616
        %v6618 = vsel %vm1967, %v6608, %v6617
        %v6620 = vshrl.u32 %v6457, 16
        %v6622 = vrot.slane %v6620, 2
        %v6623 = vshll.u32 %v6457, 16
        %v6625 = vrot.slane %v6623, 3
        %v6626 = vor.u32 %v6622, %v6625
        %v6627 = vsel %vm1967, %v6617, %v6626
        %6646 = vst [vmem:[#allocation4] sm:$0xff] %v6474
        %6647 = vst [vmem:[#allocation4 + $0x18] sm:$0xff] %v6483
        %6648 = vst [vmem:[#allocation4 + $0x30] sm:$0xff] %v6492
        %6649 = vst [vmem:[#allocation4 + $0x48] sm:$0xff] %v6501
        %6650 = vst [vmem:[#allocation4 + $0x60] sm:$0xff] %v6510
        %6651 = vst [vmem:[#allocation4 + $0x78] sm:$0xff] %v6519
        %6652 = vst [vmem:[#allocation4 + $0x90] sm:$0xff] %v6528
        %6653 = vst [vmem:[#allocation4 + $0xa8] sm:$0xff] %v6537
        %6654 = vst [vmem:[#allocation4 + $0xc0] sm:$0xff] %v6546
        %6655 = vst [vmem:[#allocation4 + $0xd8] sm:$0xff] %v6555
        %6656 = vst [vmem:[#allocation4 + $0xf0] sm:$0xff] %v6564
        %6657 = vst [vmem:[#allocation4 + $0x108] sm:$0xff] %v6573
        %6658 = vst [vmem:[#allocation4 + $0x120] sm:$0xff] %v6582
        %6659 = vst [vmem:[#allocation4 + $0x138] sm:$0xff] %v6591
        %6660 = vst [vmem:[#allocation4 + $0x150] sm:$0xff] %v6600
        %6661 = vst [vmem:[#allocation4 + $0x168] sm:$0xff] %v6609
        %6662 = vst [vmem:[#allocation4 + $0x180] sm:$0xff] %v6618
        %6663 = vst [vmem:[#allocation4 + $0x198] sm:$0xff] %v6627
        %v6664 = vld [vmem:[#allocation3] sm:$0xf8]
        %v6665 = vld [vmem:[#allocation3 + $0x8] sm:$0xff]
        %v6666 = vld [vmem:[#allocation3 + $0x10] sm:$0xff]
        %v6667 = vld [vmem:[#allocation3 + $0x18] sm:$0xff]
        %v6668 = vld [vmem:[#allocation3 + $0x20] sm:$0xff]
        %v6669 = vld [vmem:[#allocation3 + $0x28] sm:$0xff]
        %v6670 = vld [vmem:[#allocation3 + $0x30] sm:$0xff]
        %v6671 = vld [vmem:[#allocation3 + $0x38] sm:$0xff]
        %v6672 = vld [vmem:[#allocation3 + $0x40] sm:$0xff]
        %v6673 = vld [vmem:[#allocation3 + $0x48] sm:$0xff]
        %v6674 = vld [vmem:[#allocation3 + $0x50] sm:$0xff]
        %v6675 = vld [vmem:[#allocation3 + $0x58] sm:$0xff]
        %v6676 = vld [vmem:[#allocation3 + $0x60] sm:$0xff]
        %v6677 = vld [vmem:[#allocation3 + $0x68] sm:$0xff]
        %v6678 = vld [vmem:[#allocation3 + $0x70] sm:$0xff]
        %v6679 = vld [vmem:[#allocation3 + $0x78] sm:$0xff]
        %v6680 = vld [vmem:[#allocation3 + $0x80] sm:$0xff]
        %v6681 = vld [vmem:[#allocation3 + $0x88] sm:$0xff]
        %v6682 = vld [vmem:[#allocation3 + $0x90] sm:$0x7]
        %v6702 = vrot.slane %v6664, 3
        %v6703 = vrot.slane %v6665, 3
        %v6704 = vsel %vm2212, %v6702, %v6703
        %v6705 = vrot.slane %v6666, 3
        %v6706 = vsel %vm2212, %v6703, %v6705
        %v6707 = vrot.slane %v6667, 3
        %v6708 = vsel %vm2212, %v6705, %v6707
        %v6709 = vrot.slane %v6668, 3
        %v6710 = vsel %vm2212, %v6707, %v6709
        %v6711 = vrot.slane %v6669, 3
        %v6712 = vsel %vm2212, %v6709, %v6711
        %v6713 = vrot.slane %v6670, 3
        %v6714 = vsel %vm2212, %v6711, %v6713
        %v6715 = vrot.slane %v6671, 3
        %v6716 = vsel %vm2212, %v6713, %v6715
        %v6717 = vrot.slane %v6672, 3
        %v6718 = vsel %vm2212, %v6715, %v6717
        %v6719 = vrot.slane %v6673, 3
        %v6720 = vsel %vm2212, %v6717, %v6719
        %v6721 = vrot.slane %v6674, 3
        %v6722 = vsel %vm2212, %v6719, %v6721
        %v6723 = vrot.slane %v6675, 3
        %v6724 = vsel %vm2212, %v6721, %v6723
        %v6725 = vrot.slane %v6676, 3
        %v6726 = vsel %vm2212, %v6723, %v6725
        %v6727 = vrot.slane %v6677, 3
        %v6728 = vsel %vm2212, %v6725, %v6727
        %v6729 = vrot.slane %v6678, 3
        %v6730 = vsel %vm2212, %v6727, %v6729
        %v6731 = vrot.slane %v6679, 3
        %v6732 = vsel %vm2212, %v6729, %v6731
        %v6733 = vrot.slane %v6680, 3
        %v6734 = vsel %vm2212, %v6731, %v6733
        %v6735 = vrot.slane %v6681, 3
        %v6736 = vsel %vm2212, %v6733, %v6735
        %v6737 = vrot.slane %v6682, 3
        %v6738 = vsel %vm2212, %v6735, %v6737
        %6757 = vst [vmem:[#allocation4 + $0x8] sm:$0xff] %v6704
        %6758 = vst [vmem:[#allocation4 + $0x20] sm:$0xff] %v6706
        %6759 = vst [vmem:[#allocation4 + $0x38] sm:$0xff] %v6708
        %6760 = vst [vmem:[#allocation4 + $0x50] sm:$0xff] %v6710
        %6761 = vst [vmem:[#allocation4 + $0x68] sm:$0xff] %v6712
        %6762 = vst [vmem:[#allocation4 + $0x80] sm:$0xff] %v6714
        %6763 = vst [vmem:[#allocation4 + $0x98] sm:$0xff] %v6716
        %6764 = vst [vmem:[#allocation4 + $0xb0] sm:$0xff] %v6718
        %6765 = vst [vmem:[#allocation4 + $0xc8] sm:$0xff] %v6720
        %6766 = vst [vmem:[#allocation4 + $0xe0] sm:$0xff] %v6722
        %6767 = vst [vmem:[#allocation4 + $0xf8] sm:$0xff] %v6724
        %6768 = vst [vmem:[#allocation4 + $0x110] sm:$0xff] %v6726
        %6769 = vst [vmem:[#allocation4 + $0x128] sm:$0xff] %v6728
        %6770 = vst [vmem:[#allocation4 + $0x140] sm:$0xff] %v6730
        %6771 = vst [vmem:[#allocation4 + $0x158] sm:$0xff] %v6732
        %6772 = vst [vmem:[#allocation4 + $0x170] sm:$0xff] %v6734
        %6773 = vst [vmem:[#allocation4 + $0x188] sm:$0xff] %v6736
        %6774 = vst [vmem:[#allocation4 + $0x1a0] sm:$0xff] %v6738
        %v6775 = vld [vmem:[#allocation3] sm:$0xf8]
        %v6776 = vld [vmem:[#allocation3 + $0x8] sm:$0xff]
        %v6777 = vld [vmem:[#allocation3 + $0x10] sm:$0xff]
        %v6778 = vld [vmem:[#allocation3 + $0x18] sm:$0xff]
        %v6779 = vld [vmem:[#allocation3 + $0x20] sm:$0xff]
        %v6780 = vld [vmem:[#allocation3 + $0x28] sm:$0xff]
        %v6781 = vld [vmem:[#allocation3 + $0x30] sm:$0xff]
        %v6782 = vld [vmem:[#allocation3 + $0x38] sm:$0xff]
        %v6783 = vld [vmem:[#allocation3 + $0x40] sm:$0xff]
        %v6784 = vld [vmem:[#allocation3 + $0x48] sm:$0xff]
        %v6785 = vld [vmem:[#allocation3 + $0x50] sm:$0xff]
        %v6786 = vld [vmem:[#allocation3 + $0x58] sm:$0xff]
        %v6787 = vld [vmem:[#allocation3 + $0x60] sm:$0xff]
        %v6788 = vld [vmem:[#allocation3 + $0x68] sm:$0xff]
        %v6789 = vld [vmem:[#allocation3 + $0x70] sm:$0xff]
        %v6790 = vld [vmem:[#allocation3 + $0x78] sm:$0xff]
        %v6791 = vld [vmem:[#allocation3 + $0x80] sm:$0xff]
        %v6792 = vld [vmem:[#allocation3 + $0x88] sm:$0xff]
        %v6793 = vld [vmem:[#allocation3 + $0x90] sm:$0xf]
        %v6795 = vshrl.u32 %v6775, 16
        %v6797 = vrot.slane %v6795, 3
        %v6798 = vshll.u32 %v6775, 16
        %v6800 = vrot.slane %v6798, 4
        %v6801 = vor.u32 %v6797, %v6800
        %v6803 = vshrl.u32 %v6776, 16
        %v6805 = vrot.slane %v6803, 3
        %v6806 = vshll.u32 %v6776, 16
        %v6808 = vrot.slane %v6806, 4
        %v6809 = vor.u32 %v6805, %v6808
        %v6810 = vsel %vm2305, %v6801, %v6809
        %v6812 = vshrl.u32 %v6777, 16
        %v6814 = vrot.slane %v6812, 3
        %v6815 = vshll.u32 %v6777, 16
        %v6817 = vrot.slane %v6815, 4
        %v6818 = vor.u32 %v6814, %v6817
        %v6819 = vsel %vm2305, %v6809, %v6818
        %v6821 = vshrl.u32 %v6778, 16
        %v6823 = vrot.slane %v6821, 3
        %v6824 = vshll.u32 %v6778, 16
        %v6826 = vrot.slane %v6824, 4
        %v6827 = vor.u32 %v6823, %v6826
        %v6828 = vsel %vm2305, %v6818, %v6827
        %v6830 = vshrl.u32 %v6779, 16
        %v6832 = vrot.slane %v6830, 3
        %v6833 = vshll.u32 %v6779, 16
        %v6835 = vrot.slane %v6833, 4
        %v6836 = vor.u32 %v6832, %v6835
        %v6837 = vsel %vm2305, %v6827, %v6836
        %v6839 = vshrl.u32 %v6780, 16
        %v6841 = vrot.slane %v6839, 3
        %v6842 = vshll.u32 %v6780, 16
        %v6844 = vrot.slane %v6842, 4
        %v6845 = vor.u32 %v6841, %v6844
        %v6846 = vsel %vm2305, %v6836, %v6845
        %v6848 = vshrl.u32 %v6781, 16
        %v6850 = vrot.slane %v6848, 3
        %v6851 = vshll.u32 %v6781, 16
        %v6853 = vrot.slane %v6851, 4
        %v6854 = vor.u32 %v6850, %v6853
        %v6855 = vsel %vm2305, %v6845, %v6854
        %v6857 = vshrl.u32 %v6782, 16
        %v6859 = vrot.slane %v6857, 3
        %v6860 = vshll.u32 %v6782, 16
        %v6862 = vrot.slane %v6860, 4
        %v6863 = vor.u32 %v6859, %v6862
        %v6864 = vsel %vm2305, %v6854, %v6863
        %v6866 = vshrl.u32 %v6783, 16
        %v6868 = vrot.slane %v6866, 3
        %v6869 = vshll.u32 %v6783, 16
        %v6871 = vrot.slane %v6869, 4
        %v6872 = vor.u32 %v6868, %v6871
        %v6873 = vsel %vm2305, %v6863, %v6872
        %v6875 = vshrl.u32 %v6784, 16
        %v6877 = vrot.slane %v6875, 3
        %v6878 = vshll.u32 %v6784, 16
        %v6880 = vrot.slane %v6878, 4
        %v6881 = vor.u32 %v6877, %v6880
        %v6882 = vsel %vm2305, %v6872, %v6881
        %v6884 = vshrl.u32 %v6785, 16
        %v6886 = vrot.slane %v6884, 3
        %v6887 = vshll.u32 %v6785, 16
        %v6889 = vrot.slane %v6887, 4
        %v6890 = vor.u32 %v6886, %v6889
        %v6891 = vsel %vm2305, %v6881, %v6890
        %v6893 = vshrl.u32 %v6786, 16
        %v6895 = vrot.slane %v6893, 3
        %v6896 = vshll.u32 %v6786, 16
        %v6898 = vrot.slane %v6896, 4
        %v6899 = vor.u32 %v6895, %v6898
        %v6900 = vsel %vm2305, %v6890, %v6899
        %v6902 = vshrl.u32 %v6787, 16
        %v6904 = vrot.slane %v6902, 3
        %v6905 = vshll.u32 %v6787, 16
        %v6907 = vrot.slane %v6905, 4
        %v6908 = vor.u32 %v6904, %v6907
        %v6909 = vsel %vm2305, %v6899, %v6908
        %v6911 = vshrl.u32 %v6788, 16
        %v6913 = vrot.slane %v6911, 3
        %v6914 = vshll.u32 %v6788, 16
        %v6916 = vrot.slane %v6914, 4
        %v6917 = vor.u32 %v6913, %v6916
        %v6918 = vsel %vm2305, %v6908, %v6917
        %v6920 = vshrl.u32 %v6789, 16
        %v6922 = vrot.slane %v6920, 3
        %v6923 = vshll.u32 %v6789, 16
        %v6925 = vrot.slane %v6923, 4
        %v6926 = vor.u32 %v6922, %v6925
        %v6927 = vsel %vm2305, %v6917, %v6926
        %v6929 = vshrl.u32 %v6790, 16
        %v6931 = vrot.slane %v6929, 3
        %v6932 = vshll.u32 %v6790, 16
        %v6934 = vrot.slane %v6932, 4
        %v6935 = vor.u32 %v6931, %v6934
        %v6936 = vsel %vm2305, %v6926, %v6935
        %v6938 = vshrl.u32 %v6791, 16
        %v6940 = vrot.slane %v6938, 3
        %v6941 = vshll.u32 %v6791, 16
        %v6943 = vrot.slane %v6941, 4
        %v6944 = vor.u32 %v6940, %v6943
        %v6945 = vsel %vm2305, %v6935, %v6944
        %v6947 = vshrl.u32 %v6792, 16
        %v6949 = vrot.slane %v6947, 3
        %v6950 = vshll.u32 %v6792, 16
        %v6952 = vrot.slane %v6950, 4
        %v6953 = vor.u32 %v6949, %v6952
        %v6954 = vsel %vm2305, %v6944, %v6953
        %v6956 = vshrl.u32 %v6793, 16
        %v6958 = vrot.slane %v6956, 3
        %v6959 = vshll.u32 %v6793, 16
        %v6961 = vrot.slane %v6959, 4
        %v6962 = vor.u32 %v6958, %v6961
        %v6963 = vsel %vm2305, %v6953, %v6962
        %6982 = vst [vmem:[#allocation4 + $0x10] sm:$0xff] %v6810
        %6983 = vst [vmem:[#allocation4 + $0x28] sm:$0xff] %v6819
        %6984 = vst [vmem:[#allocation4 + $0x40] sm:$0xff] %v6828
        %6985 = vst [vmem:[#allocation4 + $0x58] sm:$0xff] %v6837
        %6986 = vst [vmem:[#allocation4 + $0x70] sm:$0xff] %v6846
        %6987 = vst [vmem:[#allocation4 + $0x88] sm:$0xff] %v6855
        %6988 = vst [vmem:[#allocation4 + $0xa0] sm:$0xff] %v6864
        %6989 = vst [vmem:[#allocation4 + $0xb8] sm:$0xff] %v6873
        %6990 = vst [vmem:[#allocation4 + $0xd0] sm:$0xff] %v6882
        %6991 = vst [vmem:[#allocation4 + $0xe8] sm:$0xff] %v6891
        %6992 = vst [vmem:[#allocation4 + $0x100] sm:$0xff] %v6900
        %6993 = vst [vmem:[#allocation4 + $0x118] sm:$0xff] %v6909
        %6994 = vst [vmem:[#allocation4 + $0x130] sm:$0xff] %v6918
        %6995 = vst [vmem:[#allocation4 + $0x148] sm:$0xff] %v6927
        %6996 = vst [vmem:[#allocation4 + $0x160] sm:$0xff] %v6936
        %6997 = vst [vmem:[#allocation4 + $0x178] sm:$0xff] %v6945
        %6998 = vst [vmem:[#allocation4 + $0x190] sm:$0xff] %v6954
        %6999 = vst [vmem:[#allocation4 + $0x1a8] sm:$0xff] %v6963
        %v7000 = vld [vmem:[#allocation4] sm:$0xff]
        %v7001 = vld [vmem:[#allocation4 + $0x8] sm:$0xff]
        %v7002 = vld [vmem:[#allocation4 + $0x10] sm:$0xff]
        %v7003 = vld [vmem:[#allocation4 + $0x18] sm:$0xff]
        %v7004 = vld [vmem:[#allocation4 + $0x20] sm:$0xff]
        %v7005 = vld [vmem:[#allocation4 + $0x28] sm:$0xff]
        %v7006 = vld [vmem:[#allocation4 + $0x30] sm:$0xff]
        %v7007 = vld [vmem:[#allocation4 + $0x38] sm:$0xff]
        %v7008 = vld [vmem:[#allocation4 + $0x40] sm:$0xff]
        %v7009 = vld [vmem:[#allocation4 + $0x48] sm:$0xff]
        %v7010 = vld [vmem:[#allocation4 + $0x50] sm:$0xff]
        %v7011 = vld [vmem:[#allocation4 + $0x58] sm:$0xff]
        %v7012 = vld [vmem:[#allocation4 + $0x60] sm:$0xff]
        %v7013 = vld [vmem:[#allocation4 + $0x68] sm:$0xff]
        %v7014 = vld [vmem:[#allocation4 + $0x70] sm:$0xff]
        %v7015 = vld [vmem:[#allocation4 + $0x78] sm:$0xff]
        %v7016 = vld [vmem:[#allocation4 + $0x80] sm:$0xff]
        %v7017 = vld [vmem:[#allocation4 + $0x88] sm:$0xff]
        %v7018 = vld [vmem:[#allocation4 + $0x90] sm:$0xff]
        %v7019 = vld [vmem:[#allocation4 + $0x98] sm:$0xff]
        %v7020 = vld [vmem:[#allocation4 + $0xa0] sm:$0xff]
        %v7021 = vld [vmem:[#allocation4 + $0xa8] sm:$0xff]
        %v7022 = vld [vmem:[#allocation4 + $0xb0] sm:$0xff]
        %v7023 = vld [vmem:[#allocation4 + $0xb8] sm:$0xff]
        %v7024 = vld [vmem:[#allocation4 + $0xc0] sm:$0xff]
        %v7025 = vld [vmem:[#allocation4 + $0xc8] sm:$0xff]
        %v7026 = vld [vmem:[#allocation4 + $0xd0] sm:$0xff]
        %v7027 = vld [vmem:[#allocation4 + $0xd8] sm:$0xff]
        %v7028 = vld [vmem:[#allocation4 + $0xe0] sm:$0xff]
        %v7029 = vld [vmem:[#allocation4 + $0xe8] sm:$0xff]
        %v7030 = vld [vmem:[#allocation4 + $0xf0] sm:$0xff]
        %v7031 = vld [vmem:[#allocation4 + $0xf8] sm:$0xff]
        %v7032 = vld [vmem:[#allocation4 + $0x100] sm:$0xff]
        %v7033 = vld [vmem:[#allocation4 + $0x108] sm:$0xff]
        %v7034 = vld [vmem:[#allocation4 + $0x110] sm:$0xff]
        %v7035 = vld [vmem:[#allocation4 + $0x118] sm:$0xff]
        %v7036 = vld [vmem:[#allocation4 + $0x120] sm:$0xff]
        %v7037 = vld [vmem:[#allocation4 + $0x128] sm:$0xff]
        %v7038 = vld [vmem:[#allocation4 + $0x130] sm:$0xff]
        %v7039 = vld [vmem:[#allocation4 + $0x138] sm:$0xff]
        %v7040 = vld [vmem:[#allocation4 + $0x140] sm:$0xff]
        %v7041 = vld [vmem:[#allocation4 + $0x148] sm:$0xff]
        %v7042 = vld [vmem:[#allocation4 + $0x150] sm:$0xff]
        %v7043 = vld [vmem:[#allocation4 + $0x158] sm:$0xff]
        %v7044 = vld [vmem:[#allocation4 + $0x160] sm:$0xff]
        %v7045 = vld [vmem:[#allocation4 + $0x168] sm:$0xff]
        %v7046 = vld [vmem:[#allocation4 + $0x170] sm:$0xff]
        %v7047 = vld [vmem:[#allocation4 + $0x178] sm:$0xff]
        %v7048 = vld [vmem:[#allocation4 + $0x180] sm:$0xff]
        %v7049 = vld [vmem:[#allocation4 + $0x188] sm:$0xff]
        %v7050 = vld [vmem:[#allocation4 + $0x190] sm:$0xff]
        %v7051 = vld [vmem:[#allocation4 + $0x198] sm:$0xff]
        %v7052 = vld [vmem:[#allocation4 + $0x1a0] sm:$0xff]
        %v7053 = vld [vmem:[#allocation4 + $0x1a8] sm:$0xff]
        %v7054 = vld [vmem:[#allocation25] sm:$0xf]
        %v7055 = vld [vmem:[#allocation25 + $0x4] sm:$0xf]
        %v7056 = vld [vmem:[#allocation25 + $0x8] sm:$0xf]
        %v7057 = vld [vmem:[#allocation25 + $0xc] sm:$0xf]
        %v7058 = vld [vmem:[#allocation25 + $0x10] sm:$0xf]
        %v7059 = vld [vmem:[#allocation25 + $0x14] sm:$0xf]
        %v7060 = vld [vmem:[#allocation25 + $0x18] sm:$0xf]
        %v7061 = vld [vmem:[#allocation25 + $0x1c] sm:$0xf]
        %v7062 = vld [vmem:[#allocation25 + $0x20] sm:$0xf]
        %v7063 = vld [vmem:[#allocation25 + $0x24] sm:$0xf]
        %v7064 = vld [vmem:[#allocation25 + $0x28] sm:$0xf]
        %v7065 = vld [vmem:[#allocation25 + $0x2c] sm:$0xf]
        %v7066 = vld [vmem:[#allocation25 + $0x30] sm:$0xf]
        %v7067 = vld [vmem:[#allocation25 + $0x34] sm:$0xf]
        %v7068 = vld [vmem:[#allocation25 + $0x38] sm:$0xf]
        %v7069 = vld [vmem:[#allocation25 + $0x3c] sm:$0xf]
        %v7070 = vld [vmem:[#allocation25 + $0x40] sm:$0xf]
        %v7071 = vld [vmem:[#allocation25 + $0x44] sm:$0xf]
        %v7072 = vld [vmem:[#allocation25 + $0x48] sm:$0xf]
        %v7073 = vld [vmem:[#allocation25 + $0x4c] sm:$0xf]
        %v7074 = vld [vmem:[#allocation25 + $0x50] sm:$0xf]
        %v7075 = vld [vmem:[#allocation25 + $0x54] sm:$0xf]
        %v7076 = vld [vmem:[#allocation25 + $0x58] sm:$0xf]
        %v7077 = vld [vmem:[#allocation25 + $0x5c] sm:$0xf]
        %v7078 = vld [vmem:[#allocation25 + $0x60] sm:$0xf]
        %v7079 = vld [vmem:[#allocation25 + $0x64] sm:$0xf]
        %v7080 = vld [vmem:[#allocation25 + $0x68] sm:$0xf]
        %v7081 = vld [vmem:[#allocation25 + $0x6c] sm:$0xf]
        %v7082 = vld [vmem:[#allocation25 + $0x70] sm:$0xf]
        %v7083 = vld [vmem:[#allocation25 + $0x74] sm:$0xf]
        %v7084 = vld [vmem:[#allocation25 + $0x78] sm:$0xf]
        %v7085 = vld [vmem:[#allocation25 + $0x7c] sm:$0xf]
        %v7086 = vld [vmem:[#allocation25 + $0x80] sm:$0xf]
        %v7087 = vld [vmem:[#allocation25 + $0x84] sm:$0xf]
        %v7088 = vld [vmem:[#allocation25 + $0x88] sm:$0xf]
        %v7089 = vld [vmem:[#allocation25 + $0x8c] sm:$0xf]
        %v7090 = vld [vmem:[#allocation25 + $0x90] sm:$0xf]
        %v7091 = vld [vmem:[#allocation25 + $0x94] sm:$0xf]
        %v7092 = vld [vmem:[#allocation25 + $0x98] sm:$0xf]
        %v7093 = vld [vmem:[#allocation25 + $0x9c] sm:$0xf]
        %v7094 = vld [vmem:[#allocation25 + $0xa0] sm:$0xf]
        %v7095 = vld [vmem:[#allocation25 + $0xa4] sm:$0xf]
        %v7096 = vld [vmem:[#allocation25 + $0xa8] sm:$0xf]
        %v7097 = vld [vmem:[#allocation25 + $0xac] sm:$0xf]
        %v7098 = vld [vmem:[#allocation25 + $0xb0] sm:$0xf]
        %v7099 = vld [vmem:[#allocation25 + $0xb4] sm:$0xf]
        %v7100 = vld [vmem:[#allocation25 + $0xb8] sm:$0xf]
        %v7101 = vld [vmem:[#allocation25 + $0xbc] sm:$0xf]
        %v7102 = vld [vmem:[#allocation3 + $0x8] sm:$0xf8]
        %v7103 = vld [vmem:[#allocation3 + $0x10] sm:$0xff]
        %v7104 = vld [vmem:[#allocation3 + $0x18] sm:$0xff]
        %v7105 = vld [vmem:[#allocation3 + $0x20] sm:$0xff]
        %v7106 = vld [vmem:[#allocation3 + $0x28] sm:$0xff]
        %v7107 = vld [vmem:[#allocation3 + $0x30] sm:$0xff]
        %v7108 = vld [vmem:[#allocation3 + $0x38] sm:$0xff]
        %v7109 = vld [vmem:[#allocation3 + $0x40] sm:$0xff]
        %v7110 = vld [vmem:[#allocation3 + $0x48] sm:$0xff]
        %v7111 = vld [vmem:[#allocation3 + $0x50] sm:$0xff]
        %v7112 = vld [vmem:[#allocation3 + $0x58] sm:$0xff]
        %v7113 = vld [vmem:[#allocation3 + $0x60] sm:$0xff]
        %v7114 = vld [vmem:[#allocation3 + $0x68] sm:$0xff]
        %v7115 = vld [vmem:[#allocation3 + $0x70] sm:$0xff]
        %v7116 = vld [vmem:[#allocation3 + $0x78] sm:$0xff]
        %v7117 = vld [vmem:[#allocation3 + $0x80] sm:$0xff]
        %v7118 = vld [vmem:[#allocation3 + $0x88] sm:$0xff]
        %v7119 = vld [vmem:[#allocation3 + $0x90] sm:$0xff]
        %v7120 = vld [vmem:[#allocation3 + $0x98] sm:$0xf]
        %v7122 = vshrl.u32 %v7102, 16
        %v7124 = vrot.slane %v7122, 3
        %v7125 = vshll.u32 %v7102, 16
        %v7127 = vrot.slane %v7125, 4
        %v7128 = vor.u32 %v7124, %v7127
        %v7130 = vshrl.u32 %v7103, 16
        %v7132 = vrot.slane %v7130, 3
        %v7133 = vshll.u32 %v7103, 16
        %v7135 = vrot.slane %v7133, 4
        %v7136 = vor.u32 %v7132, %v7135
        %v7137 = vsel %vm2305, %v7128, %v7136
        %v7139 = vshrl.u32 %v7104, 16
        %v7141 = vrot.slane %v7139, 3
        %v7142 = vshll.u32 %v7104, 16
        %v7144 = vrot.slane %v7142, 4
        %v7145 = vor.u32 %v7141, %v7144
        %v7146 = vsel %vm2305, %v7136, %v7145
        %v7148 = vshrl.u32 %v7105, 16
        %v7150 = vrot.slane %v7148, 3
        %v7151 = vshll.u32 %v7105, 16
        %v7153 = vrot.slane %v7151, 4
        %v7154 = vor.u32 %v7150, %v7153
        %v7155 = vsel %vm2305, %v7145, %v7154
        %v7157 = vshrl.u32 %v7106, 16
        %v7159 = vrot.slane %v7157, 3
        %v7160 = vshll.u32 %v7106, 16
        %v7162 = vrot.slane %v7160, 4
        %v7163 = vor.u32 %v7159, %v7162
        %v7164 = vsel %vm2305, %v7154, %v7163
        %v7166 = vshrl.u32 %v7107, 16
        %v7168 = vrot.slane %v7166, 3
        %v7169 = vshll.u32 %v7107, 16
        %v7171 = vrot.slane %v7169, 4
        %v7172 = vor.u32 %v7168, %v7171
        %v7173 = vsel %vm2305, %v7163, %v7172
        %v7175 = vshrl.u32 %v7108, 16
        %v7177 = vrot.slane %v7175, 3
        %v7178 = vshll.u32 %v7108, 16
        %v7180 = vrot.slane %v7178, 4
        %v7181 = vor.u32 %v7177, %v7180
        %v7182 = vsel %vm2305, %v7172, %v7181
        %v7184 = vshrl.u32 %v7109, 16
        %v7186 = vrot.slane %v7184, 3
        %v7187 = vshll.u32 %v7109, 16
        %v7189 = vrot.slane %v7187, 4
        %v7190 = vor.u32 %v7186, %v7189
        %v7191 = vsel %vm2305, %v7181, %v7190
        %v7193 = vshrl.u32 %v7110, 16
        %v7195 = vrot.slane %v7193, 3
        %v7196 = vshll.u32 %v7110, 16
        %v7198 = vrot.slane %v7196, 4
        %v7199 = vor.u32 %v7195, %v7198
        %v7200 = vsel %vm2305, %v7190, %v7199
        %v7202 = vshrl.u32 %v7111, 16
        %v7204 = vrot.slane %v7202, 3
        %v7205 = vshll.u32 %v7111, 16
        %v7207 = vrot.slane %v7205, 4
        %v7208 = vor.u32 %v7204, %v7207
        %v7209 = vsel %vm2305, %v7199, %v7208
        %v7211 = vshrl.u32 %v7112, 16
        %v7213 = vrot.slane %v7211, 3
        %v7214 = vshll.u32 %v7112, 16
        %v7216 = vrot.slane %v7214, 4
        %v7217 = vor.u32 %v7213, %v7216
        %v7218 = vsel %vm2305, %v7208, %v7217
        %v7220 = vshrl.u32 %v7113, 16
        %v7222 = vrot.slane %v7220, 3
        %v7223 = vshll.u32 %v7113, 16
        %v7225 = vrot.slane %v7223, 4
        %v7226 = vor.u32 %v7222, %v7225
        %v7227 = vsel %vm2305, %v7217, %v7226
        %v7229 = vshrl.u32 %v7114, 16
        %v7231 = vrot.slane %v7229, 3
        %v7232 = vshll.u32 %v7114, 16
        %v7234 = vrot.slane %v7232, 4
        %v7235 = vor.u32 %v7231, %v7234
        %v7236 = vsel %vm2305, %v7226, %v7235
        %v7238 = vshrl.u32 %v7115, 16
        %v7240 = vrot.slane %v7238, 3
        %v7241 = vshll.u32 %v7115, 16
        %v7243 = vrot.slane %v7241, 4
        %v7244 = vor.u32 %v7240, %v7243
        %v7245 = vsel %vm2305, %v7235, %v7244
        %v7247 = vshrl.u32 %v7116, 16
        %v7249 = vrot.slane %v7247, 3
        %v7250 = vshll.u32 %v7116, 16
        %v7252 = vrot.slane %v7250, 4
        %v7253 = vor.u32 %v7249, %v7252
        %v7254 = vsel %vm2305, %v7244, %v7253
        %v7256 = vshrl.u32 %v7117, 16
        %v7258 = vrot.slane %v7256, 3
        %v7259 = vshll.u32 %v7117, 16
        %v7261 = vrot.slane %v7259, 4
        %v7262 = vor.u32 %v7258, %v7261
        %v7263 = vsel %vm2305, %v7253, %v7262
        %v7265 = vshrl.u32 %v7118, 16
        %v7267 = vrot.slane %v7265, 3
        %v7268 = vshll.u32 %v7118, 16
        %v7270 = vrot.slane %v7268, 4
        %v7271 = vor.u32 %v7267, %v7270
        %v7272 = vsel %vm2305, %v7262, %v7271
        %v7274 = vshrl.u32 %v7119, 16
        %v7276 = vrot.slane %v7274, 3
        %v7277 = vshll.u32 %v7119, 16
        %v7279 = vrot.slane %v7277, 4
        %v7280 = vor.u32 %v7276, %v7279
        %v7281 = vsel %vm2305, %v7271, %v7280
        %v7283 = vshrl.u32 %v7120, 16
        %v7285 = vrot.slane %v7283, 3
        %v7286 = vshll.u32 %v7120, 16
        %v7288 = vrot.slane %v7286, 4
        %v7289 = vor.u32 %v7285, %v7288
        %v7290 = vsel %vm2305, %v7280, %v7289
        %7309 = vst [vmem:[#allocation4] sm:$0xff] %v7137
        %7310 = vst [vmem:[#allocation4 + $0x18] sm:$0xff] %v7146
        %7311 = vst [vmem:[#allocation4 + $0x30] sm:$0xff] %v7155
        %7312 = vst [vmem:[#allocation4 + $0x48] sm:$0xff] %v7164
        %7313 = vst [vmem:[#allocation4 + $0x60] sm:$0xff] %v7173
        %7314 = vst [vmem:[#allocation4 + $0x78] sm:$0xff] %v7182
        %7315 = vst [vmem:[#allocation4 + $0x90] sm:$0xff] %v7191
        %7316 = vst [vmem:[#allocation4 + $0xa8] sm:$0xff] %v7200
        %7317 = vst [vmem:[#allocation4 + $0xc0] sm:$0xff] %v7209
        %7318 = vst [vmem:[#allocation4 + $0xd8] sm:$0xff] %v7218
        %7319 = vst [vmem:[#allocation4 + $0xf0] sm:$0xff] %v7227
        %7320 = vst [vmem:[#allocation4 + $0x108] sm:$0xff] %v7236
        %7321 = vst [vmem:[#allocation4 + $0x120] sm:$0xff] %v7245
        %7322 = vst [vmem:[#allocation4 + $0x138] sm:$0xff] %v7254
        %7323 = vst [vmem:[#allocation4 + $0x150] sm:$0xff] %v7263
        %7324 = vst [vmem:[#allocation4 + $0x168] sm:$0xff] %v7272
        %7325 = vst [vmem:[#allocation4 + $0x180] sm:$0xff] %v7281
        %7326 = vst [vmem:[#allocation4 + $0x198] sm:$0xff] %v7290
        %v7327 = vld [vmem:[#allocation3 + $0x8] sm:$0xf0]
        %v7328 = vld [vmem:[#allocation3 + $0x10] sm:$0xff]
        %v7329 = vld [vmem:[#allocation3 + $0x18] sm:$0xff]
        %v7330 = vld [vmem:[#allocation3 + $0x20] sm:$0xff]
        %v7331 = vld [vmem:[#allocation3 + $0x28] sm:$0xff]
        %v7332 = vld [vmem:[#allocation3 + $0x30] sm:$0xff]
        %v7333 = vld [vmem:[#allocation3 + $0x38] sm:$0xff]
        %v7334 = vld [vmem:[#allocation3 + $0x40] sm:$0xff]
        %v7335 = vld [vmem:[#allocation3 + $0x48] sm:$0xff]
        %v7336 = vld [vmem:[#allocation3 + $0x50] sm:$0xff]
        %v7337 = vld [vmem:[#allocation3 + $0x58] sm:$0xff]
        %v7338 = vld [vmem:[#allocation3 + $0x60] sm:$0xff]
        %v7339 = vld [vmem:[#allocation3 + $0x68] sm:$0xff]
        %v7340 = vld [vmem:[#allocation3 + $0x70] sm:$0xff]
        %v7341 = vld [vmem:[#allocation3 + $0x78] sm:$0xff]
        %v7342 = vld [vmem:[#allocation3 + $0x80] sm:$0xff]
        %v7343 = vld [vmem:[#allocation3 + $0x88] sm:$0xff]
        %v7344 = vld [vmem:[#allocation3 + $0x90] sm:$0xff]
        %v7345 = vld [vmem:[#allocation3 + $0x98] sm:$0xf]
        %v7365 = vrot.slane %v7327, 4
        %v7366 = vrot.slane %v7328, 4
        %v7367 = vsel %vm1874, %v7365, %v7366
        %v7368 = vrot.slane %v7329, 4
        %v7369 = vsel %vm1874, %v7366, %v7368
        %v7370 = vrot.slane %v7330, 4
        %v7371 = vsel %vm1874, %v7368, %v7370
        %v7372 = vrot.slane %v7331, 4
        %v7373 = vsel %vm1874, %v7370, %v7372
        %v7374 = vrot.slane %v7332, 4
        %v7375 = vsel %vm1874, %v7372, %v7374
        %v7376 = vrot.slane %v7333, 4
        %v7377 = vsel %vm1874, %v7374, %v7376
        %v7378 = vrot.slane %v7334, 4
        %v7379 = vsel %vm1874, %v7376, %v7378
        %v7380 = vrot.slane %v7335, 4
        %v7381 = vsel %vm1874, %v7378, %v7380
        %v7382 = vrot.slane %v7336, 4
        %v7383 = vsel %vm1874, %v7380, %v7382
        %v7384 = vrot.slane %v7337, 4
        %v7385 = vsel %vm1874, %v7382, %v7384
        %v7386 = vrot.slane %v7338, 4
        %v7387 = vsel %vm1874, %v7384, %v7386
        %v7388 = vrot.slane %v7339, 4
        %v7389 = vsel %vm1874, %v7386, %v7388
        %v7390 = vrot.slane %v7340, 4
        %v7391 = vsel %vm1874, %v7388, %v7390
        %v7392 = vrot.slane %v7341, 4
        %v7393 = vsel %vm1874, %v7390, %v7392
        %v7394 = vrot.slane %v7342, 4
        %v7395 = vsel %vm1874, %v7392, %v7394
        %v7396 = vrot.slane %v7343, 4
        %v7397 = vsel %vm1874, %v7394, %v7396
        %v7398 = vrot.slane %v7344, 4
        %v7399 = vsel %vm1874, %v7396, %v7398
        %v7400 = vrot.slane %v7345, 4
        %v7401 = vsel %vm1874, %v7398, %v7400
        %7420 = vst [vmem:[#allocation4 + $0x8] sm:$0xff] %v7367
        %7421 = vst [vmem:[#allocation4 + $0x20] sm:$0xff] %v7369
        %7422 = vst [vmem:[#allocation4 + $0x38] sm:$0xff] %v7371
        %7423 = vst [vmem:[#allocation4 + $0x50] sm:$0xff] %v7373
        %7424 = vst [vmem:[#allocation4 + $0x68] sm:$0xff] %v7375
        %7425 = vst [vmem:[#allocation4 + $0x80] sm:$0xff] %v7377
        %7426 = vst [vmem:[#allocation4 + $0x98] sm:$0xff] %v7379
        %7427 = vst [vmem:[#allocation4 + $0xb0] sm:$0xff] %v7381
        %7428 = vst [vmem:[#allocation4 + $0xc8] sm:$0xff] %v7383
        %7429 = vst [vmem:[#allocation4 + $0xe0] sm:$0xff] %v7385
        %7430 = vst [vmem:[#allocation4 + $0xf8] sm:$0xff] %v7387
        %7431 = vst [vmem:[#allocation4 + $0x110] sm:$0xff] %v7389
        %7432 = vst [vmem:[#allocation4 + $0x128] sm:$0xff] %v7391
        %7433 = vst [vmem:[#allocation4 + $0x140] sm:$0xff] %v7393
        %7434 = vst [vmem:[#allocation4 + $0x158] sm:$0xff] %v7395
        %7435 = vst [vmem:[#allocation4 + $0x170] sm:$0xff] %v7397
        %7436 = vst [vmem:[#allocation4 + $0x188] sm:$0xff] %v7399
        %7437 = vst [vmem:[#allocation4 + $0x1a0] sm:$0xff] %v7401
        %v7438 = vld [vmem:[#allocation3 + $0x8] sm:$0xf0]
        %v7439 = vld [vmem:[#allocation3 + $0x10] sm:$0xff]
        %v7440 = vld [vmem:[#allocation3 + $0x18] sm:$0xff]
        %v7441 = vld [vmem:[#allocation3 + $0x20] sm:$0xff]
        %v7442 = vld [vmem:[#allocation3 + $0x28] sm:$0xff]
        %v7443 = vld [vmem:[#allocation3 + $0x30] sm:$0xff]
        %v7444 = vld [vmem:[#allocation3 + $0x38] sm:$0xff]
        %v7445 = vld [vmem:[#allocation3 + $0x40] sm:$0xff]
        %v7446 = vld [vmem:[#allocation3 + $0x48] sm:$0xff]
        %v7447 = vld [vmem:[#allocation3 + $0x50] sm:$0xff]
        %v7448 = vld [vmem:[#allocation3 + $0x58] sm:$0xff]
        %v7449 = vld [vmem:[#allocation3 + $0x60] sm:$0xff]
        %v7450 = vld [vmem:[#allocation3 + $0x68] sm:$0xff]
        %v7451 = vld [vmem:[#allocation3 + $0x70] sm:$0xff]
        %v7452 = vld [vmem:[#allocation3 + $0x78] sm:$0xff]
        %v7453 = vld [vmem:[#allocation3 + $0x80] sm:$0xff]
        %v7454 = vld [vmem:[#allocation3 + $0x88] sm:$0xff]
        %v7455 = vld [vmem:[#allocation3 + $0x90] sm:$0xff]
        %v7456 = vld [vmem:[#allocation3 + $0x98] sm:$0x1f]
        %v7458 = vshrl.u32 %v7438, 16
        %v7460 = vrot.slane %v7458, 4
        %v7461 = vshll.u32 %v7438, 16
        %v7463 = vrot.slane %v7461, 5
        %v7464 = vor.u32 %v7460, %v7463
        %v7466 = vshrl.u32 %v7439, 16
        %v7468 = vrot.slane %v7466, 4
        %v7469 = vshll.u32 %v7439, 16
        %v7471 = vrot.slane %v7469, 5
        %v7472 = vor.u32 %v7468, %v7471
        %v7473 = vsel %vm2969, %v7464, %v7472
        %v7475 = vshrl.u32 %v7440, 16
        %v7477 = vrot.slane %v7475, 4
        %v7478 = vshll.u32 %v7440, 16
        %v7480 = vrot.slane %v7478, 5
        %v7481 = vor.u32 %v7477, %v7480
        %v7482 = vsel %vm2969, %v7472, %v7481
        %v7484 = vshrl.u32 %v7441, 16
        %v7486 = vrot.slane %v7484, 4
        %v7487 = vshll.u32 %v7441, 16
        %v7489 = vrot.slane %v7487, 5
        %v7490 = vor.u32 %v7486, %v7489
        %v7491 = vsel %vm2969, %v7481, %v7490
        %v7493 = vshrl.u32 %v7442, 16
        %v7495 = vrot.slane %v7493, 4
        %v7496 = vshll.u32 %v7442, 16
        %v7498 = vrot.slane %v7496, 5
        %v7499 = vor.u32 %v7495, %v7498
        %v7500 = vsel %vm2969, %v7490, %v7499
        %v7502 = vshrl.u32 %v7443, 16
        %v7504 = vrot.slane %v7502, 4
        %v7505 = vshll.u32 %v7443, 16
        %v7507 = vrot.slane %v7505, 5
        %v7508 = vor.u32 %v7504, %v7507
        %v7509 = vsel %vm2969, %v7499, %v7508
        %v7511 = vshrl.u32 %v7444, 16
        %v7513 = vrot.slane %v7511, 4
        %v7514 = vshll.u32 %v7444, 16
        %v7516 = vrot.slane %v7514, 5
        %v7517 = vor.u32 %v7513, %v7516
        %v7518 = vsel %vm2969, %v7508, %v7517
        %v7520 = vshrl.u32 %v7445, 16
        %v7522 = vrot.slane %v7520, 4
        %v7523 = vshll.u32 %v7445, 16
        %v7525 = vrot.slane %v7523, 5
        %v7526 = vor.u32 %v7522, %v7525
        %v7527 = vsel %vm2969, %v7517, %v7526
        %v7529 = vshrl.u32 %v7446, 16
        %v7531 = vrot.slane %v7529, 4
        %v7532 = vshll.u32 %v7446, 16
        %v7534 = vrot.slane %v7532, 5
        %v7535 = vor.u32 %v7531, %v7534
        %v7536 = vsel %vm2969, %v7526, %v7535
        %v7538 = vshrl.u32 %v7447, 16
        %v7540 = vrot.slane %v7538, 4
        %v7541 = vshll.u32 %v7447, 16
        %v7543 = vrot.slane %v7541, 5
        %v7544 = vor.u32 %v7540, %v7543
        %v7545 = vsel %vm2969, %v7535, %v7544
        %v7547 = vshrl.u32 %v7448, 16
        %v7549 = vrot.slane %v7547, 4
        %v7550 = vshll.u32 %v7448, 16
        %v7552 = vrot.slane %v7550, 5
        %v7553 = vor.u32 %v7549, %v7552
        %v7554 = vsel %vm2969, %v7544, %v7553
        %v7556 = vshrl.u32 %v7449, 16
        %v7558 = vrot.slane %v7556, 4
        %v7559 = vshll.u32 %v7449, 16
        %v7561 = vrot.slane %v7559, 5
        %v7562 = vor.u32 %v7558, %v7561
        %v7563 = vsel %vm2969, %v7553, %v7562
        %v7565 = vshrl.u32 %v7450, 16
        %v7567 = vrot.slane %v7565, 4
        %v7568 = vshll.u32 %v7450, 16
        %v7570 = vrot.slane %v7568, 5
        %v7571 = vor.u32 %v7567, %v7570
        %v7572 = vsel %vm2969, %v7562, %v7571
        %v7574 = vshrl.u32 %v7451, 16
        %v7576 = vrot.slane %v7574, 4
        %v7577 = vshll.u32 %v7451, 16
        %v7579 = vrot.slane %v7577, 5
        %v7580 = vor.u32 %v7576, %v7579
        %v7581 = vsel %vm2969, %v7571, %v7580
        %v7583 = vshrl.u32 %v7452, 16
        %v7585 = vrot.slane %v7583, 4
        %v7586 = vshll.u32 %v7452, 16
        %v7588 = vrot.slane %v7586, 5
        %v7589 = vor.u32 %v7585, %v7588
        %v7590 = vsel %vm2969, %v7580, %v7589
        %v7592 = vshrl.u32 %v7453, 16
        %v7594 = vrot.slane %v7592, 4
        %v7595 = vshll.u32 %v7453, 16
        %v7597 = vrot.slane %v7595, 5
        %v7598 = vor.u32 %v7594, %v7597
        %v7599 = vsel %vm2969, %v7589, %v7598
        %v7601 = vshrl.u32 %v7454, 16
        %v7603 = vrot.slane %v7601, 4
        %v7604 = vshll.u32 %v7454, 16
        %v7606 = vrot.slane %v7604, 5
        %v7607 = vor.u32 %v7603, %v7606
        %v7608 = vsel %vm2969, %v7598, %v7607
        %v7610 = vshrl.u32 %v7455, 16
        %v7612 = vrot.slane %v7610, 4
        %v7613 = vshll.u32 %v7455, 16
        %v7615 = vrot.slane %v7613, 5
        %v7616 = vor.u32 %v7612, %v7615
        %v7617 = vsel %vm2969, %v7607, %v7616
        %v7619 = vshrl.u32 %v7456, 16
        %v7621 = vrot.slane %v7619, 4
        %v7622 = vshll.u32 %v7456, 16
        %v7624 = vrot.slane %v7622, 5
        %v7625 = vor.u32 %v7621, %v7624
        %v7626 = vsel %vm2969, %v7616, %v7625
        %7645 = vst [vmem:[#allocation4 + $0x10] sm:$0xff] %v7473
        %7646 = vst [vmem:[#allocation4 + $0x28] sm:$0xff] %v7482
        %7647 = vst [vmem:[#allocation4 + $0x40] sm:$0xff] %v7491
        %7648 = vst [vmem:[#allocation4 + $0x58] sm:$0xff] %v7500
        %7649 = vst [vmem:[#allocation4 + $0x70] sm:$0xff] %v7509
        %7650 = vst [vmem:[#allocation4 + $0x88] sm:$0xff] %v7518
        %7651 = vst [vmem:[#allocation4 + $0xa0] sm:$0xff] %v7527
        %7652 = vst [vmem:[#allocation4 + $0xb8] sm:$0xff] %v7536
        %7653 = vst [vmem:[#allocation4 + $0xd0] sm:$0xff] %v7545
        %7654 = vst [vmem:[#allocation4 + $0xe8] sm:$0xff] %v7554
        %7655 = vst [vmem:[#allocation4 + $0x100] sm:$0xff] %v7563
        %7656 = vst [vmem:[#allocation4 + $0x118] sm:$0xff] %v7572
        %7657 = vst [vmem:[#allocation4 + $0x130] sm:$0xff] %v7581
        %7658 = vst [vmem:[#allocation4 + $0x148] sm:$0xff] %v7590
        %7659 = vst [vmem:[#allocation4 + $0x160] sm:$0xff] %v7599
        %7660 = vst [vmem:[#allocation4 + $0x178] sm:$0xff] %v7608
        %7661 = vst [vmem:[#allocation4 + $0x190] sm:$0xff] %v7617
        %7662 = vst [vmem:[#allocation4 + $0x1a8] sm:$0xff] %v7626
        %v7663 = vld [vmem:[#allocation4] sm:$0xff]
        %v7664 = vld [vmem:[#allocation4 + $0x8] sm:$0xff]
        %v7665 = vld [vmem:[#allocation4 + $0x10] sm:$0xff]
        %v7666 = vld [vmem:[#allocation4 + $0x18] sm:$0xff]
        %v7667 = vld [vmem:[#allocation4 + $0x20] sm:$0xff]
        %v7668 = vld [vmem:[#allocation4 + $0x28] sm:$0xff]
        %v7669 = vld [vmem:[#allocation4 + $0x30] sm:$0xff]
        %v7670 = vld [vmem:[#allocation4 + $0x38] sm:$0xff]
        %v7671 = vld [vmem:[#allocation4 + $0x40] sm:$0xff]
        %v7672 = vld [vmem:[#allocation4 + $0x48] sm:$0xff]
        %v7673 = vld [vmem:[#allocation4 + $0x50] sm:$0xff]
        %v7674 = vld [vmem:[#allocation4 + $0x58] sm:$0xff]
        %v7675 = vld [vmem:[#allocation4 + $0x60] sm:$0xff]
        %v7676 = vld [vmem:[#allocation4 + $0x68] sm:$0xff]
        %v7677 = vld [vmem:[#allocation4 + $0x70] sm:$0xff]
        %v7678 = vld [vmem:[#allocation4 + $0x78] sm:$0xff]
        %v7679 = vld [vmem:[#allocation4 + $0x80] sm:$0xff]
        %v7680 = vld [vmem:[#allocation4 + $0x88] sm:$0xff]
        %v7681 = vld [vmem:[#allocation4 + $0x90] sm:$0xff]
        %v7682 = vld [vmem:[#allocation4 + $0x98] sm:$0xff]
        %v7683 = vld [vmem:[#allocation4 + $0xa0] sm:$0xff]
        %v7684 = vld [vmem:[#allocation4 + $0xa8] sm:$0xff]
        %v7685 = vld [vmem:[#allocation4 + $0xb0] sm:$0xff]
        %v7686 = vld [vmem:[#allocation4 + $0xb8] sm:$0xff]
        %v7687 = vld [vmem:[#allocation4 + $0xc0] sm:$0xff]
        %v7688 = vld [vmem:[#allocation4 + $0xc8] sm:$0xff]
        %v7689 = vld [vmem:[#allocation4 + $0xd0] sm:$0xff]
        %v7690 = vld [vmem:[#allocation4 + $0xd8] sm:$0xff]
        %v7691 = vld [vmem:[#allocation4 + $0xe0] sm:$0xff]
        %v7692 = vld [vmem:[#allocation4 + $0xe8] sm:$0xff]
        %v7693 = vld [vmem:[#allocation4 + $0xf0] sm:$0xff]
        %v7694 = vld [vmem:[#allocation4 + $0xf8] sm:$0xff]
        %v7695 = vld [vmem:[#allocation4 + $0x100] sm:$0xff]
        %v7696 = vld [vmem:[#allocation4 + $0x108] sm:$0xff]
        %v7697 = vld [vmem:[#allocation4 + $0x110] sm:$0xff]
        %v7698 = vld [vmem:[#allocation4 + $0x118] sm:$0xff]
        %v7699 = vld [vmem:[#allocation4 + $0x120] sm:$0xff]
        %v7700 = vld [vmem:[#allocation4 + $0x128] sm:$0xff]
        %v7701 = vld [vmem:[#allocation4 + $0x130] sm:$0xff]
        %v7702 = vld [vmem:[#allocation4 + $0x138] sm:$0xff]
        %v7703 = vld [vmem:[#allocation4 + $0x140] sm:$0xff]
        %v7704 = vld [vmem:[#allocation4 + $0x148] sm:$0xff]
        %v7705 = vld [vmem:[#allocation4 + $0x150] sm:$0xff]
        %v7706 = vld [vmem:[#allocation4 + $0x158] sm:$0xff]
        %v7707 = vld [vmem:[#allocation4 + $0x160] sm:$0xff]
        %v7708 = vld [vmem:[#allocation4 + $0x168] sm:$0xff]
        %v7709 = vld [vmem:[#allocation4 + $0x170] sm:$0xff]
        %v7710 = vld [vmem:[#allocation4 + $0x178] sm:$0xff]
        %v7711 = vld [vmem:[#allocation4 + $0x180] sm:$0xff]
        %v7712 = vld [vmem:[#allocation4 + $0x188] sm:$0xff]
        %v7713 = vld [vmem:[#allocation4 + $0x190] sm:$0xff]
        %v7714 = vld [vmem:[#allocation4 + $0x198] sm:$0xff]
        %v7715 = vld [vmem:[#allocation4 + $0x1a0] sm:$0xff]
        %v7716 = vld [vmem:[#allocation4 + $0x1a8] sm:$0xff]
        %s7717 = scalar_lea.vmem [#allocation25], 192
        %v7718 = vld [vmem:[%s7717] sm:$0xf]
        %v7719 = vld [vmem:[%s7717 + $0x4] sm:$0xf]
        %v7720 = vld [vmem:[%s7717 + $0x8] sm:$0xf]
        %v7721 = vld [vmem:[%s7717 + $0xc] sm:$0xf]
        %v7722 = vld [vmem:[%s7717 + $0x10] sm:$0xf]
        %v7723 = vld [vmem:[%s7717 + $0x14] sm:$0xf]
        %v7724 = vld [vmem:[%s7717 + $0x18] sm:$0xf]
        %v7725 = vld [vmem:[%s7717 + $0x1c] sm:$0xf]
        %v7726 = vld [vmem:[%s7717 + $0x20] sm:$0xf]
        %v7727 = vld [vmem:[%s7717 + $0x24] sm:$0xf]
        %v7728 = vld [vmem:[%s7717 + $0x28] sm:$0xf]
        %v7729 = vld [vmem:[%s7717 + $0x2c] sm:$0xf]
        %v7730 = vld [vmem:[%s7717 + $0x30] sm:$0xf]
        %v7731 = vld [vmem:[%s7717 + $0x34] sm:$0xf]
        %v7732 = vld [vmem:[%s7717 + $0x38] sm:$0xf]
        %v7733 = vld [vmem:[%s7717 + $0x3c] sm:$0xf]
        %v7734 = vld [vmem:[%s7717 + $0x40] sm:$0xf]
        %v7735 = vld [vmem:[%s7717 + $0x44] sm:$0xf]
        %v7736 = vld [vmem:[%s7717 + $0x48] sm:$0xf]
        %v7737 = vld [vmem:[%s7717 + $0x4c] sm:$0xf]
        %v7738 = vld [vmem:[%s7717 + $0x50] sm:$0xf]
        %v7739 = vld [vmem:[%s7717 + $0x54] sm:$0xf]
        %v7740 = vld [vmem:[%s7717 + $0x58] sm:$0xf]
        %v7741 = vld [vmem:[%s7717 + $0x5c] sm:$0xf]
        %v7742 = vld [vmem:[%s7717 + $0x60] sm:$0xf]
        %v7743 = vld [vmem:[%s7717 + $0x64] sm:$0xf]
        %v7744 = vld [vmem:[%s7717 + $0x68] sm:$0xf]
        %v7745 = vld [vmem:[%s7717 + $0x6c] sm:$0xf]
        %v7746 = vld [vmem:[%s7717 + $0x70] sm:$0xf]
        %v7747 = vld [vmem:[%s7717 + $0x74] sm:$0xf]
        %v7748 = vld [vmem:[%s7717 + $0x78] sm:$0xf]
        %v7749 = vld [vmem:[%s7717 + $0x7c] sm:$0xf]
        %v7750 = vld [vmem:[%s7717 + $0x80] sm:$0xf]
        %v7751 = vld [vmem:[%s7717 + $0x84] sm:$0xf]
        %v7752 = vld [vmem:[%s7717 + $0x88] sm:$0xf]
        %v7753 = vld [vmem:[%s7717 + $0x8c] sm:$0xf]
        %v7754 = vld [vmem:[%s7717 + $0x90] sm:$0xf]
        %v7755 = vld [vmem:[%s7717 + $0x94] sm:$0xf]
        %v7756 = vld [vmem:[%s7717 + $0x98] sm:$0xf]
        %v7757 = vld [vmem:[%s7717 + $0x9c] sm:$0xf]
        %v7758 = vld [vmem:[%s7717 + $0xa0] sm:$0xf]
        %v7759 = vld [vmem:[%s7717 + $0xa4] sm:$0xf]
        %v7760 = vld [vmem:[%s7717 + $0xa8] sm:$0xf]
        %v7761 = vld [vmem:[%s7717 + $0xac] sm:$0xf]
        %v7762 = vld [vmem:[%s7717 + $0xb0] sm:$0xf]
        %v7763 = vld [vmem:[%s7717 + $0xb4] sm:$0xf]
        %v7764 = vld [vmem:[%s7717 + $0xb8] sm:$0xf]
        %v7765 = vld [vmem:[%s7717 + $0xbc] sm:$0xf]
        %v7814 = vunpack.c.l.b16 %v7718
        %v7815 = vunpack.c.l.b16 %v7719
        %v7816 = vunpack.c.l.b16 %v7720
        %v7817 = vunpack.c.l.b16 %v7721
        %v7818 = vunpack.c.l.b16 %v7722
        %v7819 = vunpack.c.l.b16 %v7723
        %v7820 = vunpack.c.l.b16 %v7724
        %v7821 = vunpack.c.l.b16 %v7725
        %v7822 = vunpack.c.l.b16 %v7726
        %v7823 = vunpack.c.l.b16 %v7727
        %v7824 = vunpack.c.l.b16 %v7728
        %v7825 = vunpack.c.l.b16 %v7729
        %v7826 = vunpack.c.l.b16 %v7730
        %v7827 = vunpack.c.l.b16 %v7731
        %v7828 = vunpack.c.l.b16 %v7732
        %v7829 = vunpack.c.l.b16 %v7733
        %v7830 = vunpack.c.l.b16 %v7734
        %v7831 = vunpack.c.l.b16 %v7735
        %v7832 = vunpack.c.l.b16 %v7736
        %v7833 = vunpack.c.l.b16 %v7737
        %v7834 = vunpack.c.l.b16 %v7738
        %v7835 = vunpack.c.l.b16 %v7739
        %v7836 = vunpack.c.l.b16 %v7740
        %v7837 = vunpack.c.l.b16 %v7741
        %v7838 = vunpack.c.l.b16 %v7742
        %v7839 = vunpack.c.l.b16 %v7743
        %v7840 = vunpack.c.l.b16 %v7744
        %v7841 = vunpack.c.l.b16 %v7745
        %v7842 = vunpack.c.l.b16 %v7746
        %v7843 = vunpack.c.l.b16 %v7747
        %v7844 = vunpack.c.l.b16 %v7748
        %v7845 = vunpack.c.l.b16 %v7749
        %v7846 = vunpack.c.l.b16 %v7750
        %v7847 = vunpack.c.l.b16 %v7751
        %v7848 = vunpack.c.l.b16 %v7752
        %v7849 = vunpack.c.l.b16 %v7753
        %v7850 = vunpack.c.l.b16 %v7754
        %v7851 = vunpack.c.l.b16 %v7755
        %v7852 = vunpack.c.l.b16 %v7756
        %v7853 = vunpack.c.l.b16 %v7757
        %v7854 = vunpack.c.l.b16 %v7758
        %v7855 = vunpack.c.l.b16 %v7759
        %v7856 = vunpack.c.l.b16 %v7760
        %v7857 = vunpack.c.l.b16 %v7761
        %v7858 = vunpack.c.l.b16 %v7762
        %v7859 = vunpack.c.l.b16 %v7763
        %v7860 = vunpack.c.l.b16 %v7764
        %v7861 = vunpack.c.l.b16 %v7765
        %v7862 = vpack.c.b16 %v7815, %v7814
        %v7863 = vpack.c.b16 %v7817, %v7816
        %v7864 = vpack.c.b16 %v7819, %v7818
        %v7865 = vpack.c.b16 %v7821, %v7820
        %v7866 = vpack.c.b16 %v7823, %v7822
        %v7867 = vpack.c.b16 %v7825, %v7824
        %v7868 = vpack.c.b16 %v7827, %v7826
        %v7869 = vpack.c.b16 %v7829, %v7828
        %v7870 = vpack.c.b16 %v7831, %v7830
        %v7871 = vpack.c.b16 %v7833, %v7832
        %v7872 = vpack.c.b16 %v7835, %v7834
        %v7873 = vpack.c.b16 %v7837, %v7836
        %v7874 = vpack.c.b16 %v7839, %v7838
        %v7875 = vpack.c.b16 %v7841, %v7840
        %v7876 = vpack.c.b16 %v7843, %v7842
        %v7877 = vpack.c.b16 %v7845, %v7844
        %v7878 = vpack.c.b16 %v7847, %v7846
        %v7879 = vpack.c.b16 %v7849, %v7848
        %v7880 = vpack.c.b16 %v7851, %v7850
        %v7881 = vpack.c.b16 %v7853, %v7852
        %v7882 = vpack.c.b16 %v7855, %v7854
        %v7883 = vpack.c.b16 %v7857, %v7856
        %v7884 = vpack.c.b16 %v7859, %v7858
        %v7885 = vpack.c.b16 %v7861, %v7860
        %7910 = vmatprep.subr.bf16.mxu0 0
        %7911 = vmatpush1.bf16.msra.mxu0 %v7862
        %7912 = vmatprep.subr.bf16.mxu0 0
        %7913 = vmatpush1.bf16.msra.mxu0 %v7863
        %7914 = vmatprep.subr.bf16.mxu0 0
        %7915 = vmatpush1.bf16.msra.mxu0 %v7864
        %7916 = vmatprep.subr.bf16.mxu0 0
        %7917 = vmatpush1.bf16.msra.mxu0 %v7865
        %7918 = vmatprep.subr.bf16.mxu0 0
        %7919 = vmatpush1.bf16.msra.mxu0 %v7866
        %7920 = vmatprep.subr.bf16.mxu0 0
        %7921 = vmatpush1.bf16.msra.mxu0 %v7867
        %7922 = vmatprep.subr.bf16.mxu0 0
        %7923 = vmatpush1.bf16.msra.mxu0 %v7868
        %7924 = vmatprep.subr.bf16.mxu0 0
        %7925 = vmatpush1.bf16.msra.mxu0 %v7869
        %7926 = vmatprep.subr.bf16.mxu0 0
        %7927 = vmatpush1.bf16.msra.mxu0 %v7870
        %7928 = vmatprep.subr.bf16.mxu0 0
        %7929 = vmatpush1.bf16.msra.mxu0 %v7871
        %7930 = vmatprep.subr.bf16.mxu0 0
        %7931 = vmatpush1.bf16.msra.mxu0 %v7872
        %7932 = vmatprep.subr.bf16.mxu0 0
        %7933 = vmatpush1.bf16.msra.mxu0 %v7873
        %7934 = vmatprep.subr.bf16.mxu0 0
        %7935 = vmatpush1.bf16.msra.mxu0 %v7874
        %7936 = vmatprep.subr.bf16.mxu0 0
        %7937 = vmatpush1.bf16.msra.mxu0 %v7875
        %7938 = vmatprep.subr.bf16.mxu0 0
        %7939 = vmatpush1.bf16.msra.mxu0 %v7876
        %7940 = vmatprep.subr.bf16.mxu0 0
        %7941 = vmatpush1.bf16.msra.mxu0 %v7877
        %7942 = vmatprep.mubr.bf16.mxu0 %v7664
        %7943 = vmatmul.mubr.bf16.gmra.mrb[0].mxu0 %v7663
        %v7944 = vpop.f32.mrb[0].mxu0
        %v7945 = vadd.f32 0.0, %v7944
        %v7946 = vpop.f32.mrb[0].mxu0
        %v7947 = vpop.f32.mrb[0].mxu0
        %v7948 = vadd.f32 0.0, %v7947
        %v7949 = vpop.f32.mrb[0].mxu0
        %7950 = vmatprep.mubr.bf16.mxu0 %v7667
        %7951 = vmatmul.mubr.bf16.gmra.mrb[0].mxu0 %v7666
        %v7952 = vpop.f32.mrb[0].mxu0
        %v7953 = vadd.f32 0.0, %v7952
        %v7954 = vpop.f32.mrb[0].mxu0
        %v7955 = vpop.f32.mrb[0].mxu0
        %v7956 = vadd.f32 0.0, %v7955
        %v7957 = vpop.f32.mrb[0].mxu0
        %7958 = vmatprep.mubr.bf16.mxu0 %v7670
        %7959 = vmatmul.mubr.bf16.gmra.mrb[0].mxu0 %v7669
        %v7960 = vpop.f32.mrb[0].mxu0
        %v7961 = vadd.f32 0.0, %v7960
        %v7962 = vpop.f32.mrb[0].mxu0
        %v7963 = vpop.f32.mrb[0].mxu0
        %v7964 = vadd.f32 0.0, %v7963
        %v7965 = vpop.f32.mrb[0].mxu0
        %7966 = vmatprep.mubr.bf16.mxu0 %v7673
        %7967 = vmatmul.mubr.bf16.gmra.mrb[0].mxu0 %v7672
        %v7968 = vpop.f32.mrb[0].mxu0
        %v7969 = vadd.f32 0.0, %v7968
        %v7970 = vpop.f32.mrb[0].mxu0
        %v7971 = vpop.f32.mrb[0].mxu0
        %v7972 = vadd.f32 0.0, %v7971
        %v7973 = vpop.f32.mrb[0].mxu0
        %7974 = vmatprep.mubr.bf16.mxu0 %v7676
        %7975 = vmatmul.mubr.bf16.gmra.mrb[0].mxu0 %v7675
        %v7976 = vpop.f32.mrb[0].mxu0
        %v7977 = vadd.f32 0.0, %v7976
        %v7978 = vpop.f32.mrb[0].mxu0
        %v7979 = vpop.f32.mrb[0].mxu0
        %v7980 = vadd.f32 0.0, %v7979
        %v7981 = vpop.f32.mrb[0].mxu0
        %7982 = vmatprep.mubr.bf16.mxu0 %v7679
        %7983 = vmatmul.mubr.bf16.gmra.mrb[0].mxu0 %v7678
        %v7984 = vpop.f32.mrb[0].mxu0
        %v7985 = vadd.f32 0.0, %v7984
        %v7986 = vpop.f32.mrb[0].mxu0
        %v7987 = vpop.f32.mrb[0].mxu0
        %v7988 = vadd.f32 0.0, %v7987
        %v7989 = vpop.f32.mrb[0].mxu0
        %7990 = vmatprep.mubr.bf16.mxu0 %v7682
        %7991 = vmatmul.mubr.bf16.gmra.mrb[0].mxu0 %v7681
        %v7992 = vpop.f32.mrb[0].mxu0
        %v7993 = vadd.f32 0.0, %v7992
        %v7994 = vpop.f32.mrb[0].mxu0
        %v7995 = vpop.f32.mrb[0].mxu0
        %v7996 = vadd.f32 0.0, %v7995
        %v7997 = vpop.f32.mrb[0].mxu0
        %7998 = vmatprep.mubr.bf16.mxu0 %v7685
        %7999 = vmatmul.mubr.bf16.gmra.mrb[0].mxu0 %v7684
        %v8000 = vpop.f32.mrb[0].mxu0
        %v8001 = vadd.f32 0.0, %v8000
        %v8002 = vpop.f32.mrb[0].mxu0
        %v8003 = vpop.f32.mrb[0].mxu0
        %v8004 = vadd.f32 0.0, %v8003
        %v8005 = vpop.f32.mrb[0].mxu0
        %8006 = vmatprep.mubr.bf16.mxu0 %v7688
        %8007 = vmatmul.mubr.bf16.gmra.mrb[0].mxu0 %v7687
        %v8008 = vpop.f32.mrb[0].mxu0
        %v8009 = vadd.f32 0.0, %v8008
        %v8010 = vpop.f32.mrb[0].mxu0
        %v8011 = vpop.f32.mrb[0].mxu0
        %v8012 = vadd.f32 0.0, %v8011
        %v8013 = vpop.f32.mrb[0].mxu0
        %8014 = vmatprep.mubr.bf16.mxu0 %v7691
        %8015 = vmatmul.mubr.bf16.gmra.mrb[0].mxu0 %v7690
        %v8016 = vpop.f32.mrb[0].mxu0
        %v8017 = vadd.f32 0.0, %v8016
        %v8018 = vpop.f32.mrb[0].mxu0
        %v8019 = vpop.f32.mrb[0].mxu0
        %v8020 = vadd.f32 0.0, %v8019
        %v8021 = vpop.f32.mrb[0].mxu0
        %8022 = vmatprep.mubr.bf16.mxu0 %v7694
        %8023 = vmatmul.mubr.bf16.gmra.mrb[0].mxu0 %v7693
        %v8024 = vpop.f32.mrb[0].mxu0
        %v8025 = vadd.f32 0.0, %v8024
        %v8026 = vpop.f32.mrb[0].mxu0
        %v8027 = vpop.f32.mrb[0].mxu0
        %v8028 = vadd.f32 0.0, %v8027
        %v8029 = vpop.f32.mrb[0].mxu0
        %8030 = vmatprep.mubr.bf16.mxu0 %v7697
        %8031 = vmatmul.mubr.bf16.gmra.mrb[0].mxu0 %v7696
        %v8032 = vpop.f32.mrb[0].mxu0
        %v8033 = vadd.f32 0.0, %v8032
        %v8034 = vpop.f32.mrb[0].mxu0
        %v8035 = vpop.f32.mrb[0].mxu0
        %v8036 = vadd.f32 0.0, %v8035
        %v8037 = vpop.f32.mrb[0].mxu0
        %8038 = vmatprep.mubr.bf16.mxu0 %v7700
        %8039 = vmatmul.mubr.bf16.gmra.mrb[0].mxu0 %v7699
        %v8040 = vpop.f32.mrb[0].mxu0
        %v8041 = vadd.f32 0.0, %v8040
        %v8042 = vpop.f32.mrb[0].mxu0
        %v8043 = vpop.f32.mrb[0].mxu0
        %v8044 = vadd.f32 0.0, %v8043
        %v8045 = vpop.f32.mrb[0].mxu0
        %8046 = vmatprep.mubr.bf16.mxu0 %v7703
        %8047 = vmatmul.mubr.bf16.gmra.mrb[0].mxu0 %v7702
        %v8048 = vpop.f32.mrb[0].mxu0
        %v8049 = vadd.f32 0.0, %v8048
        %v8050 = vpop.f32.mrb[0].mxu0
        %v8051 = vpop.f32.mrb[0].mxu0
        %v8052 = vadd.f32 0.0, %v8051
        %v8053 = vpop.f32.mrb[0].mxu0
        %8054 = vmatprep.mubr.bf16.mxu0 %v7706
        %8055 = vmatmul.mubr.bf16.gmra.mrb[0].mxu0 %v7705
        %v8056 = vpop.f32.mrb[0].mxu0
        %v8057 = vadd.f32 0.0, %v8056
        %v8058 = vpop.f32.mrb[0].mxu0
        %v8059 = vpop.f32.mrb[0].mxu0
        %v8060 = vadd.f32 0.0, %v8059
        %v8061 = vpop.f32.mrb[0].mxu0
        %8062 = vmatprep.mubr.bf16.mxu0 %v7709
        %8063 = vmatmul.mubr.bf16.gmra.mrb[0].mxu0 %v7708
        %v8064 = vpop.f32.mrb[0].mxu0
        %v8065 = vadd.f32 0.0, %v8064
        %v8066 = vpop.f32.mrb[0].mxu0
        %v8067 = vpop.f32.mrb[0].mxu0
        %v8068 = vadd.f32 0.0, %v8067
        %v8069 = vpop.f32.mrb[0].mxu0
        %8070 = vmatprep.mubr.bf16.mxu0 %v7712
        %8071 = vmatmul.mubr.bf16.gmra.mrb[0].mxu0 %v7711
        %v8072 = vpop.f32.mrb[0].mxu0
        %v8073 = vadd.f32 0.0, %v8072
        %v8074 = vpop.f32.mrb[0].mxu0
        %v8075 = vpop.f32.mrb[0].mxu0
        %v8076 = vadd.f32 0.0, %v8075
        %v8077 = vpop.f32.mrb[0].mxu0
        %8078 = vmatprep.mubr.bf16.mxu0 %v7715
        %8079 = vmatmul.mubr.bf16.gmra.mrb[0].mxu0 %v7714
        %v8080 = vpop.f32.mrb[0].mxu0
        %v8081 = vadd.f32 0.0, %v8080
        %v8082 = vpop.f32.mrb[0].mxu0
        %v8083 = vpop.f32.mrb[0].mxu0
        %v8084 = vadd.f32 0.0, %v8083
        %v8085 = vpop.f32.mrb[0].mxu0
        %8086 = vdwg.mxu0
        %8087 = vmatprep.subr.bf16.mxu0 0
        %8088 = vmatpush1.bf16.msra.mxu0 %v7878
        %8089 = vmatprep.subr.bf16.mxu0 0
        %8090 = vmatpush1.bf16.msra.mxu0 %v7879
        %8091 = vmatprep.subr.bf16.mxu0 0
        %8092 = vmatpush1.bf16.msra.mxu0 %v7880
        %8093 = vmatprep.subr.bf16.mxu0 0
        %8094 = vmatpush1.bf16.msra.mxu0 %v7881
        %8095 = vmatprep.subr.bf16.mxu0 0
        %8096 = vmatpush1.bf16.msra.mxu0 %v7882
        %8097 = vmatprep.subr.bf16.mxu0 0
        %8098 = vmatpush1.bf16.msra.mxu0 %v7883
        %8099 = vmatprep.subr.bf16.mxu0 0
        %8100 = vmatpush1.bf16.msra.mxu0 %v7884
        %8101 = vmatprep.subr.bf16.mxu0 0
        %8102 = vmatpush1.bf16.msra.mxu0 %v7885
        %8103 = vmatprep.subr.bf16.mxu0 0
        %8104 = vmatpush1.bf16.msra.mxu0 0
        %8105 = vmatprep.subr.bf16.mxu0 0
        %8106 = vmatpush1.bf16.msra.mxu0 0
        %8107 = vmatprep.subr.bf16.mxu0 0
        %8108 = vmatpush1.bf16.msra.mxu0 0
        %8109 = vmatprep.subr.bf16.mxu0 0
        %8110 = vmatpush1.bf16.msra.mxu0 0
        %8111 = vmatprep.subr.bf16.mxu0 0
        %8112 = vmatpush1.bf16.msra.mxu0 0
        %8113 = vmatprep.subr.bf16.mxu0 0
        %8114 = vmatpush1.bf16.msra.mxu0 0
        %8115 = vmatprep.subr.bf16.mxu0 0
        %8116 = vmatpush1.bf16.msra.mxu0 0
        %8117 = vmatprep.subr.bf16.mxu0 0
        %8118 = vmatpush1.bf16.msra.mxu0 0
        %8119 = vmatprep.mubr.bf16.mxu0 0
        %8120 = vmatmul.mubr.bf16.gmra.mrb[0].mxu0 %v7665
        %v8121 = vpop.f32.mrb[0].mxu0
        %v8122 = vadd.f32 %v7945, %v8121
        %v8123 = vpop.f32.mrb[0].mxu0
        %v8124 = vpop.f32.mrb[0].mxu0
        %v8125 = vadd.f32 %v7948, %v8124
        %v8126 = vpop.f32.mrb[0].mxu0
        %8127 = vmatprep.mubr.bf16.mxu0 0
        %8128 = vmatmul.mubr.bf16.gmra.mrb[0].mxu0 %v7668
        %v8129 = vpop.f32.mrb[0].mxu0
        %v8130 = vadd.f32 %v7953, %v8129
        %v8131 = vpop.f32.mrb[0].mxu0
        %v8132 = vpop.f32.mrb[0].mxu0
        %v8133 = vadd.f32 %v7956, %v8132
        %v8134 = vpop.f32.mrb[0].mxu0
        %8135 = vmatprep.mubr.bf16.mxu0 0
        %8136 = vmatmul.mubr.bf16.gmra.mrb[0].mxu0 %v7671
        %v8137 = vpop.f32.mrb[0].mxu0
        %v8138 = vadd.f32 %v7961, %v8137
        %v8139 = vpop.f32.mrb[0].mxu0
        %v8140 = vpop.f32.mrb[0].mxu0
        %v8141 = vadd.f32 %v7964, %v8140
        %v8142 = vpop.f32.mrb[0].mxu0
        %8143 = vmatprep.mubr.bf16.mxu0 0
        %8144 = vmatmul.mubr.bf16.gmra.mrb[0].mxu0 %v7674
        %v8145 = vpop.f32.mrb[0].mxu0
        %v8146 = vadd.f32 %v7969, %v8145
        %v8147 = vpop.f32.mrb[0].mxu0
        %v8148 = vpop.f32.mrb[0].mxu0
        %v8149 = vadd.f32 %v7972, %v8148
        %v8150 = vpop.f32.mrb[0].mxu0
        %8151 = vmatprep.mubr.bf16.mxu0 0
        %8152 = vmatmul.mubr.bf16.gmra.mrb[0].mxu0 %v7677
        %v8153 = vpop.f32.mrb[0].mxu0
        %v8154 = vadd.f32 %v7977, %v8153
        %v8155 = vpop.f32.mrb[0].mxu0
        %v8156 = vpop.f32.mrb[0].mxu0
        %v8157 = vadd.f32 %v7980, %v8156
        %v8158 = vpop.f32.mrb[0].mxu0
        %8159 = vmatprep.mubr.bf16.mxu0 0
        %8160 = vmatmul.mubr.bf16.gmra.mrb[0].mxu0 %v7680
        %v8161 = vpop.f32.mrb[0].mxu0
        %v8162 = vadd.f32 %v7985, %v8161
        %v8163 = vpop.f32.mrb[0].mxu0
        %v8164 = vpop.f32.mrb[0].mxu0
        %v8165 = vadd.f32 %v7988, %v8164
        %v8166 = vpop.f32.mrb[0].mxu0
        %8167 = vmatprep.mubr.bf16.mxu0 0
        %8168 = vmatmul.mubr.bf16.gmra.mrb[0].mxu0 %v7683
        %v8169 = vpop.f32.mrb[0].mxu0
        %v8170 = vadd.f32 %v7993, %v8169
        %v8171 = vpop.f32.mrb[0].mxu0
        %v8172 = vpop.f32.mrb[0].mxu0
        %v8173 = vadd.f32 %v7996, %v8172
        %v8174 = vpop.f32.mrb[0].mxu0
        %8175 = vmatprep.mubr.bf16.mxu0 0
        %8176 = vmatmul.mubr.bf16.gmra.mrb[0].mxu0 %v7686
        %v8177 = vpop.f32.mrb[0].mxu0
        %v8178 = vadd.f32 %v8001, %v8177
        %v8179 = vpop.f32.mrb[0].mxu0
        %v8180 = vpop.f32.mrb[0].mxu0
        %v8181 = vadd.f32 %v8004, %v8180
        %v8182 = vpop.f32.mrb[0].mxu0
        %8183 = vmatprep.mubr.bf16.mxu0 0
        %8184 = vmatmul.mubr.bf16.gmra.mrb[0].mxu0 %v7689
        %v8185 = vpop.f32.mrb[0].mxu0
        %v8186 = vadd.f32 %v8009, %v8185
        %v8187 = vpop.f32.mrb[0].mxu0
        %v8188 = vpop.f32.mrb[0].mxu0
        %v8189 = vadd.f32 %v8012, %v8188
        %v8190 = vpop.f32.mrb[0].mxu0
        %8191 = vmatprep.mubr.bf16.mxu0 0
        %8192 = vmatmul.mubr.bf16.gmra.mrb[0].mxu0 %v7692
        %v8193 = vpop.f32.mrb[0].mxu0
        %v8194 = vadd.f32 %v8017, %v8193
        %v8195 = vpop.f32.mrb[0].mxu0
        %v8196 = vpop.f32.mrb[0].mxu0
        %v8197 = vadd.f32 %v8020, %v8196
        %v8198 = vpop.f32.mrb[0].mxu0
        %8199 = vmatprep.mubr.bf16.mxu0 0
        %8200 = vmatmul.mubr.bf16.gmra.mrb[0].mxu0 %v7695
        %v8201 = vpop.f32.mrb[0].mxu0
        %v8202 = vadd.f32 %v8025, %v8201
        %v8203 = vpop.f32.mrb[0].mxu0
        %v8204 = vpop.f32.mrb[0].mxu0
        %v8205 = vadd.f32 %v8028, %v8204
        %v8206 = vpop.f32.mrb[0].mxu0
        %8207 = vmatprep.mubr.bf16.mxu0 0
        %8208 = vmatmul.mubr.bf16.gmra.mrb[0].mxu0 %v7698
        %v8209 = vpop.f32.mrb[0].mxu0
        %v8210 = vadd.f32 %v8033, %v8209
        %v8211 = vpop.f32.mrb[0].mxu0
        %v8212 = vpop.f32.mrb[0].mxu0
        %v8213 = vadd.f32 %v8036, %v8212
        %v8214 = vpop.f32.mrb[0].mxu0
        %8215 = vmatprep.mubr.bf16.mxu0 0
        %8216 = vmatmul.mubr.bf16.gmra.mrb[0].mxu0 %v7701
        %v8217 = vpop.f32.mrb[0].mxu0
        %v8218 = vadd.f32 %v8041, %v8217
        %v8219 = vpop.f32.mrb[0].mxu0
        %v8220 = vpop.f32.mrb[0].mxu0
        %v8221 = vadd.f32 %v8044, %v8220
        %v8222 = vpop.f32.mrb[0].mxu0
        %8223 = vmatprep.mubr.bf16.mxu0 0
        %8224 = vmatmul.mubr.bf16.gmra.mrb[0].mxu0 %v7704
        %v8225 = vpop.f32.mrb[0].mxu0
        %v8226 = vadd.f32 %v8049, %v8225
        %v8227 = vpop.f32.mrb[0].mxu0
        %v8228 = vpop.f32.mrb[0].mxu0
        %v8229 = vadd.f32 %v8052, %v8228
        %v8230 = vpop.f32.mrb[0].mxu0
        %8231 = vmatprep.mubr.bf16.mxu0 0
        %8232 = vmatmul.mubr.bf16.gmra.mrb[0].mxu0 %v7707
        %v8233 = vpop.f32.mrb[0].mxu0
        %v8234 = vadd.f32 %v8057, %v8233
        %v8235 = vpop.f32.mrb[0].mxu0
        %v8236 = vpop.f32.mrb[0].mxu0
        %v8237 = vadd.f32 %v8060, %v8236
        %v8238 = vpop.f32.mrb[0].mxu0
        %8239 = vmatprep.mubr.bf16.mxu0 0
        %8240 = vmatmul.mubr.bf16.gmra.mrb[0].mxu0 %v7710
        %v8241 = vpop.f32.mrb[0].mxu0
        %v8242 = vadd.f32 %v8065, %v8241
        %v8243 = vpop.f32.mrb[0].mxu0
        %v8244 = vpop.f32.mrb[0].mxu0
        %v8245 = vadd.f32 %v8068, %v8244
        %v8246 = vpop.f32.mrb[0].mxu0
        %8247 = vmatprep.mubr.bf16.mxu0 0
        %8248 = vmatmul.mubr.bf16.gmra.mrb[0].mxu0 %v7713
        %v8249 = vpop.f32.mrb[0].mxu0
        %v8250 = vadd.f32 %v8073, %v8249
        %v8251 = vpop.f32.mrb[0].mxu0
        %v8252 = vpop.f32.mrb[0].mxu0
        %v8253 = vadd.f32 %v8076, %v8252
        %v8254 = vpop.f32.mrb[0].mxu0
        %8255 = vmatprep.mubr.bf16.mxu0 0
        %8256 = vmatmul.mubr.bf16.gmra.mrb[0].mxu0 %v7716
        %v8257 = vpop.f32.mrb[0].mxu0
        %v8258 = vadd.f32 %v8081, %v8257
        %v8259 = vpop.f32.mrb[0].mxu0
        %v8260 = vpop.f32.mrb[0].mxu0
        %v8261 = vadd.f32 %v8084, %v8260
        %v8262 = vpop.f32.mrb[0].mxu0
        %8263 = vdwg.mxu0
        %v8312 = vunpack.c.l.b16 %v7054
        %v8313 = vunpack.c.l.b16 %v7055
        %v8314 = vunpack.c.l.b16 %v7056
        %v8315 = vunpack.c.l.b16 %v7057
        %v8316 = vunpack.c.l.b16 %v7058
        %v8317 = vunpack.c.l.b16 %v7059
        %v8318 = vunpack.c.l.b16 %v7060
        %v8319 = vunpack.c.l.b16 %v7061
        %v8320 = vunpack.c.l.b16 %v7062
        %v8321 = vunpack.c.l.b16 %v7063
        %v8322 = vunpack.c.l.b16 %v7064
        %v8323 = vunpack.c.l.b16 %v7065
        %v8324 = vunpack.c.l.b16 %v7066
        %v8325 = vunpack.c.l.b16 %v7067
        %v8326 = vunpack.c.l.b16 %v7068
        %v8327 = vunpack.c.l.b16 %v7069
        %v8328 = vunpack.c.l.b16 %v7070
        %v8329 = vunpack.c.l.b16 %v7071
        %v8330 = vunpack.c.l.b16 %v7072
        %v8331 = vunpack.c.l.b16 %v7073
        %v8332 = vunpack.c.l.b16 %v7074
        %v8333 = vunpack.c.l.b16 %v7075
        %v8334 = vunpack.c.l.b16 %v7076
        %v8335 = vunpack.c.l.b16 %v7077
        %v8336 = vunpack.c.l.b16 %v7078
        %v8337 = vunpack.c.l.b16 %v7079
        %v8338 = vunpack.c.l.b16 %v7080
        %v8339 = vunpack.c.l.b16 %v7081
        %v8340 = vunpack.c.l.b16 %v7082
        %v8341 = vunpack.c.l.b16 %v7083
        %v8342 = vunpack.c.l.b16 %v7084
        %v8343 = vunpack.c.l.b16 %v7085
        %v8344 = vunpack.c.l.b16 %v7086
        %v8345 = vunpack.c.l.b16 %v7087
        %v8346 = vunpack.c.l.b16 %v7088
        %v8347 = vunpack.c.l.b16 %v7089
        %v8348 = vunpack.c.l.b16 %v7090
        %v8349 = vunpack.c.l.b16 %v7091
        %v8350 = vunpack.c.l.b16 %v7092
        %v8351 = vunpack.c.l.b16 %v7093
        %v8352 = vunpack.c.l.b16 %v7094
        %v8353 = vunpack.c.l.b16 %v7095
        %v8354 = vunpack.c.l.b16 %v7096
        %v8355 = vunpack.c.l.b16 %v7097
        %v8356 = vunpack.c.l.b16 %v7098
        %v8357 = vunpack.c.l.b16 %v7099
        %v8358 = vunpack.c.l.b16 %v7100
        %v8359 = vunpack.c.l.b16 %v7101
        %v8360 = vpack.c.b16 %v8313, %v8312
        %v8361 = vpack.c.b16 %v8315, %v8314
        %v8362 = vpack.c.b16 %v8317, %v8316
        %v8363 = vpack.c.b16 %v8319, %v8318
        %v8364 = vpack.c.b16 %v8321, %v8320
        %v8365 = vpack.c.b16 %v8323, %v8322
        %v8366 = vpack.c.b16 %v8325, %v8324
        %v8367 = vpack.c.b16 %v8327, %v8326
        %v8368 = vpack.c.b16 %v8329, %v8328
        %v8369 = vpack.c.b16 %v8331, %v8330
        %v8370 = vpack.c.b16 %v8333, %v8332
        %v8371 = vpack.c.b16 %v8335, %v8334
        %v8372 = vpack.c.b16 %v8337, %v8336
        %v8373 = vpack.c.b16 %v8339, %v8338
        %v8374 = vpack.c.b16 %v8341, %v8340
        %v8375 = vpack.c.b16 %v8343, %v8342
        %v8376 = vpack.c.b16 %v8345, %v8344
        %v8377 = vpack.c.b16 %v8347, %v8346
        %v8378 = vpack.c.b16 %v8349, %v8348
        %v8379 = vpack.c.b16 %v8351, %v8350
        %v8380 = vpack.c.b16 %v8353, %v8352
        %v8381 = vpack.c.b16 %v8355, %v8354
        %v8382 = vpack.c.b16 %v8357, %v8356
        %v8383 = vpack.c.b16 %v8359, %v8358
        %8408 = vmatprep.subr.bf16.mxu0 0
        %8409 = vmatpush1.bf16.msra.mxu0 %v8360
        %8410 = vmatprep.subr.bf16.mxu0 0
        %8411 = vmatpush1.bf16.msra.mxu0 %v8361
        %8412 = vmatprep.subr.bf16.mxu0 0
        %8413 = vmatpush1.bf16.msra.mxu0 %v8362
        %8414 = vmatprep.subr.bf16.mxu0 0
        %8415 = vmatpush1.bf16.msra.mxu0 %v8363
        %8416 = vmatprep.subr.bf16.mxu0 0
        %8417 = vmatpush1.bf16.msra.mxu0 %v8364
        %8418 = vmatprep.subr.bf16.mxu0 0
        %8419 = vmatpush1.bf16.msra.mxu0 %v8365
        %8420 = vmatprep.subr.bf16.mxu0 0
        %8421 = vmatpush1.bf16.msra.mxu0 %v8366
        %8422 = vmatprep.subr.bf16.mxu0 0
        %8423 = vmatpush1.bf16.msra.mxu0 %v8367
        %8424 = vmatprep.subr.bf16.mxu0 0
        %8425 = vmatpush1.bf16.msra.mxu0 %v8368
        %8426 = vmatprep.subr.bf16.mxu0 0
        %8427 = vmatpush1.bf16.msra.mxu0 %v8369
        %8428 = vmatprep.subr.bf16.mxu0 0
        %8429 = vmatpush1.bf16.msra.mxu0 %v8370
        %8430 = vmatprep.subr.bf16.mxu0 0
        %8431 = vmatpush1.bf16.msra.mxu0 %v8371
        %8432 = vmatprep.subr.bf16.mxu0 0
        %8433 = vmatpush1.bf16.msra.mxu0 %v8372
        %8434 = vmatprep.subr.bf16.mxu0 0
        %8435 = vmatpush1.bf16.msra.mxu0 %v8373
        %8436 = vmatprep.subr.bf16.mxu0 0
        %8437 = vmatpush1.bf16.msra.mxu0 %v8374
        %8438 = vmatprep.subr.bf16.mxu0 0
        %8439 = vmatpush1.bf16.msra.mxu0 %v8375
        %8440 = vmatprep.mubr.bf16.mxu0 %v7001
        %8441 = vmatmul.mubr.bf16.gmra.mrb[0].mxu0 %v7000
        %v8442 = vpop.f32.mrb[0].mxu0
        %v8443 = vadd.f32 %v8122, %v8442
        %v8444 = vpop.f32.mrb[0].mxu0
        %v8445 = vpop.f32.mrb[0].mxu0
        %v8446 = vadd.f32 %v8125, %v8445
        %v8447 = vpop.f32.mrb[0].mxu0
        %8448 = vmatprep.mubr.bf16.mxu0 %v7004
        %8449 = vmatmul.mubr.bf16.gmra.mrb[0].mxu0 %v7003
        %v8450 = vpop.f32.mrb[0].mxu0
        %v8451 = vadd.f32 %v8130, %v8450
        %v8452 = vpop.f32.mrb[0].mxu0
        %v8453 = vpop.f32.mrb[0].mxu0
        %v8454 = vadd.f32 %v8133, %v8453
        %v8455 = vpop.f32.mrb[0].mxu0
        %8456 = vmatprep.mubr.bf16.mxu0 %v7007
        %8457 = vmatmul.mubr.bf16.gmra.mrb[0].mxu0 %v7006
        %v8458 = vpop.f32.mrb[0].mxu0
        %v8459 = vadd.f32 %v8138, %v8458
        %v8460 = vpop.f32.mrb[0].mxu0
        %v8461 = vpop.f32.mrb[0].mxu0
        %v8462 = vadd.f32 %v8141, %v8461
        %v8463 = vpop.f32.mrb[0].mxu0
        %8464 = vmatprep.mubr.bf16.mxu0 %v7010
        %8465 = vmatmul.mubr.bf16.gmra.mrb[0].mxu0 %v7009
        %v8466 = vpop.f32.mrb[0].mxu0
        %v8467 = vadd.f32 %v8146, %v8466
        %v8468 = vpop.f32.mrb[0].mxu0
        %v8469 = vpop.f32.mrb[0].mxu0
        %v8470 = vadd.f32 %v8149, %v8469
        %v8471 = vpop.f32.mrb[0].mxu0
        %8472 = vmatprep.mubr.bf16.mxu0 %v7013
        %8473 = vmatmul.mubr.bf16.gmra.mrb[0].mxu0 %v7012
        %v8474 = vpop.f32.mrb[0].mxu0
        %v8475 = vadd.f32 %v8154, %v8474
        %v8476 = vpop.f32.mrb[0].mxu0
        %v8477 = vpop.f32.mrb[0].mxu0
        %v8478 = vadd.f32 %v8157, %v8477
        %v8479 = vpop.f32.mrb[0].mxu0
        %8480 = vmatprep.mubr.bf16.mxu0 %v7016
        %8481 = vmatmul.mubr.bf16.gmra.mrb[0].mxu0 %v7015
        %v8482 = vpop.f32.mrb[0].mxu0
        %v8483 = vadd.f32 %v8162, %v8482
        %v8484 = vpop.f32.mrb[0].mxu0
        %v8485 = vpop.f32.mrb[0].mxu0
        %v8486 = vadd.f32 %v8165, %v8485
        %v8487 = vpop.f32.mrb[0].mxu0
        %8488 = vmatprep.mubr.bf16.mxu0 %v7019
        %8489 = vmatmul.mubr.bf16.gmra.mrb[0].mxu0 %v7018
        %v8490 = vpop.f32.mrb[0].mxu0
        %v8491 = vadd.f32 %v8170, %v8490
        %v8492 = vpop.f32.mrb[0].mxu0
        %v8493 = vpop.f32.mrb[0].mxu0
        %v8494 = vadd.f32 %v8173, %v8493
        %v8495 = vpop.f32.mrb[0].mxu0
        %8496 = vmatprep.mubr.bf16.mxu0 %v7022
        %8497 = vmatmul.mubr.bf16.gmra.mrb[0].mxu0 %v7021
        %v8498 = vpop.f32.mrb[0].mxu0
        %v8499 = vadd.f32 %v8178, %v8498
        %v8500 = vpop.f32.mrb[0].mxu0
        %v8501 = vpop.f32.mrb[0].mxu0
        %v8502 = vadd.f32 %v8181, %v8501
        %v8503 = vpop.f32.mrb[0].mxu0
        %8504 = vmatprep.mubr.bf16.mxu0 %v7025
        %8505 = vmatmul.mubr.bf16.gmra.mrb[0].mxu0 %v7024
        %v8506 = vpop.f32.mrb[0].mxu0
        %v8507 = vadd.f32 %v8186, %v8506
        %v8508 = vpop.f32.mrb[0].mxu0
        %v8509 = vpop.f32.mrb[0].mxu0
        %v8510 = vadd.f32 %v8189, %v8509
        %v8511 = vpop.f32.mrb[0].mxu0
        %8512 = vmatprep.mubr.bf16.mxu0 %v7028
        %8513 = vmatmul.mubr.bf16.gmra.mrb[0].mxu0 %v7027
        %v8514 = vpop.f32.mrb[0].mxu0
        %v8515 = vadd.f32 %v8194, %v8514
        %v8516 = vpop.f32.mrb[0].mxu0
        %v8517 = vpop.f32.mrb[0].mxu0
        %v8518 = vadd.f32 %v8197, %v8517
        %v8519 = vpop.f32.mrb[0].mxu0
        %8520 = vmatprep.mubr.bf16.mxu0 %v7031
        %8521 = vmatmul.mubr.bf16.gmra.mrb[0].mxu0 %v7030
        %v8522 = vpop.f32.mrb[0].mxu0
        %v8523 = vadd.f32 %v8202, %v8522
        %v8524 = vpop.f32.mrb[0].mxu0
        %v8525 = vpop.f32.mrb[0].mxu0
        %v8526 = vadd.f32 %v8205, %v8525
        %v8527 = vpop.f32.mrb[0].mxu0
        %8528 = vmatprep.mubr.bf16.mxu0 %v7034
        %8529 = vmatmul.mubr.bf16.gmra.mrb[0].mxu0 %v7033
        %v8530 = vpop.f32.mrb[0].mxu0
        %v8531 = vadd.f32 %v8210, %v8530
        %v8532 = vpop.f32.mrb[0].mxu0
        %v8533 = vpop.f32.mrb[0].mxu0
        %v8534 = vadd.f32 %v8213, %v8533
        %v8535 = vpop.f32.mrb[0].mxu0
        %8536 = vmatprep.mubr.bf16.mxu0 %v7037
        %8537 = vmatmul.mubr.bf16.gmra.mrb[0].mxu0 %v7036
        %v8538 = vpop.f32.mrb[0].mxu0
        %v8539 = vadd.f32 %v8218, %v8538
        %v8540 = vpop.f32.mrb[0].mxu0
        %v8541 = vpop.f32.mrb[0].mxu0
        %v8542 = vadd.f32 %v8221, %v8541
        %v8543 = vpop.f32.mrb[0].mxu0
        %8544 = vmatprep.mubr.bf16.mxu0 %v7040
        %8545 = vmatmul.mubr.bf16.gmra.mrb[0].mxu0 %v7039
        %v8546 = vpop.f32.mrb[0].mxu0
        %v8547 = vadd.f32 %v8226, %v8546
        %v8548 = vpop.f32.mrb[0].mxu0
        %v8549 = vpop.f32.mrb[0].mxu0
        %v8550 = vadd.f32 %v8229, %v8549
        %v8551 = vpop.f32.mrb[0].mxu0
        %8552 = vmatprep.mubr.bf16.mxu0 %v7043
        %8553 = vmatmul.mubr.bf16.gmra.mrb[0].mxu0 %v7042
        %v8554 = vpop.f32.mrb[0].mxu0
        %v8555 = vadd.f32 %v8234, %v8554
        %v8556 = vpop.f32.mrb[0].mxu0
        %v8557 = vpop.f32.mrb[0].mxu0
        %v8558 = vadd.f32 %v8237, %v8557
        %v8559 = vpop.f32.mrb[0].mxu0
        %8560 = vmatprep.mubr.bf16.mxu0 %v7046
        %8561 = vmatmul.mubr.bf16.gmra.mrb[0].mxu0 %v7045
        %v8562 = vpop.f32.mrb[0].mxu0
        %v8563 = vadd.f32 %v8242, %v8562
        %v8564 = vpop.f32.mrb[0].mxu0
        %v8565 = vpop.f32.mrb[0].mxu0
        %v8566 = vadd.f32 %v8245, %v8565
        %v8567 = vpop.f32.mrb[0].mxu0
        %8568 = vmatprep.mubr.bf16.mxu0 %v7049
        %8569 = vmatmul.mubr.bf16.gmra.mrb[0].mxu0 %v7048
        %v8570 = vpop.f32.mrb[0].mxu0
        %v8571 = vadd.f32 %v8250, %v8570
        %v8572 = vpop.f32.mrb[0].mxu0
        %v8573 = vpop.f32.mrb[0].mxu0
        %v8574 = vadd.f32 %v8253, %v8573
        %v8575 = vpop.f32.mrb[0].mxu0
        %8576 = vmatprep.mubr.bf16.mxu0 %v7052
        %8577 = vmatmul.mubr.bf16.gmra.mrb[0].mxu0 %v7051
        %v8578 = vpop.f32.mrb[0].mxu0
        %v8579 = vadd.f32 %v8258, %v8578
        %v8580 = vpop.f32.mrb[0].mxu0
        %v8581 = vpop.f32.mrb[0].mxu0
        %v8582 = vadd.f32 %v8261, %v8581
        %v8583 = vpop.f32.mrb[0].mxu0
        %8584 = vdwg.mxu0
        %8585 = vmatprep.subr.bf16.mxu0 0
        %8586 = vmatpush1.bf16.msra.mxu0 %v8376
        %8587 = vmatprep.subr.bf16.mxu0 0
        %8588 = vmatpush1.bf16.msra.mxu0 %v8377
        %8589 = vmatprep.subr.bf16.mxu0 0
        %8590 = vmatpush1.bf16.msra.mxu0 %v8378
        %8591 = vmatprep.subr.bf16.mxu0 0
        %8592 = vmatpush1.bf16.msra.mxu0 %v8379
        %8593 = vmatprep.subr.bf16.mxu0 0
        %8594 = vmatpush1.bf16.msra.mxu0 %v8380
        %8595 = vmatprep.subr.bf16.mxu0 0
        %8596 = vmatpush1.bf16.msra.mxu0 %v8381
        %8597 = vmatprep.subr.bf16.mxu0 0
        %8598 = vmatpush1.bf16.msra.mxu0 %v8382
        %8599 = vmatprep.subr.bf16.mxu0 0
        %8600 = vmatpush1.bf16.msra.mxu0 %v8383
        %8601 = vmatprep.subr.bf16.mxu0 0
        %8602 = vmatpush1.bf16.msra.mxu0 0
        %8603 = vmatprep.subr.bf16.mxu0 0
        %8604 = vmatpush1.bf16.msra.mxu0 0
        %8605 = vmatprep.subr.bf16.mxu0 0
        %8606 = vmatpush1.bf16.msra.mxu0 0
        %8607 = vmatprep.subr.bf16.mxu0 0
        %8608 = vmatpush1.bf16.msra.mxu0 0
        %8609 = vmatprep.subr.bf16.mxu0 0
        %8610 = vmatpush1.bf16.msra.mxu0 0
        %8611 = vmatprep.subr.bf16.mxu0 0
        %8612 = vmatpush1.bf16.msra.mxu0 0
        %8613 = vmatprep.subr.bf16.mxu0 0
        %8614 = vmatpush1.bf16.msra.mxu0 0
        %8615 = vmatprep.subr.bf16.mxu0 0
        %8616 = vmatpush1.bf16.msra.mxu0 0
        %8617 = vmatprep.mubr.bf16.mxu0 0
        %8618 = vmatmul.mubr.bf16.gmra.mrb[0].mxu0 %v7002
        %v8619 = vpop.f32.mrb[0].mxu0
        %v8620 = vadd.f32 %v8443, %v8619
        %v8621 = vpop.f32.mrb[0].mxu0
        %v8622 = vpop.f32.mrb[0].mxu0
        %v8623 = vadd.f32 %v8446, %v8622
        %v8624 = vpop.f32.mrb[0].mxu0
        %8625 = vmatprep.mubr.bf16.mxu0 0
        %8626 = vmatmul.mubr.bf16.gmra.mrb[0].mxu0 %v7005
        %v8627 = vpop.f32.mrb[0].mxu0
        %v8628 = vadd.f32 %v8451, %v8627
        %v8629 = vpop.f32.mrb[0].mxu0
        %v8630 = vpop.f32.mrb[0].mxu0
        %v8631 = vadd.f32 %v8454, %v8630
        %v8632 = vpop.f32.mrb[0].mxu0
        %8633 = vmatprep.mubr.bf16.mxu0 0
        %8634 = vmatmul.mubr.bf16.gmra.mrb[0].mxu0 %v7008
        %v8635 = vpop.f32.mrb[0].mxu0
        %v8636 = vadd.f32 %v8459, %v8635
        %v8637 = vpop.f32.mrb[0].mxu0
        %v8638 = vpop.f32.mrb[0].mxu0
        %v8639 = vadd.f32 %v8462, %v8638
        %v8640 = vpop.f32.mrb[0].mxu0
        %8641 = vmatprep.mubr.bf16.mxu0 0
        %8642 = vmatmul.mubr.bf16.gmra.mrb[0].mxu0 %v7011
        %v8643 = vpop.f32.mrb[0].mxu0
        %v8644 = vadd.f32 %v8467, %v8643
        %v8645 = vpop.f32.mrb[0].mxu0
        %v8646 = vpop.f32.mrb[0].mxu0
        %v8647 = vadd.f32 %v8470, %v8646
        %v8648 = vpop.f32.mrb[0].mxu0
        %8649 = vmatprep.mubr.bf16.mxu0 0
        %8650 = vmatmul.mubr.bf16.gmra.mrb[0].mxu0 %v7014
        %v8651 = vpop.f32.mrb[0].mxu0
        %v8652 = vadd.f32 %v8475, %v8651
        %v8653 = vpop.f32.mrb[0].mxu0
        %v8654 = vpop.f32.mrb[0].mxu0
        %v8655 = vadd.f32 %v8478, %v8654
        %v8656 = vpop.f32.mrb[0].mxu0
        %8657 = vmatprep.mubr.bf16.mxu0 0
        %8658 = vmatmul.mubr.bf16.gmra.mrb[0].mxu0 %v7017
        %v8659 = vpop.f32.mrb[0].mxu0
        %v8660 = vadd.f32 %v8483, %v8659
        %v8661 = vpop.f32.mrb[0].mxu0
        %v8662 = vpop.f32.mrb[0].mxu0
        %v8663 = vadd.f32 %v8486, %v8662
        %v8664 = vpop.f32.mrb[0].mxu0
        %8665 = vmatprep.mubr.bf16.mxu0 0
        %8666 = vmatmul.mubr.bf16.gmra.mrb[0].mxu0 %v7020
        %v8667 = vpop.f32.mrb[0].mxu0
        %v8668 = vadd.f32 %v8491, %v8667
        %v8669 = vpop.f32.mrb[0].mxu0
        %v8670 = vpop.f32.mrb[0].mxu0
        %v8671 = vadd.f32 %v8494, %v8670
        %v8672 = vpop.f32.mrb[0].mxu0
        %8673 = vmatprep.mubr.bf16.mxu0 0
        %8674 = vmatmul.mubr.bf16.gmra.mrb[0].mxu0 %v7023
        %v8675 = vpop.f32.mrb[0].mxu0
        %v8676 = vadd.f32 %v8499, %v8675
        %v8677 = vpop.f32.mrb[0].mxu0
        %v8678 = vpop.f32.mrb[0].mxu0
        %v8679 = vadd.f32 %v8502, %v8678
        %v8680 = vpop.f32.mrb[0].mxu0
        %8681 = vmatprep.mubr.bf16.mxu0 0
        %8682 = vmatmul.mubr.bf16.gmra.mrb[0].mxu0 %v7026
        %v8683 = vpop.f32.mrb[0].mxu0
        %v8684 = vadd.f32 %v8507, %v8683
        %v8685 = vpop.f32.mrb[0].mxu0
        %v8686 = vpop.f32.mrb[0].mxu0
        %v8687 = vadd.f32 %v8510, %v8686
        %v8688 = vpop.f32.mrb[0].mxu0
        %8689 = vmatprep.mubr.bf16.mxu0 0
        %8690 = vmatmul.mubr.bf16.gmra.mrb[0].mxu0 %v7029
        %v8691 = vpop.f32.mrb[0].mxu0
        %v8692 = vadd.f32 %v8515, %v8691
        %v8693 = vpop.f32.mrb[0].mxu0
        %v8694 = vpop.f32.mrb[0].mxu0
        %v8695 = vadd.f32 %v8518, %v8694
        %v8696 = vpop.f32.mrb[0].mxu0
        %8697 = vmatprep.mubr.bf16.mxu0 0
        %8698 = vmatmul.mubr.bf16.gmra.mrb[0].mxu0 %v7032
        %v8699 = vpop.f32.mrb[0].mxu0
        %v8700 = vadd.f32 %v8523, %v8699
        %v8701 = vpop.f32.mrb[0].mxu0
        %v8702 = vpop.f32.mrb[0].mxu0
        %v8703 = vadd.f32 %v8526, %v8702
        %v8704 = vpop.f32.mrb[0].mxu0
        %8705 = vmatprep.mubr.bf16.mxu0 0
        %8706 = vmatmul.mubr.bf16.gmra.mrb[0].mxu0 %v7035
        %v8707 = vpop.f32.mrb[0].mxu0
        %v8708 = vadd.f32 %v8531, %v8707
        %v8709 = vpop.f32.mrb[0].mxu0
        %v8710 = vpop.f32.mrb[0].mxu0
        %v8711 = vadd.f32 %v8534, %v8710
        %v8712 = vpop.f32.mrb[0].mxu0
        %8713 = vmatprep.mubr.bf16.mxu0 0
        %8714 = vmatmul.mubr.bf16.gmra.mrb[0].mxu0 %v7038
        %v8715 = vpop.f32.mrb[0].mxu0
        %v8716 = vadd.f32 %v8539, %v8715
        %v8717 = vpop.f32.mrb[0].mxu0
        %v8718 = vpop.f32.mrb[0].mxu0
        %v8719 = vadd.f32 %v8542, %v8718
        %v8720 = vpop.f32.mrb[0].mxu0
        %8721 = vmatprep.mubr.bf16.mxu0 0
        %8722 = vmatmul.mubr.bf16.gmra.mrb[0].mxu0 %v7041
        %v8723 = vpop.f32.mrb[0].mxu0
        %v8724 = vadd.f32 %v8547, %v8723
        %v8725 = vpop.f32.mrb[0].mxu0
        %v8726 = vpop.f32.mrb[0].mxu0
        %v8727 = vadd.f32 %v8550, %v8726
        %v8728 = vpop.f32.mrb[0].mxu0
        %8729 = vmatprep.mubr.bf16.mxu0 0
        %8730 = vmatmul.mubr.bf16.gmra.mrb[0].mxu0 %v7044
        %v8731 = vpop.f32.mrb[0].mxu0
        %v8732 = vadd.f32 %v8555, %v8731
        %v8733 = vpop.f32.mrb[0].mxu0
        %v8734 = vpop.f32.mrb[0].mxu0
        %v8735 = vadd.f32 %v8558, %v8734
        %v8736 = vpop.f32.mrb[0].mxu0
        %8737 = vmatprep.mubr.bf16.mxu0 0
        %8738 = vmatmul.mubr.bf16.gmra.mrb[0].mxu0 %v7047
        %v8739 = vpop.f32.mrb[0].mxu0
        %v8740 = vadd.f32 %v8563, %v8739
        %v8741 = vpop.f32.mrb[0].mxu0
        %v8742 = vpop.f32.mrb[0].mxu0
        %v8743 = vadd.f32 %v8566, %v8742
        %v8744 = vpop.f32.mrb[0].mxu0
        %8745 = vmatprep.mubr.bf16.mxu0 0
        %8746 = vmatmul.mubr.bf16.gmra.mrb[0].mxu0 %v7050
        %v8747 = vpop.f32.mrb[0].mxu0
        %v8748 = vadd.f32 %v8571, %v8747
        %v8749 = vpop.f32.mrb[0].mxu0
        %v8750 = vpop.f32.mrb[0].mxu0
        %v8751 = vadd.f32 %v8574, %v8750
        %v8752 = vpop.f32.mrb[0].mxu0
        %8753 = vmatprep.mubr.bf16.mxu0 0
        %8754 = vmatmul.mubr.bf16.gmra.mrb[0].mxu0 %v7053
        %v8755 = vpop.f32.mrb[0].mxu0
        %v8756 = vadd.f32 %v8579, %v8755
        %v8757 = vpop.f32.mrb[0].mxu0
        %v8758 = vpop.f32.mrb[0].mxu0
        %v8759 = vadd.f32 %v8582, %v8758
        %v8760 = vpop.f32.mrb[0].mxu0
        %8761 = vdwg.mxu0
        %v8762 = vld [vmem:[#allocation3 + $0x10] sm:$0xf0]
        %v8763 = vld [vmem:[#allocation3 + $0x18] sm:$0xff]
        %v8764 = vld [vmem:[#allocation3 + $0x20] sm:$0xff]
        %v8765 = vld [vmem:[#allocation3 + $0x28] sm:$0xff]
        %v8766 = vld [vmem:[#allocation3 + $0x30] sm:$0xff]
        %v8767 = vld [vmem:[#allocation3 + $0x38] sm:$0xff]
        %v8768 = vld [vmem:[#allocation3 + $0x40] sm:$0xff]
        %v8769 = vld [vmem:[#allocation3 + $0x48] sm:$0xff]
        %v8770 = vld [vmem:[#allocation3 + $0x50] sm:$0xff]
        %v8771 = vld [vmem:[#allocation3 + $0x58] sm:$0xff]
        %v8772 = vld [vmem:[#allocation3 + $0x60] sm:$0xff]
        %v8773 = vld [vmem:[#allocation3 + $0x68] sm:$0xff]
        %v8774 = vld [vmem:[#allocation3 + $0x70] sm:$0xff]
        %v8775 = vld [vmem:[#allocation3 + $0x78] sm:$0xff]
        %v8776 = vld [vmem:[#allocation3 + $0x80] sm:$0xff]
        %v8777 = vld [vmem:[#allocation3 + $0x88] sm:$0xff]
        %v8778 = vld [vmem:[#allocation3 + $0x90] sm:$0xff]
        %v8779 = vld [vmem:[#allocation3 + $0x98] sm:$0xff]
        %v8780 = vld [vmem:[#allocation3 + $0xa0] sm:$0x1f]
        %v8782 = vshrl.u32 %v8762, 16
        %v8784 = vrot.slane %v8782, 4
        %v8785 = vshll.u32 %v8762, 16
        %v8787 = vrot.slane %v8785, 5
        %v8788 = vor.u32 %v8784, %v8787
        %v8790 = vshrl.u32 %v8763, 16
        %v8792 = vrot.slane %v8790, 4
        %v8793 = vshll.u32 %v8763, 16
        %v8795 = vrot.slane %v8793, 5
        %v8796 = vor.u32 %v8792, %v8795
        %v8797 = vsel %vm2969, %v8788, %v8796
        %v8799 = vshrl.u32 %v8764, 16
        %v8801 = vrot.slane %v8799, 4
        %v8802 = vshll.u32 %v8764, 16
        %v8804 = vrot.slane %v8802, 5
        %v8805 = vor.u32 %v8801, %v8804
        %v8806 = vsel %vm2969, %v8796, %v8805
        %v8808 = vshrl.u32 %v8765, 16
        %v8810 = vrot.slane %v8808, 4
        %v8811 = vshll.u32 %v8765, 16
        %v8813 = vrot.slane %v8811, 5
        %v8814 = vor.u32 %v8810, %v8813
        %v8815 = vsel %vm2969, %v8805, %v8814
        %v8817 = vshrl.u32 %v8766, 16
        %v8819 = vrot.slane %v8817, 4
        %v8820 = vshll.u32 %v8766, 16
        %v8822 = vrot.slane %v8820, 5
        %v8823 = vor.u32 %v8819, %v8822
        %v8824 = vsel %vm2969, %v8814, %v8823
        %v8826 = vshrl.u32 %v8767, 16
        %v8828 = vrot.slane %v8826, 4
        %v8829 = vshll.u32 %v8767, 16
        %v8831 = vrot.slane %v8829, 5
        %v8832 = vor.u32 %v8828, %v8831
        %v8833 = vsel %vm2969, %v8823, %v8832
        %v8835 = vshrl.u32 %v8768, 16
        %v8837 = vrot.slane %v8835, 4
        %v8838 = vshll.u32 %v8768, 16
        %v8840 = vrot.slane %v8838, 5
        %v8841 = vor.u32 %v8837, %v8840
        %v8842 = vsel %vm2969, %v8832, %v8841
        %v8844 = vshrl.u32 %v8769, 16
        %v8846 = vrot.slane %v8844, 4
        %v8847 = vshll.u32 %v8769, 16
        %v8849 = vrot.slane %v8847, 5
        %v8850 = vor.u32 %v8846, %v8849
        %v8851 = vsel %vm2969, %v8841, %v8850
        %v8853 = vshrl.u32 %v8770, 16
        %v8855 = vrot.slane %v8853, 4
        %v8856 = vshll.u32 %v8770, 16
        %v8858 = vrot.slane %v8856, 5
        %v8859 = vor.u32 %v8855, %v8858
        %v8860 = vsel %vm2969, %v8850, %v8859
        %v8862 = vshrl.u32 %v8771, 16
        %v8864 = vrot.slane %v8862, 4
        %v8865 = vshll.u32 %v8771, 16
        %v8867 = vrot.slane %v8865, 5
        %v8868 = vor.u32 %v8864, %v8867
        %v8869 = vsel %vm2969, %v8859, %v8868
        %v8871 = vshrl.u32 %v8772, 16
        %v8873 = vrot.slane %v8871, 4
        %v8874 = vshll.u32 %v8772, 16
        %v8876 = vrot.slane %v8874, 5
        %v8877 = vor.u32 %v8873, %v8876
        %v8878 = vsel %vm2969, %v8868, %v8877
        %v8880 = vshrl.u32 %v8773, 16
        %v8882 = vrot.slane %v8880, 4
        %v8883 = vshll.u32 %v8773, 16
        %v8885 = vrot.slane %v8883, 5
        %v8886 = vor.u32 %v8882, %v8885
        %v8887 = vsel %vm2969, %v8877, %v8886
        %v8889 = vshrl.u32 %v8774, 16
        %v8891 = vrot.slane %v8889, 4
        %v8892 = vshll.u32 %v8774, 16
        %v8894 = vrot.slane %v8892, 5
        %v8895 = vor.u32 %v8891, %v8894
        %v8896 = vsel %vm2969, %v8886, %v8895
        %v8898 = vshrl.u32 %v8775, 16
        %v8900 = vrot.slane %v8898, 4
        %v8901 = vshll.u32 %v8775, 16
        %v8903 = vrot.slane %v8901, 5
        %v8904 = vor.u32 %v8900, %v8903
        %v8905 = vsel %vm2969, %v8895, %v8904
        %v8907 = vshrl.u32 %v8776, 16
        %v8909 = vrot.slane %v8907, 4
        %v8910 = vshll.u32 %v8776, 16
        %v8912 = vrot.slane %v8910, 5
        %v8913 = vor.u32 %v8909, %v8912
        %v8914 = vsel %vm2969, %v8904, %v8913
        %v8916 = vshrl.u32 %v8777, 16
        %v8918 = vrot.slane %v8916, 4
        %v8919 = vshll.u32 %v8777, 16
        %v8921 = vrot.slane %v8919, 5
        %v8922 = vor.u32 %v8918, %v8921
        %v8923 = vsel %vm2969, %v8913, %v8922
        %v8925 = vshrl.u32 %v8778, 16
        %v8927 = vrot.slane %v8925, 4
        %v8928 = vshll.u32 %v8778, 16
        %v8930 = vrot.slane %v8928, 5
        %v8931 = vor.u32 %v8927, %v8930
        %v8932 = vsel %vm2969, %v8922, %v8931
        %v8934 = vshrl.u32 %v8779, 16
        %v8936 = vrot.slane %v8934, 4
        %v8937 = vshll.u32 %v8779, 16
        %v8939 = vrot.slane %v8937, 5
        %v8940 = vor.u32 %v8936, %v8939
        %v8941 = vsel %vm2969, %v8931, %v8940
        %v8943 = vshrl.u32 %v8780, 16
        %v8945 = vrot.slane %v8943, 4
        %v8946 = vshll.u32 %v8780, 16
        %v8948 = vrot.slane %v8946, 5
        %v8949 = vor.u32 %v8945, %v8948
        %v8950 = vsel %vm2969, %v8940, %v8949
        %8969 = vst [vmem:[#allocation4] sm:$0xff] %v8797
        %8970 = vst [vmem:[#allocation4 + $0x18] sm:$0xff] %v8806
        %8971 = vst [vmem:[#allocation4 + $0x30] sm:$0xff] %v8815
        %8972 = vst [vmem:[#allocation4 + $0x48] sm:$0xff] %v8824
        %8973 = vst [vmem:[#allocation4 + $0x60] sm:$0xff] %v8833
        %8974 = vst [vmem:[#allocation4 + $0x78] sm:$0xff] %v8842
        %8975 = vst [vmem:[#allocation4 + $0x90] sm:$0xff] %v8851
        %8976 = vst [vmem:[#allocation4 + $0xa8] sm:$0xff] %v8860
        %8977 = vst [vmem:[#allocation4 + $0xc0] sm:$0xff] %v8869
        %8978 = vst [vmem:[#allocation4 + $0xd8] sm:$0xff] %v8878
        %8979 = vst [vmem:[#allocation4 + $0xf0] sm:$0xff] %v8887
        %8980 = vst [vmem:[#allocation4 + $0x108] sm:$0xff] %v8896
        %8981 = vst [vmem:[#allocation4 + $0x120] sm:$0xff] %v8905
        %8982 = vst [vmem:[#allocation4 + $0x138] sm:$0xff] %v8914
        %8983 = vst [vmem:[#allocation4 + $0x150] sm:$0xff] %v8923
        %8984 = vst [vmem:[#allocation4 + $0x168] sm:$0xff] %v8932
        %8985 = vst [vmem:[#allocation4 + $0x180] sm:$0xff] %v8941
        %8986 = vst [vmem:[#allocation4 + $0x198] sm:$0xff] %v8950
        %v8987 = vld [vmem:[#allocation3 + $0x10] sm:$0xe0]
        %v8988 = vld [vmem:[#allocation3 + $0x18] sm:$0xff]
        %v8989 = vld [vmem:[#allocation3 + $0x20] sm:$0xff]
        %v8990 = vld [vmem:[#allocation3 + $0x28] sm:$0xff]
        %v8991 = vld [vmem:[#allocation3 + $0x30] sm:$0xff]
        %v8992 = vld [vmem:[#allocation3 + $0x38] sm:$0xff]
        %v8993 = vld [vmem:[#allocation3 + $0x40] sm:$0xff]
        %v8994 = vld [vmem:[#allocation3 + $0x48] sm:$0xff]
        %v8995 = vld [vmem:[#allocation3 + $0x50] sm:$0xff]
        %v8996 = vld [vmem:[#allocation3 + $0x58] sm:$0xff]
        %v8997 = vld [vmem:[#allocation3 + $0x60] sm:$0xff]
        %v8998 = vld [vmem:[#allocation3 + $0x68] sm:$0xff]
        %v8999 = vld [vmem:[#allocation3 + $0x70] sm:$0xff]
        %v9000 = vld [vmem:[#allocation3 + $0x78] sm:$0xff]
        %v9001 = vld [vmem:[#allocation3 + $0x80] sm:$0xff]
        %v9002 = vld [vmem:[#allocation3 + $0x88] sm:$0xff]
        %v9003 = vld [vmem:[#allocation3 + $0x90] sm:$0xff]
        %v9004 = vld [vmem:[#allocation3 + $0x98] sm:$0xff]
        %v9005 = vld [vmem:[#allocation3 + $0xa0] sm:$0x1f]
        %v9025 = vrot.slane %v8987, 5
        %v9026 = vrot.slane %v8988, 5
        %v9027 = vsel %vm4538, %v9025, %v9026
        %v9028 = vrot.slane %v8989, 5
        %v9029 = vsel %vm4538, %v9026, %v9028
        %v9030 = vrot.slane %v8990, 5
        %v9031 = vsel %vm4538, %v9028, %v9030
        %v9032 = vrot.slane %v8991, 5
        %v9033 = vsel %vm4538, %v9030, %v9032
        %v9034 = vrot.slane %v8992, 5
        %v9035 = vsel %vm4538, %v9032, %v9034
        %v9036 = vrot.slane %v8993, 5
        %v9037 = vsel %vm4538, %v9034, %v9036
        %v9038 = vrot.slane %v8994, 5
        %v9039 = vsel %vm4538, %v9036, %v9038
        %v9040 = vrot.slane %v8995, 5
        %v9041 = vsel %vm4538, %v9038, %v9040
        %v9042 = vrot.slane %v8996, 5
        %v9043 = vsel %vm4538, %v9040, %v9042
        %v9044 = vrot.slane %v8997, 5
        %v9045 = vsel %vm4538, %v9042, %v9044
        %v9046 = vrot.slane %v8998, 5
        %v9047 = vsel %vm4538, %v9044, %v9046
        %v9048 = vrot.slane %v8999, 5
        %v9049 = vsel %vm4538, %v9046, %v9048
        %v9050 = vrot.slane %v9000, 5
        %v9051 = vsel %vm4538, %v9048, %v9050
        %v9052 = vrot.slane %v9001, 5
        %v9053 = vsel %vm4538, %v9050, %v9052
        %v9054 = vrot.slane %v9002, 5
        %v9055 = vsel %vm4538, %v9052, %v9054
        %v9056 = vrot.slane %v9003, 5
        %v9057 = vsel %vm4538, %v9054, %v9056
        %v9058 = vrot.slane %v9004, 5
        %v9059 = vsel %vm4538, %v9056, %v9058
        %v9060 = vrot.slane %v9005, 5
        %v9061 = vsel %vm4538, %v9058, %v9060
        %9080 = vst [vmem:[#allocation4 + $0x8] sm:$0xff] %v9027
        %9081 = vst [vmem:[#allocation4 + $0x20] sm:$0xff] %v9029
        %9082 = vst [vmem:[#allocation4 + $0x38] sm:$0xff] %v9031
        %9083 = vst [vmem:[#allocation4 + $0x50] sm:$0xff] %v9033
        %9084 = vst [vmem:[#allocation4 + $0x68] sm:$0xff] %v9035
        %9085 = vst [vmem:[#allocation4 + $0x80] sm:$0xff] %v9037
        %9086 = vst [vmem:[#allocation4 + $0x98] sm:$0xff] %v9039
        %9087 = vst [vmem:[#allocation4 + $0xb0] sm:$0xff] %v9041
        %9088 = vst [vmem:[#allocation4 + $0xc8] sm:$0xff] %v9043
        %9089 = vst [vmem:[#allocation4 + $0xe0] sm:$0xff] %v9045
        %9090 = vst [vmem:[#allocation4 + $0xf8] sm:$0xff] %v9047
        %9091 = vst [vmem:[#allocation4 + $0x110] sm:$0xff] %v9049
        %9092 = vst [vmem:[#allocation4 + $0x128] sm:$0xff] %v9051
        %9093 = vst [vmem:[#allocation4 + $0x140] sm:$0xff] %v9053
        %9094 = vst [vmem:[#allocation4 + $0x158] sm:$0xff] %v9055
        %9095 = vst [vmem:[#allocation4 + $0x170] sm:$0xff] %v9057
        %9096 = vst [vmem:[#allocation4 + $0x188] sm:$0xff] %v9059
        %9097 = vst [vmem:[#allocation4 + $0x1a0] sm:$0xff] %v9061
        %v9098 = vld [vmem:[#allocation3 + $0x10] sm:$0xe0]
        %v9099 = vld [vmem:[#allocation3 + $0x18] sm:$0xff]
        %v9100 = vld [vmem:[#allocation3 + $0x20] sm:$0xff]
        %v9101 = vld [vmem:[#allocation3 + $0x28] sm:$0xff]
        %v9102 = vld [vmem:[#allocation3 + $0x30] sm:$0xff]
        %v9103 = vld [vmem:[#allocation3 + $0x38] sm:$0xff]
        %v9104 = vld [vmem:[#allocation3 + $0x40] sm:$0xff]
        %v9105 = vld [vmem:[#allocation3 + $0x48] sm:$0xff]
        %v9106 = vld [vmem:[#allocation3 + $0x50] sm:$0xff]
        %v9107 = vld [vmem:[#allocation3 + $0x58] sm:$0xff]
        %v9108 = vld [vmem:[#allocation3 + $0x60] sm:$0xff]
        %v9109 = vld [vmem:[#allocation3 + $0x68] sm:$0xff]
        %v9110 = vld [vmem:[#allocation3 + $0x70] sm:$0xff]
        %v9111 = vld [vmem:[#allocation3 + $0x78] sm:$0xff]
        %v9112 = vld [vmem:[#allocation3 + $0x80] sm:$0xff]
        %v9113 = vld [vmem:[#allocation3 + $0x88] sm:$0xff]
        %v9114 = vld [vmem:[#allocation3 + $0x90] sm:$0xff]
        %v9115 = vld [vmem:[#allocation3 + $0x98] sm:$0xff]
        %v9116 = vld [vmem:[#allocation3 + $0xa0] sm:$0x3f]
        %v9118 = vshrl.u32 %v9098, 16
        %v9120 = vrot.slane %v9118, 5
        %v9121 = vshll.u32 %v9098, 16
        %v9123 = vrot.slane %v9121, 6
        %v9124 = vor.u32 %v9120, %v9123
        %v9126 = vshrl.u32 %v9099, 16
        %v9128 = vrot.slane %v9126, 5
        %v9129 = vshll.u32 %v9099, 16
        %v9131 = vrot.slane %v9129, 6
        %v9132 = vor.u32 %v9128, %v9131
        %v9133 = vsel %vm4631, %v9124, %v9132
        %v9135 = vshrl.u32 %v9100, 16
        %v9137 = vrot.slane %v9135, 5
        %v9138 = vshll.u32 %v9100, 16
        %v9140 = vrot.slane %v9138, 6
        %v9141 = vor.u32 %v9137, %v9140
        %v9142 = vsel %vm4631, %v9132, %v9141
        %v9144 = vshrl.u32 %v9101, 16
        %v9146 = vrot.slane %v9144, 5
        %v9147 = vshll.u32 %v9101, 16
        %v9149 = vrot.slane %v9147, 6
        %v9150 = vor.u32 %v9146, %v9149
        %v9151 = vsel %vm4631, %v9141, %v9150
        %v9153 = vshrl.u32 %v9102, 16
        %v9155 = vrot.slane %v9153, 5
        %v9156 = vshll.u32 %v9102, 16
        %v9158 = vrot.slane %v9156, 6
        %v9159 = vor.u32 %v9155, %v9158
        %v9160 = vsel %vm4631, %v9150, %v9159
        %v9162 = vshrl.u32 %v9103, 16
        %v9164 = vrot.slane %v9162, 5
        %v9165 = vshll.u32 %v9103, 16
        %v9167 = vrot.slane %v9165, 6
        %v9168 = vor.u32 %v9164, %v9167
        %v9169 = vsel %vm4631, %v9159, %v9168
        %v9171 = vshrl.u32 %v9104, 16
        %v9173 = vrot.slane %v9171, 5
        %v9174 = vshll.u32 %v9104, 16
        %v9176 = vrot.slane %v9174, 6
        %v9177 = vor.u32 %v9173, %v9176
        %v9178 = vsel %vm4631, %v9168, %v9177
        %v9180 = vshrl.u32 %v9105, 16
        %v9182 = vrot.slane %v9180, 5
        %v9183 = vshll.u32 %v9105, 16
        %v9185 = vrot.slane %v9183, 6
        %v9186 = vor.u32 %v9182, %v9185
        %v9187 = vsel %vm4631, %v9177, %v9186
        %v9189 = vshrl.u32 %v9106, 16
        %v9191 = vrot.slane %v9189, 5
        %v9192 = vshll.u32 %v9106, 16
        %v9194 = vrot.slane %v9192, 6
        %v9195 = vor.u32 %v9191, %v9194
        %v9196 = vsel %vm4631, %v9186, %v9195
        %v9198 = vshrl.u32 %v9107, 16
        %v9200 = vrot.slane %v9198, 5
        %v9201 = vshll.u32 %v9107, 16
        %v9203 = vrot.slane %v9201, 6
        %v9204 = vor.u32 %v9200, %v9203
        %v9205 = vsel %vm4631, %v9195, %v9204
        %v9207 = vshrl.u32 %v9108, 16
        %v9209 = vrot.slane %v9207, 5
        %v9210 = vshll.u32 %v9108, 16
        %v9212 = vrot.slane %v9210, 6
        %v9213 = vor.u32 %v9209, %v9212
        %v9214 = vsel %vm4631, %v9204, %v9213
        %v9216 = vshrl.u32 %v9109, 16
        %v9218 = vrot.slane %v9216, 5
        %v9219 = vshll.u32 %v9109, 16
        %v9221 = vrot.slane %v9219, 6
        %v9222 = vor.u32 %v9218, %v9221
        %v9223 = vsel %vm4631, %v9213, %v9222
        %v9225 = vshrl.u32 %v9110, 16
        %v9227 = vrot.slane %v9225, 5
        %v9228 = vshll.u32 %v9110, 16
        %v9230 = vrot.slane %v9228, 6
        %v9231 = vor.u32 %v9227, %v9230
        %v9232 = vsel %vm4631, %v9222, %v9231
        %v9234 = vshrl.u32 %v9111, 16
        %v9236 = vrot.slane %v9234, 5
        %v9237 = vshll.u32 %v9111, 16
        %v9239 = vrot.slane %v9237, 6
        %v9240 = vor.u32 %v9236, %v9239
        %v9241 = vsel %vm4631, %v9231, %v9240
        %v9243 = vshrl.u32 %v9112, 16
        %v9245 = vrot.slane %v9243, 5
        %v9246 = vshll.u32 %v9112, 16
        %v9248 = vrot.slane %v9246, 6
        %v9249 = vor.u32 %v9245, %v9248
        %v9250 = vsel %vm4631, %v9240, %v9249
        %v9252 = vshrl.u32 %v9113, 16
        %v9254 = vrot.slane %v9252, 5
        %v9255 = vshll.u32 %v9113, 16
        %v9257 = vrot.slane %v9255, 6
        %v9258 = vor.u32 %v9254, %v9257
        %v9259 = vsel %vm4631, %v9249, %v9258
        %v9261 = vshrl.u32 %v9114, 16
        %v9263 = vrot.slane %v9261, 5
        %v9264 = vshll.u32 %v9114, 16
        %v9266 = vrot.slane %v9264, 6
        %v9267 = vor.u32 %v9263, %v9266
        %v9268 = vsel %vm4631, %v9258, %v9267
        %v9270 = vshrl.u32 %v9115, 16
        %v9272 = vrot.slane %v9270, 5
        %v9273 = vshll.u32 %v9115, 16
        %v9275 = vrot.slane %v9273, 6
        %v9276 = vor.u32 %v9272, %v9275
        %v9277 = vsel %vm4631, %v9267, %v9276
        %v9279 = vshrl.u32 %v9116, 16
        %v9281 = vrot.slane %v9279, 5
        %v9282 = vshll.u32 %v9116, 16
        %v9284 = vrot.slane %v9282, 6
        %v9285 = vor.u32 %v9281, %v9284
        %v9286 = vsel %vm4631, %v9276, %v9285
        %9305 = vst [vmem:[#allocation4 + $0x10] sm:$0xff] %v9133
        %9306 = vst [vmem:[#allocation4 + $0x28] sm:$0xff] %v9142
        %9307 = vst [vmem:[#allocation4 + $0x40] sm:$0xff] %v9151
        %9308 = vst [vmem:[#allocation4 + $0x58] sm:$0xff] %v9160
        %9309 = vst [vmem:[#allocation4 + $0x70] sm:$0xff] %v9169
        %9310 = vst [vmem:[#allocation4 + $0x88] sm:$0xff] %v9178
        %9311 = vst [vmem:[#allocation4 + $0xa0] sm:$0xff] %v9187
        %9312 = vst [vmem:[#allocation4 + $0xb8] sm:$0xff] %v9196
        %9313 = vst [vmem:[#allocation4 + $0xd0] sm:$0xff] %v9205
        %9314 = vst [vmem:[#allocation4 + $0xe8] sm:$0xff] %v9214
        %9315 = vst [vmem:[#allocation4 + $0x100] sm:$0xff] %v9223
        %9316 = vst [vmem:[#allocation4 + $0x118] sm:$0xff] %v9232
        %9317 = vst [vmem:[#allocation4 + $0x130] sm:$0xff] %v9241
        %9318 = vst [vmem:[#allocation4 + $0x148] sm:$0xff] %v9250
        %9319 = vst [vmem:[#allocation4 + $0x160] sm:$0xff] %v9259
        %9320 = vst [vmem:[#allocation4 + $0x178] sm:$0xff] %v9268
        %9321 = vst [vmem:[#allocation4 + $0x190] sm:$0xff] %v9277
        %9322 = vst [vmem:[#allocation4 + $0x1a8] sm:$0xff] %v9286
        %v9323 = vld [vmem:[#allocation4] sm:$0xff]
        %v9324 = vld [vmem:[#allocation4 + $0x8] sm:$0xff]
        %v9325 = vld [vmem:[#allocation4 + $0x10] sm:$0xff]
        %v9326 = vld [vmem:[#allocation4 + $0x18] sm:$0xff]
        %v9327 = vld [vmem:[#allocation4 + $0x20] sm:$0xff]
        %v9328 = vld [vmem:[#allocation4 + $0x28] sm:$0xff]
        %v9329 = vld [vmem:[#allocation4 + $0x30] sm:$0xff]
        %v9330 = vld [vmem:[#allocation4 + $0x38] sm:$0xff]
        %v9331 = vld [vmem:[#allocation4 + $0x40] sm:$0xff]
        %v9332 = vld [vmem:[#allocation4 + $0x48] sm:$0xff]
        %v9333 = vld [vmem:[#allocation4 + $0x50] sm:$0xff]
        %v9334 = vld [vmem:[#allocation4 + $0x58] sm:$0xff]
        %v9335 = vld [vmem:[#allocation4 + $0x60] sm:$0xff]
        %v9336 = vld [vmem:[#allocation4 + $0x68] sm:$0xff]
        %v9337 = vld [vmem:[#allocation4 + $0x70] sm:$0xff]
        %v9338 = vld [vmem:[#allocation4 + $0x78] sm:$0xff]
        %v9339 = vld [vmem:[#allocation4 + $0x80] sm:$0xff]
        %v9340 = vld [vmem:[#allocation4 + $0x88] sm:$0xff]
        %v9341 = vld [vmem:[#allocation4 + $0x90] sm:$0xff]
        %v9342 = vld [vmem:[#allocation4 + $0x98] sm:$0xff]
        %v9343 = vld [vmem:[#allocation4 + $0xa0] sm:$0xff]
        %v9344 = vld [vmem:[#allocation4 + $0xa8] sm:$0xff]
        %v9345 = vld [vmem:[#allocation4 + $0xb0] sm:$0xff]
        %v9346 = vld [vmem:[#allocation4 + $0xb8] sm:$0xff]
        %v9347 = vld [vmem:[#allocation4 + $0xc0] sm:$0xff]
        %v9348 = vld [vmem:[#allocation4 + $0xc8] sm:$0xff]
        %v9349 = vld [vmem:[#allocation4 + $0xd0] sm:$0xff]
        %v9350 = vld [vmem:[#allocation4 + $0xd8] sm:$0xff]
        %v9351 = vld [vmem:[#allocation4 + $0xe0] sm:$0xff]
        %v9352 = vld [vmem:[#allocation4 + $0xe8] sm:$0xff]
        %v9353 = vld [vmem:[#allocation4 + $0xf0] sm:$0xff]
        %v9354 = vld [vmem:[#allocation4 + $0xf8] sm:$0xff]
        %v9355 = vld [vmem:[#allocation4 + $0x100] sm:$0xff]
        %v9356 = vld [vmem:[#allocation4 + $0x108] sm:$0xff]
        %v9357 = vld [vmem:[#allocation4 + $0x110] sm:$0xff]
        %v9358 = vld [vmem:[#allocation4 + $0x118] sm:$0xff]
        %v9359 = vld [vmem:[#allocation4 + $0x120] sm:$0xff]
        %v9360 = vld [vmem:[#allocation4 + $0x128] sm:$0xff]
        %v9361 = vld [vmem:[#allocation4 + $0x130] sm:$0xff]
        %v9362 = vld [vmem:[#allocation4 + $0x138] sm:$0xff]
        %v9363 = vld [vmem:[#allocation4 + $0x140] sm:$0xff]
        %v9364 = vld [vmem:[#allocation4 + $0x148] sm:$0xff]
        %v9365 = vld [vmem:[#allocation4 + $0x150] sm:$0xff]
        %v9366 = vld [vmem:[#allocation4 + $0x158] sm:$0xff]
        %v9367 = vld [vmem:[#allocation4 + $0x160] sm:$0xff]
        %v9368 = vld [vmem:[#allocation4 + $0x168] sm:$0xff]
        %v9369 = vld [vmem:[#allocation4 + $0x170] sm:$0xff]
        %v9370 = vld [vmem:[#allocation4 + $0x178] sm:$0xff]
        %v9371 = vld [vmem:[#allocation4 + $0x180] sm:$0xff]
        %v9372 = vld [vmem:[#allocation4 + $0x188] sm:$0xff]
        %v9373 = vld [vmem:[#allocation4 + $0x190] sm:$0xff]
        %v9374 = vld [vmem:[#allocation4 + $0x198] sm:$0xff]
        %v9375 = vld [vmem:[#allocation4 + $0x1a0] sm:$0xff]
        %v9376 = vld [vmem:[#allocation4 + $0x1a8] sm:$0xff]
        %s9377 = scalar_lea.vmem [#allocation25], 384
        %v9378 = vld [vmem:[%s9377] sm:$0xf]
        %v9379 = vld [vmem:[%s9377 + $0x4] sm:$0xf]
        %v9380 = vld [vmem:[%s9377 + $0x8] sm:$0xf]
        %v9381 = vld [vmem:[%s9377 + $0xc] sm:$0xf]
        %v9382 = vld [vmem:[%s9377 + $0x10] sm:$0xf]
        %v9383 = vld [vmem:[%s9377 + $0x14] sm:$0xf]
        %v9384 = vld [vmem:[%s9377 + $0x18] sm:$0xf]
        %v9385 = vld [vmem:[%s9377 + $0x1c] sm:$0xf]
        %v9386 = vld [vmem:[%s9377 + $0x20] sm:$0xf]
        %v9387 = vld [vmem:[%s9377 + $0x24] sm:$0xf]
        %v9388 = vld [vmem:[%s9377 + $0x28] sm:$0xf]
        %v9389 = vld [vmem:[%s9377 + $0x2c] sm:$0xf]
        %v9390 = vld [vmem:[%s9377 + $0x30] sm:$0xf]
        %v9391 = vld [vmem:[%s9377 + $0x34] sm:$0xf]
        %v9392 = vld [vmem:[%s9377 + $0x38] sm:$0xf]
        %v9393 = vld [vmem:[%s9377 + $0x3c] sm:$0xf]
        %v9394 = vld [vmem:[%s9377 + $0x40] sm:$0xf]
        %v9395 = vld [vmem:[%s9377 + $0x44] sm:$0xf]
        %v9396 = vld [vmem:[%s9377 + $0x48] sm:$0xf]
        %v9397 = vld [vmem:[%s9377 + $0x4c] sm:$0xf]
        %v9398 = vld [vmem:[%s9377 + $0x50] sm:$0xf]
        %v9399 = vld [vmem:[%s9377 + $0x54] sm:$0xf]
        %v9400 = vld [vmem:[%s9377 + $0x58] sm:$0xf]
        %v9401 = vld [vmem:[%s9377 + $0x5c] sm:$0xf]
        %v9402 = vld [vmem:[%s9377 + $0x60] sm:$0xf]
        %v9403 = vld [vmem:[%s9377 + $0x64] sm:$0xf]
        %v9404 = vld [vmem:[%s9377 + $0x68] sm:$0xf]
        %v9405 = vld [vmem:[%s9377 + $0x6c] sm:$0xf]
        %v9406 = vld [vmem:[%s9377 + $0x70] sm:$0xf]
        %v9407 = vld [vmem:[%s9377 + $0x74] sm:$0xf]
        %v9408 = vld [vmem:[%s9377 + $0x78] sm:$0xf]
        %v9409 = vld [vmem:[%s9377 + $0x7c] sm:$0xf]
        %v9410 = vld [vmem:[%s9377 + $0x80] sm:$0xf]
        %v9411 = vld [vmem:[%s9377 + $0x84] sm:$0xf]
        %v9412 = vld [vmem:[%s9377 + $0x88] sm:$0xf]
        %v9413 = vld [vmem:[%s9377 + $0x8c] sm:$0xf]
        %v9414 = vld [vmem:[%s9377 + $0x90] sm:$0xf]
        %v9415 = vld [vmem:[%s9377 + $0x94] sm:$0xf]
        %v9416 = vld [vmem:[%s9377 + $0x98] sm:$0xf]
        %v9417 = vld [vmem:[%s9377 + $0x9c] sm:$0xf]
        %v9418 = vld [vmem:[%s9377 + $0xa0] sm:$0xf]
        %v9419 = vld [vmem:[%s9377 + $0xa4] sm:$0xf]
        %v9420 = vld [vmem:[%s9377 + $0xa8] sm:$0xf]
        %v9421 = vld [vmem:[%s9377 + $0xac] sm:$0xf]
        %v9422 = vld [vmem:[%s9377 + $0xb0] sm:$0xf]
        %v9423 = vld [vmem:[%s9377 + $0xb4] sm:$0xf]
        %v9424 = vld [vmem:[%s9377 + $0xb8] sm:$0xf]
        %v9425 = vld [vmem:[%s9377 + $0xbc] sm:$0xf]
        %v9474 = vunpack.c.l.b16 %v9378
        %v9475 = vunpack.c.l.b16 %v9379
        %v9476 = vunpack.c.l.b16 %v9380
        %v9477 = vunpack.c.l.b16 %v9381
        %v9478 = vunpack.c.l.b16 %v9382
        %v9479 = vunpack.c.l.b16 %v9383
        %v9480 = vunpack.c.l.b16 %v9384
        %v9481 = vunpack.c.l.b16 %v9385
        %v9482 = vunpack.c.l.b16 %v9386
        %v9483 = vunpack.c.l.b16 %v9387
        %v9484 = vunpack.c.l.b16 %v9388
        %v9485 = vunpack.c.l.b16 %v9389
        %v9486 = vunpack.c.l.b16 %v9390
        %v9487 = vunpack.c.l.b16 %v9391
        %v9488 = vunpack.c.l.b16 %v9392
        %v9489 = vunpack.c.l.b16 %v9393
        %v9490 = vunpack.c.l.b16 %v9394
        %v9491 = vunpack.c.l.b16 %v9395
        %v9492 = vunpack.c.l.b16 %v9396
        %v9493 = vunpack.c.l.b16 %v9397
        %v9494 = vunpack.c.l.b16 %v9398
        %v9495 = vunpack.c.l.b16 %v9399
        %v9496 = vunpack.c.l.b16 %v9400
        %v9497 = vunpack.c.l.b16 %v9401
        %v9498 = vunpack.c.l.b16 %v9402
        %v9499 = vunpack.c.l.b16 %v9403
        %v9500 = vunpack.c.l.b16 %v9404
        %v9501 = vunpack.c.l.b16 %v9405
        %v9502 = vunpack.c.l.b16 %v9406
        %v9503 = vunpack.c.l.b16 %v9407
        %v9504 = vunpack.c.l.b16 %v9408
        %v9505 = vunpack.c.l.b16 %v9409
        %v9506 = vunpack.c.l.b16 %v9410
        %v9507 = vunpack.c.l.b16 %v9411
        %v9508 = vunpack.c.l.b16 %v9412
        %v9509 = vunpack.c.l.b16 %v9413
        %v9510 = vunpack.c.l.b16 %v9414
        %v9511 = vunpack.c.l.b16 %v9415
        %v9512 = vunpack.c.l.b16 %v9416
        %v9513 = vunpack.c.l.b16 %v9417
        %v9514 = vunpack.c.l.b16 %v9418
        %v9515 = vunpack.c.l.b16 %v9419
        %v9516 = vunpack.c.l.b16 %v9420
        %v9517 = vunpack.c.l.b16 %v9421
        %v9518 = vunpack.c.l.b16 %v9422
        %v9519 = vunpack.c.l.b16 %v9423
        %v9520 = vunpack.c.l.b16 %v9424
        %v9521 = vunpack.c.l.b16 %v9425
        %v9522 = vpack.c.b16 %v9475, %v9474
        %v9523 = vpack.c.b16 %v9477, %v9476
        %v9524 = vpack.c.b16 %v9479, %v9478
        %v9525 = vpack.c.b16 %v9481, %v9480
        %v9526 = vpack.c.b16 %v9483, %v9482
        %v9527 = vpack.c.b16 %v9485, %v9484
        %v9528 = vpack.c.b16 %v9487, %v9486
        %v9529 = vpack.c.b16 %v9489, %v9488
        %v9530 = vpack.c.b16 %v9491, %v9490
        %v9531 = vpack.c.b16 %v9493, %v9492
        %v9532 = vpack.c.b16 %v9495, %v9494
        %v9533 = vpack.c.b16 %v9497, %v9496
        %v9534 = vpack.c.b16 %v9499, %v9498
        %v9535 = vpack.c.b16 %v9501, %v9500
        %v9536 = vpack.c.b16 %v9503, %v9502
        %v9537 = vpack.c.b16 %v9505, %v9504
        %v9538 = vpack.c.b16 %v9507, %v9506
        %v9539 = vpack.c.b16 %v9509, %v9508
        %v9540 = vpack.c.b16 %v9511, %v9510
        %v9541 = vpack.c.b16 %v9513, %v9512
        %v9542 = vpack.c.b16 %v9515, %v9514
        %v9543 = vpack.c.b16 %v9517, %v9516
        %v9544 = vpack.c.b16 %v9519, %v9518
        %v9545 = vpack.c.b16 %v9521, %v9520
        %9570 = vmatprep.subr.bf16.mxu0 0
        %9571 = vmatpush1.bf16.msra.mxu0 %v9522
        %9572 = vmatprep.subr.bf16.mxu0 0
        %9573 = vmatpush1.bf16.msra.mxu0 %v9523
        %9574 = vmatprep.subr.bf16.mxu0 0
        %9575 = vmatpush1.bf16.msra.mxu0 %v9524
        %9576 = vmatprep.subr.bf16.mxu0 0
        %9577 = vmatpush1.bf16.msra.mxu0 %v9525
        %9578 = vmatprep.subr.bf16.mxu0 0
        %9579 = vmatpush1.bf16.msra.mxu0 %v9526
        %9580 = vmatprep.subr.bf16.mxu0 0
        %9581 = vmatpush1.bf16.msra.mxu0 %v9527
        %9582 = vmatprep.subr.bf16.mxu0 0
        %9583 = vmatpush1.bf16.msra.mxu0 %v9528
        %9584 = vmatprep.subr.bf16.mxu0 0
        %9585 = vmatpush1.bf16.msra.mxu0 %v9529
        %9586 = vmatprep.subr.bf16.mxu0 0
        %9587 = vmatpush1.bf16.msra.mxu0 %v9530
        %9588 = vmatprep.subr.bf16.mxu0 0
        %9589 = vmatpush1.bf16.msra.mxu0 %v9531
        %9590 = vmatprep.subr.bf16.mxu0 0
        %9591 = vmatpush1.bf16.msra.mxu0 %v9532
        %9592 = vmatprep.subr.bf16.mxu0 0
        %9593 = vmatpush1.bf16.msra.mxu0 %v9533
        %9594 = vmatprep.subr.bf16.mxu0 0
        %9595 = vmatpush1.bf16.msra.mxu0 %v9534
        %9596 = vmatprep.subr.bf16.mxu0 0
        %9597 = vmatpush1.bf16.msra.mxu0 %v9535
        %9598 = vmatprep.subr.bf16.mxu0 0
        %9599 = vmatpush1.bf16.msra.mxu0 %v9536
        %9600 = vmatprep.subr.bf16.mxu0 0
        %9601 = vmatpush1.bf16.msra.mxu0 %v9537
        %9602 = vmatprep.mubr.bf16.mxu0 %v9324
        %9603 = vmatmul.mubr.bf16.gmra.mrb[0].mxu0 %v9323
        %v9604 = vpop.f32.mrb[0].mxu0
        %v9605 = vadd.f32 0.0, %v9604
        %v9606 = vpop.f32.mrb[0].mxu0
        %v9607 = vpop.f32.mrb[0].mxu0
        %v9608 = vadd.f32 0.0, %v9607
        %v9609 = vpop.f32.mrb[0].mxu0
        %9610 = vmatprep.mubr.bf16.mxu0 %v9327
        %9611 = vmatmul.mubr.bf16.gmra.mrb[0].mxu0 %v9326
        %v9612 = vpop.f32.mrb[0].mxu0
        %v9613 = vadd.f32 0.0, %v9612
        %v9614 = vpop.f32.mrb[0].mxu0
        %v9615 = vpop.f32.mrb[0].mxu0
        %v9616 = vadd.f32 0.0, %v9615
        %v9617 = vpop.f32.mrb[0].mxu0
        %9618 = vmatprep.mubr.bf16.mxu0 %v9330
        %9619 = vmatmul.mubr.bf16.gmra.mrb[0].mxu0 %v9329
        %v9620 = vpop.f32.mrb[0].mxu0
        %v9621 = vadd.f32 0.0, %v9620
        %v9622 = vpop.f32.mrb[0].mxu0
        %v9623 = vpop.f32.mrb[0].mxu0
        %v9624 = vadd.f32 0.0, %v9623
        %v9625 = vpop.f32.mrb[0].mxu0
        %9626 = vmatprep.mubr.bf16.mxu0 %v9333
        %9627 = vmatmul.mubr.bf16.gmra.mrb[0].mxu0 %v9332
        %v9628 = vpop.f32.mrb[0].mxu0
        %v9629 = vadd.f32 0.0, %v9628
        %v9630 = vpop.f32.mrb[0].mxu0
        %v9631 = vpop.f32.mrb[0].mxu0
        %v9632 = vadd.f32 0.0, %v9631
        %v9633 = vpop.f32.mrb[0].mxu0
        %9634 = vmatprep.mubr.bf16.mxu0 %v9336
        %9635 = vmatmul.mubr.bf16.gmra.mrb[0].mxu0 %v9335
        %v9636 = vpop.f32.mrb[0].mxu0
        %v9637 = vadd.f32 0.0, %v9636
        %v9638 = vpop.f32.mrb[0].mxu0
        %v9639 = vpop.f32.mrb[0].mxu0
        %v9640 = vadd.f32 0.0, %v9639
        %v9641 = vpop.f32.mrb[0].mxu0
        %9642 = vmatprep.mubr.bf16.mxu0 %v9339
        %9643 = vmatmul.mubr.bf16.gmra.mrb[0].mxu0 %v9338
        %v9644 = vpop.f32.mrb[0].mxu0
        %v9645 = vadd.f32 0.0, %v9644
        %v9646 = vpop.f32.mrb[0].mxu0
        %v9647 = vpop.f32.mrb[0].mxu0
        %v9648 = vadd.f32 0.0, %v9647
        %v9649 = vpop.f32.mrb[0].mxu0
        %9650 = vmatprep.mubr.bf16.mxu0 %v9342
        %9651 = vmatmul.mubr.bf16.gmra.mrb[0].mxu0 %v9341
        %v9652 = vpop.f32.mrb[0].mxu0
        %v9653 = vadd.f32 0.0, %v9652
        %v9654 = vpop.f32.mrb[0].mxu0
        %v9655 = vpop.f32.mrb[0].mxu0
        %v9656 = vadd.f32 0.0, %v9655
        %v9657 = vpop.f32.mrb[0].mxu0
        %9658 = vmatprep.mubr.bf16.mxu0 %v9345
        %9659 = vmatmul.mubr.bf16.gmra.mrb[0].mxu0 %v9344
        %v9660 = vpop.f32.mrb[0].mxu0
        %v9661 = vadd.f32 0.0, %v9660
        %v9662 = vpop.f32.mrb[0].mxu0
        %v9663 = vpop.f32.mrb[0].mxu0
        %v9664 = vadd.f32 0.0, %v9663
        %v9665 = vpop.f32.mrb[0].mxu0
        %9666 = vmatprep.mubr.bf16.mxu0 %v9348
        %9667 = vmatmul.mubr.bf16.gmra.mrb[0].mxu0 %v9347
        %v9668 = vpop.f32.mrb[0].mxu0
        %v9669 = vadd.f32 0.0, %v9668
        %v9670 = vpop.f32.mrb[0].mxu0
        %v9671 = vpop.f32.mrb[0].mxu0
        %v9672 = vadd.f32 0.0, %v9671
        %v9673 = vpop.f32.mrb[0].mxu0
        %9674 = vmatprep.mubr.bf16.mxu0 %v9351
        %9675 = vmatmul.mubr.bf16.gmra.mrb[0].mxu0 %v9350
        %v9676 = vpop.f32.mrb[0].mxu0
        %v9677 = vadd.f32 0.0, %v9676
        %v9678 = vpop.f32.mrb[0].mxu0
        %v9679 = vpop.f32.mrb[0].mxu0
        %v9680 = vadd.f32 0.0, %v9679
        %v9681 = vpop.f32.mrb[0].mxu0
        %9682 = vmatprep.mubr.bf16.mxu0 %v9354
        %9683 = vmatmul.mubr.bf16.gmra.mrb[0].mxu0 %v9353
        %v9684 = vpop.f32.mrb[0].mxu0
        %v9685 = vadd.f32 0.0, %v9684
        %v9686 = vpop.f32.mrb[0].mxu0
        %v9687 = vpop.f32.mrb[0].mxu0
        %v9688 = vadd.f32 0.0, %v9687
        %v9689 = vpop.f32.mrb[0].mxu0
        %9690 = vmatprep.mubr.bf16.mxu0 %v9357
        %9691 = vmatmul.mubr.bf16.gmra.mrb[0].mxu0 %v9356
        %v9692 = vpop.f32.mrb[0].mxu0
        %v9693 = vadd.f32 0.0, %v9692
        %v9694 = vpop.f32.mrb[0].mxu0
        %v9695 = vpop.f32.mrb[0].mxu0
        %v9696 = vadd.f32 0.0, %v9695
        %v9697 = vpop.f32.mrb[0].mxu0
        %9698 = vmatprep.mubr.bf16.mxu0 %v9360
        %9699 = vmatmul.mubr.bf16.gmra.mrb[0].mxu0 %v9359
        %v9700 = vpop.f32.mrb[0].mxu0
        %v9701 = vadd.f32 0.0, %v9700
        %v9702 = vpop.f32.mrb[0].mxu0
        %v9703 = vpop.f32.mrb[0].mxu0
        %v9704 = vadd.f32 0.0, %v9703
        %v9705 = vpop.f32.mrb[0].mxu0
        %9706 = vmatprep.mubr.bf16.mxu0 %v9363
        %9707 = vmatmul.mubr.bf16.gmra.mrb[0].mxu0 %v9362
        %v9708 = vpop.f32.mrb[0].mxu0
        %v9709 = vadd.f32 0.0, %v9708
        %v9710 = vpop.f32.mrb[0].mxu0
        %v9711 = vpop.f32.mrb[0].mxu0
        %v9712 = vadd.f32 0.0, %v9711
        %v9713 = vpop.f32.mrb[0].mxu0
        %9714 = vmatprep.mubr.bf16.mxu0 %v9366
        %9715 = vmatmul.mubr.bf16.gmra.mrb[0].mxu0 %v9365
        %v9716 = vpop.f32.mrb[0].mxu0
        %v9717 = vadd.f32 0.0, %v9716
        %v9718 = vpop.f32.mrb[0].mxu0
        %v9719 = vpop.f32.mrb[0].mxu0
        %v9720 = vadd.f32 0.0, %v9719
        %v9721 = vpop.f32.mrb[0].mxu0
        %9722 = vmatprep.mubr.bf16.mxu0 %v9369
        %9723 = vmatmul.mubr.bf16.gmra.mrb[0].mxu0 %v9368
        %v9724 = vpop.f32.mrb[0].mxu0
        %v9725 = vadd.f32 0.0, %v9724
        %v9726 = vpop.f32.mrb[0].mxu0
        %v9727 = vpop.f32.mrb[0].mxu0
        %v9728 = vadd.f32 0.0, %v9727
        %v9729 = vpop.f32.mrb[0].mxu0
        %9730 = vmatprep.mubr.bf16.mxu0 %v9372
        %9731 = vmatmul.mubr.bf16.gmra.mrb[0].mxu0 %v9371
        %v9732 = vpop.f32.mrb[0].mxu0
        %v9733 = vadd.f32 0.0, %v9732
        %v9734 = vpop.f32.mrb[0].mxu0
        %v9735 = vpop.f32.mrb[0].mxu0
        %v9736 = vadd.f32 0.0, %v9735
        %v9737 = vpop.f32.mrb[0].mxu0
        %9738 = vmatprep.mubr.bf16.mxu0 %v9375
        %9739 = vmatmul.mubr.bf16.gmra.mrb[0].mxu0 %v9374
        %v9740 = vpop.f32.mrb[0].mxu0
        %v9741 = vadd.f32 0.0, %v9740
        %v9742 = vpop.f32.mrb[0].mxu0
        %v9743 = vpop.f32.mrb[0].mxu0
        %v9744 = vadd.f32 0.0, %v9743
        %v9745 = vpop.f32.mrb[0].mxu0
        %9746 = vdwg.mxu0
        %9747 = vmatprep.subr.bf16.mxu0 0
        %9748 = vmatpush1.bf16.msra.mxu0 %v9538
        %9749 = vmatprep.subr.bf16.mxu0 0
        %9750 = vmatpush1.bf16.msra.mxu0 %v9539
        %9751 = vmatprep.subr.bf16.mxu0 0
        %9752 = vmatpush1.bf16.msra.mxu0 %v9540
        %9753 = vmatprep.subr.bf16.mxu0 0
        %9754 = vmatpush1.bf16.msra.mxu0 %v9541
        %9755 = vmatprep.subr.bf16.mxu0 0
        %9756 = vmatpush1.bf16.msra.mxu0 %v9542
        %9757 = vmatprep.subr.bf16.mxu0 0
        %9758 = vmatpush1.bf16.msra.mxu0 %v9543
        %9759 = vmatprep.subr.bf16.mxu0 0
        %9760 = vmatpush1.bf16.msra.mxu0 %v9544
        %9761 = vmatprep.subr.bf16.mxu0 0
        %9762 = vmatpush1.bf16.msra.mxu0 %v9545
        %9763 = vmatprep.subr.bf16.mxu0 0
        %9764 = vmatpush1.bf16.msra.mxu0 0
        %9765 = vmatprep.subr.bf16.mxu0 0
        %9766 = vmatpush1.bf16.msra.mxu0 0
        %9767 = vmatprep.subr.bf16.mxu0 0
        %9768 = vmatpush1.bf16.msra.mxu0 0
        %9769 = vmatprep.subr.bf16.mxu0 0
        %9770 = vmatpush1.bf16.msra.mxu0 0
        %9771 = vmatprep.subr.bf16.mxu0 0
        %9772 = vmatpush1.bf16.msra.mxu0 0
        %9773 = vmatprep.subr.bf16.mxu0 0
        %9774 = vmatpush1.bf16.msra.mxu0 0
        %9775 = vmatprep.subr.bf16.mxu0 0
        %9776 = vmatpush1.bf16.msra.mxu0 0
        %9777 = vmatprep.subr.bf16.mxu0 0
        %9778 = vmatpush1.bf16.msra.mxu0 0
        %9779 = vmatprep.mubr.bf16.mxu0 0
        %9780 = vmatmul.mubr.bf16.gmra.mrb[0].mxu0 %v9325
        %v9781 = vpop.f32.mrb[0].mxu0
        %v9782 = vadd.f32 %v9605, %v9781
        %v9783 = vpop.f32.mrb[0].mxu0
        %v9784 = vpop.f32.mrb[0].mxu0
        %v9785 = vadd.f32 %v9608, %v9784
        %v9786 = vpop.f32.mrb[0].mxu0
        %9787 = vmatprep.mubr.bf16.mxu0 0
        %9788 = vmatmul.mubr.bf16.gmra.mrb[0].mxu0 %v9328
        %v9789 = vpop.f32.mrb[0].mxu0
        %v9790 = vadd.f32 %v9613, %v9789
        %v9791 = vpop.f32.mrb[0].mxu0
        %v9792 = vpop.f32.mrb[0].mxu0
        %v9793 = vadd.f32 %v9616, %v9792
        %v9794 = vpop.f32.mrb[0].mxu0
        %9795 = vmatprep.mubr.bf16.mxu0 0
        %9796 = vmatmul.mubr.bf16.gmra.mrb[0].mxu0 %v9331
        %v9797 = vpop.f32.mrb[0].mxu0
        %v9798 = vadd.f32 %v9621, %v9797
        %v9799 = vpop.f32.mrb[0].mxu0
        %v9800 = vpop.f32.mrb[0].mxu0
        %v9801 = vadd.f32 %v9624, %v9800
        %v9802 = vpop.f32.mrb[0].mxu0
        %9803 = vmatprep.mubr.bf16.mxu0 0
        %9804 = vmatmul.mubr.bf16.gmra.mrb[0].mxu0 %v9334
        %v9805 = vpop.f32.mrb[0].mxu0
        %v9806 = vadd.f32 %v9629, %v9805
        %v9807 = vpop.f32.mrb[0].mxu0
        %v9808 = vpop.f32.mrb[0].mxu0
        %v9809 = vadd.f32 %v9632, %v9808
        %v9810 = vpop.f32.mrb[0].mxu0
        %9811 = vmatprep.mubr.bf16.mxu0 0
        %9812 = vmatmul.mubr.bf16.gmra.mrb[0].mxu0 %v9337
        %v9813 = vpop.f32.mrb[0].mxu0
        %v9814 = vadd.f32 %v9637, %v9813
        %v9815 = vpop.f32.mrb[0].mxu0
        %v9816 = vpop.f32.mrb[0].mxu0
        %v9817 = vadd.f32 %v9640, %v9816
        %v9818 = vpop.f32.mrb[0].mxu0
        %9819 = vmatprep.mubr.bf16.mxu0 0
        %9820 = vmatmul.mubr.bf16.gmra.mrb[0].mxu0 %v9340
        %v9821 = vpop.f32.mrb[0].mxu0
        %v9822 = vadd.f32 %v9645, %v9821
        %v9823 = vpop.f32.mrb[0].mxu0
        %v9824 = vpop.f32.mrb[0].mxu0
        %v9825 = vadd.f32 %v9648, %v9824
        %v9826 = vpop.f32.mrb[0].mxu0
        %9827 = vmatprep.mubr.bf16.mxu0 0
        %9828 = vmatmul.mubr.bf16.gmra.mrb[0].mxu0 %v9343
        %v9829 = vpop.f32.mrb[0].mxu0
        %v9830 = vadd.f32 %v9653, %v9829
        %v9831 = vpop.f32.mrb[0].mxu0
        %v9832 = vpop.f32.mrb[0].mxu0
        %v9833 = vadd.f32 %v9656, %v9832
        %v9834 = vpop.f32.mrb[0].mxu0
        %9835 = vmatprep.mubr.bf16.mxu0 0
        %9836 = vmatmul.mubr.bf16.gmra.mrb[0].mxu0 %v9346
        %v9837 = vpop.f32.mrb[0].mxu0
        %v9838 = vadd.f32 %v9661, %v9837
        %v9839 = vpop.f32.mrb[0].mxu0
        %v9840 = vpop.f32.mrb[0].mxu0
        %v9841 = vadd.f32 %v9664, %v9840
        %v9842 = vpop.f32.mrb[0].mxu0
        %9843 = vmatprep.mubr.bf16.mxu0 0
        %9844 = vmatmul.mubr.bf16.gmra.mrb[0].mxu0 %v9349
        %v9845 = vpop.f32.mrb[0].mxu0
        %v9846 = vadd.f32 %v9669, %v9845
        %v9847 = vpop.f32.mrb[0].mxu0
        %v9848 = vpop.f32.mrb[0].mxu0
        %v9849 = vadd.f32 %v9672, %v9848
        %v9850 = vpop.f32.mrb[0].mxu0
        %9851 = vmatprep.mubr.bf16.mxu0 0
        %9852 = vmatmul.mubr.bf16.gmra.mrb[0].mxu0 %v9352
        %v9853 = vpop.f32.mrb[0].mxu0
        %v9854 = vadd.f32 %v9677, %v9853
        %v9855 = vpop.f32.mrb[0].mxu0
        %v9856 = vpop.f32.mrb[0].mxu0
        %v9857 = vadd.f32 %v9680, %v9856
        %v9858 = vpop.f32.mrb[0].mxu0
        %9859 = vmatprep.mubr.bf16.mxu0 0
        %9860 = vmatmul.mubr.bf16.gmra.mrb[0].mxu0 %v9355
        %v9861 = vpop.f32.mrb[0].mxu0
        %v9862 = vadd.f32 %v9685, %v9861
        %v9863 = vpop.f32.mrb[0].mxu0
        %v9864 = vpop.f32.mrb[0].mxu0
        %v9865 = vadd.f32 %v9688, %v9864
        %v9866 = vpop.f32.mrb[0].mxu0
        %9867 = vmatprep.mubr.bf16.mxu0 0
        %9868 = vmatmul.mubr.bf16.gmra.mrb[0].mxu0 %v9358
        %v9869 = vpop.f32.mrb[0].mxu0
        %v9870 = vadd.f32 %v9693, %v9869
        %v9871 = vpop.f32.mrb[0].mxu0
        %v9872 = vpop.f32.mrb[0].mxu0
        %v9873 = vadd.f32 %v9696, %v9872
        %v9874 = vpop.f32.mrb[0].mxu0
        %9875 = vmatprep.mubr.bf16.mxu0 0
        %9876 = vmatmul.mubr.bf16.gmra.mrb[0].mxu0 %v9361
        %v9877 = vpop.f32.mrb[0].mxu0
        %v9878 = vadd.f32 %v9701, %v9877
        %v9879 = vpop.f32.mrb[0].mxu0
        %v9880 = vpop.f32.mrb[0].mxu0
        %v9881 = vadd.f32 %v9704, %v9880
        %v9882 = vpop.f32.mrb[0].mxu0
        %9883 = vmatprep.mubr.bf16.mxu0 0
        %9884 = vmatmul.mubr.bf16.gmra.mrb[0].mxu0 %v9364
        %v9885 = vpop.f32.mrb[0].mxu0
        %v9886 = vadd.f32 %v9709, %v9885
        %v9887 = vpop.f32.mrb[0].mxu0
        %v9888 = vpop.f32.mrb[0].mxu0
        %v9889 = vadd.f32 %v9712, %v9888
        %v9890 = vpop.f32.mrb[0].mxu0
        %9891 = vmatprep.mubr.bf16.mxu0 0
        %9892 = vmatmul.mubr.bf16.gmra.mrb[0].mxu0 %v9367
        %v9893 = vpop.f32.mrb[0].mxu0
        %v9894 = vadd.f32 %v9717, %v9893
        %v9895 = vpop.f32.mrb[0].mxu0
        %v9896 = vpop.f32.mrb[0].mxu0
        %v9897 = vadd.f32 %v9720, %v9896
        %v9898 = vpop.f32.mrb[0].mxu0
        %9899 = vmatprep.mubr.bf16.mxu0 0
        %9900 = vmatmul.mubr.bf16.gmra.mrb[0].mxu0 %v9370
        %v9901 = vpop.f32.mrb[0].mxu0
        %v9902 = vadd.f32 %v9725, %v9901
        %v9903 = vpop.f32.mrb[0].mxu0
        %v9904 = vpop.f32.mrb[0].mxu0
        %v9905 = vadd.f32 %v9728, %v9904
        %v9906 = vpop.f32.mrb[0].mxu0
        %9907 = vmatprep.mubr.bf16.mxu0 0
        %9908 = vmatmul.mubr.bf16.gmra.mrb[0].mxu0 %v9373
        %v9909 = vpop.f32.mrb[0].mxu0
        %v9910 = vadd.f32 %v9733, %v9909
        %v9911 = vpop.f32.mrb[0].mxu0
        %v9912 = vpop.f32.mrb[0].mxu0
        %v9913 = vadd.f32 %v9736, %v9912
        %v9914 = vpop.f32.mrb[0].mxu0
        %9915 = vmatprep.mubr.bf16.mxu0 0
        %9916 = vmatmul.mubr.bf16.gmra.mrb[0].mxu0 %v9376
        %v9917 = vpop.f32.mrb[0].mxu0
        %v9918 = vadd.f32 %v9741, %v9917
        %v9919 = vpop.f32.mrb[0].mxu0
        %v9920 = vpop.f32.mrb[0].mxu0
        %v9921 = vadd.f32 %v9744, %v9920
        %v9922 = vpop.f32.mrb[0].mxu0
        %9923 = vdwg.mxu0
        %v9924 = vadd.f32 %v8620, %v9782
        %v9925 = vadd.f32 %v8623, %v9785
        %v9926 = vadd.f32 %v8628, %v9790
        %v9927 = vadd.f32 %v8631, %v9793
        %v9928 = vadd.f32 %v8636, %v9798
        %v9929 = vadd.f32 %v8639, %v9801
        %v9930 = vadd.f32 %v8644, %v9806
        %v9931 = vadd.f32 %v8647, %v9809
        %v9932 = vadd.f32 %v8652, %v9814
        %v9933 = vadd.f32 %v8655, %v9817
        %v9934 = vadd.f32 %v8660, %v9822
        %v9935 = vadd.f32 %v8663, %v9825
        %v9936 = vadd.f32 %v8668, %v9830
        %v9937 = vadd.f32 %v8671, %v9833
        %v9938 = vadd.f32 %v8676, %v9838
        %v9939 = vadd.f32 %v8679, %v9841
        %v9940 = vadd.f32 %v8684, %v9846
        %v9941 = vadd.f32 %v8687, %v9849
        %v9942 = vadd.f32 %v8692, %v9854
        %v9943 = vadd.f32 %v8695, %v9857
        %v9944 = vadd.f32 %v8700, %v9862
        %v9945 = vadd.f32 %v8703, %v9865
        %v9946 = vadd.f32 %v8708, %v9870
        %v9947 = vadd.f32 %v8711, %v9873
        %v9948 = vadd.f32 %v8716, %v9878
        %v9949 = vadd.f32 %v8719, %v9881
        %v9950 = vadd.f32 %v8724, %v9886
        %v9951 = vadd.f32 %v8727, %v9889
        %v9952 = vadd.f32 %v8732, %v9894
        %v9953 = vadd.f32 %v8735, %v9897
        %v9954 = vadd.f32 %v8740, %v9902
        %v9955 = vadd.f32 %v8743, %v9905
        %v9956 = vadd.f32 %v8748, %v9910
        %v9957 = vadd.f32 %v8751, %v9913
        %v9958 = vadd.f32 %v8756, %v9918
        %v9959 = vadd.f32 %v8759, %v9921
        %v9960 = vld [vmem:[#allocation26] sm:$0x1]
        %v9962 = vlaneseq
        %v9963 = vshrl.u32 %v9962, 7
        %v9964 = vsub.s32 0, %v9963
        %v9965 = vrot.slane %v9960, %v9964
        %v9967 = vadd.f32 %v9924, %v9965
        %v9968 = vadd.f32 %v9925, %v9965
        %v9969 = vadd.f32 %v9926, %v9965
        %v9970 = vadd.f32 %v9927, %v9965
        %v9971 = vadd.f32 %v9928, %v9965
        %v9972 = vadd.f32 %v9929, %v9965
        %v9973 = vadd.f32 %v9930, %v9965
        %v9974 = vadd.f32 %v9931, %v9965
        %v9975 = vadd.f32 %v9932, %v9965
        %v9976 = vadd.f32 %v9933, %v9965
        %v9977 = vadd.f32 %v9934, %v9965
        %v9978 = vadd.f32 %v9935, %v9965
        %v9979 = vadd.f32 %v9936, %v9965
        %v9980 = vadd.f32 %v9937, %v9965
        %v9981 = vadd.f32 %v9938, %v9965
        %v9982 = vadd.f32 %v9939, %v9965
        %v9983 = vadd.f32 %v9940, %v9965
        %v9984 = vadd.f32 %v9941, %v9965
        %v9985 = vadd.f32 %v9942, %v9965
        %v9986 = vadd.f32 %v9943, %v9965
        %v9987 = vadd.f32 %v9944, %v9965
        %v9988 = vadd.f32 %v9945, %v9965
        %v9989 = vadd.f32 %v9946, %v9965
        %v9990 = vadd.f32 %v9947, %v9965
        %v9991 = vadd.f32 %v9948, %v9965
        %v9992 = vadd.f32 %v9949, %v9965
        %v9993 = vadd.f32 %v9950, %v9965
        %v9994 = vadd.f32 %v9951, %v9965
        %v9995 = vadd.f32 %v9952, %v9965
        %v9996 = vadd.f32 %v9953, %v9965
        %v9997 = vadd.f32 %v9954, %v9965
        %v9998 = vadd.f32 %v9955, %v9965
        %v9999 = vadd.f32 %v9956, %v9965
        %v10000 = vadd.f32 %v9957, %v9965
        %v10001 = vadd.f32 %v9958, %v9965
        %v10002 = vadd.f32 %v9959, %v9965
        %v10003 = vld [vmem:[%s648 + $0xc] sm:$0xf]
        %v10004 = vld [vmem:[%s648 + $0x10] sm:$0xf]
        %v10005 = vld [vmem:[%s648 + $0x14] sm:$0xf]
        %v10006 = vld [vmem:[%s648 + $0x18] sm:$0xf]
        %v10007 = vld [vmem:[%s648 + $0x1c] sm:$0xf]
        %v10008 = vld [vmem:[%s648 + $0x20] sm:$0xf]
        %v10009 = vld [vmem:[%s648 + $0x24] sm:$0xf]
        %v10010 = vld [vmem:[%s648 + $0x28] sm:$0xf]
        %v10011 = vld [vmem:[%s648 + $0x2c] sm:$0xf]
        %v10012 = vld [vmem:[%s648 + $0x30] sm:$0xf]
        %v10013 = vld [vmem:[%s648 + $0x34] sm:$0xf]
        %v10014 = vld [vmem:[%s648 + $0x38] sm:$0xf]
        %v10015 = vld [vmem:[%s648 + $0x3c] sm:$0xf]
        %v10016 = vld [vmem:[%s648 + $0x40] sm:$0xf]
        %v10017 = vld [vmem:[%s648 + $0x44] sm:$0xf]
        %v10018 = vld [vmem:[%s648 + $0x48] sm:$0xf]
        %v10019 = vld [vmem:[%s648 + $0x4c] sm:$0xf]
        %v10020 = vld [vmem:[%s648 + $0x50] sm:$0xf]
        %v10021 = vld [vmem:[%s648 + $0x54] sm:$0xf]
        %v10022 = vld [vmem:[%s648 + $0x58] sm:$0xf]
        %v10023 = vld [vmem:[%s648 + $0x5c] sm:$0xf]
        %v10024 = vld [vmem:[%s648 + $0x60] sm:$0xf]
        %v10025 = vld [vmem:[%s648 + $0x64] sm:$0xf]
        %v10026 = vld [vmem:[%s648 + $0x68] sm:$0xf]
        %v10027 = vld [vmem:[%s648 + $0x6c] sm:$0xf]
        %v10028 = vld [vmem:[%s648 + $0x70] sm:$0xf]
        %v10029 = vld [vmem:[%s648 + $0x74] sm:$0xf]
        %v10030 = vld [vmem:[%s648 + $0x78] sm:$0xf]
        %v10031 = vld [vmem:[%s648 + $0x7c] sm:$0xf]
        %v10032 = vld [vmem:[%s648 + $0x80] sm:$0xf]
        %v10033 = vld [vmem:[%s648 + $0x84] sm:$0xf]
        %v10034 = vld [vmem:[%s648 + $0x88] sm:$0xf]
        %v10035 = vld [vmem:[%s648 + $0x8c] sm:$0xf]
        %v10036 = vld [vmem:[%s648 + $0x90] sm:$0xf]
        %v10037 = vld [vmem:[%s648 + $0x94] sm:$0xf]
        %v10038 = vld [vmem:[%s648 + $0x98] sm:$0xf]
        %v10039 = vld [vmem:[#allocation28] sm:$0xf]
        %v10040 = vld [vmem:[#allocation28 + $0x4] sm:$0xf]
        %v10041 = vld [vmem:[#allocation28 + $0x8] sm:$0xf]
        %v10042 = vld [vmem:[#allocation28 + $0xc] sm:$0xf]
        %v10043 = vld [vmem:[#allocation28 + $0x10] sm:$0xf]
        %v10044 = vld [vmem:[#allocation28 + $0x14] sm:$0xf]
        %v10045 = vld [vmem:[#allocation28 + $0x18] sm:$0xf]
        %v10046 = vld [vmem:[#allocation28 + $0x1c] sm:$0xf]
        %v10047 = vld [vmem:[#allocation28 + $0x20] sm:$0xf]
        %v10048 = vld [vmem:[#allocation28 + $0x24] sm:$0xf]
        %v10049 = vld [vmem:[#allocation28 + $0x28] sm:$0xf]
        %v10050 = vld [vmem:[#allocation28 + $0x2c] sm:$0xf]
        %v10051 = vld [vmem:[#allocation28 + $0x30] sm:$0xf]
        %v10052 = vld [vmem:[#allocation28 + $0x34] sm:$0xf]
        %v10053 = vld [vmem:[#allocation28 + $0x38] sm:$0xf]
        %v10054 = vld [vmem:[#allocation28 + $0x3c] sm:$0xf]
        %v10055 = vld [vmem:[#allocation29] sm:$0x1]
        %v10057 = vlaneseq
        %v10058 = vshrl.u32 %v10057, 7
        %v10059 = vsub.s32 0, %v10058
        %v10060 = vrot.slane %v10055, %v10059
        %v10098 = vunpack.c.l.b16 %v10003
        %v10099 = vunpack.c.l.b16 %v10004
        %v10100 = vunpack.c.l.b16 %v10005
        %v10101 = vunpack.c.l.b16 %v10006
        %v10102 = vunpack.c.l.b16 %v10007
        %v10103 = vunpack.c.l.b16 %v10008
        %v10104 = vunpack.c.l.b16 %v10009
        %v10105 = vunpack.c.l.b16 %v10010
        %v10106 = vunpack.c.l.b16 %v10011
        %v10107 = vunpack.c.l.b16 %v10012
        %v10108 = vunpack.c.l.b16 %v10013
        %v10109 = vunpack.c.l.b16 %v10014
        %v10110 = vunpack.c.l.b16 %v10015
        %v10111 = vunpack.c.l.b16 %v10016
        %v10112 = vunpack.c.l.b16 %v10017
        %v10113 = vunpack.c.l.b16 %v10018
        %v10114 = vunpack.c.l.b16 %v10019
        %v10115 = vunpack.c.l.b16 %v10020
        %v10116 = vunpack.c.l.b16 %v10021
        %v10117 = vunpack.c.l.b16 %v10022
        %v10118 = vunpack.c.l.b16 %v10023
        %v10119 = vunpack.c.l.b16 %v10024
        %v10120 = vunpack.c.l.b16 %v10025
        %v10121 = vunpack.c.l.b16 %v10026
        %v10122 = vunpack.c.l.b16 %v10027
        %v10123 = vunpack.c.l.b16 %v10028
        %v10124 = vunpack.c.l.b16 %v10029
        %v10125 = vunpack.c.l.b16 %v10030
        %v10126 = vunpack.c.l.b16 %v10031
        %v10127 = vunpack.c.l.b16 %v10032
        %v10128 = vunpack.c.l.b16 %v10033
        %v10129 = vunpack.c.l.b16 %v10034
        %v10130 = vunpack.c.l.b16 %v10035
        %v10131 = vunpack.c.l.b16 %v10036
        %v10132 = vunpack.c.l.b16 %v10037
        %v10133 = vunpack.c.l.b16 %v10038
        %v10134 = vpack.c.b16 %v10099, %v10098
        %v10135 = vpack.c.b16 %v10101, %v10100
        %v10136 = vpack.c.b16 %v10103, %v10102
        %v10137 = vpack.c.b16 %v10105, %v10104
        %v10138 = vpack.c.b16 %v10107, %v10106
        %v10139 = vpack.c.b16 %v10109, %v10108
        %v10140 = vpack.c.b16 %v10111, %v10110
        %v10141 = vpack.c.b16 %v10113, %v10112
        %v10142 = vpack.c.b16 %v10115, %v10114
        %v10143 = vpack.c.b16 %v10117, %v10116
        %v10144 = vpack.c.b16 %v10119, %v10118
        %v10145 = vpack.c.b16 %v10121, %v10120
        %v10146 = vpack.c.b16 %v10123, %v10122
        %v10147 = vpack.c.b16 %v10125, %v10124
        %v10148 = vpack.c.b16 %v10127, %v10126
        %v10149 = vpack.c.b16 %v10129, %v10128
        %v10150 = vpack.c.b16 %v10131, %v10130
        %v10151 = vpack.c.b16 %v10133, %v10132
        %v10186 = vunpack.c.l.b16 %v10039
        %v10187 = vunpack.c.l.b16 %v10040
        %v10188 = vunpack.c.l.b16 %v10041
        %v10189 = vunpack.c.l.b16 %v10042
        %v10190 = vunpack.c.l.b16 %v10043
        %v10191 = vunpack.c.l.b16 %v10044
        %v10192 = vunpack.c.l.b16 %v10045
        %v10193 = vunpack.c.l.b16 %v10046
        %v10194 = vunpack.c.l.b16 %v10047
        %v10195 = vunpack.c.l.b16 %v10048
        %v10196 = vunpack.c.l.b16 %v10049
        %v10197 = vunpack.c.l.b16 %v10050
        %v10198 = vunpack.c.l.b16 %v10051
        %v10199 = vunpack.c.l.b16 %v10052
        %v10200 = vunpack.c.l.b16 %v10053
        %v10201 = vunpack.c.l.b16 %v10054
        %v10202 = vpack.c.b16 %v10187, %v10186
        %v10203 = vpack.c.b16 %v10189, %v10188
        %v10204 = vpack.c.b16 %v10191, %v10190
        %v10205 = vpack.c.b16 %v10193, %v10192
        %v10206 = vpack.c.b16 %v10195, %v10194
        %v10207 = vpack.c.b16 %v10197, %v10196
        %v10208 = vpack.c.b16 %v10199, %v10198
        %v10209 = vpack.c.b16 %v10201, %v10200
        %10218 = vmatprep.subr.bf16.mxu0 0
        %10219 = vmatpush1.bf16.msra.mxu0 %v10202
        %10220 = vmatprep.subr.bf16.mxu0 0
        %10221 = vmatpush1.bf16.msra.mxu0 %v10203
        %10222 = vmatprep.subr.bf16.mxu0 0
        %10223 = vmatpush1.bf16.msra.mxu0 %v10204
        %10224 = vmatprep.subr.bf16.mxu0 0
        %10225 = vmatpush1.bf16.msra.mxu0 %v10205
        %10226 = vmatprep.subr.bf16.mxu0 0
        %10227 = vmatpush1.bf16.msra.mxu0 %v10206
        %10228 = vmatprep.subr.bf16.mxu0 0
        %10229 = vmatpush1.bf16.msra.mxu0 %v10207
        %10230 = vmatprep.subr.bf16.mxu0 0
        %10231 = vmatpush1.bf16.msra.mxu0 %v10208
        %10232 = vmatprep.subr.bf16.mxu0 0
        %10233 = vmatpush1.bf16.msra.mxu0 %v10209
        %10234 = vmatprep.subr.bf16.mxu0 0
        %10235 = vmatpush1.bf16.msra.mxu0 0
        %10236 = vmatprep.subr.bf16.mxu0 0
        %10237 = vmatpush1.bf16.msra.mxu0 0
        %10238 = vmatprep.subr.bf16.mxu0 0
        %10239 = vmatpush1.bf16.msra.mxu0 0
        %10240 = vmatprep.subr.bf16.mxu0 0
        %10241 = vmatpush1.bf16.msra.mxu0 0
        %10242 = vmatprep.subr.bf16.mxu0 0
        %10243 = vmatpush1.bf16.msra.mxu0 0
        %10244 = vmatprep.subr.bf16.mxu0 0
        %10245 = vmatpush1.bf16.msra.mxu0 0
        %10246 = vmatprep.subr.bf16.mxu0 0
        %10247 = vmatpush1.bf16.msra.mxu0 0
        %10248 = vmatprep.subr.bf16.mxu0 0
        %10249 = vmatpush1.bf16.msra.mxu0 0
        %10250 = vmatprep.mubr.bf16.mxu0 0
        %10251 = vmatmul.mubr.bf16.gmra.mrb[0].mxu0 %v10134
        %v10252 = vpop.f32.mrb[0].mxu0
        %v10253 = vadd.f32 %v10060, %v10252
        %v10254 = vpop.f32.mrb[0].mxu0
        %v10255 = vpop.f32.mrb[0].mxu0
        %v10256 = vadd.f32 %v10060, %v10255
        %v10257 = vpop.f32.mrb[0].mxu0
        %10258 = vmatprep.mubr.bf16.mxu0 0
        %10259 = vmatmul.mubr.bf16.gmra.mrb[0].mxu0 %v10135
        %v10260 = vpop.f32.mrb[0].mxu0
        %v10261 = vadd.f32 %v10060, %v10260
        %v10262 = vpop.f32.mrb[0].mxu0
        %v10263 = vpop.f32.mrb[0].mxu0
        %v10264 = vadd.f32 %v10060, %v10263
        %v10265 = vpop.f32.mrb[0].mxu0
        %10266 = vmatprep.mubr.bf16.mxu0 0
        %10267 = vmatmul.mubr.bf16.gmra.mrb[0].mxu0 %v10136
        %v10268 = vpop.f32.mrb[0].mxu0
        %v10269 = vadd.f32 %v10060, %v10268
        %v10270 = vpop.f32.mrb[0].mxu0
        %v10271 = vpop.f32.mrb[0].mxu0
        %v10272 = vadd.f32 %v10060, %v10271
        %v10273 = vpop.f32.mrb[0].mxu0
        %10274 = vmatprep.mubr.bf16.mxu0 0
        %10275 = vmatmul.mubr.bf16.gmra.mrb[0].mxu0 %v10137
        %v10276 = vpop.f32.mrb[0].mxu0
        %v10277 = vadd.f32 %v10060, %v10276
        %v10278 = vpop.f32.mrb[0].mxu0
        %v10279 = vpop.f32.mrb[0].mxu0
        %v10280 = vadd.f32 %v10060, %v10279
        %v10281 = vpop.f32.mrb[0].mxu0
        %10282 = vmatprep.mubr.bf16.mxu0 0
        %10283 = vmatmul.mubr.bf16.gmra.mrb[0].mxu0 %v10138
        %v10284 = vpop.f32.mrb[0].mxu0
        %v10285 = vadd.f32 %v10060, %v10284
        %v10286 = vpop.f32.mrb[0].mxu0
        %v10287 = vpop.f32.mrb[0].mxu0
        %v10288 = vadd.f32 %v10060, %v10287
        %v10289 = vpop.f32.mrb[0].mxu0
        %10290 = vmatprep.mubr.bf16.mxu0 0
        %10291 = vmatmul.mubr.bf16.gmra.mrb[0].mxu0 %v10139
        %v10292 = vpop.f32.mrb[0].mxu0
        %v10293 = vadd.f32 %v10060, %v10292
        %v10294 = vpop.f32.mrb[0].mxu0
        %v10295 = vpop.f32.mrb[0].mxu0
        %v10296 = vadd.f32 %v10060, %v10295
        %v10297 = vpop.f32.mrb[0].mxu0
        %10298 = vmatprep.mubr.bf16.mxu0 0
        %10299 = vmatmul.mubr.bf16.gmra.mrb[0].mxu0 %v10140
        %v10300 = vpop.f32.mrb[0].mxu0
        %v10301 = vadd.f32 %v10060, %v10300
        %v10302 = vpop.f32.mrb[0].mxu0
        %v10303 = vpop.f32.mrb[0].mxu0
        %v10304 = vadd.f32 %v10060, %v10303
        %v10305 = vpop.f32.mrb[0].mxu0
        %10306 = vmatprep.mubr.bf16.mxu0 0
        %10307 = vmatmul.mubr.bf16.gmra.mrb[0].mxu0 %v10141
        %v10308 = vpop.f32.mrb[0].mxu0
        %v10309 = vadd.f32 %v10060, %v10308
        %v10310 = vpop.f32.mrb[0].mxu0
        %v10311 = vpop.f32.mrb[0].mxu0
        %v10312 = vadd.f32 %v10060, %v10311
        %v10313 = vpop.f32.mrb[0].mxu0
        %10314 = vmatprep.mubr.bf16.mxu0 0
        %10315 = vmatmul.mubr.bf16.gmra.mrb[0].mxu0 %v10142
        %v10316 = vpop.f32.mrb[0].mxu0
        %v10317 = vadd.f32 %v10060, %v10316
        %v10318 = vpop.f32.mrb[0].mxu0
        %v10319 = vpop.f32.mrb[0].mxu0
        %v10320 = vadd.f32 %v10060, %v10319
        %v10321 = vpop.f32.mrb[0].mxu0
        %10322 = vmatprep.mubr.bf16.mxu0 0
        %10323 = vmatmul.mubr.bf16.gmra.mrb[0].mxu0 %v10143
        %v10324 = vpop.f32.mrb[0].mxu0
        %v10325 = vadd.f32 %v10060, %v10324
        %v10326 = vpop.f32.mrb[0].mxu0
        %v10327 = vpop.f32.mrb[0].mxu0
        %v10328 = vadd.f32 %v10060, %v10327
        %v10329 = vpop.f32.mrb[0].mxu0
        %10330 = vmatprep.mubr.bf16.mxu0 0
        %10331 = vmatmul.mubr.bf16.gmra.mrb[0].mxu0 %v10144
        %v10332 = vpop.f32.mrb[0].mxu0
        %v10333 = vadd.f32 %v10060, %v10332
        %v10334 = vpop.f32.mrb[0].mxu0
        %v10335 = vpop.f32.mrb[0].mxu0
        %v10336 = vadd.f32 %v10060, %v10335
        %v10337 = vpop.f32.mrb[0].mxu0
        %10338 = vmatprep.mubr.bf16.mxu0 0
        %10339 = vmatmul.mubr.bf16.gmra.mrb[0].mxu0 %v10145
        %v10340 = vpop.f32.mrb[0].mxu0
        %v10341 = vadd.f32 %v10060, %v10340
        %v10342 = vpop.f32.mrb[0].mxu0
        %v10343 = vpop.f32.mrb[0].mxu0
        %v10344 = vadd.f32 %v10060, %v10343
        %v10345 = vpop.f32.mrb[0].mxu0
        %10346 = vmatprep.mubr.bf16.mxu0 0
        %10347 = vmatmul.mubr.bf16.gmra.mrb[0].mxu0 %v10146
        %v10348 = vpop.f32.mrb[0].mxu0
        %v10349 = vadd.f32 %v10060, %v10348
        %v10350 = vpop.f32.mrb[0].mxu0
        %v10351 = vpop.f32.mrb[0].mxu0
        %v10352 = vadd.f32 %v10060, %v10351
        %v10353 = vpop.f32.mrb[0].mxu0
        %10354 = vmatprep.mubr.bf16.mxu0 0
        %10355 = vmatmul.mubr.bf16.gmra.mrb[0].mxu0 %v10147
        %v10356 = vpop.f32.mrb[0].mxu0
        %v10357 = vadd.f32 %v10060, %v10356
        %v10358 = vpop.f32.mrb[0].mxu0
        %v10359 = vpop.f32.mrb[0].mxu0
        %v10360 = vadd.f32 %v10060, %v10359
        %v10361 = vpop.f32.mrb[0].mxu0
        %10362 = vmatprep.mubr.bf16.mxu0 0
        %10363 = vmatmul.mubr.bf16.gmra.mrb[0].mxu0 %v10148
        %v10364 = vpop.f32.mrb[0].mxu0
        %v10365 = vadd.f32 %v10060, %v10364
        %v10366 = vpop.f32.mrb[0].mxu0
        %v10367 = vpop.f32.mrb[0].mxu0
        %v10368 = vadd.f32 %v10060, %v10367
        %v10369 = vpop.f32.mrb[0].mxu0
        %10370 = vmatprep.mubr.bf16.mxu0 0
        %10371 = vmatmul.mubr.bf16.gmra.mrb[0].mxu0 %v10149
        %v10372 = vpop.f32.mrb[0].mxu0
        %v10373 = vadd.f32 %v10060, %v10372
        %v10374 = vpop.f32.mrb[0].mxu0
        %v10375 = vpop.f32.mrb[0].mxu0
        %v10376 = vadd.f32 %v10060, %v10375
        %v10377 = vpop.f32.mrb[0].mxu0
        %10378 = vmatprep.mubr.bf16.mxu0 0
        %10379 = vmatmul.mubr.bf16.gmra.mrb[0].mxu0 %v10150
        %v10380 = vpop.f32.mrb[0].mxu0
        %v10381 = vadd.f32 %v10060, %v10380
        %v10382 = vpop.f32.mrb[0].mxu0
        %v10383 = vpop.f32.mrb[0].mxu0
        %v10384 = vadd.f32 %v10060, %v10383
        %v10385 = vpop.f32.mrb[0].mxu0
        %10386 = vmatprep.mubr.bf16.mxu0 0
        %10387 = vmatmul.mubr.bf16.gmra.mrb[0].mxu0 %v10151
        %v10388 = vpop.f32.mrb[0].mxu0
        %v10389 = vadd.f32 %v10060, %v10388
        %v10390 = vpop.f32.mrb[0].mxu0
        %v10391 = vpop.f32.mrb[0].mxu0
        %v10392 = vadd.f32 %v10060, %v10391
        %v10393 = vpop.f32.mrb[0].mxu0
        %10394 = vdwg.mxu0
        %v10395 = vadd.f32 %v10253, %v9967
        %v10396 = vadd.f32 %v10256, %v9968
        %v10397 = vadd.f32 %v10261, %v9969
        %v10398 = vadd.f32 %v10264, %v9970
        %v10399 = vadd.f32 %v10269, %v9971
        %v10400 = vadd.f32 %v10272, %v9972
        %v10401 = vadd.f32 %v10277, %v9973
        %v10402 = vadd.f32 %v10280, %v9974
        %v10403 = vadd.f32 %v10285, %v9975
        %v10404 = vadd.f32 %v10288, %v9976
        %v10405 = vadd.f32 %v10293, %v9977
        %v10406 = vadd.f32 %v10296, %v9978
        %v10407 = vadd.f32 %v10301, %v9979
        %v10408 = vadd.f32 %v10304, %v9980
        %v10409 = vadd.f32 %v10309, %v9981
        %v10410 = vadd.f32 %v10312, %v9982
        %v10411 = vadd.f32 %v10317, %v9983
        %v10412 = vadd.f32 %v10320, %v9984
        %v10413 = vadd.f32 %v10325, %v9985
        %v10414 = vadd.f32 %v10328, %v9986
        %v10415 = vadd.f32 %v10333, %v9987
        %v10416 = vadd.f32 %v10336, %v9988
        %v10417 = vadd.f32 %v10341, %v9989
        %v10418 = vadd.f32 %v10344, %v9990
        %v10419 = vadd.f32 %v10349, %v9991
        %v10420 = vadd.f32 %v10352, %v9992
        %v10421 = vadd.f32 %v10357, %v9993
        %v10422 = vadd.f32 %v10360, %v9994
        %v10423 = vadd.f32 %v10365, %v9995
        %v10424 = vadd.f32 %v10368, %v9996
        %v10425 = vadd.f32 %v10373, %v9997
        %v10426 = vadd.f32 %v10376, %v9998
        %v10427 = vadd.f32 %v10381, %v9999
        %v10428 = vadd.f32 %v10384, %v10000
        %v10429 = vadd.f32 %v10389, %v10001
        %v10430 = vadd.f32 %v10392, %v10002
        %10431 = vst [vmem:[%s764] sm:$0xff] %v10395
        %10432 = vst [vmem:[%s764 + $0x8] sm:$0xff] %v10396
        %10433 = vst [vmem:[%s764 + $0x10] sm:$0xff] %v10397
        %10434 = vst [vmem:[%s764 + $0x18] sm:$0xff] %v10398
        %10435 = vst [vmem:[%s764 + $0x20] sm:$0xff] %v10399
        %10436 = vst [vmem:[%s764 + $0x28] sm:$0xff] %v10400
        %10437 = vst [vmem:[%s764 + $0x30] sm:$0xff] %v10401
        %10438 = vst [vmem:[%s764 + $0x38] sm:$0xff] %v10402
        %10439 = vst [vmem:[%s764 + $0x40] sm:$0xff] %v10403
        %10440 = vst [vmem:[%s764 + $0x48] sm:$0xff] %v10404
        %10441 = vst [vmem:[%s764 + $0x50] sm:$0xff] %v10405
        %10442 = vst [vmem:[%s764 + $0x58] sm:$0xff] %v10406
        %10443 = vst [vmem:[%s764 + $0x60] sm:$0xff] %v10407
        %10444 = vst [vmem:[%s764 + $0x68] sm:$0xff] %v10408
        %10445 = vst [vmem:[%s764 + $0x70] sm:$0xff] %v10409
        %10446 = vst [vmem:[%s764 + $0x78] sm:$0xff] %v10410
        %10447 = vst [vmem:[%s764 + $0x80] sm:$0xff] %v10411
        %10448 = vst [vmem:[%s764 + $0x88] sm:$0xff] %v10412
        %10449 = vst [vmem:[%s764 + $0x90] sm:$0xff] %v10413
        %10450 = vst [vmem:[%s764 + $0x98] sm:$0xff] %v10414
        %10451 = vst [vmem:[%s764 + $0xa0] sm:$0xff] %v10415
        %10452 = vst [vmem:[%s764 + $0xa8] sm:$0xff] %v10416
        %10453 = vst [vmem:[%s764 + $0xb0] sm:$0xff] %v10417
        %10454 = vst [vmem:[%s764 + $0xb8] sm:$0xff] %v10418
        %10455 = vst [vmem:[%s764 + $0xc0] sm:$0xff] %v10419
        %10456 = vst [vmem:[%s764 + $0xc8] sm:$0xff] %v10420
        %10457 = vst [vmem:[%s764 + $0xd0] sm:$0xff] %v10421
        %10458 = vst [vmem:[%s764 + $0xd8] sm:$0xff] %v10422
        %10459 = vst [vmem:[%s764 + $0xe0] sm:$0xff] %v10423
        %10460 = vst [vmem:[%s764 + $0xe8] sm:$0xff] %v10424
        %10461 = vst [vmem:[%s764 + $0xf0] sm:$0xff] %v10425
        %10462 = vst [vmem:[%s764 + $0xf8] sm:$0xff] %v10426
        %10463 = vst [vmem:[%s764 + $0x100] sm:$0xff] %v10427
        %10464 = vst [vmem:[%s764 + $0x108] sm:$0xff] %v10428
        %10465 = vst [vmem:[%s764 + $0x110] sm:$0xff] %v10429
        %10466 = vst [vmem:[%s764 + $0x118] sm:$0xff] %v10430
        %s10467 = sand.u32 %s397, 1
        %s10468 = scalar_lea.sflag [#allocation7], %s10467
        %s10469 = sand.u32 %s397, 1
        %s10470 = smul.addr %s10469, 288
        %s10471 = scalar_lea.vmem [#allocation31], %s10470
        // Predicated region
        $region149: #{tpu_custom_call.1} parent=83 // pred_check
          %p10472 = pneg %p407
        $region150: #{tpu_custom_call.1} parent=83 // pred_check_branch
          %10474 = sbr.rel (%p10472) target = $region152
        $region151: #{tpu_custom_call.1} parent=83 // pred_region
          %s10476 = ssub.s32 4608, 4608
          %10477 = vsyncadd %s10468, %s10476
          %s10478 = smul.addr %s43, 36
          %s10479 = smul.addr %s10478, 128
          %s10480 = scalar_lea.hbm %s16, %s10479
          %s10481 = sshll.u32 %s10471, 4
          %s10482 = int_to_ptr.vmem [resolvable:$true] %s10481
          %10487 = dma.vmem_to_hbm [thread:$0]  %s10482, 4608, %s10480, %s10468, 128, 128, 8
        $region152: #{tpu_custom_call.1} parent=83 // pred_fallthru
          _
      $region84: #{tpu_custom_call.1} parent=5 // pred_fallthru
        _
      %p10488 = scmp.le.s32.totalorder 2, %s38
      // Predicated region
      $region153: #{tpu_custom_call.1} parent=5 // pred_check
        %p10489 = pneg %p10488
      $region154: #{tpu_custom_call.1} parent=5 // pred_check_branch
        %10491 = sbr.rel (%p10489) target = $region156
      $region155: #{tpu_custom_call.1} parent=5 // pred_region
        %s10492 = ssub.s32 %s38, 2
        // Predicated region
        $region157: #{tpu_custom_call.1} parent=155 // pred_check
          %p10493 = pneg %p413
        $region158: #{tpu_custom_call.1} parent=155 // pred_check_branch
          %10495 = sbr.rel (%p10493) target = $region160
        $region159: #{tpu_custom_call.1} parent=155 // pred_region
          %s10496 = sand.u32 %s398, 1
          %s10497 = scalar_lea.sflag [#allocation7], %s10496
          %s10498 = sand.u32 %s398, 1
          %s10499 = smul.addr %s10498, 288
          %s10500 = scalar_lea.vmem [#allocation31], %s10499
          %10501 = dma.done %s10497, 4608
        $region160: #{tpu_custom_call.1} parent=155 // pred_fallthru
          _
      $region156: #{tpu_custom_call.1} parent=5 // pred_fallthru
        _
    $region6: #{tpu_custom_call.1} parent=1 // loop_footer
      %s42 = sadd.s32 1, %s38
    $region7: #{tpu_custom_call.1} parent=1 // loop_footer_branch
      %37 = sbr.rel target = $region3
    $region8: #{tpu_custom_call.1} parent=1 // loop_exit
      _
    %10502 = vsyncpa [#allocation6], 1
    %s10503 = scalar_lea.sflag [#allocation6], 1
    %10504 = vsyncpa %s10503, 1
    %10505 = vsyncpa [#allocation9], 1
    %s10506 = scalar_lea.sflag [#allocation9], 1
    %10507 = vsyncpa %s10506, 1
    %10508 = vsyncpa [#allocation12], 1
    %10509 = vsyncpa [#allocation15], 1
    %10510 = vsyncpa [#allocation18], 1
    %10511 = vsyncpa [#allocation21], 1
    %10512 = vsyncpa [#allocation24], 1
    %10513 = vsyncpa [#allocation27], 1
    %10514 = vsyncpa [#allocation30], 1
    %10515 = vsyncpa [#allocation7], 1
    %s10516 = scalar_lea.sflag [#allocation7], 1
    %10517 = vsyncpa %s10516, 1

</llo_original>
